<compile_context>
chip_gen: v5e
topology: v5e:2x2
jax: 0.10.0
libtpu: 0.0.40
codegen_flags: <defaults>
</compile_context>

<pallas_src>
import functools

import jax
import jax.numpy as jnp
import numpy as np
from jax.experimental import pallas as pl
from jax.experimental.pallas import tpu as pltpu


# ----------------------------- Pallas kernels -----------------------------

def _fused_aspp_kernel(x_ref, w_ref, b_ref, pool_ref, o_ref, *,
                       TR, W, Cin, Cout, dils, max_d):
    """One (batch, row-tile) step of the fused ASPP forward.

    x_ref    : (1, TR + 2*max_d, W + 2*max_d, Cin)  bf16 halo'd input slab
    w_ref    : (27, Cin, Cout)  bf16 BN-folded conv weights
               (index = branch*9 + kh*3 + kw)
    b_ref    : (3, 1, Cout)     f32 BN-folded conv biases
    pool_ref : (1, 1, Cout)     f32 pooled + ReLU'd ASPPPooling value (per image)
    o_ref    : (1, TR, W, 4*Cout) f32 concatenated output
    """
    pieces = []
    for bi, d in enumerate(dils):
        acc = jnp.zeros((TR * W, Cout), jnp.float32)
        for kh in range(3):
            for kw in range(3):
                r0 = (max_d - d) + kh * d          # static tap offsets
                c0 = (max_d - d) + kw * d
                patch = x_ref[0, pl.ds(r0, TR), pl.ds(c0, W), :]
                acc = acc + jnp.dot(               # bf16 x bf16 -> f32 acc (MXU)
                    patch.reshape(TR * W, Cin),
                    w_ref[bi * 9 + kh * 3 + kw],
                    preferred_element_type=jnp.float32)
        pieces.append(jnp.maximum(acc + b_ref[bi], 0.0))       # conv + BN + ReLU
    # ASPPPooling branch: bilinear upsample from 1x1 == broadcast.
    pieces.append(jnp.broadcast_to(pool_ref[0], (TR * W, Cout)))
    out = jnp.concatenate(pieces, axis=-1)                     # (TR*W, 4*Cout)
    o_ref[...] = out.reshape(1, TR, W, 4 * Cout).astype(o_ref.dtype)


def _aspp_pool_prepass_kernel(x_ref, w_ref, b_ref, o_ref, *, H, W, Cin, Cout):
    """Global-avg-pool -> 1x1 conv -> folded BN -> ReLU, one image per step."""
    x = x_ref[0].astype(jnp.float32).reshape(H * W, Cin)
    mean = jnp.mean(x, axis=0, keepdims=True)                  # (1, Cin)
    y = jnp.dot(mean, w_ref[...], preferred_element_type=jnp.float32) + b_ref[...]
    o_ref[...] = jnp.maximum(y, 0.0).reshape(1, 1, Cout)


# ----------------------------- wrappers ------------------------------------

def aspp_pool_prepass(x_bf16, w_pool, b_pool):
    N, H, W, Cin = x_bf16.shape
    Cout = w_pool.shape[-1]
    kernel = functools.partial(_aspp_pool_prepass_kernel, H=H, W=W, Cin=Cin, Cout=Cout)
    return pl.pallas_call(
        kernel,
        out_shape=jax.ShapeDtypeStruct((N, 1, Cout), jnp.float32),
        grid_spec=pltpu.PrefetchScalarGridSpec(
            num_scalar_prefetch=0,
            grid=(N,),
            in_specs=[
                pl.BlockSpec((1, H, W, Cin), lambda n: (n, 0, 0, 0)),
                pl.BlockSpec((Cin, Cout), lambda n: (0, 0)),
                pl.BlockSpec((1, Cout), lambda n: (0, 0)),
            ],
            out_specs=pl.BlockSpec((1, 1, Cout), lambda n: (n, 0, 0)),
        ),
        compiler_params=pltpu.CompilerParams(dimension_semantics=("parallel",)),
    )(x_bf16, w_pool, b_pool)


def fused_aspp(x_bf16, w_all, b_all, pooled, dils, row_tile):
    N, H, W, Cin = x_bf16.shape
    Cout = w_all.shape[-1]
    max_d = max(dils)
    if H % row_tile != 0:
        row_tile = H                      # fall back to whole-image row tiles
    TR = row_tile
    R = H // TR
    TRh = TR + 2 * max_d
    Wp = W + 2 * max_d

    # Pad ONCE to the maximum dilation (shared by all branches) and materialize
    # halo'd row slabs (Blocked BlockSpecs cannot express overlapping windows,
    # so the 2*max_d halo rows are duplicated in HBM -- ~2*max_d/TR overhead,
    # fused with the pad by XLA).
    xp = jnp.pad(x_bf16, ((0, 0), (max_d, max_d), (max_d, max_d), (0, 0)))
    row_idx = jnp.arange(R)[:, None] * TR + jnp.arange(TRh)[None, :]
    x_tiles = xp[:, row_idx].reshape(N * R, TRh, Wp, Cin)

    kernel = functools.partial(_fused_aspp_kernel, TR=TR, W=W, Cin=Cin,
                               Cout=Cout, dils=tuple(dils), max_d=max_d)
    return pl.pallas_call(
        kernel,
        out_shape=jax.ShapeDtypeStruct((N, H, W, 4 * Cout), jnp.float32),
        grid_spec=pltpu.PrefetchScalarGridSpec(
            num_scalar_prefetch=0,
            grid=(N, R),
            in_specs=[
                pl.BlockSpec((1, TRh, Wp, Cin), lambda n, r: (n * R + r, 0, 0, 0)),
                pl.BlockSpec((27, Cin, Cout), lambda n, r: (0, 0, 0)),
                pl.BlockSpec((3, 1, Cout), lambda n, r: (0, 0, 0)),
                pl.BlockSpec((1, 1, Cout), lambda n, r: (n, 0, 0)),
            ],
            out_specs=pl.BlockSpec((1, TR, W, 4 * Cout), lambda n, r: (n, r, 0, 0)),
        ),
        compiler_params=pltpu.CompilerParams(
            dimension_semantics=("parallel", "parallel"),
            # Raise the scoped-VMEM limit above the 16/32 MiB defaults while
            # staying under v7x's 64 MiB physical VMEM.
            vmem_limit_bytes=48 * 1024 * 1024),
    )(x_tiles, w_all, b_all, pooled)


# ----------------------------- param setup (glue) --------------------------

def init_params(key, in_ch):
    cout = in_ch // 4
    ks = iter(jax.random.split(key, 32))

    def bn_params():
        return dict(
            gamma=1.0 + 0.1 * jax.random.normal(next(ks), (cout,), jnp.float32),
            beta=0.1 * jax.random.normal(next(ks), (cout,), jnp.float32),
            mean=0.1 * jax.random.normal(next(ks), (cout,), jnp.float32),
            var=0.5 + jnp.abs(jax.random.normal(next(ks), (cout,), jnp.float32)),
        )

    params = {}
    for i in range(1, 4):
        params[f"aspp_d{i}"] = dict(
            w=0.1 * jax.random.normal(next(ks), (3, 3, in_ch, cout), jnp.float32),
            b=0.1 * jax.random.normal(next(ks), (cout,), jnp.float32),
            bn=bn_params(),
        )
    params["aspp_d4"] = dict(
        w=0.1 * jax.random.normal(next(ks), (in_ch, cout), jnp.float32),
        bn=bn_params(),
    )
    return params


def fold_conv_bn(w, b, bn, eps=1e-5):
    scale = bn["gamma"] * jax.lax.rsqrt(bn["var"] + eps)
    return w * scale, (b - bn["mean"]) * scale + bn["beta"]


def fold_pool_bn(w, bn, eps=1e-5):
    scale = bn["gamma"] * jax.lax.rsqrt(bn["var"] + eps)
    return w * scale, bn["beta"] - bn["mean"] * scale   # 1x1 conv has no bias


def aspp_forward(x_nchw, params, dils, row_tile=8):
    x = jnp.transpose(x_nchw, (0, 2, 3, 1)).astype(jnp.bfloat16)   # NCHW -> NHWC
    # BN-fold + pack the three dilated-conv branches: (27, Cin, Cout) bf16.
    w_list, b_list = [], []
    for i in range(3):
        p = params[f"aspp_d{i + 1}"]
        w_f, b_f = fold_conv_bn(p["w"], p["b"], p["bn"])
        w_list.append(w_f)
        b_list.append(b_f)
    Cin = x.shape[-1]
    Cout = w_list[0].shape[-1]
    w_all = jnp.stack(w_list, 0).reshape(27, Cin, Cout).astype(jnp.bfloat16)
    b_all = jnp.stack(b_list, 0)[:, None, :]                        # (3,1,Cout) f32
    # ASPPPooling branch pre-pass -> (N, 1, Cout), ReLU'd.
    w_pool, b_pool = fold_pool_bn(params["aspp_d4"]["w"], params["aspp_d4"]["bn"])
    pooled = aspp_pool_prepass(x, w_pool, b_pool[None, :])
    y = fused_aspp(x, w_all, b_all, pooled, dils, row_tile)         # (N,H,W,4*Cout)
    return jnp.transpose(y, (0, 3, 1, 2))                           # NHWC -> NCHW


# ----------------------------- pure-JAX reference ---------------------------

def ref_forward(x_nchw, params, dils):
    N, Cin, H, W = x_nchw.shape
    Cout = Cin // 4
    x = jnp.transpose(x_nchw, (0, 2, 3, 1)).astype(jnp.bfloat16)
    outs = []
    for i, d in enumerate(dils):
        p = params[f"aspp_d{i + 1}"]
        w_f, b_f = fold_conv_bn(p["w"], p["b"], p["bn"])
        y = jax.lax.conv_general_dilated(
            x, w_f.astype(jnp.bfloat16), window_strides=(1, 1),
            padding=[(d, d), (d, d)], rhs_dilation=(d, d),
            dimension_numbers=("NHWC", "HWIO", "NHWC"),
            preferred_element_type=jnp.float32)
        outs.append(jnp.maximum(y + b_f, 0.0))
    w_f, b_f = fold_pool_bn(params["aspp_d4"]["w"], params["aspp_d4"]["bn"])
    m = jnp.mean(x.astype(jnp.float32), axis=(1, 2))                # (N, Cin)
    yp = jnp.maximum(jnp.dot(m, w_f, preferred_element_type=jnp.float32) + b_f, 0.0)
    outs.append(jnp.broadcast_to(yp[:, None, None, :], (N, H, W, Cout)))
    return jnp.transpose(jnp.concatenate(outs, axis=-1), (0, 3, 1, 2))


# ----------------------------- main -----------------------------------------

if __name__ == "__main__":
    N, in_ch, H, W = 2, 8, 16, 16
    d1, d2, d3 = 1, 2, 3            # d4 = 'full' -> ASPPPooling branch
    key = jax.random.PRNGKey(0)
    kx, kp = jax.random.split(key)
    x_nchw = jax.random.normal(kx, (N, in_ch, H, W), jnp.float32)
    params = init_params(kp, in_ch)

    fwd = jax.jit(lambda x, p: aspp_forward(x, p, (d1, d2, d3), row_tile=8))
    out = jax.block_until_ready(fwd(x_nchw, params))
    assert out.shape == (N, in_ch, H, W), out.shape   # 4 branches of in_ch//4 each

    ref = jax.block_until_ready(ref_forward(x_nchw, params, (d1, d2, d3)))
    assert np.allclose(np.asarray(out), np.asarray(ref), atol=2e-3, rtol=2e-3), \
        "Pallas ASPP output mismatch vs reference"

    print("KERNEL_OK")
</pallas_src>

<mosaic_0001>
module attributes {stable_mosaic.version = 11 : i64} {
  func.func @_aspp_pool_prepass_kernel(%arg0: i32, %arg1: memref<1x16x16x8xbf16, #tpu.memory_space<vmem>>, %arg2: memref<8x2xf32, #tpu.memory_space<vmem>>, %arg3: memref<1x2xf32, #tpu.memory_space<vmem>>, %arg4: memref<1x1x2xf32, #tpu.memory_space<vmem>>) attributes {dimension_semantics = [#tpu.dimension_semantics<parallel>], iteration_bounds = array<i64: 2>, scalar_prefetch = 0 : i64, scratch_operands = 0 : i64, tpu.core_type = #tpu.core_type<tc>, window_params = [{transform_indices = @transform_0, window_bounds = array<i64: 1, 16, 16, 8>}, {pipeline_mode = #tpu.pipeline_mode<synchronous>, transform_indices = @transform_1, window_bounds = array<i64: 8, 2>}, {pipeline_mode = #tpu.pipeline_mode<synchronous>, transform_indices = @transform_2, window_bounds = array<i64: 1, 2>}, {transform_indices = @transform_3, window_bounds = array<i64: 1, 1, 2>}]} {
    %c0 = arith.constant 0 : index
    %c0_0 = arith.constant 0 : index
    %c0_1 = arith.constant 0 : index
    %c0_2 = arith.constant 0 : index
    %0 = vector.load %arg1[%c0, %c0_0, %c0_1, %c0_2] : memref<1x16x16x8xbf16, #tpu.memory_space<vmem>>, vector<1x16x16x8xbf16>
    %1 = vector.shape_cast %0 : vector<1x16x16x8xbf16> to vector<16x16x8xbf16>
    %2 = arith.extf %1 : vector<16x16x8xbf16> to vector<16x16x8xf32>
    %3 = vector.shape_cast %2 : vector<16x16x8xf32> to vector<256x8xf32>
    %cst = arith.constant dense<0.000000e+00> : vector<8xf32>
    %4 = vector.multi_reduction <add>, %3, %cst [0] : vector<256x8xf32> to vector<8xf32>
    %5 = vector.shape_cast %4 : vector<8xf32> to vector<1x8xf32>
    %cst_3 = arith.constant 2.560000e+02 : f32
    %6 = vector.broadcast %cst_3 : f32 to vector<1x8xf32>
    %7 = arith.divf %5, %6 : vector<1x8xf32>
    %c0_4 = arith.constant 0 : index
    %c0_5 = arith.constant 0 : index
    %8 = vector.load %arg2[%c0_4, %c0_5] : memref<8x2xf32, #tpu.memory_space<vmem>>, vector<8x2xf32>
    %cst_6 = arith.constant dense<0.000000e+00> : vector<1x2xf32>
    %9 = tpu.matmul %7, %8, %cst_6 {dimension_numbers = #tpu.dot_dimension_numbers<[1], [0], [0], [1], [0, 0, 1, 1], [], []>} : vector<1x8xf32>, vector<8x2xf32>, vector<1x2xf32> -> vector<1x2xf32>
    %c0_7 = arith.constant 0 : index
    %c0_8 = arith.constant 0 : index
    %10 = vector.load %arg3[%c0_7, %c0_8] : memref<1x2xf32, #tpu.memory_space<vmem>>, vector<1x2xf32>
    %11 = arith.addf %9, %10 : vector<1x2xf32>
    %cst_9 = arith.constant 0.000000e+00 : f32
    %12 = vector.broadcast %cst_9 : f32 to vector<1x2xf32>
    %13 = arith.maximumf %11, %12 : vector<1x2xf32>
    %14 = vector.shape_cast %13 : vector<1x2xf32> to vector<1x1x2xf32>
    %c0_10 = arith.constant 0 : index
    %c0_11 = arith.constant 0 : index
    %c0_12 = arith.constant 0 : index
    %15 = vector.load %arg4[%c0_10, %c0_11, %c0_12] : memref<1x1x2xf32, #tpu.memory_space<vmem>>, vector<1x1x2xf32>
    tpu.vector_store %arg4[%c0_10, %c0_11, %c0_12], %14 {strides = array<i32>} : memref<1x1x2xf32, #tpu.memory_space<vmem>>, vector<1x1x2xf32>,
    return
  }
  func.func @transform_0(%arg0: i32) -> (i32, i32, i32, i32) {
    %c0_i32 = arith.constant 0 : i32
    %c0_i32_0 = arith.constant 0 : i32
    %c0_i32_1 = arith.constant 0 : i32
    %c0_i32_2 = arith.constant 0 : i32
    return %arg0, %c0_i32, %c0_i32_0, %c0_i32_1 : i32, i32, i32, i32
  }
  func.func @transform_1(%arg0: i32) -> (i32, i32) {
    %c0_i32 = arith.constant 0 : i32
    %c0_i32_0 = arith.constant 0 : i32
    %c0_i32_1 = arith.constant 0 : i32
    return %c0_i32, %c0_i32_0 : i32, i32
  }
  func.func @transform_2(%arg0: i32) -> (i32, i32) {
    %c0_i32 = arith.constant 0 : i32
    %c0_i32_0 = arith.constant 0 : i32
    %c0_i32_1 = arith.constant 0 : i32
    return %c0_i32, %c0_i32_0 : i32, i32
  }
  func.func @transform_3(%arg0: i32) -> (i32, i32, i32) {
    %c0_i32 = arith.constant 0 : i32
    %c0_i32_0 = arith.constant 0 : i32
    %c0_i32_1 = arith.constant 0 : i32
    return %arg0, %c0_i32, %c0_i32_0 : i32, i32, i32
  }
}

module attributes {stable_mosaic.version = 11 : i64} {
  func.func @_fused_aspp_kernel(%arg0: i32, %arg1: i32, %arg2: memref<1x14x22x8xbf16, #tpu.memory_space<vmem>>, %arg3: memref<27x8x2xbf16, #tpu.memory_space<vmem>>, %arg4: memref<3x1x2xf32, #tpu.memory_space<vmem>>, %arg5: memref<1x1x2xf32, #tpu.memory_space<vmem>>, %arg6: memref<1x8x16x8xf32, #tpu.memory_space<vmem>>) attributes {dimension_semantics = [#tpu.dimension_semantics<parallel>, #tpu.dimension_semantics<parallel>], iteration_bounds = array<i64: 2, 2>, scalar_prefetch = 0 : i64, scratch_operands = 0 : i64, tpu.core_type = #tpu.core_type<tc>, window_params = [{transform_indices = @transform_0, window_bounds = array<i64: 1, 14, 22, 8>}, {pipeline_mode = #tpu.pipeline_mode<synchronous>, transform_indices = @transform_1, window_bounds = array<i64: 27, 8, 2>}, {pipeline_mode = #tpu.pipeline_mode<synchronous>, transform_indices = @transform_2, window_bounds = array<i64: 3, 1, 2>}, {transform_indices = @transform_3, window_bounds = array<i64: 1, 1, 2>}, {transform_indices = @transform_4, window_bounds = array<i64: 1, 8, 16, 8>}]} {
    %cst = arith.constant 0.000000e+00 : f32
    %0 = vector.broadcast %cst : f32 to vector<128x2xf32>
    %c0 = arith.constant 0 : index
    %c2 = arith.constant 2 : index
    %c2_0 = arith.constant 2 : index
    %c0_1 = arith.constant 0 : index
    %1 = vector.load %arg2[%c0, %c2, %c2_0, %c0_1] : memref<1x14x22x8xbf16, #tpu.memory_space<vmem>>, vector<1x8x16x8xbf16>
    %2 = vector.shape_cast %1 : vector<1x8x16x8xbf16> to vector<8x16x8xbf16>
    %3 = vector.shape_cast %2 : vector<8x16x8xbf16> to vector<128x8xbf16>
    %c0_2 = arith.constant 0 : index
    %c0_3 = arith.constant 0 : index
    %c0_4 = arith.constant 0 : index
    %4 = vector.load %arg3[%c0_2, %c0_3, %c0_4] : memref<27x8x2xbf16, #tpu.memory_space<vmem>>, vector<1x8x2xbf16>
    %5 = vector.shape_cast %4 : vector<1x8x2xbf16> to vector<8x2xbf16>
    %cst_5 = arith.constant dense<0.000000e+00> : vector<128x2xf32>
    %6 = tpu.matmul %3, %5, %cst_5 {dimension_numbers = #tpu.dot_dimension_numbers<[1], [0], [0], [1], [0, 0, 1, 1], [], []>} : vector<128x8xbf16>, vector<8x2xbf16>, vector<128x2xf32> -> vector<128x2xf32>
    %7 = arith.addf %0, %6 : vector<128x2xf32>
    %c0_6 = arith.constant 0 : index
    %c2_7 = arith.constant 2 : index
    %c3 = arith.constant 3 : index
    %c0_8 = arith.constant 0 : index
    %8 = vector.load %arg2[%c0_6, %c2_7, %c3, %c0_8] : memref<1x14x22x8xbf16, #tpu.memory_space<vmem>>, vector<1x8x16x8xbf16>
    %9 = vector.shape_cast %8 : vector<1x8x16x8xbf16> to vector<8x16x8xbf16>
    %10 = vector.shape_cast %9 : vector<8x16x8xbf16> to vector<128x8xbf16>
    %c1 = arith.constant 1 : index
    %c0_9 = arith.constant 0 : index
    %c0_10 = arith.constant 0 : index
    %11 = vector.load %arg3[%c1, %c0_9, %c0_10] : memref<27x8x2xbf16, #tpu.memory_space<vmem>>, vector<1x8x2xbf16>
    %12 = vector.shape_cast %11 : vector<1x8x2xbf16> to vector<8x2xbf16>
    %cst_11 = arith.constant dense<0.000000e+00> : vector<128x2xf32>
    %13 = tpu.matmul %10, %12, %cst_11 {dimension_numbers = #tpu.dot_dimension_numbers<[1], [0], [0], [1], [0, 0, 1, 1], [], []>} : vector<128x8xbf16>, vector<8x2xbf16>, vector<128x2xf32> -> vector<128x2xf32>
    %14 = arith.addf %7, %13 : vector<128x2xf32>
    %c0_12 = arith.constant 0 : index
    %c2_13 = arith.constant 2 : index
    %c4 = arith.constant 4 : index
    %c0_14 = arith.constant 0 : index
    %15 = vector.load %arg2[%c0_12, %c2_13, %c4, %c0_14] : memref<1x14x22x8xbf16, #tpu.memory_space<vmem>>, vector<1x8x16x8xbf16>
    %16 = vector.shape_cast %15 : vector<1x8x16x8xbf16> to vector<8x16x8xbf16>
    %17 = vector.shape_cast %16 : vector<8x16x8xbf16> to vector<128x8xbf16>
    %c2_15 = arith.constant 2 : index
    %c0_16 = arith.constant 0 : index
    %c0_17 = arith.constant 0 : index
    %18 = vector.load %arg3[%c2_15, %c0_16, %c0_17] : memref<27x8x2xbf16, #tpu.memory_space<vmem>>, vector<1x8x2xbf16>
    %19 = vector.shape_cast %18 : vector<1x8x2xbf16> to vector<8x2xbf16>
    %cst_18 = arith.constant dense<0.000000e+00> : vector<128x2xf32>
    %20 = tpu.matmul %17, %19, %cst_18 {dimension_numbers = #tpu.dot_dimension_numbers<[1], [0], [0], [1], [0, 0, 1, 1], [], []>} : vector<128x8xbf16>, vector<8x2xbf16>, vector<128x2xf32> -> vector<128x2xf32>
    %21 = arith.addf %14, %20 : vector<128x2xf32>
    %c0_19 = arith.constant 0 : index
    %c3_20 = arith.constant 3 : index
    %c2_21 = arith.constant 2 : index
    %c0_22 = arith.constant 0 : index
    %22 = vector.load %arg2[%c0_19, %c3_20, %c2_21, %c0_22] : memref<1x14x22x8xbf16, #tpu.memory_space<vmem>>, vector<1x8x16x8xbf16>
    %23 = vector.shape_cast %22 : vector<1x8x16x8xbf16> to vector<8x16x8xbf16>
    %24 = vector.shape_cast %23 : vector<8x16x8xbf16> to vector<128x8xbf16>
    %c3_23 = arith.constant 3 : index
    %c0_24 = arith.constant 0 : index
    %c0_25 = arith.constant 0 : index
    %25 = vector.load %arg3[%c3_23, %c0_24, %c0_25] : memref<27x8x2xbf16, #tpu.memory_space<vmem>>, vector<1x8x2xbf16>
    %26 = vector.shape_cast %25 : vector<1x8x2xbf16> to vector<8x2xbf16>
    %cst_26 = arith.constant dense<0.000000e+00> : vector<128x2xf32>
    %27 = tpu.matmul %24, %26, %cst_26 {dimension_numbers = #tpu.dot_dimension_numbers<[1], [0], [0], [1], [0, 0, 1, 1], [], []>} : vector<128x8xbf16>, vector<8x2xbf16>, vector<128x2xf32> -> vector<128x2xf32>
    %28 = arith.addf %21, %27 : vector<128x2xf32>
    %c0_27 = arith.constant 0 : index
    %c3_28 = arith.constant 3 : index
    %c3_29 = arith.constant 3 : index
    %c0_30 = arith.constant 0 : index
    %29 = vector.load %arg2[%c0_27, %c3_28, %c3_29, %c0_30] : memref<1x14x22x8xbf16, #tpu.memory_space<vmem>>, vector<1x8x16x8xbf16>
    %30 = vector.shape_cast %29 : vector<1x8x16x8xbf16> to vector<8x16x8xbf16>
    %31 = vector.shape_cast %30 : vector<8x16x8xbf16> to vector<128x8xbf16>
    %c4_31 = arith.constant 4 : index
    %c0_32 = arith.constant 0 : index
    %c0_33 = arith.constant 0 : index
    %32 = vector.load %arg3[%c4_31, %c0_32, %c0_33] : memref<27x8x2xbf16, #tpu.memory_space<vmem>>, vector<1x8x2xbf16>
    %33 = vector.shape_cast %32 : vector<1x8x2xbf16> to vector<8x2xbf16>
    %cst_34 = arith.constant dense<0.000000e+00> : vector<128x2xf32>
    %34 = tpu.matmul %31, %33, %cst_34 {dimension_numbers = #tpu.dot_dimension_numbers<[1], [0], [0], [1], [0, 0, 1, 1], [], []>} : vector<128x8xbf16>, vector<8x2xbf16>, vector<128x2xf32> -> vector<128x2xf32>
    %35 = arith.addf %28, %34 : vector<128x2xf32>
    %c0_35 = arith.constant 0 : index
    %c3_36 = arith.constant 3 : index
    %c4_37 = arith.constant 4 : index
    %c0_38 = arith.constant 0 : index
    %36 = vector.load %arg2[%c0_35, %c3_36, %c4_37, %c0_38] : memref<1x14x22x8xbf16, #tpu.memory_space<vmem>>, vector<1x8x16x8xbf16>
    %37 = vector.shape_cast %36 : vector<1x8x16x8xbf16> to vector<8x16x8xbf16>
    %38 = vector.shape_cast %37 : vector<8x16x8xbf16> to vector<128x8xbf16>
    %c5 = arith.constant 5 : index
    %c0_39 = arith.constant 0 : index
    %c0_40 = arith.constant 0 : index
    %39 = vector.load %arg3[%c5, %c0_39, %c0_40] : memref<27x8x2xbf16, #tpu.memory_space<vmem>>, vector<1x8x2xbf16>
    %40 = vector.shape_cast %39 : vector<1x8x2xbf16> to vector<8x2xbf16>
    %cst_41 = arith.constant dense<0.000000e+00> : vector<128x2xf32>
    %41 = tpu.matmul %38, %40, %cst_41 {dimension_numbers = #tpu.dot_dimension_numbers<[1], [0], [0], [1], [0, 0, 1, 1], [], []>} : vector<128x8xbf16>, vector<8x2xbf16>, vector<128x2xf32> -> vector<128x2xf32>
    %42 = arith.addf %35, %41 : vector<128x2xf32>
    %c0_42 = arith.constant 0 : index
    %c4_43 = arith.constant 4 : index
    %c2_44 = arith.constant 2 : index
    %c0_45 = arith.constant 0 : index
    %43 = vector.load %arg2[%c0_42, %c4_43, %c2_44, %c0_45] : memref<1x14x22x8xbf16, #tpu.memory_space<vmem>>, vector<1x8x16x8xbf16>
    %44 = vector.shape_cast %43 : vector<1x8x16x8xbf16> to vector<8x16x8xbf16>
    %45 = vector.shape_cast %44 : vector<8x16x8xbf16> to vector<128x8xbf16>
    %c6 = arith.constant 6 : index
    %c0_46 = arith.constant 0 : index
    %c0_47 = arith.constant 0 : index
    %46 = vector.load %arg3[%c6, %c0_46, %c0_47] : memref<27x8x2xbf16, #tpu.memory_space<vmem>>, vector<1x8x2xbf16>
    %47 = vector.shape_cast %46 : vector<1x8x2xbf16> to vector<8x2xbf16>
    %cst_48 = arith.constant dense<0.000000e+00> : vector<128x2xf32>
    %48 = tpu.matmul %45, %47, %cst_48 {dimension_numbers = #tpu.dot_dimension_numbers<[1], [0], [0], [1], [0, 0, 1, 1], [], []>} : vector<128x8xbf16>, vector<8x2xbf16>, vector<128x2xf32> -> vector<128x2xf32>
    %49 = arith.addf %42, %48 : vector<128x2xf32>
    %c0_49 = arith.constant 0 : index
    %c4_50 = arith.constant 4 : index
    %c3_51 = arith.constant 3 : index
    %c0_52 = arith.constant 0 : index
    %50 = vector.load %arg2[%c0_49, %c4_50, %c3_51, %c0_52] : memref<1x14x22x8xbf16, #tpu.memory_space<vmem>>, vector<1x8x16x8xbf16>
    %51 = vector.shape_cast %50 : vector<1x8x16x8xbf16> to vector<8x16x8xbf16>
    %52 = vector.shape_cast %51 : vector<8x16x8xbf16> to vector<128x8xbf16>
    %c7 = arith.constant 7 : index
    %c0_53 = arith.constant 0 : index
    %c0_54 = arith.constant 0 : index
    %53 = vector.load %arg3[%c7, %c0_53, %c0_54] : memref<27x8x2xbf16, #tpu.memory_space<vmem>>, vector<1x8x2xbf16>
    %54 = vector.shape_cast %53 : vector<1x8x2xbf16> to vector<8x2xbf16>
    %cst_55 = arith.constant dense<0.000000e+00> : vector<128x2xf32>
    %55 = tpu.matmul %52, %54, %cst_55 {dimension_numbers = #tpu.dot_dimension_numbers<[1], [0], [0], [1], [0, 0, 1, 1], [], []>} : vector<128x8xbf16>, vector<8x2xbf16>, vector<128x2xf32> -> vector<128x2xf32>
    %56 = arith.addf %49, %55 : vector<128x2xf32>
    %c0_56 = arith.constant 0 : index
    %c4_57 = arith.constant 4 : index
    %c4_58 = arith.constant 4 : index
    %c0_59 = arith.constant 0 : index
    %57 = vector.load %arg2[%c0_56, %c4_57, %c4_58, %c0_59] : memref<1x14x22x8xbf16, #tpu.memory_space<vmem>>, vector<1x8x16x8xbf16>
    %58 = vector.shape_cast %57 : vector<1x8x16x8xbf16> to vector<8x16x8xbf16>
    %59 = vector.shape_cast %58 : vector<8x16x8xbf16> to vector<128x8xbf16>
    %c8 = arith.constant 8 : index
    %c0_60 = arith.constant 0 : index
    %c0_61 = arith.constant 0 : index
    %60 = vector.load %arg3[%c8, %c0_60, %c0_61] : memref<27x8x2xbf16, #tpu.memory_space<vmem>>, vector<1x8x2xbf16>
    %61 = vector.shape_cast %60 : vector<1x8x2xbf16> to vector<8x2xbf16>
    %cst_62 = arith.constant dense<0.000000e+00> : vector<128x2xf32>
    %62 = tpu.matmul %59, %61, %cst_62 {dimension_numbers = #tpu.dot_dimension_numbers<[1], [0], [0], [1], [0, 0, 1, 1], [], []>} : vector<128x8xbf16>, vector<8x2xbf16>, vector<128x2xf32> -> vector<128x2xf32>
    %63 = arith.addf %56, %62 : vector<128x2xf32>
    %c0_63 = arith.constant 0 : index
    %c0_64 = arith.constant 0 : index
    %c0_65 = arith.constant 0 : index
    %64 = vector.load %arg4[%c0_63, %c0_64, %c0_65] : memref<3x1x2xf32, #tpu.memory_space<vmem>>, vector<1x1x2xf32>
    %65 = vector.shape_cast %64 : vector<1x1x2xf32> to vector<1x2xf32>
    %66 = vector.broadcast %65 : vector<1x2xf32> to vector<128x2xf32>
    %67 = arith.addf %63, %66 : vector<128x2xf32>
    %cst_66 = arith.constant 0.000000e+00 : f32
    %68 = vector.broadcast %cst_66 : f32 to vector<128x2xf32>
    %69 = arith.maximumf %67, %68 : vector<128x2xf32>
    %cst_67 = arith.constant 0.000000e+00 : f32
    %70 = vector.broadcast %cst_67 : f32 to vector<128x2xf32>
    %c0_68 = arith.constant 0 : index
    %c1_69 = arith.constant 1 : index
    %c1_70 = arith.constant 1 : index
    %c0_71 = arith.constant 0 : index
    %71 = vector.load %arg2[%c0_68, %c1_69, %c1_70, %c0_71] : memref<1x14x22x8xbf16, #tpu.memory_space<vmem>>, vector<1x8x16x8xbf16>
    %72 = vector.shape_cast %71 : vector<1x8x16x8xbf16> to vector<8x16x8xbf16>
    %73 = vector.shape_cast %72 : vector<8x16x8xbf16> to vector<128x8xbf16>
    %c9 = arith.constant 9 : index
    %c0_72 = arith.constant 0 : index
    %c0_73 = arith.constant 0 : index
    %74 = vector.load %arg3[%c9, %c0_72, %c0_73] : memref<27x8x2xbf16, #tpu.memory_space<vmem>>, vector<1x8x2xbf16>
    %75 = vector.shape_cast %74 : vector<1x8x2xbf16> to vector<8x2xbf16>
    %cst_74 = arith.constant dense<0.000000e+00> : vector<128x2xf32>
    %76 = tpu.matmul %73, %75, %cst_74 {dimension_numbers = #tpu.dot_dimension_numbers<[1], [0], [0], [1], [0, 0, 1, 1], [], []>} : vector<128x8xbf16>, vector<8x2xbf16>, vector<128x2xf32> -> vector<128x2xf32>
    %77 = arith.addf %70, %76 : vector<128x2xf32>
    %c0_75 = arith.constant 0 : index
    %c1_76 = arith.constant 1 : index
    %c3_77 = arith.constant 3 : index
    %c0_78 = arith.constant 0 : index
    %78 = vector.load %arg2[%c0_75, %c1_76, %c3_77, %c0_78] : memref<1x14x22x8xbf16, #tpu.memory_space<vmem>>, vector<1x8x16x8xbf16>
    %79 = vector.shape_cast %78 : vector<1x8x16x8xbf16> to vector<8x16x8xbf16>
    %80 = vector.shape_cast %79 : vector<8x16x8xbf16> to vector<128x8xbf16>
    %c10 = arith.constant 10 : index
    %c0_79 = arith.constant 0 : index
    %c0_80 = arith.constant 0 : index
    %81 = vector.load %arg3[%c10, %c0_79, %c0_80] : memref<27x8x2xbf16, #tpu.memory_space<vmem>>, vector<1x8x2xbf16>
    %82 = vector.shape_cast %81 : vector<1x8x2xbf16> to vector<8x2xbf16>
    %cst_81 = arith.constant dense<0.000000e+00> : vector<128x2xf32>
    %83 = tpu.matmul %80, %82, %cst_81 {dimension_numbers = #tpu.dot_dimension_numbers<[1], [0], [0], [1], [0, 0, 1, 1], [], []>} : vector<128x8xbf16>, vector<8x2xbf16>, vector<128x2xf32> -> vector<128x2xf32>
    %84 = arith.addf %77, %83 : vector<128x2xf32>
    %c0_82 = arith.constant 0 : index
    %c1_83 = arith.constant 1 : index
    %c5_84 = arith.constant 5 : index
    %c0_85 = arith.constant 0 : index
    %85 = vector.load %arg2[%c0_82, %c1_83, %c5_84, %c0_85] : memref<1x14x22x8xbf16, #tpu.memory_space<vmem>>, vector<1x8x16x8xbf16>
    %86 = vector.shape_cast %85 : vector<1x8x16x8xbf16> to vector<8x16x8xbf16>
    %87 = vector.shape_cast %86 : vector<8x16x8xbf16> to vector<128x8xbf16>
    %c11 = arith.constant 11 : index
    %c0_86 = arith.constant 0 : index
    %c0_87 = arith.constant 0 : index
    %88 = vector.load %arg3[%c11, %c0_86, %c0_87] : memref<27x8x2xbf16, #tpu.memory_space<vmem>>, vector<1x8x2xbf16>
    %89 = vector.shape_cast %88 : vector<1x8x2xbf16> to vector<8x2xbf16>
    %cst_88 = arith.constant dense<0.000000e+00> : vector<128x2xf32>
    %90 = tpu.matmul %87, %89, %cst_88 {dimension_numbers = #tpu.dot_dimension_numbers<[1], [0], [0], [1], [0, 0, 1, 1], [], []>} : vector<128x8xbf16>, vector<8x2xbf16>, vector<128x2xf32> -> vector<128x2xf32>
    %91 = arith.addf %84, %90 : vector<128x2xf32>
    %c0_89 = arith.constant 0 : index
    %c3_90 = arith.constant 3 : index
    %c1_91 = arith.constant 1 : index
    %c0_92 = arith.constant 0 : index
    %92 = vector.load %arg2[%c0_89, %c3_90, %c1_91, %c0_92] : memref<1x14x22x8xbf16, #tpu.memory_space<vmem>>, vector<1x8x16x8xbf16>
    %93 = vector.shape_cast %92 : vector<1x8x16x8xbf16> to vector<8x16x8xbf16>
    %94 = vector.shape_cast %93 : vector<8x16x8xbf16> to vector<128x8xbf16>
    %c12 = arith.constant 12 : index
    %c0_93 = arith.constant 0 : index
    %c0_94 = arith.constant 0 : index
    %95 = vector.load %arg3[%c12, %c0_93, %c0_94] : memref<27x8x2xbf16, #tpu.memory_space<vmem>>, vector<1x8x2xbf16>
    %96 = vector.shape_cast %95 : vector<1x8x2xbf16> to vector<8x2xbf16>
    %cst_95 = arith.constant dense<0.000000e+00> : vector<128x2xf32>
    %97 = tpu.matmul %94, %96, %cst_95 {dimension_numbers = #tpu.dot_dimension_numbers<[1], [0], [0], [1], [0, 0, 1, 1], [], []>} : vector<128x8xbf16>, vector<8x2xbf16>, vector<128x2xf32> -> vector<128x2xf32>
    %98 = arith.addf %91, %97 : vector<128x2xf32>
    %c0_96 = arith.constant 0 : index
    %c3_97 = arith.constant 3 : index
    %c3_98 = arith.constant 3 : index
    %c0_99 = arith.constant 0 : index
    %99 = vector.load %arg2[%c0_96, %c3_97, %c3_98, %c0_99] : memref<1x14x22x8xbf16, #tpu.memory_space<vmem>>, vector<1x8x16x8xbf16>
    %100 = vector.shape_cast %99 : vector<1x8x16x8xbf16> to vector<8x16x8xbf16>
    %101 = vector.shape_cast %100 : vector<8x16x8xbf16> to vector<128x8xbf16>
    %c13 = arith.constant 13 : index
    %c0_100 = arith.constant 0 : index
    %c0_101 = arith.constant 0 : index
    %102 = vector.load %arg3[%c13, %c0_100, %c0_101] : memref<27x8x2xbf16, #tpu.memory_space<vmem>>, vector<1x8x2xbf16>
    %103 = vector.shape_cast %102 : vector<1x8x2xbf16> to vector<8x2xbf16>
    %cst_102 = arith.constant dense<0.000000e+00> : vector<128x2xf32>
    %104 = tpu.matmul %101, %103, %cst_102 {dimension_numbers = #tpu.dot_dimension_numbers<[1], [0], [0], [1], [0, 0, 1, 1], [], []>} : vector<128x8xbf16>, vector<8x2xbf16>, vector<128x2xf32> -> vector<128x2xf32>
    %105 = arith.addf %98, %104 : vector<128x2xf32>
    %c0_103 = arith.constant 0 : index
    %c3_104 = arith.constant 3 : index
    %c5_105 = arith.constant 5 : index
    %c0_106 = arith.constant 0 : index
    %106 = vector.load %arg2[%c0_103, %c3_104, %c5_105, %c0_106] : memref<1x14x22x8xbf16, #tpu.memory_space<vmem>>, vector<1x8x16x8xbf16>
    %107 = vector.shape_cast %106 : vector<1x8x16x8xbf16> to vector<8x16x8xbf16>
    %108 = vector.shape_cast %107 : vector<8x16x8xbf16> to vector<128x8xbf16>
    %c14 = arith.constant 14 : index
    %c0_107 = arith.constant 0 : index
    %c0_108 = arith.constant 0 : index
    %109 = vector.load %arg3[%c14, %c0_107, %c0_108] : memref<27x8x2xbf16, #tpu.memory_space<vmem>>, vector<1x8x2xbf16>
    %110 = vector.shape_cast %109 : vector<1x8x2xbf16> to vector<8x2xbf16>
    %cst_109 = arith.constant dense<0.000000e+00> : vector<128x2xf32>
    %111 = tpu.matmul %108, %110, %cst_109 {dimension_numbers = #tpu.dot_dimension_numbers<[1], [0], [0], [1], [0, 0, 1, 1], [], []>} : vector<128x8xbf16>, vector<8x2xbf16>, vector<128x2xf32> -> vector<128x2xf32>
    %112 = arith.addf %105, %111 : vector<128x2xf32>
    %c0_110 = arith.constant 0 : index
    %c5_111 = arith.constant 5 : index
    %c1_112 = arith.constant 1 : index
    %c0_113 = arith.constant 0 : index
    %113 = vector.load %arg2[%c0_110, %c5_111, %c1_112, %c0_113] : memref<1x14x22x8xbf16, #tpu.memory_space<vmem>>, vector<1x8x16x8xbf16>
    %114 = vector.shape_cast %113 : vector<1x8x16x8xbf16> to vector<8x16x8xbf16>
    %115 = vector.shape_cast %114 : vector<8x16x8xbf16> to vector<128x8xbf16>
    %c15 = arith.constant 15 : index
    %c0_114 = arith.constant 0 : index
    %c0_115 = arith.constant 0 : index
    %116 = vector.load %arg3[%c15, %c0_114, %c0_115] : memref<27x8x2xbf16, #tpu.memory_space<vmem>>, vector<1x8x2xbf16>
    %117 = vector.shape_cast %116 : vector<1x8x2xbf16> to vector<8x2xbf16>
    %cst_116 = arith.constant dense<0.000000e+00> : vector<128x2xf32>
    %118 = tpu.matmul %115, %117, %cst_116 {dimension_numbers = #tpu.dot_dimension_numbers<[1], [0], [0], [1], [0, 0, 1, 1], [], []>} : vector<128x8xbf16>, vector<8x2xbf16>, vector<128x2xf32> -> vector<128x2xf32>
    %119 = arith.addf %112, %118 : vector<128x2xf32>
    %c0_117 = arith.constant 0 : index
    %c5_118 = arith.constant 5 : index
    %c3_119 = arith.constant 3 : index
    %c0_120 = arith.constant 0 : index
    %120 = vector.load %arg2[%c0_117, %c5_118, %c3_119, %c0_120] : memref<1x14x22x8xbf16, #tpu.memory_space<vmem>>, vector<1x8x16x8xbf16>
    %121 = vector.shape_cast %120 : vector<1x8x16x8xbf16> to vector<8x16x8xbf16>
    %122 = vector.shape_cast %121 : vector<8x16x8xbf16> to vector<128x8xbf16>
    %c16 = arith.constant 16 : index
    %c0_121 = arith.constant 0 : index
    %c0_122 = arith.constant 0 : index
    %123 = vector.load %arg3[%c16, %c0_121, %c0_122] : memref<27x8x2xbf16, #tpu.memory_space<vmem>>, vector<1x8x2xbf16>
    %124 = vector.shape_cast %123 : vector<1x8x2xbf16> to vector<8x2xbf16>
    %cst_123 = arith.constant dense<0.000000e+00> : vector<128x2xf32>
    %125 = tpu.matmul %122, %124, %cst_123 {dimension_numbers = #tpu.dot_dimension_numbers<[1], [0], [0], [1], [0, 0, 1, 1], [], []>} : vector<128x8xbf16>, vector<8x2xbf16>, vector<128x2xf32> -> vector<128x2xf32>
    %126 = arith.addf %119, %125 : vector<128x2xf32>
    %c0_124 = arith.constant 0 : index
    %c5_125 = arith.constant 5 : index
    %c5_126 = arith.constant 5 : index
    %c0_127 = arith.constant 0 : index
    %127 = vector.load %arg2[%c0_124, %c5_125, %c5_126, %c0_127] : memref<1x14x22x8xbf16, #tpu.memory_space<vmem>>, vector<1x8x16x8xbf16>
    %128 = vector.shape_cast %127 : vector<1x8x16x8xbf16> to vector<8x16x8xbf16>
    %129 = vector.shape_cast %128 : vector<8x16x8xbf16> to vector<128x8xbf16>
    %c17 = arith.constant 17 : index
    %c0_128 = arith.constant 0 : index
    %c0_129 = arith.constant 0 : index
    %130 = vector.load %arg3[%c17, %c0_128, %c0_129] : memref<27x8x2xbf16, #tpu.memory_space<vmem>>, vector<1x8x2xbf16>
    %131 = vector.shape_cast %130 : vector<1x8x2xbf16> to vector<8x2xbf16>
    %cst_130 = arith.constant dense<0.000000e+00> : vector<128x2xf32>
    %132 = tpu.matmul %129, %131, %cst_130 {dimension_numbers = #tpu.dot_dimension_numbers<[1], [0], [0], [1], [0, 0, 1, 1], [], []>} : vector<128x8xbf16>, vector<8x2xbf16>, vector<128x2xf32> -> vector<128x2xf32>
    %133 = arith.addf %126, %132 : vector<128x2xf32>
    %c1_131 = arith.constant 1 : index
    %c0_132 = arith.constant 0 : index
    %c0_133 = arith.constant 0 : index
    %134 = vector.load %arg4[%c1_131, %c0_132, %c0_133] : memref<3x1x2xf32, #tpu.memory_space<vmem>>, vector<1x1x2xf32>
    %135 = vector.shape_cast %134 : vector<1x1x2xf32> to vector<1x2xf32>
    %136 = vector.broadcast %135 : vector<1x2xf32> to vector<128x2xf32>
    %137 = arith.addf %133, %136 : vector<128x2xf32>
    %cst_134 = arith.constant 0.000000e+00 : f32
    %138 = vector.broadcast %cst_134 : f32 to vector<128x2xf32>
    %139 = arith.maximumf %137, %138 : vector<128x2xf32>
    %cst_135 = arith.constant 0.000000e+00 : f32
    %140 = vector.broadcast %cst_135 : f32 to vector<128x2xf32>
    %c0_136 = arith.constant 0 : index
    %c0_137 = arith.constant 0 : index
    %c0_138 = arith.constant 0 : index
    %c0_139 = arith.constant 0 : index
    %141 = vector.load %arg2[%c0_136, %c0_137, %c0_138, %c0_139] : memref<1x14x22x8xbf16, #tpu.memory_space<vmem>>, vector<1x8x16x8xbf16>
    %142 = vector.shape_cast %141 : vector<1x8x16x8xbf16> to vector<8x16x8xbf16>
    %143 = vector.shape_cast %142 : vector<8x16x8xbf16> to vector<128x8xbf16>
    %c18 = arith.constant 18 : index
    %c0_140 = arith.constant 0 : index
    %c0_141 = arith.constant 0 : index
    %144 = vector.load %arg3[%c18, %c0_140, %c0_141] : memref<27x8x2xbf16, #tpu.memory_space<vmem>>, vector<1x8x2xbf16>
    %145 = vector.shape_cast %144 : vector<1x8x2xbf16> to vector<8x2xbf16>
    %cst_142 = arith.constant dense<0.000000e+00> : vector<128x2xf32>
    %146 = tpu.matmul %143, %145, %cst_142 {dimension_numbers = #tpu.dot_dimension_numbers<[1], [0], [0], [1], [0, 0, 1, 1], [], []>} : vector<128x8xbf16>, vector<8x2xbf16>, vector<128x2xf32> -> vector<128x2xf32>
    %147 = arith.addf %140, %146 : vector<128x2xf32>
    %c0_143 = arith.constant 0 : index
    %c0_144 = arith.constant 0 : index
    %c3_145 = arith.constant 3 : index
    %c0_146 = arith.constant 0 : index
    %148 = vector.load %arg2[%c0_143, %c0_144, %c3_145, %c0_146] : memref<1x14x22x8xbf16, #tpu.memory_space<vmem>>, vector<1x8x16x8xbf16>
    %149 = vector.shape_cast %148 : vector<1x8x16x8xbf16> to vector<8x16x8xbf16>
    %150 = vector.shape_cast %149 : vector<8x16x8xbf16> to vector<128x8xbf16>
    %c19 = arith.constant 19 : index
    %c0_147 = arith.constant 0 : index
    %c0_148 = arith.constant 0 : index
    %151 = vector.load %arg3[%c19, %c0_147, %c0_148] : memref<27x8x2xbf16, #tpu.memory_space<vmem>>, vector<1x8x2xbf16>
    %152 = vector.shape_cast %151 : vector<1x8x2xbf16> to vector<8x2xbf16>
    %cst_149 = arith.constant dense<0.000000e+00> : vector<128x2xf32>
    %153 = tpu.matmul %150, %152, %cst_149 {dimension_numbers = #tpu.dot_dimension_numbers<[1], [0], [0], [1], [0, 0, 1, 1], [], []>} : vector<128x8xbf16>, vector<8x2xbf16>, vector<128x2xf32> -> vector<128x2xf32>
    %154 = arith.addf %147, %153 : vector<128x2xf32>
    %c0_150 = arith.constant 0 : index
    %c0_151 = arith.constant 0 : index
    %c6_152 = arith.constant 6 : index
    %c0_153 = arith.constant 0 : index
    %155 = vector.load %arg2[%c0_150, %c0_151, %c6_152, %c0_153] : memref<1x14x22x8xbf16, #tpu.memory_space<vmem>>, vector<1x8x16x8xbf16>
    %156 = vector.shape_cast %155 : vector<1x8x16x8xbf16> to vector<8x16x8xbf16>
    %157 = vector.shape_cast %156 : vector<8x16x8xbf16> to vector<128x8xbf16>
    %c20 = arith.constant 20 : index
    %c0_154 = arith.constant 0 : index
    %c0_155 = arith.constant 0 : index
    %158 = vector.load %arg3[%c20, %c0_154, %c0_155] : memref<27x8x2xbf16, #tpu.memory_space<vmem>>, vector<1x8x2xbf16>
    %159 = vector.shape_cast %158 : vector<1x8x2xbf16> to vector<8x2xbf16>
    %cst_156 = arith.constant dense<0.000000e+00> : vector<128x2xf32>
    %160 = tpu.matmul %157, %159, %cst_156 {dimension_numbers = #tpu.dot_dimension_numbers<[1], [0], [0], [1], [0, 0, 1, 1], [], []>} : vector<128x8xbf16>, vector<8x2xbf16>, vector<128x2xf32> -> vector<128x2xf32>
    %161 = arith.addf %154, %160 : vector<128x2xf32>
    %c0_157 = arith.constant 0 : index
    %c3_158 = arith.constant 3 : index
    %c0_159 = arith.constant 0 : index
    %c0_160 = arith.constant 0 : index
    %162 = vector.load %arg2[%c0_157, %c3_158, %c0_159, %c0_160] : memref<1x14x22x8xbf16, #tpu.memory_space<vmem>>, vector<1x8x16x8xbf16>
    %163 = vector.shape_cast %162 : vector<1x8x16x8xbf16> to vector<8x16x8xbf16>
    %164 = vector.shape_cast %163 : vector<8x16x8xbf16> to vector<128x8xbf16>
    %c21 = arith.constant 21 : index
    %c0_161 = arith.constant 0 : index
    %c0_162 = arith.constant 0 : index
    %165 = vector.load %arg3[%c21, %c0_161, %c0_162] : memref<27x8x2xbf16, #tpu.memory_space<vmem>>, vector<1x8x2xbf16>
    %166 = vector.shape_cast %165 : vector<1x8x2xbf16> to vector<8x2xbf16>
    %cst_163 = arith.constant dense<0.000000e+00> : vector<128x2xf32>
    %167 = tpu.matmul %164, %166, %cst_163 {dimension_numbers = #tpu.dot_dimension_numbers<[1], [0], [0], [1], [0, 0, 1, 1], [], []>} : vector<128x8xbf16>, vector<8x2xbf16>, vector<128x2xf32> -> vector<128x2xf32>
    %168 = arith.addf %161, %167 : vector<128x2xf32>
    %c0_164 = arith.constant 0 : index
    %c3_165 = arith.constant 3 : index
    %c3_166 = arith.constant 3 : index
    %c0_167 = arith.constant 0 : index
    %169 = vector.load %arg2[%c0_164, %c3_165, %c3_166, %c0_167] : memref<1x14x22x8xbf16, #tpu.memory_space<vmem>>, vector<1x8x16x8xbf16>
    %170 = vector.shape_cast %169 : vector<1x8x16x8xbf16> to vector<8x16x8xbf16>
    %171 = vector.shape_cast %170 : vector<8x16x8xbf16> to vector<128x8xbf16>
    %c22 = arith.constant 22 : index
    %c0_168 = arith.constant 0 : index
    %c0_169 = arith.constant 0 : index
    %172 = vector.load %arg3[%c22, %c0_168, %c0_169] : memref<27x8x2xbf16, #tpu.memory_space<vmem>>, vector<1x8x2xbf16>
    %173 = vector.shape_cast %172 : vector<1x8x2xbf16> to vector<8x2xbf16>
    %cst_170 = arith.constant dense<0.000000e+00> : vector<128x2xf32>
    %174 = tpu.matmul %171, %173, %cst_170 {dimension_numbers = #tpu.dot_dimension_numbers<[1], [0], [0], [1], [0, 0, 1, 1], [], []>} : vector<128x8xbf16>, vector<8x2xbf16>, vector<128x2xf32> -> vector<128x2xf32>
    %175 = arith.addf %168, %174 : vector<128x2xf32>
    %c0_171 = arith.constant 0 : index
    %c3_172 = arith.constant 3 : index
    %c6_173 = arith.constant 6 : index
    %c0_174 = arith.constant 0 : index
    %176 = vector.load %arg2[%c0_171, %c3_172, %c6_173, %c0_174] : memref<1x14x22x8xbf16, #tpu.memory_space<vmem>>, vector<1x8x16x8xbf16>
    %177 = vector.shape_cast %176 : vector<1x8x16x8xbf16> to vector<8x16x8xbf16>
    %178 = vector.shape_cast %177 : vector<8x16x8xbf16> to vector<128x8xbf16>
    %c23 = arith.constant 23 : index
    %c0_175 = arith.constant 0 : index
    %c0_176 = arith.constant 0 : index
    %179 = vector.load %arg3[%c23, %c0_175, %c0_176] : memref<27x8x2xbf16, #tpu.memory_space<vmem>>, vector<1x8x2xbf16>
    %180 = vector.shape_cast %179 : vector<1x8x2xbf16> to vector<8x2xbf16>
    %cst_177 = arith.constant dense<0.000000e+00> : vector<128x2xf32>
    %181 = tpu.matmul %178, %180, %cst_177 {dimension_numbers = #tpu.dot_dimension_numbers<[1], [0], [0], [1], [0, 0, 1, 1], [], []>} : vector<128x8xbf16>, vector<8x2xbf16>, vector<128x2xf32> -> vector<128x2xf32>
    %182 = arith.addf %175, %181 : vector<128x2xf32>
    %c0_178 = arith.constant 0 : index
    %c6_179 = arith.constant 6 : index
    %c0_180 = arith.constant 0 : index
    %c0_181 = arith.constant 0 : index
    %183 = vector.load %arg2[%c0_178, %c6_179, %c0_180, %c0_181] : memref<1x14x22x8xbf16, #tpu.memory_space<vmem>>, vector<1x8x16x8xbf16>
    %184 = vector.shape_cast %183 : vector<1x8x16x8xbf16> to vector<8x16x8xbf16>
    %185 = vector.shape_cast %184 : vector<8x16x8xbf16> to vector<128x8xbf16>
    %c24 = arith.constant 24 : index
    %c0_182 = arith.constant 0 : index
    %c0_183 = arith.constant 0 : index
    %186 = vector.load %arg3[%c24, %c0_182, %c0_183] : memref<27x8x2xbf16, #tpu.memory_space<vmem>>, vector<1x8x2xbf16>
    %187 = vector.shape_cast %186 : vector<1x8x2xbf16> to vector<8x2xbf16>
    %cst_184 = arith.constant dense<0.000000e+00> : vector<128x2xf32>
    %188 = tpu.matmul %185, %187, %cst_184 {dimension_numbers = #tpu.dot_dimension_numbers<[1], [0], [0], [1], [0, 0, 1, 1], [], []>} : vector<128x8xbf16>, vector<8x2xbf16>, vector<128x2xf32> -> vector<128x2xf32>
    %189 = arith.addf %182, %188 : vector<128x2xf32>
    %c0_185 = arith.constant 0 : index
    %c6_186 = arith.constant 6 : index
    %c3_187 = arith.constant 3 : index
    %c0_188 = arith.constant 0 : index
    %190 = vector.load %arg2[%c0_185, %c6_186, %c3_187, %c0_188] : memref<1x14x22x8xbf16, #tpu.memory_space<vmem>>, vector<1x8x16x8xbf16>
    %191 = vector.shape_cast %190 : vector<1x8x16x8xbf16> to vector<8x16x8xbf16>
    %192 = vector.shape_cast %191 : vector<8x16x8xbf16> to vector<128x8xbf16>
    %c25 = arith.constant 25 : index
    %c0_189 = arith.constant 0 : index
    %c0_190 = arith.constant 0 : index
    %193 = vector.load %arg3[%c25, %c0_189, %c0_190] : memref<27x8x2xbf16, #tpu.memory_space<vmem>>, vector<1x8x2xbf16>
    %194 = vector.shape_cast %193 : vector<1x8x2xbf16> to vector<8x2xbf16>
    %cst_191 = arith.constant dense<0.000000e+00> : vector<128x2xf32>
    %195 = tpu.matmul %192, %194, %cst_191 {dimension_numbers = #tpu.dot_dimension_numbers<[1], [0], [0], [1], [0, 0, 1, 1], [], []>} : vector<128x8xbf16>, vector<8x2xbf16>, vector<128x2xf32> -> vector<128x2xf32>
    %196 = arith.addf %189, %195 : vector<128x2xf32>
    %c0_192 = arith.constant 0 : index
    %c6_193 = arith.constant 6 : index
    %c6_194 = arith.constant 6 : index
    %c0_195 = arith.constant 0 : index
    %197 = vector.load %arg2[%c0_192, %c6_193, %c6_194, %c0_195] : memref<1x14x22x8xbf16, #tpu.memory_space<vmem>>, vector<1x8x16x8xbf16>
    %198 = vector.shape_cast %197 : vector<1x8x16x8xbf16> to vector<8x16x8xbf16>
    %199 = vector.shape_cast %198 : vector<8x16x8xbf16> to vector<128x8xbf16>
    %c26 = arith.constant 26 : index
    %c0_196 = arith.constant 0 : index
    %c0_197 = arith.constant 0 : index
    %200 = vector.load %arg3[%c26, %c0_196, %c0_197] : memref<27x8x2xbf16, #tpu.memory_space<vmem>>, vector<1x8x2xbf16>
    %201 = vector.shape_cast %200 : vector<1x8x2xbf16> to vector<8x2xbf16>
    %cst_198 = arith.constant dense<0.000000e+00> : vector<128x2xf32>
    %202 = tpu.matmul %199, %201, %cst_198 {dimension_numbers = #tpu.dot_dimension_numbers<[1], [0], [0], [1], [0, 0, 1, 1], [], []>} : vector<128x8xbf16>, vector<8x2xbf16>, vector<128x2xf32> -> vector<128x2xf32>
    %203 = arith.addf %196, %202 : vector<128x2xf32>
    %c2_199 = arith.constant 2 : index
    %c0_200 = arith.constant 0 : index
    %c0_201 = arith.constant 0 : index
    %204 = vector.load %arg4[%c2_199, %c0_200, %c0_201] : memref<3x1x2xf32, #tpu.memory_space<vmem>>, vector<1x1x2xf32>
    %205 = vector.shape_cast %204 : vector<1x1x2xf32> to vector<1x2xf32>
    %206 = vector.broadcast %205 : vector<1x2xf32> to vector<128x2xf32>
    %207 = arith.addf %203, %206 : vector<128x2xf32>
    %cst_202 = arith.constant 0.000000e+00 : f32
    %208 = vector.broadcast %cst_202 : f32 to vector<128x2xf32>
    %209 = arith.maximumf %207, %208 : vector<128x2xf32>
    %c0_203 = arith.constant 0 : index
    %c0_204 = arith.constant 0 : index
    %c0_205 = arith.constant 0 : index
    %210 = vector.load %arg5[%c0_203, %c0_204, %c0_205] : memref<1x1x2xf32, #tpu.memory_space<vmem>>, vector<1x1x2xf32>
    %211 = vector.shape_cast %210 : vector<1x1x2xf32> to vector<1x2xf32>
    %212 = vector.shape_cast %211 : vector<1x2xf32> to vector<1x2xf32>
    %213 = vector.broadcast %212 : vector<1x2xf32> to vector<128x2xf32>
    %214 = tpu.concatenate %69, %139, %209, %213 in 1 : vector<128x2xf32>, vector<128x2xf32>, vector<128x2xf32>, vector<128x2xf32> -> vector<128x8xf32>
    %215 = vector.shape_cast %214 : vector<128x8xf32> to vector<1x8x16x8xf32>
    %c0_206 = arith.constant 0 : index
    %c0_207 = arith.constant 0 : index
    %c0_208 = arith.constant 0 : index
    %c0_209 = arith.constant 0 : index
    %216 = vector.load %arg6[%c0_206, %c0_207, %c0_208, %c0_209] : memref<1x8x16x8xf32, #tpu.memory_space<vmem>>, vector<1x8x16x8xf32>
    tpu.vector_store %arg6[%c0_206, %c0_207, %c0_208, %c0_209], %215 {strides = array<i32>} : memref<1x8x16x8xf32, #tpu.memory_space<vmem>>, vector<1x8x16x8xf32>,
    return
  }
  func.func @transform_0(%arg0: i32, %arg1: i32) -> (i32, i32, i32, i32) {
    %c2_i32 = arith.constant 2 : i32
    %0 = arith.muli %arg0, %c2_i32 : i32
    %1 = arith.addi %0, %arg1 : i32
    %c0_i32 = arith.constant 0 : i32
    %c0_i32_0 = arith.constant 0 : i32
    %c0_i32_1 = arith.constant 0 : i32
    %c0_i32_2 = arith.constant 0 : i32
    return %1, %c0_i32, %c0_i32_0, %c0_i32_1 : i32, i32, i32, i32
  }
  func.func @transform_1(%arg0: i32, %arg1: i32) -> (i32, i32, i32) {
    %c0_i32 = arith.constant 0 : i32
    %c0_i32_0 = arith.constant 0 : i32
    %c0_i32_1 = arith.constant 0 : i32
    %c0_i32_2 = arith.constant 0 : i32
    return %c0_i32, %c0_i32_0, %c0_i32_1 : i32, i32, i32
  }
  func.func @transform_2(%arg0: i32, %arg1: i32) -> (i32, i32, i32) {
    %c0_i32 = arith.constant 0 : i32
    %c0_i32_0 = arith.constant 0 : i32
    %c0_i32_1 = arith.constant 0 : i32
    %c0_i32_2 = arith.constant 0 : i32
    return %c0_i32, %c0_i32_0, %c0_i32_1 : i32, i32, i32
  }
  func.func @transform_3(%arg0: i32, %arg1: i32) -> (i32, i32, i32) {
    %c0_i32 = arith.constant 0 : i32
    %c0_i32_0 = arith.constant 0 : i32
    %c0_i32_1 = arith.constant 0 : i32
    return %arg0, %c0_i32, %c0_i32_0 : i32, i32, i32
  }
  func.func @transform_4(%arg0: i32, %arg1: i32) -> (i32, i32, i32, i32) {
    %c0_i32 = arith.constant 0 : i32
    %c0_i32_0 = arith.constant 0 : i32
    %c0_i32_1 = arith.constant 0 : i32
    return %arg0, %arg1, %c0_i32, %c0_i32_0 : i32, i32, i32, i32
  }
}

</mosaic_0001>

<llo_original>
// kernel: _lambda_.2
$region0: #{_lambda_.2}
  #allocation0 [shape = 'u32[]', space=smem, size = 0x4, offset = 0x4, fixed_abs, tag = 'smem constant byte address 0x4 - core index']
  #allocation1 [shape = 'u32[72,128]{1,0:T(1,128)}', space=vmem, size = 0x9000, scoped, tag = 'internal scratch']
  %s0 = inlined_call_operand.vmem [shape: bf16[2,16,16,8], index: 0, kind: input, shape index: {}]
  %s1 = inlined_call_operand.vmem [shape: f32[8,2], index: 1, kind: input, shape index: {}]
  %s2 = inlined_call_operand.vmem [shape: f32[1,2], index: 2, kind: input, shape index: {}]
  %s3 = inlined_call_operand.vmem [shape: f32[2,1,2], index: 3, kind: output, shape index: {}]
  %s4 = sld [smem:[#allocation0]]
  $region45: #{_lambda_.2} parent=0
    _
  %s6 = ssub.s32 1, %s4
  %s7 = scalar_select 0, %s6, %s4
  loop: start=0, step=1, limit=4
  $region2: #{_lambda_.2} parent=0 // loop_pre_header
    _
  $region3: #{_lambda_.2} parent=0 // loop_header
    %s9 = sphi 0, %s13
    %p10 = scmp.ge.s32.totalorder %s9, 4
    %s19 = sphi 0, %s21
    %s22 = sphi 0, %s19
    %s23 = sphi 0, %s22
    %s39 = sphi 0, %s23
    %s43 = sphi 0, %s43
    %s45 = sphi 0, %s43
    %s46 = sphi 0, %s45
    %s60 = sphi 0, %s46
    %s64 = sphi 0, %s64
    %s66 = sphi 0, %s64
    %s67 = sphi 0, %s66
    %s81 = sphi 0, %s67
    %s87 = sphi 0, %s89
    %s90 = sphi 0, %s87
    %s91 = sphi 0, %s90
    %s107 = sphi 0, %s91
  $region4: #{_lambda_.2} parent=0 // loop_header_branch
    %12 = sbr.rel (%p10) target = $region8
  $region5: #{_lambda_.2} parent=0 // loop_body
    %s14 = ssub.s32 %s9, 1
    %s15 = ssub.s32 %s9, 2
    %s16 = sadd.s32 %s9, 1
    %s17 = ssub.s32 %s9, %s16
    %p18 = scmp.eq.s32.totalorder %s17, 0
    %s20 = sadd.s32 %s19, 1
    %s21 = scalar_select %p18, %s19, %s20
    %p24 = pneg %p18
    %p25 = scmp.eq.s32.totalorder %s9, 1
    %p26 = por %p24, %p25
    %p27 = scmp.ne.s32.totalorder %s19, %s22
    %p28 = scmp.eq.s32.totalorder %s9, 0
    %p29 = por %p27, %p28
    %p30 = scmp.ne.s32.totalorder %s19, %s22
    %p31 = scmp.eq.s32.totalorder %s14, 1
    %p32 = por %p30, %p31
    %p33 = scmp.ne.s32.totalorder %s22, %s23
    %p34 = scmp.eq.s32.totalorder %s14, 0
    %p35 = por %p33, %p34
    %p36 = scmp.ne.s32.totalorder %s22, %s23
    %p37 = scmp.eq.s32.totalorder %s15, 1
    %p38 = por %p36, %p37
    %p40 = scmp.ne.s32.totalorder %s23, %s39
    %p41 = scmp.eq.s32.totalorder %s15, 0
    %p42 = por %p40, %p41
    %s44 = sadd.s32 %s43, 1
    %p47 = scmp.eq.s32.totalorder %s9, 1
    %p48 = scmp.ne.s32.totalorder %s43, %s45
    %p49 = scmp.eq.s32.totalorder %s9, 0
    %p50 = por %p48, %p49
    %p51 = scmp.ne.s32.totalorder %s43, %s45
    %p52 = scmp.eq.s32.totalorder %s14, 1
    %p53 = por %p51, %p52
    %p54 = scmp.ne.s32.totalorder %s45, %s46
    %p55 = scmp.eq.s32.totalorder %s14, 0
    %p56 = por %p54, %p55
    %p57 = scmp.ne.s32.totalorder %s45, %s46
    %p58 = scmp.eq.s32.totalorder %s15, 1
    %p59 = por %p57, %p58
    %p61 = scmp.ne.s32.totalorder %s46, %s60
    %p62 = scmp.eq.s32.totalorder %s15, 0
    %p63 = por %p61, %p62
    %s65 = sadd.s32 %s64, 1
    %p68 = scmp.eq.s32.totalorder %s9, 1
    %p69 = scmp.ne.s32.totalorder %s64, %s66
    %p70 = scmp.eq.s32.totalorder %s9, 0
    %p71 = por %p69, %p70
    %p72 = scmp.ne.s32.totalorder %s64, %s66
    %p73 = scmp.eq.s32.totalorder %s14, 1
    %p74 = por %p72, %p73
    %p75 = scmp.ne.s32.totalorder %s66, %s67
    %p76 = scmp.eq.s32.totalorder %s14, 0
    %p77 = por %p75, %p76
    %p78 = scmp.ne.s32.totalorder %s66, %s67
    %p79 = scmp.eq.s32.totalorder %s15, 1
    %p80 = por %p78, %p79
    %p82 = scmp.ne.s32.totalorder %s67, %s81
    %p83 = scmp.eq.s32.totalorder %s15, 0
    %p84 = por %p82, %p83
    %s85 = ssub.s32 %s9, %s16
    %p86 = scmp.eq.s32.totalorder %s85, 0
    %s88 = sadd.s32 %s87, 1
    %s89 = scalar_select %p86, %s87, %s88
    %p92 = pneg %p86
    %p93 = scmp.eq.s32.totalorder %s9, 1
    %p94 = por %p92, %p93
    %p95 = scmp.ne.s32.totalorder %s87, %s90
    %p96 = scmp.eq.s32.totalorder %s9, 0
    %p97 = por %p95, %p96
    %p98 = scmp.ne.s32.totalorder %s87, %s90
    %p99 = scmp.eq.s32.totalorder %s14, 1
    %p100 = por %p98, %p99
    %p101 = scmp.ne.s32.totalorder %s90, %s91
    %p102 = scmp.eq.s32.totalorder %s14, 0
    %p103 = por %p101, %p102
    %p104 = scmp.ne.s32.totalorder %s90, %s91
    %p105 = scmp.eq.s32.totalorder %s15, 1
    %p106 = por %p104, %p105
    %p108 = scmp.ne.s32.totalorder %s91, %s107
    %p109 = scmp.eq.s32.totalorder %s15, 0
    %p110 = por %p108, %p109
    %p111 = scmp.le.s32.totalorder 1, %s9
    %p112 = scmp.lt.s32.totalorder %s9, 3
    %p113 = pnand %p111, %p112
    %p114 = pneg %p113
    // Predicated region
    $region9: #{_lambda_.2} parent=5 // pred_check
      _
    $region10: #{_lambda_.2} parent=5 // pred_check_branch
      %116 = sbr.rel (%p113) target = $region12
    $region11: #{_lambda_.2} parent=5 // pred_region
      %s117 = ssub.s32 %s9, 1
      // Predicated region
      $region13: #{_lambda_.2} parent=11 // pred_check
        %p118 = pneg %p56
      $region14: #{_lambda_.2} parent=11 // pred_check_branch
        %120 = sbr.rel (%p118) target = $region16
      $region15: #{_lambda_.2} parent=11 // pred_region
        _
      $region16: #{_lambda_.2} parent=11 // pred_fallthru
        _
      // Predicated region
      $region17: #{_lambda_.2} parent=11 // pred_check
        %p121 = pneg %p77
      $region18: #{_lambda_.2} parent=11 // pred_check_branch
        %123 = sbr.rel (%p121) target = $region20
      $region19: #{_lambda_.2} parent=11 // pred_region
        _
      $region20: #{_lambda_.2} parent=11 // pred_fallthru
        _
    $region12: #{_lambda_.2} parent=5 // pred_fallthru
      _
    %p124 = scmp.lt.s32.totalorder %s9, 2
    // Predicated region
    $region21: #{_lambda_.2} parent=5 // pred_check
      %p125 = pneg %p124
    $region22: #{_lambda_.2} parent=5 // pred_check_branch
      %127 = sbr.rel (%p125) target = $region24
    $region23: #{_lambda_.2} parent=5 // pred_region
      // Predicated region
      $region25: #{_lambda_.2} parent=23 // pred_check
        %p128 = pneg %p29
      $region26: #{_lambda_.2} parent=23 // pred_check_branch
        %130 = sbr.rel (%p128) target = $region28
      $region27: #{_lambda_.2} parent=23 // pred_region
        %p131 = scmp.lt.s32.totalorder %s9, 1
        %s132 = scalar_select %p131, %s9, 1
        %s133 = smul.addr %s132, 32
        %s134 = smul.addr %s133, 4
        %s135 = scalar_lea.vmem %s0, %s134
      $region28: #{_lambda_.2} parent=23 // pred_fallthru
        _
    $region24: #{_lambda_.2} parent=5 // pred_fallthru
      _
    %p136 = scmp.le.s32.totalorder 1, %s9
    %p137 = scmp.lt.s32.totalorder %s9, 3
    %p138 = pnand %p136, %p137
    %p139 = pneg %p138
    // Predicated region
    $region29: #{_lambda_.2} parent=5 // pred_check
      _
    $region30: #{_lambda_.2} parent=5 // pred_check_branch
      %141 = sbr.rel (%p138) target = $region32
    $region31: #{_lambda_.2} parent=5 // pred_region
      %s142 = ssub.s32 %s9, 1
      %p143 = scmp.lt.s32.totalorder %s14, 1
      %s144 = scalar_select %p143, %s14, 1
      %s145 = smul.addr %s144, 32
      %s146 = smul.addr %s145, 4
      %s147 = scalar_lea.vmem %s0, %s146
      %p148 = pneg %p35
      %p149 = pneg %p32
      %p150 = pneg %p56
      %p151 = pneg %p53
      %p152 = pneg %p77
      %p153 = pneg %p74
      %p154 = pneg %p103
      %p155 = pneg %p100
      %p156 = scmp.lt.s32.totalorder %s14, 1
      %s157 = scalar_select %p156, %s14, 1
      %s158 = scalar_lea.vmem %s3, %s157
      %p159 = scmp.lt.s32.totalorder %s14, 1
      %s160 = scalar_select %p159, %s14, 1
      %s161 = smul.addr %s160, 32
      %s162 = smul.addr %s161, 4
      %s163 = scalar_lea.vmem %s0, %s162
      %p164 = scmp.lt.s32.totalorder %s14, 1
      %s165 = scalar_select %p164, %s14, 1
      %s166 = scalar_lea.vmem %s3, %s165
      %v167 = vld [vmem:[%s163] sm:$0xf]
      %v168 = vld [vmem:[%s163 + $0x4] sm:$0xf]
      %v169 = vld [vmem:[%s163 + $0x8] sm:$0xf]
      %v170 = vld [vmem:[%s163 + $0xc] sm:$0xf]
      %v171 = vld [vmem:[%s163 + $0x10] sm:$0xf]
      %v172 = vld [vmem:[%s163 + $0x14] sm:$0xf]
      %v173 = vld [vmem:[%s163 + $0x18] sm:$0xf]
      %v174 = vld [vmem:[%s163 + $0x1c] sm:$0xf]
      %v175 = vld [vmem:[%s163 + $0x20] sm:$0xf]
      %v176 = vld [vmem:[%s163 + $0x24] sm:$0xf]
      %v177 = vld [vmem:[%s163 + $0x28] sm:$0xf]
      %v178 = vld [vmem:[%s163 + $0x2c] sm:$0xf]
      %v179 = vld [vmem:[%s163 + $0x30] sm:$0xf]
      %v180 = vld [vmem:[%s163 + $0x34] sm:$0xf]
      %v181 = vld [vmem:[%s163 + $0x38] sm:$0xf]
      %v182 = vld [vmem:[%s163 + $0x3c] sm:$0xf]
      %v183 = vld [vmem:[%s163 + $0x40] sm:$0xf]
      %v184 = vld [vmem:[%s163 + $0x44] sm:$0xf]
      %v185 = vld [vmem:[%s163 + $0x48] sm:$0xf]
      %v186 = vld [vmem:[%s163 + $0x4c] sm:$0xf]
      %v187 = vld [vmem:[%s163 + $0x50] sm:$0xf]
      %v188 = vld [vmem:[%s163 + $0x54] sm:$0xf]
      %v189 = vld [vmem:[%s163 + $0x58] sm:$0xf]
      %v190 = vld [vmem:[%s163 + $0x5c] sm:$0xf]
      %v191 = vld [vmem:[%s163 + $0x60] sm:$0xf]
      %v192 = vld [vmem:[%s163 + $0x64] sm:$0xf]
      %v193 = vld [vmem:[%s163 + $0x68] sm:$0xf]
      %v194 = vld [vmem:[%s163 + $0x6c] sm:$0xf]
      %v195 = vld [vmem:[%s163 + $0x70] sm:$0xf]
      %v196 = vld [vmem:[%s163 + $0x74] sm:$0xf]
      %v197 = vld [vmem:[%s163 + $0x78] sm:$0xf]
      %v198 = vld [vmem:[%s163 + $0x7c] sm:$0xf]
      %v199 = vunpack.c.l.bf16 %v167
      %v200 = vunpack.c.l.bf16 %v168
      %v201 = vunpack.c.l.bf16 %v169
      %v202 = vunpack.c.l.bf16 %v170
      %v203 = vunpack.c.l.bf16 %v171
      %v204 = vunpack.c.l.bf16 %v172
      %v205 = vunpack.c.l.bf16 %v173
      %v206 = vunpack.c.l.bf16 %v174
      %v207 = vunpack.c.l.bf16 %v175
      %v208 = vunpack.c.l.bf16 %v176
      %v209 = vunpack.c.l.bf16 %v177
      %v210 = vunpack.c.l.bf16 %v178
      %v211 = vunpack.c.l.bf16 %v179
      %v212 = vunpack.c.l.bf16 %v180
      %v213 = vunpack.c.l.bf16 %v181
      %v214 = vunpack.c.l.bf16 %v182
      %v215 = vunpack.c.l.bf16 %v183
      %v216 = vunpack.c.l.bf16 %v184
      %v217 = vunpack.c.l.bf16 %v185
      %v218 = vunpack.c.l.bf16 %v186
      %v219 = vunpack.c.l.bf16 %v187
      %v220 = vunpack.c.l.bf16 %v188
      %v221 = vunpack.c.l.bf16 %v189
      %v222 = vunpack.c.l.bf16 %v190
      %v223 = vunpack.c.l.bf16 %v191
      %v224 = vunpack.c.l.bf16 %v192
      %v225 = vunpack.c.l.bf16 %v193
      %v226 = vunpack.c.l.bf16 %v194
      %v227 = vunpack.c.l.bf16 %v195
      %v228 = vunpack.c.l.bf16 %v196
      %v229 = vunpack.c.l.bf16 %v197
      %v230 = vunpack.c.l.bf16 %v198
      %vm231 = vcmask 64512
      %v232 = vsel %vm231, %v199, 0.0
      %v233 = vsel %vm231, %v200, 0.0
      %v234 = vadd.f32 %v232, %v233
      %v235 = vsel %vm231, %v201, 0.0
      %v236 = vadd.f32 %v234, %v235
      %v237 = vsel %vm231, %v202, 0.0
      %v238 = vadd.f32 %v236, %v237
      %v239 = vsel %vm231, %v203, 0.0
      %v240 = vadd.f32 %v238, %v239
      %v241 = vsel %vm231, %v204, 0.0
      %v242 = vadd.f32 %v240, %v241
      %v243 = vsel %vm231, %v205, 0.0
      %v244 = vadd.f32 %v242, %v243
      %v245 = vsel %vm231, %v206, 0.0
      %v246 = vadd.f32 %v244, %v245
      %v247 = vsel %vm231, %v207, 0.0
      %v248 = vadd.f32 %v246, %v247
      %v249 = vsel %vm231, %v208, 0.0
      %v250 = vadd.f32 %v248, %v249
      %v251 = vsel %vm231, %v209, 0.0
      %v252 = vadd.f32 %v250, %v251
      %v253 = vsel %vm231, %v210, 0.0
      %v254 = vadd.f32 %v252, %v253
      %v255 = vsel %vm231, %v211, 0.0
      %v256 = vadd.f32 %v254, %v255
      %v257 = vsel %vm231, %v212, 0.0
      %v258 = vadd.f32 %v256, %v257
      %v259 = vsel %vm231, %v213, 0.0
      %v260 = vadd.f32 %v258, %v259
      %v261 = vsel %vm231, %v214, 0.0
      %v262 = vadd.f32 %v260, %v261
      %v263 = vsel %vm231, %v215, 0.0
      %v264 = vadd.f32 %v262, %v263
      %v265 = vsel %vm231, %v216, 0.0
      %v266 = vadd.f32 %v264, %v265
      %v267 = vsel %vm231, %v217, 0.0
      %v268 = vadd.f32 %v266, %v267
      %v269 = vsel %vm231, %v218, 0.0
      %v270 = vadd.f32 %v268, %v269
      %v271 = vsel %vm231, %v219, 0.0
      %v272 = vadd.f32 %v270, %v271
      %v273 = vsel %vm231, %v220, 0.0
      %v274 = vadd.f32 %v272, %v273
      %v275 = vsel %vm231, %v221, 0.0
      %v276 = vadd.f32 %v274, %v275
      %v277 = vsel %vm231, %v222, 0.0
      %v278 = vadd.f32 %v276, %v277
      %v279 = vsel %vm231, %v223, 0.0
      %v280 = vadd.f32 %v278, %v279
      %v281 = vsel %vm231, %v224, 0.0
      %v282 = vadd.f32 %v280, %v281
      %v283 = vsel %vm231, %v225, 0.0
      %v284 = vadd.f32 %v282, %v283
      %v285 = vsel %vm231, %v226, 0.0
      %v286 = vadd.f32 %v284, %v285
      %v287 = vsel %vm231, %v227, 0.0
      %v288 = vadd.f32 %v286, %v287
      %v289 = vsel %vm231, %v228, 0.0
      %v290 = vadd.f32 %v288, %v289
      %v291 = vsel %vm231, %v229, 0.0
      %v292 = vadd.f32 %v290, %v291
      %v293 = vsel %vm231, %v230, 0.0
      %v294 = vadd.f32 %v292, %v293
      %v295 = vrot.slane %v294, 4
      %v296 = vadd.f32 %v294, %v295
      %v297 = vrot.slane %v296, 2
      %v298 = vadd.f32 %v296, %v297
      %v299 = vrot.slane %v298, 1
      %v300 = vadd.f32 %v298, %v299
      %v301 = vrcp.pop 256.0
      %v302 = vmul.f32 256.0, %v301
      %v303 = vsub.f32 1.0, %v302
      %v304 = vmul.f32 %v301, %v303
      %v305 = vadd.f32 %v301, %v304
      %vm306 = vweird.f32 %v301
      %v307 = vsel %vm306, %v301, %v305
      %v308 = vmul.f32 %v300, %v307
      %v309 = vld [vmem:[%s1] sm:$0xff]
      %v310 = vld [vmem:[%s2] sm:$0x1]
      %v312 = vsel %vm231, %v308, 0
      %314 = vmatpush.msra.mxu0 0.0
      %315 = vmatpush.msra.mxu0 0.0
      %316 = vmatpush.msra.mxu0 0.0
      %317 = vmatpush.msra.mxu0 0.0
      %318 = vmatpush.msra.mxu0 0.0
      %319 = vmatpush.msra.mxu0 0.0
      %320 = vmatpush.msra.mxu0 0.0
      %321 = vmatpush.msra.mxu0 0.0
      %322 = vmatpush.msra.mxu0 0.0
      %323 = vmatpush.msra.mxu0 0.0
      %324 = vmatpush.msra.mxu0 0.0
      %325 = vmatpush.msra.mxu0 0.0
      %326 = vmatpush.msra.mxu0 0.0
      %327 = vmatpush.msra.mxu0 0.0
      %328 = vmatpush.msra.mxu0 0.0
      %329 = vmatpush.msra.mxu0 %v309
      %330 = vmatmul.f32.gmra.mxu0 %v312
      %v331 = vpop.f32.mrf.mxu0
      %v332 = vadd.f32 %v310, %v331
      %333 = vdwg.mxu0
      %v334 = vmax.f32 %v332, 0.0
      %vm335 = vcmask 8192
      %336 = vst.msk [vmem:[%s166] sm:$0x1] %vm335, %v334
      %p337 = scmp.lt.s32.totalorder %s14, 1
      %s338 = scalar_select %p337, %s14, 1
      %s339 = scalar_lea.vmem %s3, %s338
      // Predicated region
      $region33: #{_lambda_.2} parent=31 // pred_check
        %p340 = pneg %p100
      $region34: #{_lambda_.2} parent=31 // pred_check_branch
        %342 = sbr.rel (%p340) target = $region36
      $region35: #{_lambda_.2} parent=31 // pred_region
        _
      $region36: #{_lambda_.2} parent=31 // pred_fallthru
        _
    $region32: #{_lambda_.2} parent=5 // pred_fallthru
      _
    %p343 = scmp.le.s32.totalorder 2, %s9
    // Predicated region
    $region37: #{_lambda_.2} parent=5 // pred_check
      %p344 = pneg %p343
    $region38: #{_lambda_.2} parent=5 // pred_check_branch
      %346 = sbr.rel (%p344) target = $region40
    $region39: #{_lambda_.2} parent=5 // pred_region
      %s347 = ssub.s32 %s9, 2
      // Predicated region
      $region41: #{_lambda_.2} parent=39 // pred_check
        %p348 = pneg %p106
      $region42: #{_lambda_.2} parent=39 // pred_check_branch
        %350 = sbr.rel (%p348) target = $region44
      $region43: #{_lambda_.2} parent=39 // pred_region
        %p351 = scmp.lt.s32.totalorder %s15, 1
        %s352 = scalar_select %p351, %s15, 1
        %s353 = scalar_lea.vmem %s3, %s352
      $region44: #{_lambda_.2} parent=39 // pred_fallthru
        _
    $region40: #{_lambda_.2} parent=5 // pred_fallthru
      _
  $region6: #{_lambda_.2} parent=0 // loop_footer
    %s13 = sadd.s32 1, %s9
  $region7: #{_lambda_.2} parent=0 // loop_footer_branch
    %8 = sbr.rel target = $region3
  $region8: #{_lambda_.2} parent=0 // loop_exit
    _

// kernel: _lambda_.3
$region0: #{_lambda_.3}
  #allocation0 [shape = 'u32[]', space=smem, size = 0x4, offset = 0x4, fixed_abs, tag = 'smem constant byte address 0x4 - core index']
  #allocation1 [shape = 'u32[72,128]{1,0:T(1,128)}', space=vmem, size = 0x9000, scoped, tag = 'internal scratch']
  %s0 = inlined_call_operand.vmem [shape: bf16[4,14,22,8], index: 0, kind: input, shape index: {}]
  %s1 = inlined_call_operand.vmem [shape: bf16[27,8,2], index: 1, kind: input, shape index: {}]
  %s2 = inlined_call_operand.vmem [shape: f32[3,1,2], index: 2, kind: input, shape index: {}]
  %s3 = inlined_call_operand.vmem [shape: f32[2,1,2], index: 3, kind: input, shape index: {}]
  %s4 = inlined_call_operand.vmem [shape: f32[2,16,16,8], index: 4, kind: output, shape index: {}]
  %s5 = sld [smem:[#allocation0]]
  $region49: #{_lambda_.3} parent=0
    _
  %s7 = ssub.s32 1, %s5
  %s8 = scalar_select 0, %s7, %s5
  loop: start=0, step=1, limit=6
  $region2: #{_lambda_.3} parent=0 // loop_pre_header
    _
  $region3: #{_lambda_.3} parent=0 // loop_header
    %s10 = sphi 0, %s14
    %p11 = scmp.ge.s32.totalorder %s10, 6
    %s17 = sphi 0, %s29
    %s18 = sphi 0, %s25
    %s19 = sphi 0, %s17
    %s20 = sphi 0, %s18
    %s21 = sphi 0, %s19
    %s22 = sphi 0, %s20
    %s36 = sphi 0, %s38
    %s39 = sphi 0, %s36
    %s40 = sphi 0, %s39
    %s56 = sphi 0, %s40
    %s60 = sphi 0, %s60
    %s62 = sphi 0, %s60
    %s63 = sphi 0, %s62
    %s77 = sphi 0, %s63
    %s81 = sphi 0, %s81
    %s83 = sphi 0, %s81
    %s84 = sphi 0, %s83
    %s98 = sphi 0, %s84
    %s104 = sphi 0, %s106
    %s107 = sphi 0, %s104
    %s108 = sphi 0, %s107
    %s124 = sphi 0, %s108
    %s132 = sphi 0, %s134
    %s135 = sphi 0, %s132
    %s136 = sphi 0, %s135
    %s152 = sphi 0, %s136
  $region4: #{_lambda_.3} parent=0 // loop_header_branch
    %13 = sbr.rel (%p11) target = $region8
  $region5: #{_lambda_.3} parent=0 // loop_body
    %s15 = ssub.s32 %s10, 1
    %s16 = ssub.s32 %s10, 2
    %s23 = sadd.s32 1, %s18
    %p24 = scmp.ge.s32.totalorder %s23, 2
    %s25 = scalar_select %p24, 0, %s23
    %s26 = sadd.s32 1, %s17
    %s27 = scalar_select %p24, %s26, %s17
    %p28 = scmp.ge.s32.totalorder %s27, 2
    %s29 = scalar_select %p28, 0, %s27
    %s30 = smul.u32 %s17, 2
    %s31 = sadd.s32 %s30, %s18
    %s32 = smul.u32 %s29, 2
    %s33 = sadd.s32 %s32, %s25
    %s34 = ssub.s32 %s31, %s33
    %p35 = scmp.eq.s32.totalorder %s34, 0
    %s37 = sadd.s32 %s36, 1
    %s38 = scalar_select %p35, %s36, %s37
    %p41 = pneg %p35
    %p42 = scmp.eq.s32.totalorder %s10, 3
    %p43 = por %p41, %p42
    %p44 = scmp.ne.s32.totalorder %s36, %s39
    %p45 = scmp.eq.s32.totalorder %s10, 0
    %p46 = por %p44, %p45
    %p47 = scmp.ne.s32.totalorder %s36, %s39
    %p48 = scmp.eq.s32.totalorder %s15, 3
    %p49 = por %p47, %p48
    %p50 = scmp.ne.s32.totalorder %s39, %s40
    %p51 = scmp.eq.s32.totalorder %s15, 0
    %p52 = por %p50, %p51
    %p53 = scmp.ne.s32.totalorder %s39, %s40
    %p54 = scmp.eq.s32.totalorder %s16, 3
    %p55 = por %p53, %p54
    %p57 = scmp.ne.s32.totalorder %s40, %s56
    %p58 = scmp.eq.s32.totalorder %s16, 0
    %p59 = por %p57, %p58
    %s61 = sadd.s32 %s60, 1
    %p64 = scmp.eq.s32.totalorder %s10, 3
    %p65 = scmp.ne.s32.totalorder %s60, %s62
    %p66 = scmp.eq.s32.totalorder %s10, 0
    %p67 = por %p65, %p66
    %p68 = scmp.ne.s32.totalorder %s60, %s62
    %p69 = scmp.eq.s32.totalorder %s15, 3
    %p70 = por %p68, %p69
    %p71 = scmp.ne.s32.totalorder %s62, %s63
    %p72 = scmp.eq.s32.totalorder %s15, 0
    %p73 = por %p71, %p72
    %p74 = scmp.ne.s32.totalorder %s62, %s63
    %p75 = scmp.eq.s32.totalorder %s16, 3
    %p76 = por %p74, %p75
    %p78 = scmp.ne.s32.totalorder %s63, %s77
    %p79 = scmp.eq.s32.totalorder %s16, 0
    %p80 = por %p78, %p79
    %s82 = sadd.s32 %s81, 1
    %p85 = scmp.eq.s32.totalorder %s10, 3
    %p86 = scmp.ne.s32.totalorder %s81, %s83
    %p87 = scmp.eq.s32.totalorder %s10, 0
    %p88 = por %p86, %p87
    %p89 = scmp.ne.s32.totalorder %s81, %s83
    %p90 = scmp.eq.s32.totalorder %s15, 3
    %p91 = por %p89, %p90
    %p92 = scmp.ne.s32.totalorder %s83, %s84
    %p93 = scmp.eq.s32.totalorder %s15, 0
    %p94 = por %p92, %p93
    %p95 = scmp.ne.s32.totalorder %s83, %s84
    %p96 = scmp.eq.s32.totalorder %s16, 3
    %p97 = por %p95, %p96
    %p99 = scmp.ne.s32.totalorder %s84, %s98
    %p100 = scmp.eq.s32.totalorder %s16, 0
    %p101 = por %p99, %p100
    %s102 = ssub.s32 %s17, %s29
    %p103 = scmp.eq.s32.totalorder %s102, 0
    %s105 = sadd.s32 %s104, 1
    %s106 = scalar_select %p103, %s104, %s105
    %p109 = pneg %p103
    %p110 = scmp.eq.s32.totalorder %s10, 3
    %p111 = por %p109, %p110
    %p112 = scmp.ne.s32.totalorder %s104, %s107
    %p113 = scmp.eq.s32.totalorder %s10, 0
    %p114 = por %p112, %p113
    %p115 = scmp.ne.s32.totalorder %s104, %s107
    %p116 = scmp.eq.s32.totalorder %s15, 3
    %p117 = por %p115, %p116
    %p118 = scmp.ne.s32.totalorder %s107, %s108
    %p119 = scmp.eq.s32.totalorder %s15, 0
    %p120 = por %p118, %p119
    %p121 = scmp.ne.s32.totalorder %s107, %s108
    %p122 = scmp.eq.s32.totalorder %s16, 3
    %p123 = por %p121, %p122
    %p125 = scmp.ne.s32.totalorder %s108, %s124
    %p126 = scmp.eq.s32.totalorder %s16, 0
    %p127 = por %p125, %p126
    %s128 = ssub.s32 %s17, %s29
    %s129 = ssub.s32 %s18, %s25
    %s130 = sor.u32 %s128, %s129
    %p131 = scmp.eq.s32.totalorder %s130, 0
    %s133 = sadd.s32 %s132, 1
    %s134 = scalar_select %p131, %s132, %s133
    %p137 = pneg %p131
    %p138 = scmp.eq.s32.totalorder %s10, 3
    %p139 = por %p137, %p138
    %p140 = scmp.ne.s32.totalorder %s132, %s135
    %p141 = scmp.eq.s32.totalorder %s10, 0
    %p142 = por %p140, %p141
    %p143 = scmp.ne.s32.totalorder %s132, %s135
    %p144 = scmp.eq.s32.totalorder %s15, 3
    %p145 = por %p143, %p144
    %p146 = scmp.ne.s32.totalorder %s135, %s136
    %p147 = scmp.eq.s32.totalorder %s15, 0
    %p148 = por %p146, %p147
    %p149 = scmp.ne.s32.totalorder %s135, %s136
    %p150 = scmp.eq.s32.totalorder %s16, 3
    %p151 = por %p149, %p150
    %p153 = scmp.ne.s32.totalorder %s136, %s152
    %p154 = scmp.eq.s32.totalorder %s16, 0
    %p155 = por %p153, %p154
    %p156 = scmp.le.s32.totalorder 1, %s10
    %p157 = scmp.lt.s32.totalorder %s10, 5
    %p158 = pnand %p156, %p157
    %p159 = pneg %p158
    // Predicated region
    $region9: #{_lambda_.3} parent=5 // pred_check
      _
    $region10: #{_lambda_.3} parent=5 // pred_check_branch
      %161 = sbr.rel (%p158) target = $region12
    $region11: #{_lambda_.3} parent=5 // pred_region
      %s162 = ssub.s32 %s10, 1
      // Predicated region
      $region13: #{_lambda_.3} parent=11 // pred_check
        %p163 = pneg %p73
      $region14: #{_lambda_.3} parent=11 // pred_check_branch
        %165 = sbr.rel (%p163) target = $region16
      $region15: #{_lambda_.3} parent=11 // pred_region
        _
      $region16: #{_lambda_.3} parent=11 // pred_fallthru
        _
      // Predicated region
      $region17: #{_lambda_.3} parent=11 // pred_check
        %p166 = pneg %p94
      $region18: #{_lambda_.3} parent=11 // pred_check_branch
        %168 = sbr.rel (%p166) target = $region20
      $region19: #{_lambda_.3} parent=11 // pred_region
        _
      $region20: #{_lambda_.3} parent=11 // pred_fallthru
        _
    $region12: #{_lambda_.3} parent=5 // pred_fallthru
      _
    %p169 = scmp.lt.s32.totalorder %s10, 4
    // Predicated region
    $region21: #{_lambda_.3} parent=5 // pred_check
      %p170 = pneg %p169
    $region22: #{_lambda_.3} parent=5 // pred_check_branch
      %172 = sbr.rel (%p170) target = $region24
    $region23: #{_lambda_.3} parent=5 // pred_region
      // Predicated region
      $region25: #{_lambda_.3} parent=23 // pred_check
        %p173 = pneg %p46
      $region26: #{_lambda_.3} parent=23 // pred_check_branch
        %175 = sbr.rel (%p173) target = $region28
      $region27: #{_lambda_.3} parent=23 // pred_region
        %s176 = smul.u32 %s17, 2
        %s177 = sadd.s32 %s176, %s18
        %p178 = scmp.lt.s32.totalorder %s177, 3
        %s179 = scalar_select %p178, %s177, 3
        %s180 = smul.addr %s179, 42
        %s181 = smul.addr %s180, 4
        %s182 = scalar_lea.vmem %s0, %s181
        %s183 = smul.u32 %s17, 2
        %s184 = sadd.s32 %s183, %s18
      $region28: #{_lambda_.3} parent=23 // pred_fallthru
        _
      // Predicated region
      $region29: #{_lambda_.3} parent=23 // pred_check
        %p185 = pneg %p114
      $region30: #{_lambda_.3} parent=23 // pred_check_branch
        %187 = sbr.rel (%p185) target = $region32
      $region31: #{_lambda_.3} parent=23 // pred_region
        %p188 = scmp.lt.s32.totalorder %s17, 1
        %s189 = scalar_select %p188, %s17, 1
        %s190 = scalar_lea.vmem %s3, %s189
      $region32: #{_lambda_.3} parent=23 // pred_fallthru
        _
    $region24: #{_lambda_.3} parent=5 // pred_fallthru
      _
    %p191 = scmp.le.s32.totalorder 1, %s10
    %p192 = scmp.lt.s32.totalorder %s10, 5
    %p193 = pnand %p191, %p192
    %p194 = pneg %p193
    // Predicated region
    $region33: #{_lambda_.3} parent=5 // pred_check
      _
    $region34: #{_lambda_.3} parent=5 // pred_check_branch
      %196 = sbr.rel (%p193) target = $region36
    $region35: #{_lambda_.3} parent=5 // pred_region
      %s197 = ssub.s32 %s10, 1
      %s198 = smul.u32 %s19, 2
      %s199 = sadd.s32 %s198, %s20
      %p200 = scmp.lt.s32.totalorder %s199, 3
      %s201 = scalar_select %p200, %s199, 3
      %s202 = smul.addr %s201, 42
      %s203 = smul.addr %s202, 4
      %s204 = scalar_lea.vmem %s0, %s203
      %p205 = pneg %p52
      %p206 = pneg %p49
      %p207 = pneg %p73
      %p208 = pneg %p70
      %p209 = pneg %p94
      %p210 = pneg %p91
      %p211 = scmp.lt.s32.totalorder %s19, 1
      %s212 = scalar_select %p211, %s19, 1
      %s213 = scalar_lea.vmem %s3, %s212
      %p214 = pneg %p120
      %p215 = pneg %p117
      %p216 = pneg %p148
      %p217 = pneg %p145
      %s218 = smul.u32 8, %s20
      %p219 = scmp.lt.s32.totalorder %s19, 1
      %s220 = scalar_select %p219, %s19, 1
      %p221 = scmp.lt.s32.totalorder %s218, 15
      %s222 = scalar_select %p221, %s218, 15
      %s223 = smul.addr %s222, 2
      %s224 = smul.addr %s220, 32
      %s225 = sadd.s32 %s223, %s224
      %s226 = smul.addr %s225, 8
      %s227 = scalar_lea.vmem %s4, %s226
      %s228 = smul.u32 %s19, 2
      %s229 = sadd.s32 %s228, %s20
      %p230 = scmp.lt.s32.totalorder %s229, 3
      %s231 = scalar_select %p230, %s229, 3
      %s232 = smul.addr %s231, 42
      %s233 = smul.addr %s232, 4
      %s234 = scalar_lea.vmem %s0, %s233
      %s235 = smul.u32 %s19, 2
      %s236 = sadd.s32 %s235, %s20
      %p237 = scmp.lt.s32.totalorder %s19, 1
      %s238 = scalar_select %p237, %s19, 1
      %s239 = scalar_lea.vmem %s3, %s238
      %s240 = smul.u32 8, %s20
      %p241 = scmp.lt.s32.totalorder %s19, 1
      %s242 = scalar_select %p241, %s19, 1
      %p243 = scmp.lt.s32.totalorder %s240, 15
      %s244 = scalar_select %p243, %s240, 15
      %s245 = smul.addr %s244, 2
      %s246 = smul.addr %s242, 32
      %s247 = sadd.s32 %s245, %s246
      %s248 = smul.addr %s247, 8
      %s249 = scalar_lea.vmem %s4, %s248
      %s250 = smul.u32 8, %s20
      %s252 = scalar_lea.vmem %s234, 24
      %v253 = vld [vmem:[%s252] sm:$0xe]
      %v254 = vld [vmem:[%s252 + $0x4] sm:$0xf]
      %v255 = vld [vmem:[%s252 + $0x8] sm:$0x1]
      %v256 = vld [vmem:[%s252 + $0xc] sm:$0xe]
      %v257 = vld [vmem:[%s252 + $0x10] sm:$0xf]
      %v258 = vld [vmem:[%s252 + $0x14] sm:$0x1]
      %v259 = vld [vmem:[%s252 + $0x18] sm:$0xe]
      %v260 = vld [vmem:[%s252 + $0x1c] sm:$0xf]
      %v261 = vld [vmem:[%s252 + $0x20] sm:$0x1]
      %v262 = vld [vmem:[%s252 + $0x24] sm:$0xe]
      %v263 = vld [vmem:[%s252 + $0x28] sm:$0xf]
      %v264 = vld [vmem:[%s252 + $0x2c] sm:$0x1]
      %v265 = vld [vmem:[%s252 + $0x30] sm:$0xe]
      %v266 = vld [vmem:[%s252 + $0x34] sm:$0xf]
      %v267 = vld [vmem:[%s252 + $0x38] sm:$0x1]
      %v268 = vld [vmem:[%s252 + $0x3c] sm:$0xe]
      %v269 = vld [vmem:[%s252 + $0x40] sm:$0xf]
      %v270 = vld [vmem:[%s252 + $0x44] sm:$0x1]
      %v271 = vld [vmem:[%s252 + $0x48] sm:$0xe]
      %v272 = vld [vmem:[%s252 + $0x4c] sm:$0xf]
      %v273 = vld [vmem:[%s252 + $0x50] sm:$0x1]
      %v274 = vld [vmem:[%s252 + $0x54] sm:$0xe]
      %v275 = vld [vmem:[%s252 + $0x58] sm:$0xf]
      %v276 = vld [vmem:[%s252 + $0x5c] sm:$0x1]
      %vm301 = vcmask 1042432
      %vm302 = vcmask 1046532
      %vm303 = vmor %vm301, %vm302
      %v304 = vrot.slane %v253, 5
      %v305 = vrot.slane %v304, 4
      %v306 = vrot.slane %v254, 5
      %v307 = vsel %vm303, %v305, %v306
      %v308 = vrot.slane %v306, 4
      %v309 = vrot.slane %v255, 5
      %v310 = vsel %vm303, %v308, %v309
      %v311 = vrot.slane %v256, 5
      %v312 = vrot.slane %v311, 4
      %v313 = vrot.slane %v257, 5
      %v314 = vsel %vm303, %v312, %v313
      %v315 = vrot.slane %v313, 4
      %v316 = vrot.slane %v258, 5
      %v317 = vsel %vm303, %v315, %v316
      %v318 = vrot.slane %v259, 5
      %v319 = vrot.slane %v318, 4
      %v320 = vrot.slane %v260, 5
      %v321 = vsel %vm303, %v319, %v320
      %v322 = vrot.slane %v320, 4
      %v323 = vrot.slane %v261, 5
      %v324 = vsel %vm303, %v322, %v323
      %v325 = vrot.slane %v262, 5
      %v326 = vrot.slane %v325, 4
      %v327 = vrot.slane %v263, 5
      %v328 = vsel %vm303, %v326, %v327
      %v329 = vrot.slane %v327, 4
      %v330 = vrot.slane %v264, 5
      %v331 = vsel %vm303, %v329, %v330
      %v332 = vrot.slane %v265, 5
      %v333 = vrot.slane %v332, 4
      %v334 = vrot.slane %v266, 5
      %v335 = vsel %vm303, %v333, %v334
      %v336 = vrot.slane %v334, 4
      %v337 = vrot.slane %v267, 5
      %v338 = vsel %vm303, %v336, %v337
      %v339 = vrot.slane %v268, 5
      %v340 = vrot.slane %v339, 4
      %v341 = vrot.slane %v269, 5
      %v342 = vsel %vm303, %v340, %v341
      %v343 = vrot.slane %v341, 4
      %v344 = vrot.slane %v270, 5
      %v345 = vsel %vm303, %v343, %v344
      %v346 = vrot.slane %v271, 5
      %v347 = vrot.slane %v346, 4
      %v348 = vrot.slane %v272, 5
      %v349 = vsel %vm303, %v347, %v348
      %v350 = vrot.slane %v348, 4
      %v351 = vrot.slane %v273, 5
      %v352 = vsel %vm303, %v350, %v351
      %v353 = vrot.slane %v274, 5
      %v354 = vrot.slane %v353, 4
      %v355 = vrot.slane %v275, 5
      %v356 = vsel %vm303, %v354, %v355
      %v357 = vrot.slane %v355, 4
      %v358 = vrot.slane %v276, 5
      %v359 = vsel %vm303, %v357, %v358
      %v360 = vld [vmem:[%s1] sm:$0xf]
      %v361 = vld [vmem:[%s252 + $0x8] sm:$0x3]
      %v362 = vld [vmem:[%s252 + $0x14] sm:$0x3]
      %v363 = vld [vmem:[%s252 + $0x20] sm:$0x3]
      %v364 = vld [vmem:[%s252 + $0x2c] sm:$0x3]
      %v365 = vld [vmem:[%s252 + $0x38] sm:$0x3]
      %v366 = vld [vmem:[%s252 + $0x44] sm:$0x3]
      %v367 = vld [vmem:[%s252 + $0x50] sm:$0x3]
      %v368 = vld [vmem:[%s252 + $0x5c] sm:$0x3]
      %vm369 = vsmask.f32 2304
      %vm370 = vsmask.f32 6416
      %vm371 = vmor %vm369, %vm370
      %v373 = vshrl.u32 %v253, 16
      %v375 = vrot.slane %v373, 5
      %v376 = vshll.u32 %v253, 16
      %v378 = vrot.slane %v376, 6
      %v379 = vor.u32 %v375, %v378
      %v380 = vrot.slane %v379, 4
      %v382 = vshrl.u32 %v254, 16
      %v384 = vrot.slane %v382, 5
      %v385 = vshll.u32 %v254, 16
      %v387 = vrot.slane %v385, 6
      %v388 = vor.u32 %v384, %v387
      %v389 = vsel %vm371, %v380, %v388
      %v390 = vrot.slane %v388, 4
      %v392 = vshrl.u32 %v361, 16
      %v394 = vrot.slane %v392, 5
      %v395 = vshll.u32 %v361, 16
      %v397 = vrot.slane %v395, 6
      %v398 = vor.u32 %v394, %v397
      %v399 = vsel %vm371, %v390, %v398
      %v401 = vshrl.u32 %v256, 16
      %v403 = vrot.slane %v401, 5
      %v404 = vshll.u32 %v256, 16
      %v406 = vrot.slane %v404, 6
      %v407 = vor.u32 %v403, %v406
      %v408 = vrot.slane %v407, 4
      %v410 = vshrl.u32 %v257, 16
      %v412 = vrot.slane %v410, 5
      %v413 = vshll.u32 %v257, 16
      %v415 = vrot.slane %v413, 6
      %v416 = vor.u32 %v412, %v415
      %v417 = vsel %vm371, %v408, %v416
      %v418 = vrot.slane %v416, 4
      %v420 = vshrl.u32 %v362, 16
      %v422 = vrot.slane %v420, 5
      %v423 = vshll.u32 %v362, 16
      %v425 = vrot.slane %v423, 6
      %v426 = vor.u32 %v422, %v425
      %v427 = vsel %vm371, %v418, %v426
      %v429 = vshrl.u32 %v259, 16
      %v431 = vrot.slane %v429, 5
      %v432 = vshll.u32 %v259, 16
      %v434 = vrot.slane %v432, 6
      %v435 = vor.u32 %v431, %v434
      %v436 = vrot.slane %v435, 4
      %v438 = vshrl.u32 %v260, 16
      %v440 = vrot.slane %v438, 5
      %v441 = vshll.u32 %v260, 16
      %v443 = vrot.slane %v441, 6
      %v444 = vor.u32 %v440, %v443
      %v445 = vsel %vm371, %v436, %v444
      %v446 = vrot.slane %v444, 4
      %v448 = vshrl.u32 %v363, 16
      %v450 = vrot.slane %v448, 5
      %v451 = vshll.u32 %v363, 16
      %v453 = vrot.slane %v451, 6
      %v454 = vor.u32 %v450, %v453
      %v455 = vsel %vm371, %v446, %v454
      %v457 = vshrl.u32 %v262, 16
      %v459 = vrot.slane %v457, 5
      %v460 = vshll.u32 %v262, 16
      %v462 = vrot.slane %v460, 6
      %v463 = vor.u32 %v459, %v462
      %v464 = vrot.slane %v463, 4
      %v466 = vshrl.u32 %v263, 16
      %v468 = vrot.slane %v466, 5
      %v469 = vshll.u32 %v263, 16
      %v471 = vrot.slane %v469, 6
      %v472 = vor.u32 %v468, %v471
      %v473 = vsel %vm371, %v464, %v472
      %v474 = vrot.slane %v472, 4
      %v476 = vshrl.u32 %v364, 16
      %v478 = vrot.slane %v476, 5
      %v479 = vshll.u32 %v364, 16
      %v481 = vrot.slane %v479, 6
      %v482 = vor.u32 %v478, %v481
      %v483 = vsel %vm371, %v474, %v482
      %v485 = vshrl.u32 %v265, 16
      %v487 = vrot.slane %v485, 5
      %v488 = vshll.u32 %v265, 16
      %v490 = vrot.slane %v488, 6
      %v491 = vor.u32 %v487, %v490
      %v492 = vrot.slane %v491, 4
      %v494 = vshrl.u32 %v266, 16
      %v496 = vrot.slane %v494, 5
      %v497 = vshll.u32 %v266, 16
      %v499 = vrot.slane %v497, 6
      %v500 = vor.u32 %v496, %v499
      %v501 = vsel %vm371, %v492, %v500
      %v502 = vrot.slane %v500, 4
      %v504 = vshrl.u32 %v365, 16
      %v506 = vrot.slane %v504, 5
      %v507 = vshll.u32 %v365, 16
      %v509 = vrot.slane %v507, 6
      %v510 = vor.u32 %v506, %v509
      %v511 = vsel %vm371, %v502, %v510
      %v513 = vshrl.u32 %v268, 16
      %v515 = vrot.slane %v513, 5
      %v516 = vshll.u32 %v268, 16
      %v518 = vrot.slane %v516, 6
      %v519 = vor.u32 %v515, %v518
      %v520 = vrot.slane %v519, 4
      %v522 = vshrl.u32 %v269, 16
      %v524 = vrot.slane %v522, 5
      %v525 = vshll.u32 %v269, 16
      %v527 = vrot.slane %v525, 6
      %v528 = vor.u32 %v524, %v527
      %v529 = vsel %vm371, %v520, %v528
      %v530 = vrot.slane %v528, 4
      %v532 = vshrl.u32 %v366, 16
      %v534 = vrot.slane %v532, 5
      %v535 = vshll.u32 %v366, 16
      %v537 = vrot.slane %v535, 6
      %v538 = vor.u32 %v534, %v537
      %v539 = vsel %vm371, %v530, %v538
      %v541 = vshrl.u32 %v271, 16
      %v543 = vrot.slane %v541, 5
      %v544 = vshll.u32 %v271, 16
      %v546 = vrot.slane %v544, 6
      %v547 = vor.u32 %v543, %v546
      %v548 = vrot.slane %v547, 4
      %v550 = vshrl.u32 %v272, 16
      %v552 = vrot.slane %v550, 5
      %v553 = vshll.u32 %v272, 16
      %v555 = vrot.slane %v553, 6
      %v556 = vor.u32 %v552, %v555
      %v557 = vsel %vm371, %v548, %v556
      %v558 = vrot.slane %v556, 4
      %v560 = vshrl.u32 %v367, 16
      %v562 = vrot.slane %v560, 5
      %v563 = vshll.u32 %v367, 16
      %v565 = vrot.slane %v563, 6
      %v566 = vor.u32 %v562, %v565
      %v567 = vsel %vm371, %v558, %v566
      %v569 = vshrl.u32 %v274, 16
      %v571 = vrot.slane %v569, 5
      %v572 = vshll.u32 %v274, 16
      %v574 = vrot.slane %v572, 6
      %v575 = vor.u32 %v571, %v574
      %v576 = vrot.slane %v575, 4
      %v578 = vshrl.u32 %v275, 16
      %v580 = vrot.slane %v578, 5
      %v581 = vshll.u32 %v275, 16
      %v583 = vrot.slane %v581, 6
      %v584 = vor.u32 %v580, %v583
      %v585 = vsel %vm371, %v576, %v584
      %v586 = vrot.slane %v584, 4
      %v588 = vshrl.u32 %v368, 16
      %v590 = vrot.slane %v588, 5
      %v591 = vshll.u32 %v368, 16
      %v593 = vrot.slane %v591, 6
      %v594 = vor.u32 %v590, %v593
      %v595 = vsel %vm371, %v586, %v594
      %s596 = scalar_lea.vmem %s1, 4
      %v597 = vld [vmem:[%s596] sm:$0xf]
      %v598 = vunpack.c.l.b16 %v389
      %v599 = vunpack.c.l.b16 %v399
      %v600 = vunpack.c.l.b16 %v417
      %v601 = vunpack.c.l.b16 %v427
      %v602 = vunpack.c.l.b16 %v445
      %v603 = vunpack.c.l.b16 %v455
      %v604 = vunpack.c.l.b16 %v473
      %v605 = vunpack.c.l.b16 %v483
      %v606 = vunpack.c.l.b16 %v501
      %v607 = vunpack.c.l.b16 %v511
      %v608 = vunpack.c.l.b16 %v529
      %v609 = vunpack.c.l.b16 %v539
      %v610 = vunpack.c.l.b16 %v557
      %v611 = vunpack.c.l.b16 %v567
      %v612 = vunpack.c.l.b16 %v585
      %v613 = vunpack.c.l.b16 %v595
      %v614 = vpack.c.b16 %v599, %v598
      %v615 = vpack.c.b16 %v601, %v600
      %v616 = vpack.c.b16 %v603, %v602
      %v617 = vpack.c.b16 %v605, %v604
      %v618 = vpack.c.b16 %v607, %v606
      %v619 = vpack.c.b16 %v609, %v608
      %v620 = vpack.c.b16 %v611, %v610
      %v621 = vpack.c.b16 %v613, %v612
      %vm622 = vcmask 64512
      %v624 = vsel %vm622, %v614, 0
      %v627 = vsel %vm622, %v615, 0
      %v630 = vsel %vm622, %v616, 0
      %v633 = vsel %vm622, %v617, 0
      %v636 = vsel %vm622, %v618, 0
      %v639 = vsel %vm622, %v619, 0
      %v642 = vsel %vm622, %v620, 0
      %v645 = vsel %vm622, %v621, 0
      %vm647 = vcmask 1043456
      %v649 = vsel %vm647, %v597, 0
      %651 = vmatpush.bf16.msra.mxu0 0
      %652 = vmatpush.bf16.msra.mxu0 0
      %653 = vmatpush.bf16.msra.mxu0 0
      %654 = vmatpush.bf16.msra.mxu0 0
      %655 = vmatpush.bf16.msra.mxu0 0
      %656 = vmatpush.bf16.msra.mxu0 0
      %657 = vmatpush.bf16.msra.mxu0 0
      %658 = vmatpush.bf16.msra.mxu0 %v649
      %659 = vmatmul.bf16.gmra.mxu0 %v624
      %v660 = vpop.f32.mrf.mxu0
      %v661 = vadd.f32 0.0, %v660
      %v662 = vpop.f32.mrf.mxu0
      %v663 = vadd.f32 0.0, %v662
      %664 = vmatmul.bf16.gmra.mxu0 %v627
      %v665 = vpop.f32.mrf.mxu0
      %v666 = vadd.f32 0.0, %v665
      %v667 = vpop.f32.mrf.mxu0
      %v668 = vadd.f32 0.0, %v667
      %669 = vmatmul.bf16.gmra.mxu0 %v630
      %v670 = vpop.f32.mrf.mxu0
      %v671 = vadd.f32 0.0, %v670
      %v672 = vpop.f32.mrf.mxu0
      %v673 = vadd.f32 0.0, %v672
      %674 = vmatmul.bf16.gmra.mxu0 %v633
      %v675 = vpop.f32.mrf.mxu0
      %v676 = vadd.f32 0.0, %v675
      %v677 = vpop.f32.mrf.mxu0
      %v678 = vadd.f32 0.0, %v677
      %679 = vmatmul.bf16.gmra.mxu0 %v636
      %v680 = vpop.f32.mrf.mxu0
      %v681 = vadd.f32 0.0, %v680
      %v682 = vpop.f32.mrf.mxu0
      %v683 = vadd.f32 0.0, %v682
      %684 = vmatmul.bf16.gmra.mxu0 %v639
      %v685 = vpop.f32.mrf.mxu0
      %v686 = vadd.f32 0.0, %v685
      %v687 = vpop.f32.mrf.mxu0
      %v688 = vadd.f32 0.0, %v687
      %689 = vmatmul.bf16.gmra.mxu0 %v642
      %v690 = vpop.f32.mrf.mxu0
      %v691 = vadd.f32 0.0, %v690
      %v692 = vpop.f32.mrf.mxu0
      %v693 = vadd.f32 0.0, %v692
      %694 = vmatmul.bf16.gmra.mxu0 %v645
      %v695 = vpop.f32.mrf.mxu0
      %v696 = vadd.f32 0.0, %v695
      %v697 = vpop.f32.mrf.mxu0
      %v698 = vadd.f32 0.0, %v697
      %699 = vdwg.mxu0
      %v700 = vunpack.c.l.b16 %v307
      %v701 = vunpack.c.l.b16 %v310
      %v702 = vunpack.c.l.b16 %v314
      %v703 = vunpack.c.l.b16 %v317
      %v704 = vunpack.c.l.b16 %v321
      %v705 = vunpack.c.l.b16 %v324
      %v706 = vunpack.c.l.b16 %v328
      %v707 = vunpack.c.l.b16 %v331
      %v708 = vunpack.c.l.b16 %v335
      %v709 = vunpack.c.l.b16 %v338
      %v710 = vunpack.c.l.b16 %v342
      %v711 = vunpack.c.l.b16 %v345
      %v712 = vunpack.c.l.b16 %v349
      %v713 = vunpack.c.l.b16 %v352
      %v714 = vunpack.c.l.b16 %v356
      %v715 = vunpack.c.l.b16 %v359
      %v716 = vpack.c.b16 %v701, %v700
      %v717 = vpack.c.b16 %v703, %v702
      %v718 = vpack.c.b16 %v705, %v704
      %v719 = vpack.c.b16 %v707, %v706
      %v720 = vpack.c.b16 %v709, %v708
      %v721 = vpack.c.b16 %v711, %v710
      %v722 = vpack.c.b16 %v713, %v712
      %v723 = vpack.c.b16 %v715, %v714
      %v725 = vsel %vm622, %v716, 0
      %v728 = vsel %vm622, %v717, 0
      %v731 = vsel %vm622, %v718, 0
      %v734 = vsel %vm622, %v719, 0
      %v737 = vsel %vm622, %v720, 0
      %v740 = vsel %vm622, %v721, 0
      %v743 = vsel %vm622, %v722, 0
      %v746 = vsel %vm622, %v723, 0
      %v749 = vsel %vm647, %v360, 0
      %751 = vmatpush.bf16.msra.mxu0 0
      %752 = vmatpush.bf16.msra.mxu0 0
      %753 = vmatpush.bf16.msra.mxu0 0
      %754 = vmatpush.bf16.msra.mxu0 0
      %755 = vmatpush.bf16.msra.mxu0 0
      %756 = vmatpush.bf16.msra.mxu0 0
      %757 = vmatpush.bf16.msra.mxu0 0
      %758 = vmatpush.bf16.msra.mxu0 %v749
      %759 = vmatmul.bf16.gmra.mxu0 %v725
      %v760 = vpop.f32.mrf.mxu0
      %v761 = vadd.f32 %v661, %v760
      %v762 = vpop.f32.mrf.mxu0
      %v763 = vadd.f32 %v663, %v762
      %764 = vmatmul.bf16.gmra.mxu0 %v728
      %v765 = vpop.f32.mrf.mxu0
      %v766 = vadd.f32 %v666, %v765
      %v767 = vpop.f32.mrf.mxu0
      %v768 = vadd.f32 %v668, %v767
      %769 = vmatmul.bf16.gmra.mxu0 %v731
      %v770 = vpop.f32.mrf.mxu0
      %v771 = vadd.f32 %v671, %v770
      %v772 = vpop.f32.mrf.mxu0
      %v773 = vadd.f32 %v673, %v772
      %774 = vmatmul.bf16.gmra.mxu0 %v734
      %v775 = vpop.f32.mrf.mxu0
      %v776 = vadd.f32 %v676, %v775
      %v777 = vpop.f32.mrf.mxu0
      %v778 = vadd.f32 %v678, %v777
      %779 = vmatmul.bf16.gmra.mxu0 %v737
      %v780 = vpop.f32.mrf.mxu0
      %v781 = vadd.f32 %v681, %v780
      %v782 = vpop.f32.mrf.mxu0
      %v783 = vadd.f32 %v683, %v782
      %784 = vmatmul.bf16.gmra.mxu0 %v740
      %v785 = vpop.f32.mrf.mxu0
      %v786 = vadd.f32 %v686, %v785
      %v787 = vpop.f32.mrf.mxu0
      %v788 = vadd.f32 %v688, %v787
      %789 = vmatmul.bf16.gmra.mxu0 %v743
      %v790 = vpop.f32.mrf.mxu0
      %v791 = vadd.f32 %v691, %v790
      %v792 = vpop.f32.mrf.mxu0
      %v793 = vadd.f32 %v693, %v792
      %794 = vmatmul.bf16.gmra.mxu0 %v746
      %v795 = vpop.f32.mrf.mxu0
      %v796 = vadd.f32 %v696, %v795
      %v797 = vpop.f32.mrf.mxu0
      %v798 = vadd.f32 %v698, %v797
      %799 = vdwg.mxu0
      %v800 = vld [vmem:[%s252] sm:$0xc]
      %v801 = vld [vmem:[%s252 + $0xc] sm:$0xc]
      %v802 = vld [vmem:[%s252 + $0x18] sm:$0xc]
      %v803 = vld [vmem:[%s252 + $0x24] sm:$0xc]
      %v804 = vld [vmem:[%s252 + $0x30] sm:$0xc]
      %v805 = vld [vmem:[%s252 + $0x3c] sm:$0xc]
      %v806 = vld [vmem:[%s252 + $0x48] sm:$0xc]
      %v807 = vld [vmem:[%s252 + $0x54] sm:$0xc]
      %vm824 = vcmask 1041408
      %vm825 = vcmask 1045508
      %vm826 = vmor %vm824, %vm825
      %v827 = vrot.slane %v800, 6
      %v828 = vrot.slane %v827, 4
      %v829 = vrot.slane %v254, 6
      %v830 = vsel %vm826, %v828, %v829
      %v831 = vrot.slane %v829, 4
      %v832 = vrot.slane %v361, 6
      %v833 = vsel %vm826, %v831, %v832
      %v834 = vrot.slane %v801, 6
      %v835 = vrot.slane %v834, 4
      %v836 = vrot.slane %v257, 6
      %v837 = vsel %vm826, %v835, %v836
      %v838 = vrot.slane %v836, 4
      %v839 = vrot.slane %v362, 6
      %v840 = vsel %vm826, %v838, %v839
      %v841 = vrot.slane %v802, 6
      %v842 = vrot.slane %v841, 4
      %v843 = vrot.slane %v260, 6
      %v844 = vsel %vm826, %v842, %v843
      %v845 = vrot.slane %v843, 4
      %v846 = vrot.slane %v363, 6
      %v847 = vsel %vm826, %v845, %v846
      %v848 = vrot.slane %v803, 6
      %v849 = vrot.slane %v848, 4
      %v850 = vrot.slane %v263, 6
      %v851 = vsel %vm826, %v849, %v850
      %v852 = vrot.slane %v850, 4
      %v853 = vrot.slane %v364, 6
      %v854 = vsel %vm826, %v852, %v853
      %v855 = vrot.slane %v804, 6
      %v856 = vrot.slane %v855, 4
      %v857 = vrot.slane %v266, 6
      %v858 = vsel %vm826, %v856, %v857
      %v859 = vrot.slane %v857, 4
      %v860 = vrot.slane %v365, 6
      %v861 = vsel %vm826, %v859, %v860
      %v862 = vrot.slane %v805, 6
      %v863 = vrot.slane %v862, 4
      %v864 = vrot.slane %v269, 6
      %v865 = vsel %vm826, %v863, %v864
      %v866 = vrot.slane %v864, 4
      %v867 = vrot.slane %v366, 6
      %v868 = vsel %vm826, %v866, %v867
      %v869 = vrot.slane %v806, 6
      %v870 = vrot.slane %v869, 4
      %v871 = vrot.slane %v272, 6
      %v872 = vsel %vm826, %v870, %v871
      %v873 = vrot.slane %v871, 4
      %v874 = vrot.slane %v367, 6
      %v875 = vsel %vm826, %v873, %v874
      %v876 = vrot.slane %v807, 6
      %v877 = vrot.slane %v876, 4
      %v878 = vrot.slane %v275, 6
      %v879 = vsel %vm826, %v877, %v878
      %v880 = vrot.slane %v878, 4
      %v881 = vrot.slane %v368, 6
      %v882 = vsel %vm826, %v880, %v881
      %s883 = scalar_lea.vmem %s1, 8
      %v884 = vld [vmem:[%s883] sm:$0xf]
      %v885 = vunpack.c.l.b16 %v830
      %v886 = vunpack.c.l.b16 %v833
      %v887 = vunpack.c.l.b16 %v837
      %v888 = vunpack.c.l.b16 %v840
      %v889 = vunpack.c.l.b16 %v844
      %v890 = vunpack.c.l.b16 %v847
      %v891 = vunpack.c.l.b16 %v851
      %v892 = vunpack.c.l.b16 %v854
      %v893 = vunpack.c.l.b16 %v858
      %v894 = vunpack.c.l.b16 %v861
      %v895 = vunpack.c.l.b16 %v865
      %v896 = vunpack.c.l.b16 %v868
      %v897 = vunpack.c.l.b16 %v872
      %v898 = vunpack.c.l.b16 %v875
      %v899 = vunpack.c.l.b16 %v879
      %v900 = vunpack.c.l.b16 %v882
      %v901 = vpack.c.b16 %v886, %v885
      %v902 = vpack.c.b16 %v888, %v887
      %v903 = vpack.c.b16 %v890, %v889
      %v904 = vpack.c.b16 %v892, %v891
      %v905 = vpack.c.b16 %v894, %v893
      %v906 = vpack.c.b16 %v896, %v895
      %v907 = vpack.c.b16 %v898, %v897
      %v908 = vpack.c.b16 %v900, %v899
      %v910 = vsel %vm622, %v901, 0
      %v913 = vsel %vm622, %v902, 0
      %v916 = vsel %vm622, %v903, 0
      %v919 = vsel %vm622, %v904, 0
      %v922 = vsel %vm622, %v905, 0
      %v925 = vsel %vm622, %v906, 0
      %v928 = vsel %vm622, %v907, 0
      %v931 = vsel %vm622, %v908, 0
      %v934 = vsel %vm647, %v884, 0
      %936 = vmatpush.bf16.msra.mxu0 0
      %937 = vmatpush.bf16.msra.mxu0 0
      %938 = vmatpush.bf16.msra.mxu0 0
      %939 = vmatpush.bf16.msra.mxu0 0
      %940 = vmatpush.bf16.msra.mxu0 0
      %941 = vmatpush.bf16.msra.mxu0 0
      %942 = vmatpush.bf16.msra.mxu0 0
      %943 = vmatpush.bf16.msra.mxu0 %v934
      %944 = vmatmul.bf16.gmra.mxu0 %v910
      %v945 = vpop.f32.mrf.mxu0
      %v946 = vadd.f32 0.0, %v945
      %v947 = vpop.f32.mrf.mxu0
      %v948 = vadd.f32 0.0, %v947
      %949 = vmatmul.bf16.gmra.mxu0 %v913
      %v950 = vpop.f32.mrf.mxu0
      %v951 = vadd.f32 0.0, %v950
      %v952 = vpop.f32.mrf.mxu0
      %v953 = vadd.f32 0.0, %v952
      %954 = vmatmul.bf16.gmra.mxu0 %v916
      %v955 = vpop.f32.mrf.mxu0
      %v956 = vadd.f32 0.0, %v955
      %v957 = vpop.f32.mrf.mxu0
      %v958 = vadd.f32 0.0, %v957
      %959 = vmatmul.bf16.gmra.mxu0 %v919
      %v960 = vpop.f32.mrf.mxu0
      %v961 = vadd.f32 0.0, %v960
      %v962 = vpop.f32.mrf.mxu0
      %v963 = vadd.f32 0.0, %v962
      %964 = vmatmul.bf16.gmra.mxu0 %v922
      %v965 = vpop.f32.mrf.mxu0
      %v966 = vadd.f32 0.0, %v965
      %v967 = vpop.f32.mrf.mxu0
      %v968 = vadd.f32 0.0, %v967
      %969 = vmatmul.bf16.gmra.mxu0 %v925
      %v970 = vpop.f32.mrf.mxu0
      %v971 = vadd.f32 0.0, %v970
      %v972 = vpop.f32.mrf.mxu0
      %v973 = vadd.f32 0.0, %v972
      %974 = vmatmul.bf16.gmra.mxu0 %v928
      %v975 = vpop.f32.mrf.mxu0
      %v976 = vadd.f32 0.0, %v975
      %v977 = vpop.f32.mrf.mxu0
      %v978 = vadd.f32 0.0, %v977
      %979 = vmatmul.bf16.gmra.mxu0 %v931
      %v980 = vpop.f32.mrf.mxu0
      %v981 = vadd.f32 0.0, %v980
      %v982 = vpop.f32.mrf.mxu0
      %v983 = vadd.f32 0.0, %v982
      %984 = vdwg.mxu0
      %v985 = vadd.f32 %v761, %v946
      %v986 = vadd.f32 %v763, %v948
      %v987 = vadd.f32 %v766, %v951
      %v988 = vadd.f32 %v768, %v953
      %v989 = vadd.f32 %v771, %v956
      %v990 = vadd.f32 %v773, %v958
      %v991 = vadd.f32 %v776, %v961
      %v992 = vadd.f32 %v778, %v963
      %v993 = vadd.f32 %v781, %v966
      %v994 = vadd.f32 %v783, %v968
      %v995 = vadd.f32 %v786, %v971
      %v996 = vadd.f32 %v788, %v973
      %v997 = vadd.f32 %v791, %v976
      %v998 = vadd.f32 %v793, %v978
      %v999 = vadd.f32 %v796, %v981
      %v1000 = vadd.f32 %v798, %v983
      %s1001 = scalar_lea.vmem %s234, 36
      %v1002 = vld [vmem:[%s1001] sm:$0xe]
      %v1003 = vld [vmem:[%s1001 + $0x4] sm:$0xf]
      %v1004 = vld [vmem:[%s1001 + $0x8] sm:$0x1]
      %v1005 = vld [vmem:[%s1001 + $0xc] sm:$0xe]
      %v1006 = vld [vmem:[%s1001 + $0x10] sm:$0xf]
      %v1007 = vld [vmem:[%s1001 + $0x14] sm:$0x1]
      %v1008 = vld [vmem:[%s1001 + $0x18] sm:$0xe]
      %v1009 = vld [vmem:[%s1001 + $0x1c] sm:$0xf]
      %v1010 = vld [vmem:[%s1001 + $0x20] sm:$0x1]
      %v1011 = vld [vmem:[%s1001 + $0x24] sm:$0xe]
      %v1012 = vld [vmem:[%s1001 + $0x28] sm:$0xf]
      %v1013 = vld [vmem:[%s1001 + $0x2c] sm:$0x1]
      %v1014 = vld [vmem:[%s1001 + $0x30] sm:$0xe]
      %v1015 = vld [vmem:[%s1001 + $0x34] sm:$0xf]
      %v1016 = vld [vmem:[%s1001 + $0x38] sm:$0x1]
      %v1017 = vld [vmem:[%s1001 + $0x3c] sm:$0xe]
      %v1018 = vld [vmem:[%s1001 + $0x40] sm:$0xf]
      %v1019 = vld [vmem:[%s1001 + $0x44] sm:$0x1]
      %v1020 = vld [vmem:[%s1001 + $0x48] sm:$0xe]
      %v1021 = vld [vmem:[%s1001 + $0x4c] sm:$0xf]
      %v1022 = vld [vmem:[%s1001 + $0x50] sm:$0x1]
      %v1023 = vld [vmem:[%s1001 + $0x54] sm:$0xe]
      %v1024 = vld [vmem:[%s1001 + $0x58] sm:$0xf]
      %v1025 = vld [vmem:[%s1001 + $0x5c] sm:$0x1]
      %v1050 = vrot.slane %v1002, 5
      %v1051 = vrot.slane %v1050, 4
      %v1052 = vrot.slane %v1003, 5
      %v1053 = vsel %vm303, %v1051, %v1052
      %v1054 = vrot.slane %v1052, 4
      %v1055 = vrot.slane %v1004, 5
      %v1056 = vsel %vm303, %v1054, %v1055
      %v1057 = vrot.slane %v1005, 5
      %v1058 = vrot.slane %v1057, 4
      %v1059 = vrot.slane %v1006, 5
      %v1060 = vsel %vm303, %v1058, %v1059
      %v1061 = vrot.slane %v1059, 4
      %v1062 = vrot.slane %v1007, 5
      %v1063 = vsel %vm303, %v1061, %v1062
      %v1064 = vrot.slane %v1008, 5
      %v1065 = vrot.slane %v1064, 4
      %v1066 = vrot.slane %v1009, 5
      %v1067 = vsel %vm303, %v1065, %v1066
      %v1068 = vrot.slane %v1066, 4
      %v1069 = vrot.slane %v1010, 5
      %v1070 = vsel %vm303, %v1068, %v1069
      %v1071 = vrot.slane %v1011, 5
      %v1072 = vrot.slane %v1071, 4
      %v1073 = vrot.slane %v1012, 5
      %v1074 = vsel %vm303, %v1072, %v1073
      %v1075 = vrot.slane %v1073, 4
      %v1076 = vrot.slane %v1013, 5
      %v1077 = vsel %vm303, %v1075, %v1076
      %v1078 = vrot.slane %v1014, 5
      %v1079 = vrot.slane %v1078, 4
      %v1080 = vrot.slane %v1015, 5
      %v1081 = vsel %vm303, %v1079, %v1080
      %v1082 = vrot.slane %v1080, 4
      %v1083 = vrot.slane %v1016, 5
      %v1084 = vsel %vm303, %v1082, %v1083
      %v1085 = vrot.slane %v1017, 5
      %v1086 = vrot.slane %v1085, 4
      %v1087 = vrot.slane %v1018, 5
      %v1088 = vsel %vm303, %v1086, %v1087
      %v1089 = vrot.slane %v1087, 4
      %v1090 = vrot.slane %v1019, 5
      %v1091 = vsel %vm303, %v1089, %v1090
      %v1092 = vrot.slane %v1020, 5
      %v1093 = vrot.slane %v1092, 4
      %v1094 = vrot.slane %v1021, 5
      %v1095 = vsel %vm303, %v1093, %v1094
      %v1096 = vrot.slane %v1094, 4
      %v1097 = vrot.slane %v1022, 5
      %v1098 = vsel %vm303, %v1096, %v1097
      %v1099 = vrot.slane %v1023, 5
      %v1100 = vrot.slane %v1099, 4
      %v1101 = vrot.slane %v1024, 5
      %v1102 = vsel %vm303, %v1100, %v1101
      %v1103 = vrot.slane %v1101, 4
      %v1104 = vrot.slane %v1025, 5
      %v1105 = vsel %vm303, %v1103, %v1104
      %s1106 = scalar_lea.vmem %s1, 12
      %v1107 = vld [vmem:[%s1106] sm:$0xf]
      %v1108 = vunpack.c.l.b16 %v1053
      %v1109 = vunpack.c.l.b16 %v1056
      %v1110 = vunpack.c.l.b16 %v1060
      %v1111 = vunpack.c.l.b16 %v1063
      %v1112 = vunpack.c.l.b16 %v1067
      %v1113 = vunpack.c.l.b16 %v1070
      %v1114 = vunpack.c.l.b16 %v1074
      %v1115 = vunpack.c.l.b16 %v1077
      %v1116 = vunpack.c.l.b16 %v1081
      %v1117 = vunpack.c.l.b16 %v1084
      %v1118 = vunpack.c.l.b16 %v1088
      %v1119 = vunpack.c.l.b16 %v1091
      %v1120 = vunpack.c.l.b16 %v1095
      %v1121 = vunpack.c.l.b16 %v1098
      %v1122 = vunpack.c.l.b16 %v1102
      %v1123 = vunpack.c.l.b16 %v1105
      %v1124 = vpack.c.b16 %v1109, %v1108
      %v1125 = vpack.c.b16 %v1111, %v1110
      %v1126 = vpack.c.b16 %v1113, %v1112
      %v1127 = vpack.c.b16 %v1115, %v1114
      %v1128 = vpack.c.b16 %v1117, %v1116
      %v1129 = vpack.c.b16 %v1119, %v1118
      %v1130 = vpack.c.b16 %v1121, %v1120
      %v1131 = vpack.c.b16 %v1123, %v1122
      %v1133 = vsel %vm622, %v1124, 0
      %v1136 = vsel %vm622, %v1125, 0
      %v1139 = vsel %vm622, %v1126, 0
      %v1142 = vsel %vm622, %v1127, 0
      %v1145 = vsel %vm622, %v1128, 0
      %v1148 = vsel %vm622, %v1129, 0
      %v1151 = vsel %vm622, %v1130, 0
      %v1154 = vsel %vm622, %v1131, 0
      %v1157 = vsel %vm647, %v1107, 0
      %1159 = vmatpush.bf16.msra.mxu0 0
      %1160 = vmatpush.bf16.msra.mxu0 0
      %1161 = vmatpush.bf16.msra.mxu0 0
      %1162 = vmatpush.bf16.msra.mxu0 0
      %1163 = vmatpush.bf16.msra.mxu0 0
      %1164 = vmatpush.bf16.msra.mxu0 0
      %1165 = vmatpush.bf16.msra.mxu0 0
      %1166 = vmatpush.bf16.msra.mxu0 %v1157
      %1167 = vmatmul.bf16.gmra.mxu0 %v1133
      %v1168 = vpop.f32.mrf.mxu0
      %v1169 = vadd.f32 0.0, %v1168
      %v1170 = vpop.f32.mrf.mxu0
      %v1171 = vadd.f32 0.0, %v1170
      %1172 = vmatmul.bf16.gmra.mxu0 %v1136
      %v1173 = vpop.f32.mrf.mxu0
      %v1174 = vadd.f32 0.0, %v1173
      %v1175 = vpop.f32.mrf.mxu0
      %v1176 = vadd.f32 0.0, %v1175
      %1177 = vmatmul.bf16.gmra.mxu0 %v1139
      %v1178 = vpop.f32.mrf.mxu0
      %v1179 = vadd.f32 0.0, %v1178
      %v1180 = vpop.f32.mrf.mxu0
      %v1181 = vadd.f32 0.0, %v1180
      %1182 = vmatmul.bf16.gmra.mxu0 %v1142
      %v1183 = vpop.f32.mrf.mxu0
      %v1184 = vadd.f32 0.0, %v1183
      %v1185 = vpop.f32.mrf.mxu0
      %v1186 = vadd.f32 0.0, %v1185
      %1187 = vmatmul.bf16.gmra.mxu0 %v1145
      %v1188 = vpop.f32.mrf.mxu0
      %v1189 = vadd.f32 0.0, %v1188
      %v1190 = vpop.f32.mrf.mxu0
      %v1191 = vadd.f32 0.0, %v1190
      %1192 = vmatmul.bf16.gmra.mxu0 %v1148
      %v1193 = vpop.f32.mrf.mxu0
      %v1194 = vadd.f32 0.0, %v1193
      %v1195 = vpop.f32.mrf.mxu0
      %v1196 = vadd.f32 0.0, %v1195
      %1197 = vmatmul.bf16.gmra.mxu0 %v1151
      %v1198 = vpop.f32.mrf.mxu0
      %v1199 = vadd.f32 0.0, %v1198
      %v1200 = vpop.f32.mrf.mxu0
      %v1201 = vadd.f32 0.0, %v1200
      %1202 = vmatmul.bf16.gmra.mxu0 %v1154
      %v1203 = vpop.f32.mrf.mxu0
      %v1204 = vadd.f32 0.0, %v1203
      %v1205 = vpop.f32.mrf.mxu0
      %v1206 = vadd.f32 0.0, %v1205
      %1207 = vdwg.mxu0
      %v1208 = vadd.f32 %v985, %v1169
      %v1209 = vadd.f32 %v986, %v1171
      %v1210 = vadd.f32 %v987, %v1174
      %v1211 = vadd.f32 %v988, %v1176
      %v1212 = vadd.f32 %v989, %v1179
      %v1213 = vadd.f32 %v990, %v1181
      %v1214 = vadd.f32 %v991, %v1184
      %v1215 = vadd.f32 %v992, %v1186
      %v1216 = vadd.f32 %v993, %v1189
      %v1217 = vadd.f32 %v994, %v1191
      %v1218 = vadd.f32 %v995, %v1194
      %v1219 = vadd.f32 %v996, %v1196
      %v1220 = vadd.f32 %v997, %v1199
      %v1221 = vadd.f32 %v998, %v1201
      %v1222 = vadd.f32 %v999, %v1204
      %v1223 = vadd.f32 %v1000, %v1206
      %v1224 = vld [vmem:[%s1001 + $0x8] sm:$0x3]
      %v1225 = vld [vmem:[%s1001 + $0x14] sm:$0x3]
      %v1226 = vld [vmem:[%s1001 + $0x20] sm:$0x3]
      %v1227 = vld [vmem:[%s1001 + $0x2c] sm:$0x3]
      %v1228 = vld [vmem:[%s1001 + $0x38] sm:$0x3]
      %v1229 = vld [vmem:[%s1001 + $0x44] sm:$0x3]
      %v1230 = vld [vmem:[%s1001 + $0x50] sm:$0x3]
      %v1231 = vld [vmem:[%s1001 + $0x5c] sm:$0x3]
      %v1233 = vshrl.u32 %v1002, 16
      %v1235 = vrot.slane %v1233, 5
      %v1236 = vshll.u32 %v1002, 16
      %v1238 = vrot.slane %v1236, 6
      %v1239 = vor.u32 %v1235, %v1238
      %v1240 = vrot.slane %v1239, 4
      %v1242 = vshrl.u32 %v1003, 16
      %v1244 = vrot.slane %v1242, 5
      %v1245 = vshll.u32 %v1003, 16
      %v1247 = vrot.slane %v1245, 6
      %v1248 = vor.u32 %v1244, %v1247
      %v1249 = vsel %vm371, %v1240, %v1248
      %v1250 = vrot.slane %v1248, 4
      %v1252 = vshrl.u32 %v1224, 16
      %v1254 = vrot.slane %v1252, 5
      %v1255 = vshll.u32 %v1224, 16
      %v1257 = vrot.slane %v1255, 6
      %v1258 = vor.u32 %v1254, %v1257
      %v1259 = vsel %vm371, %v1250, %v1258
      %v1261 = vshrl.u32 %v1005, 16
      %v1263 = vrot.slane %v1261, 5
      %v1264 = vshll.u32 %v1005, 16
      %v1266 = vrot.slane %v1264, 6
      %v1267 = vor.u32 %v1263, %v1266
      %v1268 = vrot.slane %v1267, 4
      %v1270 = vshrl.u32 %v1006, 16
      %v1272 = vrot.slane %v1270, 5
      %v1273 = vshll.u32 %v1006, 16
      %v1275 = vrot.slane %v1273, 6
      %v1276 = vor.u32 %v1272, %v1275
      %v1277 = vsel %vm371, %v1268, %v1276
      %v1278 = vrot.slane %v1276, 4
      %v1280 = vshrl.u32 %v1225, 16
      %v1282 = vrot.slane %v1280, 5
      %v1283 = vshll.u32 %v1225, 16
      %v1285 = vrot.slane %v1283, 6
      %v1286 = vor.u32 %v1282, %v1285
      %v1287 = vsel %vm371, %v1278, %v1286
      %v1289 = vshrl.u32 %v1008, 16
      %v1291 = vrot.slane %v1289, 5
      %v1292 = vshll.u32 %v1008, 16
      %v1294 = vrot.slane %v1292, 6
      %v1295 = vor.u32 %v1291, %v1294
      %v1296 = vrot.slane %v1295, 4
      %v1298 = vshrl.u32 %v1009, 16
      %v1300 = vrot.slane %v1298, 5
      %v1301 = vshll.u32 %v1009, 16
      %v1303 = vrot.slane %v1301, 6
      %v1304 = vor.u32 %v1300, %v1303
      %v1305 = vsel %vm371, %v1296, %v1304
      %v1306 = vrot.slane %v1304, 4
      %v1308 = vshrl.u32 %v1226, 16
      %v1310 = vrot.slane %v1308, 5
      %v1311 = vshll.u32 %v1226, 16
      %v1313 = vrot.slane %v1311, 6
      %v1314 = vor.u32 %v1310, %v1313
      %v1315 = vsel %vm371, %v1306, %v1314
      %v1317 = vshrl.u32 %v1011, 16
      %v1319 = vrot.slane %v1317, 5
      %v1320 = vshll.u32 %v1011, 16
      %v1322 = vrot.slane %v1320, 6
      %v1323 = vor.u32 %v1319, %v1322
      %v1324 = vrot.slane %v1323, 4
      %v1326 = vshrl.u32 %v1012, 16
      %v1328 = vrot.slane %v1326, 5
      %v1329 = vshll.u32 %v1012, 16
      %v1331 = vrot.slane %v1329, 6
      %v1332 = vor.u32 %v1328, %v1331
      %v1333 = vsel %vm371, %v1324, %v1332
      %v1334 = vrot.slane %v1332, 4
      %v1336 = vshrl.u32 %v1227, 16
      %v1338 = vrot.slane %v1336, 5
      %v1339 = vshll.u32 %v1227, 16
      %v1341 = vrot.slane %v1339, 6
      %v1342 = vor.u32 %v1338, %v1341
      %v1343 = vsel %vm371, %v1334, %v1342
      %v1345 = vshrl.u32 %v1014, 16
      %v1347 = vrot.slane %v1345, 5
      %v1348 = vshll.u32 %v1014, 16
      %v1350 = vrot.slane %v1348, 6
      %v1351 = vor.u32 %v1347, %v1350
      %v1352 = vrot.slane %v1351, 4
      %v1354 = vshrl.u32 %v1015, 16
      %v1356 = vrot.slane %v1354, 5
      %v1357 = vshll.u32 %v1015, 16
      %v1359 = vrot.slane %v1357, 6
      %v1360 = vor.u32 %v1356, %v1359
      %v1361 = vsel %vm371, %v1352, %v1360
      %v1362 = vrot.slane %v1360, 4
      %v1364 = vshrl.u32 %v1228, 16
      %v1366 = vrot.slane %v1364, 5
      %v1367 = vshll.u32 %v1228, 16
      %v1369 = vrot.slane %v1367, 6
      %v1370 = vor.u32 %v1366, %v1369
      %v1371 = vsel %vm371, %v1362, %v1370
      %v1373 = vshrl.u32 %v1017, 16
      %v1375 = vrot.slane %v1373, 5
      %v1376 = vshll.u32 %v1017, 16
      %v1378 = vrot.slane %v1376, 6
      %v1379 = vor.u32 %v1375, %v1378
      %v1380 = vrot.slane %v1379, 4
      %v1382 = vshrl.u32 %v1018, 16
      %v1384 = vrot.slane %v1382, 5
      %v1385 = vshll.u32 %v1018, 16
      %v1387 = vrot.slane %v1385, 6
      %v1388 = vor.u32 %v1384, %v1387
      %v1389 = vsel %vm371, %v1380, %v1388
      %v1390 = vrot.slane %v1388, 4
      %v1392 = vshrl.u32 %v1229, 16
      %v1394 = vrot.slane %v1392, 5
      %v1395 = vshll.u32 %v1229, 16
      %v1397 = vrot.slane %v1395, 6
      %v1398 = vor.u32 %v1394, %v1397
      %v1399 = vsel %vm371, %v1390, %v1398
      %v1401 = vshrl.u32 %v1020, 16
      %v1403 = vrot.slane %v1401, 5
      %v1404 = vshll.u32 %v1020, 16
      %v1406 = vrot.slane %v1404, 6
      %v1407 = vor.u32 %v1403, %v1406
      %v1408 = vrot.slane %v1407, 4
      %v1410 = vshrl.u32 %v1021, 16
      %v1412 = vrot.slane %v1410, 5
      %v1413 = vshll.u32 %v1021, 16
      %v1415 = vrot.slane %v1413, 6
      %v1416 = vor.u32 %v1412, %v1415
      %v1417 = vsel %vm371, %v1408, %v1416
      %v1418 = vrot.slane %v1416, 4
      %v1420 = vshrl.u32 %v1230, 16
      %v1422 = vrot.slane %v1420, 5
      %v1423 = vshll.u32 %v1230, 16
      %v1425 = vrot.slane %v1423, 6
      %v1426 = vor.u32 %v1422, %v1425
      %v1427 = vsel %vm371, %v1418, %v1426
      %v1429 = vshrl.u32 %v1023, 16
      %v1431 = vrot.slane %v1429, 5
      %v1432 = vshll.u32 %v1023, 16
      %v1434 = vrot.slane %v1432, 6
      %v1435 = vor.u32 %v1431, %v1434
      %v1436 = vrot.slane %v1435, 4
      %v1438 = vshrl.u32 %v1024, 16
      %v1440 = vrot.slane %v1438, 5
      %v1441 = vshll.u32 %v1024, 16
      %v1443 = vrot.slane %v1441, 6
      %v1444 = vor.u32 %v1440, %v1443
      %v1445 = vsel %vm371, %v1436, %v1444
      %v1446 = vrot.slane %v1444, 4
      %v1448 = vshrl.u32 %v1231, 16
      %v1450 = vrot.slane %v1448, 5
      %v1451 = vshll.u32 %v1231, 16
      %v1453 = vrot.slane %v1451, 6
      %v1454 = vor.u32 %v1450, %v1453
      %v1455 = vsel %vm371, %v1446, %v1454
      %s1456 = scalar_lea.vmem %s1, 16
      %v1457 = vld [vmem:[%s1456] sm:$0xf]
      %v1458 = vunpack.c.l.b16 %v1249
      %v1459 = vunpack.c.l.b16 %v1259
      %v1460 = vunpack.c.l.b16 %v1277
      %v1461 = vunpack.c.l.b16 %v1287
      %v1462 = vunpack.c.l.b16 %v1305
      %v1463 = vunpack.c.l.b16 %v1315
      %v1464 = vunpack.c.l.b16 %v1333
      %v1465 = vunpack.c.l.b16 %v1343
      %v1466 = vunpack.c.l.b16 %v1361
      %v1467 = vunpack.c.l.b16 %v1371
      %v1468 = vunpack.c.l.b16 %v1389
      %v1469 = vunpack.c.l.b16 %v1399
      %v1470 = vunpack.c.l.b16 %v1417
      %v1471 = vunpack.c.l.b16 %v1427
      %v1472 = vunpack.c.l.b16 %v1445
      %v1473 = vunpack.c.l.b16 %v1455
      %v1474 = vpack.c.b16 %v1459, %v1458
      %v1475 = vpack.c.b16 %v1461, %v1460
      %v1476 = vpack.c.b16 %v1463, %v1462
      %v1477 = vpack.c.b16 %v1465, %v1464
      %v1478 = vpack.c.b16 %v1467, %v1466
      %v1479 = vpack.c.b16 %v1469, %v1468
      %v1480 = vpack.c.b16 %v1471, %v1470
      %v1481 = vpack.c.b16 %v1473, %v1472
      %v1483 = vsel %vm622, %v1474, 0
      %v1486 = vsel %vm622, %v1475, 0
      %v1489 = vsel %vm622, %v1476, 0
      %v1492 = vsel %vm622, %v1477, 0
      %v1495 = vsel %vm622, %v1478, 0
      %v1498 = vsel %vm622, %v1479, 0
      %v1501 = vsel %vm622, %v1480, 0
      %v1504 = vsel %vm622, %v1481, 0
      %v1507 = vsel %vm647, %v1457, 0
      %1509 = vmatpush.bf16.msra.mxu0 0
      %1510 = vmatpush.bf16.msra.mxu0 0
      %1511 = vmatpush.bf16.msra.mxu0 0
      %1512 = vmatpush.bf16.msra.mxu0 0
      %1513 = vmatpush.bf16.msra.mxu0 0
      %1514 = vmatpush.bf16.msra.mxu0 0
      %1515 = vmatpush.bf16.msra.mxu0 0
      %1516 = vmatpush.bf16.msra.mxu0 %v1507
      %1517 = vmatmul.bf16.gmra.mxu0 %v1483
      %v1518 = vpop.f32.mrf.mxu0
      %v1519 = vadd.f32 0.0, %v1518
      %v1520 = vpop.f32.mrf.mxu0
      %v1521 = vadd.f32 0.0, %v1520
      %1522 = vmatmul.bf16.gmra.mxu0 %v1486
      %v1523 = vpop.f32.mrf.mxu0
      %v1524 = vadd.f32 0.0, %v1523
      %v1525 = vpop.f32.mrf.mxu0
      %v1526 = vadd.f32 0.0, %v1525
      %1527 = vmatmul.bf16.gmra.mxu0 %v1489
      %v1528 = vpop.f32.mrf.mxu0
      %v1529 = vadd.f32 0.0, %v1528
      %v1530 = vpop.f32.mrf.mxu0
      %v1531 = vadd.f32 0.0, %v1530
      %1532 = vmatmul.bf16.gmra.mxu0 %v1492
      %v1533 = vpop.f32.mrf.mxu0
      %v1534 = vadd.f32 0.0, %v1533
      %v1535 = vpop.f32.mrf.mxu0
      %v1536 = vadd.f32 0.0, %v1535
      %1537 = vmatmul.bf16.gmra.mxu0 %v1495
      %v1538 = vpop.f32.mrf.mxu0
      %v1539 = vadd.f32 0.0, %v1538
      %v1540 = vpop.f32.mrf.mxu0
      %v1541 = vadd.f32 0.0, %v1540
      %1542 = vmatmul.bf16.gmra.mxu0 %v1498
      %v1543 = vpop.f32.mrf.mxu0
      %v1544 = vadd.f32 0.0, %v1543
      %v1545 = vpop.f32.mrf.mxu0
      %v1546 = vadd.f32 0.0, %v1545
      %1547 = vmatmul.bf16.gmra.mxu0 %v1501
      %v1548 = vpop.f32.mrf.mxu0
      %v1549 = vadd.f32 0.0, %v1548
      %v1550 = vpop.f32.mrf.mxu0
      %v1551 = vadd.f32 0.0, %v1550
      %1552 = vmatmul.bf16.gmra.mxu0 %v1504
      %v1553 = vpop.f32.mrf.mxu0
      %v1554 = vadd.f32 0.0, %v1553
      %v1555 = vpop.f32.mrf.mxu0
      %v1556 = vadd.f32 0.0, %v1555
      %1557 = vdwg.mxu0
      %v1558 = vadd.f32 %v1208, %v1519
      %v1559 = vadd.f32 %v1209, %v1521
      %v1560 = vadd.f32 %v1210, %v1524
      %v1561 = vadd.f32 %v1211, %v1526
      %v1562 = vadd.f32 %v1212, %v1529
      %v1563 = vadd.f32 %v1213, %v1531
      %v1564 = vadd.f32 %v1214, %v1534
      %v1565 = vadd.f32 %v1215, %v1536
      %v1566 = vadd.f32 %v1216, %v1539
      %v1567 = vadd.f32 %v1217, %v1541
      %v1568 = vadd.f32 %v1218, %v1544
      %v1569 = vadd.f32 %v1219, %v1546
      %v1570 = vadd.f32 %v1220, %v1549
      %v1571 = vadd.f32 %v1221, %v1551
      %v1572 = vadd.f32 %v1222, %v1554
      %v1573 = vadd.f32 %v1223, %v1556
      %v1574 = vld [vmem:[%s1001] sm:$0xc]
      %v1575 = vld [vmem:[%s1001 + $0xc] sm:$0xc]
      %v1576 = vld [vmem:[%s1001 + $0x18] sm:$0xc]
      %v1577 = vld [vmem:[%s1001 + $0x24] sm:$0xc]
      %v1578 = vld [vmem:[%s1001 + $0x30] sm:$0xc]
      %v1579 = vld [vmem:[%s1001 + $0x3c] sm:$0xc]
      %v1580 = vld [vmem:[%s1001 + $0x48] sm:$0xc]
      %v1581 = vld [vmem:[%s1001 + $0x54] sm:$0xc]
      %v1598 = vrot.slane %v1574, 6
      %v1599 = vrot.slane %v1598, 4
      %v1600 = vrot.slane %v1003, 6
      %v1601 = vsel %vm826, %v1599, %v1600
      %v1602 = vrot.slane %v1600, 4
      %v1603 = vrot.slane %v1224, 6
      %v1604 = vsel %vm826, %v1602, %v1603
      %v1605 = vrot.slane %v1575, 6
      %v1606 = vrot.slane %v1605, 4
      %v1607 = vrot.slane %v1006, 6
      %v1608 = vsel %vm826, %v1606, %v1607
      %v1609 = vrot.slane %v1607, 4
      %v1610 = vrot.slane %v1225, 6
      %v1611 = vsel %vm826, %v1609, %v1610
      %v1612 = vrot.slane %v1576, 6
      %v1613 = vrot.slane %v1612, 4
      %v1614 = vrot.slane %v1009, 6
      %v1615 = vsel %vm826, %v1613, %v1614
      %v1616 = vrot.slane %v1614, 4
      %v1617 = vrot.slane %v1226, 6
      %v1618 = vsel %vm826, %v1616, %v1617
      %v1619 = vrot.slane %v1577, 6
      %v1620 = vrot.slane %v1619, 4
      %v1621 = vrot.slane %v1012, 6
      %v1622 = vsel %vm826, %v1620, %v1621
      %v1623 = vrot.slane %v1621, 4
      %v1624 = vrot.slane %v1227, 6
      %v1625 = vsel %vm826, %v1623, %v1624
      %v1626 = vrot.slane %v1578, 6
      %v1627 = vrot.slane %v1626, 4
      %v1628 = vrot.slane %v1015, 6
      %v1629 = vsel %vm826, %v1627, %v1628
      %v1630 = vrot.slane %v1628, 4
      %v1631 = vrot.slane %v1228, 6
      %v1632 = vsel %vm826, %v1630, %v1631
      %v1633 = vrot.slane %v1579, 6
      %v1634 = vrot.slane %v1633, 4
      %v1635 = vrot.slane %v1018, 6
      %v1636 = vsel %vm826, %v1634, %v1635
      %v1637 = vrot.slane %v1635, 4
      %v1638 = vrot.slane %v1229, 6
      %v1639 = vsel %vm826, %v1637, %v1638
      %v1640 = vrot.slane %v1580, 6
      %v1641 = vrot.slane %v1640, 4
      %v1642 = vrot.slane %v1021, 6
      %v1643 = vsel %vm826, %v1641, %v1642
      %v1644 = vrot.slane %v1642, 4
      %v1645 = vrot.slane %v1230, 6
      %v1646 = vsel %vm826, %v1644, %v1645
      %v1647 = vrot.slane %v1581, 6
      %v1648 = vrot.slane %v1647, 4
      %v1649 = vrot.slane %v1024, 6
      %v1650 = vsel %vm826, %v1648, %v1649
      %v1651 = vrot.slane %v1649, 4
      %v1652 = vrot.slane %v1231, 6
      %v1653 = vsel %vm826, %v1651, %v1652
      %s1654 = scalar_lea.vmem %s1, 20
      %v1655 = vld [vmem:[%s1654] sm:$0xf]
      %v1656 = vunpack.c.l.b16 %v1601
      %v1657 = vunpack.c.l.b16 %v1604
      %v1658 = vunpack.c.l.b16 %v1608
      %v1659 = vunpack.c.l.b16 %v1611
      %v1660 = vunpack.c.l.b16 %v1615
      %v1661 = vunpack.c.l.b16 %v1618
      %v1662 = vunpack.c.l.b16 %v1622
      %v1663 = vunpack.c.l.b16 %v1625
      %v1664 = vunpack.c.l.b16 %v1629
      %v1665 = vunpack.c.l.b16 %v1632
      %v1666 = vunpack.c.l.b16 %v1636
      %v1667 = vunpack.c.l.b16 %v1639
      %v1668 = vunpack.c.l.b16 %v1643
      %v1669 = vunpack.c.l.b16 %v1646
      %v1670 = vunpack.c.l.b16 %v1650
      %v1671 = vunpack.c.l.b16 %v1653
      %v1672 = vpack.c.b16 %v1657, %v1656
      %v1673 = vpack.c.b16 %v1659, %v1658
      %v1674 = vpack.c.b16 %v1661, %v1660
      %v1675 = vpack.c.b16 %v1663, %v1662
      %v1676 = vpack.c.b16 %v1665, %v1664
      %v1677 = vpack.c.b16 %v1667, %v1666
      %v1678 = vpack.c.b16 %v1669, %v1668
      %v1679 = vpack.c.b16 %v1671, %v1670
      %v1681 = vsel %vm622, %v1672, 0
      %v1684 = vsel %vm622, %v1673, 0
      %v1687 = vsel %vm622, %v1674, 0
      %v1690 = vsel %vm622, %v1675, 0
      %v1693 = vsel %vm622, %v1676, 0
      %v1696 = vsel %vm622, %v1677, 0
      %v1699 = vsel %vm622, %v1678, 0
      %v1702 = vsel %vm622, %v1679, 0
      %v1705 = vsel %vm647, %v1655, 0
      %1707 = vmatpush.bf16.msra.mxu0 0
      %1708 = vmatpush.bf16.msra.mxu0 0
      %1709 = vmatpush.bf16.msra.mxu0 0
      %1710 = vmatpush.bf16.msra.mxu0 0
      %1711 = vmatpush.bf16.msra.mxu0 0
      %1712 = vmatpush.bf16.msra.mxu0 0
      %1713 = vmatpush.bf16.msra.mxu0 0
      %1714 = vmatpush.bf16.msra.mxu0 %v1705
      %1715 = vmatmul.bf16.gmra.mxu0 %v1681
      %v1716 = vpop.f32.mrf.mxu0
      %v1717 = vadd.f32 0.0, %v1716
      %v1718 = vpop.f32.mrf.mxu0
      %v1719 = vadd.f32 0.0, %v1718
      %1720 = vmatmul.bf16.gmra.mxu0 %v1684
      %v1721 = vpop.f32.mrf.mxu0
      %v1722 = vadd.f32 0.0, %v1721
      %v1723 = vpop.f32.mrf.mxu0
      %v1724 = vadd.f32 0.0, %v1723
      %1725 = vmatmul.bf16.gmra.mxu0 %v1687
      %v1726 = vpop.f32.mrf.mxu0
      %v1727 = vadd.f32 0.0, %v1726
      %v1728 = vpop.f32.mrf.mxu0
      %v1729 = vadd.f32 0.0, %v1728
      %1730 = vmatmul.bf16.gmra.mxu0 %v1690
      %v1731 = vpop.f32.mrf.mxu0
      %v1732 = vadd.f32 0.0, %v1731
      %v1733 = vpop.f32.mrf.mxu0
      %v1734 = vadd.f32 0.0, %v1733
      %1735 = vmatmul.bf16.gmra.mxu0 %v1693
      %v1736 = vpop.f32.mrf.mxu0
      %v1737 = vadd.f32 0.0, %v1736
      %v1738 = vpop.f32.mrf.mxu0
      %v1739 = vadd.f32 0.0, %v1738
      %1740 = vmatmul.bf16.gmra.mxu0 %v1696
      %v1741 = vpop.f32.mrf.mxu0
      %v1742 = vadd.f32 0.0, %v1741
      %v1743 = vpop.f32.mrf.mxu0
      %v1744 = vadd.f32 0.0, %v1743
      %1745 = vmatmul.bf16.gmra.mxu0 %v1699
      %v1746 = vpop.f32.mrf.mxu0
      %v1747 = vadd.f32 0.0, %v1746
      %v1748 = vpop.f32.mrf.mxu0
      %v1749 = vadd.f32 0.0, %v1748
      %1750 = vmatmul.bf16.gmra.mxu0 %v1702
      %v1751 = vpop.f32.mrf.mxu0
      %v1752 = vadd.f32 0.0, %v1751
      %v1753 = vpop.f32.mrf.mxu0
      %v1754 = vadd.f32 0.0, %v1753
      %1755 = vdwg.mxu0
      %v1756 = vadd.f32 %v1558, %v1717
      %v1757 = vadd.f32 %v1559, %v1719
      %v1758 = vadd.f32 %v1560, %v1722
      %v1759 = vadd.f32 %v1561, %v1724
      %v1760 = vadd.f32 %v1562, %v1727
      %v1761 = vadd.f32 %v1563, %v1729
      %v1762 = vadd.f32 %v1564, %v1732
      %v1763 = vadd.f32 %v1565, %v1734
      %v1764 = vadd.f32 %v1566, %v1737
      %v1765 = vadd.f32 %v1567, %v1739
      %v1766 = vadd.f32 %v1568, %v1742
      %v1767 = vadd.f32 %v1569, %v1744
      %v1768 = vadd.f32 %v1570, %v1747
      %v1769 = vadd.f32 %v1571, %v1749
      %v1770 = vadd.f32 %v1572, %v1752
      %v1771 = vadd.f32 %v1573, %v1754
      %s1772 = scalar_lea.vmem %s234, 48
      %v1773 = vld [vmem:[%s1772] sm:$0xe]
      %v1774 = vld [vmem:[%s1772 + $0x4] sm:$0xf]
      %v1775 = vld [vmem:[%s1772 + $0x8] sm:$0x1]
      %v1776 = vld [vmem:[%s1772 + $0xc] sm:$0xe]
      %v1777 = vld [vmem:[%s1772 + $0x10] sm:$0xf]
      %v1778 = vld [vmem:[%s1772 + $0x14] sm:$0x1]
      %v1779 = vld [vmem:[%s1772 + $0x18] sm:$0xe]
      %v1780 = vld [vmem:[%s1772 + $0x1c] sm:$0xf]
      %v1781 = vld [vmem:[%s1772 + $0x20] sm:$0x1]
      %v1782 = vld [vmem:[%s1772 + $0x24] sm:$0xe]
      %v1783 = vld [vmem:[%s1772 + $0x28] sm:$0xf]
      %v1784 = vld [vmem:[%s1772 + $0x2c] sm:$0x1]
      %v1785 = vld [vmem:[%s1772 + $0x30] sm:$0xe]
      %v1786 = vld [vmem:[%s1772 + $0x34] sm:$0xf]
      %v1787 = vld [vmem:[%s1772 + $0x38] sm:$0x1]
      %v1788 = vld [vmem:[%s1772 + $0x3c] sm:$0xe]
      %v1789 = vld [vmem:[%s1772 + $0x40] sm:$0xf]
      %v1790 = vld [vmem:[%s1772 + $0x44] sm:$0x1]
      %v1791 = vld [vmem:[%s1772 + $0x48] sm:$0xe]
      %v1792 = vld [vmem:[%s1772 + $0x4c] sm:$0xf]
      %v1793 = vld [vmem:[%s1772 + $0x50] sm:$0x1]
      %v1794 = vld [vmem:[%s1772 + $0x54] sm:$0xe]
      %v1795 = vld [vmem:[%s1772 + $0x58] sm:$0xf]
      %v1796 = vld [vmem:[%s1772 + $0x5c] sm:$0x1]
      %v1821 = vrot.slane %v1773, 5
      %v1822 = vrot.slane %v1821, 4
      %v1823 = vrot.slane %v1774, 5
      %v1824 = vsel %vm303, %v1822, %v1823
      %v1825 = vrot.slane %v1823, 4
      %v1826 = vrot.slane %v1775, 5
      %v1827 = vsel %vm303, %v1825, %v1826
      %v1828 = vrot.slane %v1776, 5
      %v1829 = vrot.slane %v1828, 4
      %v1830 = vrot.slane %v1777, 5
      %v1831 = vsel %vm303, %v1829, %v1830
      %v1832 = vrot.slane %v1830, 4
      %v1833 = vrot.slane %v1778, 5
      %v1834 = vsel %vm303, %v1832, %v1833
      %v1835 = vrot.slane %v1779, 5
      %v1836 = vrot.slane %v1835, 4
      %v1837 = vrot.slane %v1780, 5
      %v1838 = vsel %vm303, %v1836, %v1837
      %v1839 = vrot.slane %v1837, 4
      %v1840 = vrot.slane %v1781, 5
      %v1841 = vsel %vm303, %v1839, %v1840
      %v1842 = vrot.slane %v1782, 5
      %v1843 = vrot.slane %v1842, 4
      %v1844 = vrot.slane %v1783, 5
      %v1845 = vsel %vm303, %v1843, %v1844
      %v1846 = vrot.slane %v1844, 4
      %v1847 = vrot.slane %v1784, 5
      %v1848 = vsel %vm303, %v1846, %v1847
      %v1849 = vrot.slane %v1785, 5
      %v1850 = vrot.slane %v1849, 4
      %v1851 = vrot.slane %v1786, 5
      %v1852 = vsel %vm303, %v1850, %v1851
      %v1853 = vrot.slane %v1851, 4
      %v1854 = vrot.slane %v1787, 5
      %v1855 = vsel %vm303, %v1853, %v1854
      %v1856 = vrot.slane %v1788, 5
      %v1857 = vrot.slane %v1856, 4
      %v1858 = vrot.slane %v1789, 5
      %v1859 = vsel %vm303, %v1857, %v1858
      %v1860 = vrot.slane %v1858, 4
      %v1861 = vrot.slane %v1790, 5
      %v1862 = vsel %vm303, %v1860, %v1861
      %v1863 = vrot.slane %v1791, 5
      %v1864 = vrot.slane %v1863, 4
      %v1865 = vrot.slane %v1792, 5
      %v1866 = vsel %vm303, %v1864, %v1865
      %v1867 = vrot.slane %v1865, 4
      %v1868 = vrot.slane %v1793, 5
      %v1869 = vsel %vm303, %v1867, %v1868
      %v1870 = vrot.slane %v1794, 5
      %v1871 = vrot.slane %v1870, 4
      %v1872 = vrot.slane %v1795, 5
      %v1873 = vsel %vm303, %v1871, %v1872
      %v1874 = vrot.slane %v1872, 4
      %v1875 = vrot.slane %v1796, 5
      %v1876 = vsel %vm303, %v1874, %v1875
      %s1877 = scalar_lea.vmem %s1, 24
      %v1878 = vld [vmem:[%s1877] sm:$0xf]
      %v1879 = vunpack.c.l.b16 %v1824
      %v1880 = vunpack.c.l.b16 %v1827
      %v1881 = vunpack.c.l.b16 %v1831
      %v1882 = vunpack.c.l.b16 %v1834
      %v1883 = vunpack.c.l.b16 %v1838
      %v1884 = vunpack.c.l.b16 %v1841
      %v1885 = vunpack.c.l.b16 %v1845
      %v1886 = vunpack.c.l.b16 %v1848
      %v1887 = vunpack.c.l.b16 %v1852
      %v1888 = vunpack.c.l.b16 %v1855
      %v1889 = vunpack.c.l.b16 %v1859
      %v1890 = vunpack.c.l.b16 %v1862
      %v1891 = vunpack.c.l.b16 %v1866
      %v1892 = vunpack.c.l.b16 %v1869
      %v1893 = vunpack.c.l.b16 %v1873
      %v1894 = vunpack.c.l.b16 %v1876
      %v1895 = vpack.c.b16 %v1880, %v1879
      %v1896 = vpack.c.b16 %v1882, %v1881
      %v1897 = vpack.c.b16 %v1884, %v1883
      %v1898 = vpack.c.b16 %v1886, %v1885
      %v1899 = vpack.c.b16 %v1888, %v1887
      %v1900 = vpack.c.b16 %v1890, %v1889
      %v1901 = vpack.c.b16 %v1892, %v1891
      %v1902 = vpack.c.b16 %v1894, %v1893
      %v1904 = vsel %vm622, %v1895, 0
      %v1907 = vsel %vm622, %v1896, 0
      %v1910 = vsel %vm622, %v1897, 0
      %v1913 = vsel %vm622, %v1898, 0
      %v1916 = vsel %vm622, %v1899, 0
      %v1919 = vsel %vm622, %v1900, 0
      %v1922 = vsel %vm622, %v1901, 0
      %v1925 = vsel %vm622, %v1902, 0
      %v1928 = vsel %vm647, %v1878, 0
      %1930 = vmatpush.bf16.msra.mxu0 0
      %1931 = vmatpush.bf16.msra.mxu0 0
      %1932 = vmatpush.bf16.msra.mxu0 0
      %1933 = vmatpush.bf16.msra.mxu0 0
      %1934 = vmatpush.bf16.msra.mxu0 0
      %1935 = vmatpush.bf16.msra.mxu0 0
      %1936 = vmatpush.bf16.msra.mxu0 0
      %1937 = vmatpush.bf16.msra.mxu0 %v1928
      %1938 = vmatmul.bf16.gmra.mxu0 %v1904
      %v1939 = vpop.f32.mrf.mxu0
      %v1940 = vadd.f32 0.0, %v1939
      %v1941 = vpop.f32.mrf.mxu0
      %v1942 = vadd.f32 0.0, %v1941
      %1943 = vmatmul.bf16.gmra.mxu0 %v1907
      %v1944 = vpop.f32.mrf.mxu0
      %v1945 = vadd.f32 0.0, %v1944
      %v1946 = vpop.f32.mrf.mxu0
      %v1947 = vadd.f32 0.0, %v1946
      %1948 = vmatmul.bf16.gmra.mxu0 %v1910
      %v1949 = vpop.f32.mrf.mxu0
      %v1950 = vadd.f32 0.0, %v1949
      %v1951 = vpop.f32.mrf.mxu0
      %v1952 = vadd.f32 0.0, %v1951
      %1953 = vmatmul.bf16.gmra.mxu0 %v1913
      %v1954 = vpop.f32.mrf.mxu0
      %v1955 = vadd.f32 0.0, %v1954
      %v1956 = vpop.f32.mrf.mxu0
      %v1957 = vadd.f32 0.0, %v1956
      %1958 = vmatmul.bf16.gmra.mxu0 %v1916
      %v1959 = vpop.f32.mrf.mxu0
      %v1960 = vadd.f32 0.0, %v1959
      %v1961 = vpop.f32.mrf.mxu0
      %v1962 = vadd.f32 0.0, %v1961
      %1963 = vmatmul.bf16.gmra.mxu0 %v1919
      %v1964 = vpop.f32.mrf.mxu0
      %v1965 = vadd.f32 0.0, %v1964
      %v1966 = vpop.f32.mrf.mxu0
      %v1967 = vadd.f32 0.0, %v1966
      %1968 = vmatmul.bf16.gmra.mxu0 %v1922
      %v1969 = vpop.f32.mrf.mxu0
      %v1970 = vadd.f32 0.0, %v1969
      %v1971 = vpop.f32.mrf.mxu0
      %v1972 = vadd.f32 0.0, %v1971
      %1973 = vmatmul.bf16.gmra.mxu0 %v1925
      %v1974 = vpop.f32.mrf.mxu0
      %v1975 = vadd.f32 0.0, %v1974
      %v1976 = vpop.f32.mrf.mxu0
      %v1977 = vadd.f32 0.0, %v1976
      %1978 = vdwg.mxu0
      %v1979 = vadd.f32 %v1756, %v1940
      %v1980 = vadd.f32 %v1757, %v1942
      %v1981 = vadd.f32 %v1758, %v1945
      %v1982 = vadd.f32 %v1759, %v1947
      %v1983 = vadd.f32 %v1760, %v1950
      %v1984 = vadd.f32 %v1761, %v1952
      %v1985 = vadd.f32 %v1762, %v1955
      %v1986 = vadd.f32 %v1763, %v1957
      %v1987 = vadd.f32 %v1764, %v1960
      %v1988 = vadd.f32 %v1765, %v1962
      %v1989 = vadd.f32 %v1766, %v1965
      %v1990 = vadd.f32 %v1767, %v1967
      %v1991 = vadd.f32 %v1768, %v1970
      %v1992 = vadd.f32 %v1769, %v1972
      %v1993 = vadd.f32 %v1770, %v1975
      %v1994 = vadd.f32 %v1771, %v1977
      %v1995 = vld [vmem:[%s1772 + $0x8] sm:$0x3]
      %v1996 = vld [vmem:[%s1772 + $0x14] sm:$0x3]
      %v1997 = vld [vmem:[%s1772 + $0x20] sm:$0x3]
      %v1998 = vld [vmem:[%s1772 + $0x2c] sm:$0x3]
      %v1999 = vld [vmem:[%s1772 + $0x38] sm:$0x3]
      %v2000 = vld [vmem:[%s1772 + $0x44] sm:$0x3]
      %v2001 = vld [vmem:[%s1772 + $0x50] sm:$0x3]
      %v2002 = vld [vmem:[%s1772 + $0x5c] sm:$0x3]
      %v2004 = vshrl.u32 %v1773, 16
      %v2006 = vrot.slane %v2004, 5
      %v2007 = vshll.u32 %v1773, 16
      %v2009 = vrot.slane %v2007, 6
      %v2010 = vor.u32 %v2006, %v2009
      %v2011 = vrot.slane %v2010, 4
      %v2013 = vshrl.u32 %v1774, 16
      %v2015 = vrot.slane %v2013, 5
      %v2016 = vshll.u32 %v1774, 16
      %v2018 = vrot.slane %v2016, 6
      %v2019 = vor.u32 %v2015, %v2018
      %v2020 = vsel %vm371, %v2011, %v2019
      %v2021 = vrot.slane %v2019, 4
      %v2023 = vshrl.u32 %v1995, 16
      %v2025 = vrot.slane %v2023, 5
      %v2026 = vshll.u32 %v1995, 16
      %v2028 = vrot.slane %v2026, 6
      %v2029 = vor.u32 %v2025, %v2028
      %v2030 = vsel %vm371, %v2021, %v2029
      %v2032 = vshrl.u32 %v1776, 16
      %v2034 = vrot.slane %v2032, 5
      %v2035 = vshll.u32 %v1776, 16
      %v2037 = vrot.slane %v2035, 6
      %v2038 = vor.u32 %v2034, %v2037
      %v2039 = vrot.slane %v2038, 4
      %v2041 = vshrl.u32 %v1777, 16
      %v2043 = vrot.slane %v2041, 5
      %v2044 = vshll.u32 %v1777, 16
      %v2046 = vrot.slane %v2044, 6
      %v2047 = vor.u32 %v2043, %v2046
      %v2048 = vsel %vm371, %v2039, %v2047
      %v2049 = vrot.slane %v2047, 4
      %v2051 = vshrl.u32 %v1996, 16
      %v2053 = vrot.slane %v2051, 5
      %v2054 = vshll.u32 %v1996, 16
      %v2056 = vrot.slane %v2054, 6
      %v2057 = vor.u32 %v2053, %v2056
      %v2058 = vsel %vm371, %v2049, %v2057
      %v2060 = vshrl.u32 %v1779, 16
      %v2062 = vrot.slane %v2060, 5
      %v2063 = vshll.u32 %v1779, 16
      %v2065 = vrot.slane %v2063, 6
      %v2066 = vor.u32 %v2062, %v2065
      %v2067 = vrot.slane %v2066, 4
      %v2069 = vshrl.u32 %v1780, 16
      %v2071 = vrot.slane %v2069, 5
      %v2072 = vshll.u32 %v1780, 16
      %v2074 = vrot.slane %v2072, 6
      %v2075 = vor.u32 %v2071, %v2074
      %v2076 = vsel %vm371, %v2067, %v2075
      %v2077 = vrot.slane %v2075, 4
      %v2079 = vshrl.u32 %v1997, 16
      %v2081 = vrot.slane %v2079, 5
      %v2082 = vshll.u32 %v1997, 16
      %v2084 = vrot.slane %v2082, 6
      %v2085 = vor.u32 %v2081, %v2084
      %v2086 = vsel %vm371, %v2077, %v2085
      %v2088 = vshrl.u32 %v1782, 16
      %v2090 = vrot.slane %v2088, 5
      %v2091 = vshll.u32 %v1782, 16
      %v2093 = vrot.slane %v2091, 6
      %v2094 = vor.u32 %v2090, %v2093
      %v2095 = vrot.slane %v2094, 4
      %v2097 = vshrl.u32 %v1783, 16
      %v2099 = vrot.slane %v2097, 5
      %v2100 = vshll.u32 %v1783, 16
      %v2102 = vrot.slane %v2100, 6
      %v2103 = vor.u32 %v2099, %v2102
      %v2104 = vsel %vm371, %v2095, %v2103
      %v2105 = vrot.slane %v2103, 4
      %v2107 = vshrl.u32 %v1998, 16
      %v2109 = vrot.slane %v2107, 5
      %v2110 = vshll.u32 %v1998, 16
      %v2112 = vrot.slane %v2110, 6
      %v2113 = vor.u32 %v2109, %v2112
      %v2114 = vsel %vm371, %v2105, %v2113
      %v2116 = vshrl.u32 %v1785, 16
      %v2118 = vrot.slane %v2116, 5
      %v2119 = vshll.u32 %v1785, 16
      %v2121 = vrot.slane %v2119, 6
      %v2122 = vor.u32 %v2118, %v2121
      %v2123 = vrot.slane %v2122, 4
      %v2125 = vshrl.u32 %v1786, 16
      %v2127 = vrot.slane %v2125, 5
      %v2128 = vshll.u32 %v1786, 16
      %v2130 = vrot.slane %v2128, 6
      %v2131 = vor.u32 %v2127, %v2130
      %v2132 = vsel %vm371, %v2123, %v2131
      %v2133 = vrot.slane %v2131, 4
      %v2135 = vshrl.u32 %v1999, 16
      %v2137 = vrot.slane %v2135, 5
      %v2138 = vshll.u32 %v1999, 16
      %v2140 = vrot.slane %v2138, 6
      %v2141 = vor.u32 %v2137, %v2140
      %v2142 = vsel %vm371, %v2133, %v2141
      %v2144 = vshrl.u32 %v1788, 16
      %v2146 = vrot.slane %v2144, 5
      %v2147 = vshll.u32 %v1788, 16
      %v2149 = vrot.slane %v2147, 6
      %v2150 = vor.u32 %v2146, %v2149
      %v2151 = vrot.slane %v2150, 4
      %v2153 = vshrl.u32 %v1789, 16
      %v2155 = vrot.slane %v2153, 5
      %v2156 = vshll.u32 %v1789, 16
      %v2158 = vrot.slane %v2156, 6
      %v2159 = vor.u32 %v2155, %v2158
      %v2160 = vsel %vm371, %v2151, %v2159
      %v2161 = vrot.slane %v2159, 4
      %v2163 = vshrl.u32 %v2000, 16
      %v2165 = vrot.slane %v2163, 5
      %v2166 = vshll.u32 %v2000, 16
      %v2168 = vrot.slane %v2166, 6
      %v2169 = vor.u32 %v2165, %v2168
      %v2170 = vsel %vm371, %v2161, %v2169
      %v2172 = vshrl.u32 %v1791, 16
      %v2174 = vrot.slane %v2172, 5
      %v2175 = vshll.u32 %v1791, 16
      %v2177 = vrot.slane %v2175, 6
      %v2178 = vor.u32 %v2174, %v2177
      %v2179 = vrot.slane %v2178, 4
      %v2181 = vshrl.u32 %v1792, 16
      %v2183 = vrot.slane %v2181, 5
      %v2184 = vshll.u32 %v1792, 16
      %v2186 = vrot.slane %v2184, 6
      %v2187 = vor.u32 %v2183, %v2186
      %v2188 = vsel %vm371, %v2179, %v2187
      %v2189 = vrot.slane %v2187, 4
      %v2191 = vshrl.u32 %v2001, 16
      %v2193 = vrot.slane %v2191, 5
      %v2194 = vshll.u32 %v2001, 16
      %v2196 = vrot.slane %v2194, 6
      %v2197 = vor.u32 %v2193, %v2196
      %v2198 = vsel %vm371, %v2189, %v2197
      %v2200 = vshrl.u32 %v1794, 16
      %v2202 = vrot.slane %v2200, 5
      %v2203 = vshll.u32 %v1794, 16
      %v2205 = vrot.slane %v2203, 6
      %v2206 = vor.u32 %v2202, %v2205
      %v2207 = vrot.slane %v2206, 4
      %v2209 = vshrl.u32 %v1795, 16
      %v2211 = vrot.slane %v2209, 5
      %v2212 = vshll.u32 %v1795, 16
      %v2214 = vrot.slane %v2212, 6
      %v2215 = vor.u32 %v2211, %v2214
      %v2216 = vsel %vm371, %v2207, %v2215
      %v2217 = vrot.slane %v2215, 4
      %v2219 = vshrl.u32 %v2002, 16
      %v2221 = vrot.slane %v2219, 5
      %v2222 = vshll.u32 %v2002, 16
      %v2224 = vrot.slane %v2222, 6
      %v2225 = vor.u32 %v2221, %v2224
      %v2226 = vsel %vm371, %v2217, %v2225
      %s2227 = scalar_lea.vmem %s1, 28
      %v2228 = vld [vmem:[%s2227] sm:$0xf]
      %v2229 = vunpack.c.l.b16 %v2020
      %v2230 = vunpack.c.l.b16 %v2030
      %v2231 = vunpack.c.l.b16 %v2048
      %v2232 = vunpack.c.l.b16 %v2058
      %v2233 = vunpack.c.l.b16 %v2076
      %v2234 = vunpack.c.l.b16 %v2086
      %v2235 = vunpack.c.l.b16 %v2104
      %v2236 = vunpack.c.l.b16 %v2114
      %v2237 = vunpack.c.l.b16 %v2132
      %v2238 = vunpack.c.l.b16 %v2142
      %v2239 = vunpack.c.l.b16 %v2160
      %v2240 = vunpack.c.l.b16 %v2170
      %v2241 = vunpack.c.l.b16 %v2188
      %v2242 = vunpack.c.l.b16 %v2198
      %v2243 = vunpack.c.l.b16 %v2216
      %v2244 = vunpack.c.l.b16 %v2226
      %v2245 = vpack.c.b16 %v2230, %v2229
      %v2246 = vpack.c.b16 %v2232, %v2231
      %v2247 = vpack.c.b16 %v2234, %v2233
      %v2248 = vpack.c.b16 %v2236, %v2235
      %v2249 = vpack.c.b16 %v2238, %v2237
      %v2250 = vpack.c.b16 %v2240, %v2239
      %v2251 = vpack.c.b16 %v2242, %v2241
      %v2252 = vpack.c.b16 %v2244, %v2243
      %v2254 = vsel %vm622, %v2245, 0
      %v2257 = vsel %vm622, %v2246, 0
      %v2260 = vsel %vm622, %v2247, 0
      %v2263 = vsel %vm622, %v2248, 0
      %v2266 = vsel %vm622, %v2249, 0
      %v2269 = vsel %vm622, %v2250, 0
      %v2272 = vsel %vm622, %v2251, 0
      %v2275 = vsel %vm622, %v2252, 0
      %v2278 = vsel %vm647, %v2228, 0
      %2280 = vmatpush.bf16.msra.mxu0 0
      %2281 = vmatpush.bf16.msra.mxu0 0
      %2282 = vmatpush.bf16.msra.mxu0 0
      %2283 = vmatpush.bf16.msra.mxu0 0
      %2284 = vmatpush.bf16.msra.mxu0 0
      %2285 = vmatpush.bf16.msra.mxu0 0
      %2286 = vmatpush.bf16.msra.mxu0 0
      %2287 = vmatpush.bf16.msra.mxu0 %v2278
      %2288 = vmatmul.bf16.gmra.mxu0 %v2254
      %v2289 = vpop.f32.mrf.mxu0
      %v2290 = vadd.f32 0.0, %v2289
      %v2291 = vpop.f32.mrf.mxu0
      %v2292 = vadd.f32 0.0, %v2291
      %2293 = vmatmul.bf16.gmra.mxu0 %v2257
      %v2294 = vpop.f32.mrf.mxu0
      %v2295 = vadd.f32 0.0, %v2294
      %v2296 = vpop.f32.mrf.mxu0
      %v2297 = vadd.f32 0.0, %v2296
      %2298 = vmatmul.bf16.gmra.mxu0 %v2260
      %v2299 = vpop.f32.mrf.mxu0
      %v2300 = vadd.f32 0.0, %v2299
      %v2301 = vpop.f32.mrf.mxu0
      %v2302 = vadd.f32 0.0, %v2301
      %2303 = vmatmul.bf16.gmra.mxu0 %v2263
      %v2304 = vpop.f32.mrf.mxu0
      %v2305 = vadd.f32 0.0, %v2304
      %v2306 = vpop.f32.mrf.mxu0
      %v2307 = vadd.f32 0.0, %v2306
      %2308 = vmatmul.bf16.gmra.mxu0 %v2266
      %v2309 = vpop.f32.mrf.mxu0
      %v2310 = vadd.f32 0.0, %v2309
      %v2311 = vpop.f32.mrf.mxu0
      %v2312 = vadd.f32 0.0, %v2311
      %2313 = vmatmul.bf16.gmra.mxu0 %v2269
      %v2314 = vpop.f32.mrf.mxu0
      %v2315 = vadd.f32 0.0, %v2314
      %v2316 = vpop.f32.mrf.mxu0
      %v2317 = vadd.f32 0.0, %v2316
      %2318 = vmatmul.bf16.gmra.mxu0 %v2272
      %v2319 = vpop.f32.mrf.mxu0
      %v2320 = vadd.f32 0.0, %v2319
      %v2321 = vpop.f32.mrf.mxu0
      %v2322 = vadd.f32 0.0, %v2321
      %2323 = vmatmul.bf16.gmra.mxu0 %v2275
      %v2324 = vpop.f32.mrf.mxu0
      %v2325 = vadd.f32 0.0, %v2324
      %v2326 = vpop.f32.mrf.mxu0
      %v2327 = vadd.f32 0.0, %v2326
      %2328 = vdwg.mxu0
      %v2329 = vadd.f32 %v1979, %v2290
      %v2330 = vadd.f32 %v1980, %v2292
      %v2331 = vadd.f32 %v1981, %v2295
      %v2332 = vadd.f32 %v1982, %v2297
      %v2333 = vadd.f32 %v1983, %v2300
      %v2334 = vadd.f32 %v1984, %v2302
      %v2335 = vadd.f32 %v1985, %v2305
      %v2336 = vadd.f32 %v1986, %v2307
      %v2337 = vadd.f32 %v1987, %v2310
      %v2338 = vadd.f32 %v1988, %v2312
      %v2339 = vadd.f32 %v1989, %v2315
      %v2340 = vadd.f32 %v1990, %v2317
      %v2341 = vadd.f32 %v1991, %v2320
      %v2342 = vadd.f32 %v1992, %v2322
      %v2343 = vadd.f32 %v1993, %v2325
      %v2344 = vadd.f32 %v1994, %v2327
      %v2345 = vld [vmem:[%s1772] sm:$0xc]
      %v2346 = vld [vmem:[%s1772 + $0xc] sm:$0xc]
      %v2347 = vld [vmem:[%s1772 + $0x18] sm:$0xc]
      %v2348 = vld [vmem:[%s1772 + $0x24] sm:$0xc]
      %v2349 = vld [vmem:[%s1772 + $0x30] sm:$0xc]
      %v2350 = vld [vmem:[%s1772 + $0x3c] sm:$0xc]
      %v2351 = vld [vmem:[%s1772 + $0x48] sm:$0xc]
      %v2352 = vld [vmem:[%s1772 + $0x54] sm:$0xc]
      %v2369 = vrot.slane %v2345, 6
      %v2370 = vrot.slane %v2369, 4
      %v2371 = vrot.slane %v1774, 6
      %v2372 = vsel %vm826, %v2370, %v2371
      %v2373 = vrot.slane %v2371, 4
      %v2374 = vrot.slane %v1995, 6
      %v2375 = vsel %vm826, %v2373, %v2374
      %v2376 = vrot.slane %v2346, 6
      %v2377 = vrot.slane %v2376, 4
      %v2378 = vrot.slane %v1777, 6
      %v2379 = vsel %vm826, %v2377, %v2378
      %v2380 = vrot.slane %v2378, 4
      %v2381 = vrot.slane %v1996, 6
      %v2382 = vsel %vm826, %v2380, %v2381
      %v2383 = vrot.slane %v2347, 6
      %v2384 = vrot.slane %v2383, 4
      %v2385 = vrot.slane %v1780, 6
      %v2386 = vsel %vm826, %v2384, %v2385
      %v2387 = vrot.slane %v2385, 4
      %v2388 = vrot.slane %v1997, 6
      %v2389 = vsel %vm826, %v2387, %v2388
      %v2390 = vrot.slane %v2348, 6
      %v2391 = vrot.slane %v2390, 4
      %v2392 = vrot.slane %v1783, 6
      %v2393 = vsel %vm826, %v2391, %v2392
      %v2394 = vrot.slane %v2392, 4
      %v2395 = vrot.slane %v1998, 6
      %v2396 = vsel %vm826, %v2394, %v2395
      %v2397 = vrot.slane %v2349, 6
      %v2398 = vrot.slane %v2397, 4
      %v2399 = vrot.slane %v1786, 6
      %v2400 = vsel %vm826, %v2398, %v2399
      %v2401 = vrot.slane %v2399, 4
      %v2402 = vrot.slane %v1999, 6
      %v2403 = vsel %vm826, %v2401, %v2402
      %v2404 = vrot.slane %v2350, 6
      %v2405 = vrot.slane %v2404, 4
      %v2406 = vrot.slane %v1789, 6
      %v2407 = vsel %vm826, %v2405, %v2406
      %v2408 = vrot.slane %v2406, 4
      %v2409 = vrot.slane %v2000, 6
      %v2410 = vsel %vm826, %v2408, %v2409
      %v2411 = vrot.slane %v2351, 6
      %v2412 = vrot.slane %v2411, 4
      %v2413 = vrot.slane %v1792, 6
      %v2414 = vsel %vm826, %v2412, %v2413
      %v2415 = vrot.slane %v2413, 4
      %v2416 = vrot.slane %v2001, 6
      %v2417 = vsel %vm826, %v2415, %v2416
      %v2418 = vrot.slane %v2352, 6
      %v2419 = vrot.slane %v2418, 4
      %v2420 = vrot.slane %v1795, 6
      %v2421 = vsel %vm826, %v2419, %v2420
      %v2422 = vrot.slane %v2420, 4
      %v2423 = vrot.slane %v2002, 6
      %v2424 = vsel %vm826, %v2422, %v2423
      %s2425 = scalar_lea.vmem %s1, 32
      %v2426 = vld [vmem:[%s2425] sm:$0xf]
      %v2427 = vunpack.c.l.b16 %v2372
      %v2428 = vunpack.c.l.b16 %v2375
      %v2429 = vunpack.c.l.b16 %v2379
      %v2430 = vunpack.c.l.b16 %v2382
      %v2431 = vunpack.c.l.b16 %v2386
      %v2432 = vunpack.c.l.b16 %v2389
      %v2433 = vunpack.c.l.b16 %v2393
      %v2434 = vunpack.c.l.b16 %v2396
      %v2435 = vunpack.c.l.b16 %v2400
      %v2436 = vunpack.c.l.b16 %v2403
      %v2437 = vunpack.c.l.b16 %v2407
      %v2438 = vunpack.c.l.b16 %v2410
      %v2439 = vunpack.c.l.b16 %v2414
      %v2440 = vunpack.c.l.b16 %v2417
      %v2441 = vunpack.c.l.b16 %v2421
      %v2442 = vunpack.c.l.b16 %v2424
      %v2443 = vpack.c.b16 %v2428, %v2427
      %v2444 = vpack.c.b16 %v2430, %v2429
      %v2445 = vpack.c.b16 %v2432, %v2431
      %v2446 = vpack.c.b16 %v2434, %v2433
      %v2447 = vpack.c.b16 %v2436, %v2435
      %v2448 = vpack.c.b16 %v2438, %v2437
      %v2449 = vpack.c.b16 %v2440, %v2439
      %v2450 = vpack.c.b16 %v2442, %v2441
      %v2452 = vsel %vm622, %v2443, 0
      %v2455 = vsel %vm622, %v2444, 0
      %v2458 = vsel %vm622, %v2445, 0
      %v2461 = vsel %vm622, %v2446, 0
      %v2464 = vsel %vm622, %v2447, 0
      %v2467 = vsel %vm622, %v2448, 0
      %v2470 = vsel %vm622, %v2449, 0
      %v2473 = vsel %vm622, %v2450, 0
      %v2476 = vsel %vm647, %v2426, 0
      %2478 = vmatpush.bf16.msra.mxu0 0
      %2479 = vmatpush.bf16.msra.mxu0 0
      %2480 = vmatpush.bf16.msra.mxu0 0
      %2481 = vmatpush.bf16.msra.mxu0 0
      %2482 = vmatpush.bf16.msra.mxu0 0
      %2483 = vmatpush.bf16.msra.mxu0 0
      %2484 = vmatpush.bf16.msra.mxu0 0
      %2485 = vmatpush.bf16.msra.mxu0 %v2476
      %2486 = vmatmul.bf16.gmra.mxu0 %v2452
      %v2487 = vpop.f32.mrf.mxu0
      %v2488 = vadd.f32 0.0, %v2487
      %v2489 = vpop.f32.mrf.mxu0
      %v2490 = vadd.f32 0.0, %v2489
      %2491 = vmatmul.bf16.gmra.mxu0 %v2455
      %v2492 = vpop.f32.mrf.mxu0
      %v2493 = vadd.f32 0.0, %v2492
      %v2494 = vpop.f32.mrf.mxu0
      %v2495 = vadd.f32 0.0, %v2494
      %2496 = vmatmul.bf16.gmra.mxu0 %v2458
      %v2497 = vpop.f32.mrf.mxu0
      %v2498 = vadd.f32 0.0, %v2497
      %v2499 = vpop.f32.mrf.mxu0
      %v2500 = vadd.f32 0.0, %v2499
      %2501 = vmatmul.bf16.gmra.mxu0 %v2461
      %v2502 = vpop.f32.mrf.mxu0
      %v2503 = vadd.f32 0.0, %v2502
      %v2504 = vpop.f32.mrf.mxu0
      %v2505 = vadd.f32 0.0, %v2504
      %2506 = vmatmul.bf16.gmra.mxu0 %v2464
      %v2507 = vpop.f32.mrf.mxu0
      %v2508 = vadd.f32 0.0, %v2507
      %v2509 = vpop.f32.mrf.mxu0
      %v2510 = vadd.f32 0.0, %v2509
      %2511 = vmatmul.bf16.gmra.mxu0 %v2467
      %v2512 = vpop.f32.mrf.mxu0
      %v2513 = vadd.f32 0.0, %v2512
      %v2514 = vpop.f32.mrf.mxu0
      %v2515 = vadd.f32 0.0, %v2514
      %2516 = vmatmul.bf16.gmra.mxu0 %v2470
      %v2517 = vpop.f32.mrf.mxu0
      %v2518 = vadd.f32 0.0, %v2517
      %v2519 = vpop.f32.mrf.mxu0
      %v2520 = vadd.f32 0.0, %v2519
      %2521 = vmatmul.bf16.gmra.mxu0 %v2473
      %v2522 = vpop.f32.mrf.mxu0
      %v2523 = vadd.f32 0.0, %v2522
      %v2524 = vpop.f32.mrf.mxu0
      %v2525 = vadd.f32 0.0, %v2524
      %2526 = vdwg.mxu0
      %v2527 = vadd.f32 %v2329, %v2488
      %v2528 = vadd.f32 %v2330, %v2490
      %v2529 = vadd.f32 %v2331, %v2493
      %v2530 = vadd.f32 %v2332, %v2495
      %v2531 = vadd.f32 %v2333, %v2498
      %v2532 = vadd.f32 %v2334, %v2500
      %v2533 = vadd.f32 %v2335, %v2503
      %v2534 = vadd.f32 %v2336, %v2505
      %v2535 = vadd.f32 %v2337, %v2508
      %v2536 = vadd.f32 %v2338, %v2510
      %v2537 = vadd.f32 %v2339, %v2513
      %v2538 = vadd.f32 %v2340, %v2515
      %v2539 = vadd.f32 %v2341, %v2518
      %v2540 = vadd.f32 %v2342, %v2520
      %v2541 = vadd.f32 %v2343, %v2523
      %v2542 = vadd.f32 %v2344, %v2525
      %v2543 = vld [vmem:[%s2] sm:$0x1]
      %v2545 = vperm.slane %v2543, 0
      %v2547 = vadd.f32 %v2527, %v2545
      %v2548 = vadd.f32 %v2528, %v2545
      %v2549 = vadd.f32 %v2529, %v2545
      %v2550 = vadd.f32 %v2530, %v2545
      %v2551 = vadd.f32 %v2531, %v2545
      %v2552 = vadd.f32 %v2532, %v2545
      %v2553 = vadd.f32 %v2533, %v2545
      %v2554 = vadd.f32 %v2534, %v2545
      %v2555 = vadd.f32 %v2535, %v2545
      %v2556 = vadd.f32 %v2536, %v2545
      %v2557 = vadd.f32 %v2537, %v2545
      %v2558 = vadd.f32 %v2538, %v2545
      %v2559 = vadd.f32 %v2539, %v2545
      %v2560 = vadd.f32 %v2540, %v2545
      %v2561 = vadd.f32 %v2541, %v2545
      %v2562 = vadd.f32 %v2542, %v2545
      %v2563 = vmax.f32 %v2547, 0.0
      %v2564 = vmax.f32 %v2548, 0.0
      %v2565 = vmax.f32 %v2549, 0.0
      %v2566 = vmax.f32 %v2550, 0.0
      %v2567 = vmax.f32 %v2551, 0.0
      %v2568 = vmax.f32 %v2552, 0.0
      %v2569 = vmax.f32 %v2553, 0.0
      %v2570 = vmax.f32 %v2554, 0.0
      %v2571 = vmax.f32 %v2555, 0.0
      %v2572 = vmax.f32 %v2556, 0.0
      %v2573 = vmax.f32 %v2557, 0.0
      %v2574 = vmax.f32 %v2558, 0.0
      %v2575 = vmax.f32 %v2559, 0.0
      %v2576 = vmax.f32 %v2560, 0.0
      %v2577 = vmax.f32 %v2561, 0.0
      %v2578 = vmax.f32 %v2562, 0.0
      %s2579 = scalar_lea.vmem %s234, 12
      %v2580 = vld [vmem:[%s2579] sm:$0xf]
      %v2581 = vld [vmem:[%s2579 + $0x4] sm:$0xf]
      %v2582 = vld [vmem:[%s2579 + $0x8] sm:$0x1]
      %v2583 = vld [vmem:[%s2579 + $0xc] sm:$0xf]
      %v2584 = vld [vmem:[%s2579 + $0x10] sm:$0xf]
      %v2585 = vld [vmem:[%s2579 + $0x14] sm:$0x1]
      %v2586 = vld [vmem:[%s2579 + $0x18] sm:$0xf]
      %v2587 = vld [vmem:[%s2579 + $0x1c] sm:$0xf]
      %v2588 = vld [vmem:[%s2579 + $0x20] sm:$0x1]
      %v2589 = vld [vmem:[%s2579 + $0x24] sm:$0xf]
      %v2590 = vld [vmem:[%s2579 + $0x28] sm:$0xf]
      %v2591 = vld [vmem:[%s2579 + $0x2c] sm:$0x1]
      %v2592 = vld [vmem:[%s2579 + $0x30] sm:$0xf]
      %v2593 = vld [vmem:[%s2579 + $0x34] sm:$0xf]
      %v2594 = vld [vmem:[%s2579 + $0x38] sm:$0x1]
      %v2595 = vld [vmem:[%s2579 + $0x3c] sm:$0xf]
      %v2596 = vld [vmem:[%s2579 + $0x40] sm:$0xf]
      %v2597 = vld [vmem:[%s2579 + $0x44] sm:$0x1]
      %v2598 = vld [vmem:[%s2579 + $0x48] sm:$0xf]
      %v2599 = vld [vmem:[%s2579 + $0x4c] sm:$0xf]
      %v2600 = vld [vmem:[%s2579 + $0x50] sm:$0x1]
      %v2601 = vld [vmem:[%s2579 + $0x54] sm:$0xf]
      %v2602 = vld [vmem:[%s2579 + $0x58] sm:$0xf]
      %v2603 = vld [vmem:[%s2579 + $0x5c] sm:$0x1]
      %vm2604 = vsmask.f32 3328
      %vm2605 = vsmask.f32 7440
      %vm2606 = vmor %vm2604, %vm2605
      %v2608 = vshrl.u32 %v2580, 16
      %v2610 = vrot.slane %v2608, 4
      %v2611 = vshll.u32 %v2580, 16
      %v2613 = vrot.slane %v2611, 5
      %v2614 = vor.u32 %v2610, %v2613
      %v2615 = vrot.slane %v2614, 4
      %v2617 = vshll.u32 %v2581, 16
      %v2619 = vrot.slane %v2617, 5
      %v2620 = vsel %vm2606, %v2615, %v2619
      %v2621 = vshrl.u32 %v2581, 16
      %v2623 = vrot.slane %v2621, 4
      %v2624 = vor.u32 %v2623, %v2619
      %v2625 = vrot.slane %v2624, 4
      %v2627 = vshll.u32 %v2582, 16
      %v2629 = vrot.slane %v2627, 5
      %v2630 = vsel %vm2606, %v2625, %v2629
      %v2632 = vshrl.u32 %v2583, 16
      %v2634 = vrot.slane %v2632, 4
      %v2635 = vshll.u32 %v2583, 16
      %v2637 = vrot.slane %v2635, 5
      %v2638 = vor.u32 %v2634, %v2637
      %v2639 = vrot.slane %v2638, 4
      %v2641 = vshll.u32 %v2584, 16
      %v2643 = vrot.slane %v2641, 5
      %v2644 = vsel %vm2606, %v2639, %v2643
      %v2645 = vshrl.u32 %v2584, 16
      %v2647 = vrot.slane %v2645, 4
      %v2648 = vor.u32 %v2647, %v2643
      %v2649 = vrot.slane %v2648, 4
      %v2651 = vshll.u32 %v2585, 16
      %v2653 = vrot.slane %v2651, 5
      %v2654 = vsel %vm2606, %v2649, %v2653
      %v2656 = vshrl.u32 %v2586, 16
      %v2658 = vrot.slane %v2656, 4
      %v2659 = vshll.u32 %v2586, 16
      %v2661 = vrot.slane %v2659, 5
      %v2662 = vor.u32 %v2658, %v2661
      %v2663 = vrot.slane %v2662, 4
      %v2665 = vshll.u32 %v2587, 16
      %v2667 = vrot.slane %v2665, 5
      %v2668 = vsel %vm2606, %v2663, %v2667
      %v2669 = vshrl.u32 %v2587, 16
      %v2671 = vrot.slane %v2669, 4
      %v2672 = vor.u32 %v2671, %v2667
      %v2673 = vrot.slane %v2672, 4
      %v2675 = vshll.u32 %v2588, 16
      %v2677 = vrot.slane %v2675, 5
      %v2678 = vsel %vm2606, %v2673, %v2677
      %v2680 = vshrl.u32 %v2589, 16
      %v2682 = vrot.slane %v2680, 4
      %v2683 = vshll.u32 %v2589, 16
      %v2685 = vrot.slane %v2683, 5
      %v2686 = vor.u32 %v2682, %v2685
      %v2687 = vrot.slane %v2686, 4
      %v2689 = vshll.u32 %v2590, 16
      %v2691 = vrot.slane %v2689, 5
      %v2692 = vsel %vm2606, %v2687, %v2691
      %v2693 = vshrl.u32 %v2590, 16
      %v2695 = vrot.slane %v2693, 4
      %v2696 = vor.u32 %v2695, %v2691
      %v2697 = vrot.slane %v2696, 4
      %v2699 = vshll.u32 %v2591, 16
      %v2701 = vrot.slane %v2699, 5
      %v2702 = vsel %vm2606, %v2697, %v2701
      %v2704 = vshrl.u32 %v2592, 16
      %v2706 = vrot.slane %v2704, 4
      %v2707 = vshll.u32 %v2592, 16
      %v2709 = vrot.slane %v2707, 5
      %v2710 = vor.u32 %v2706, %v2709
      %v2711 = vrot.slane %v2710, 4
      %v2713 = vshll.u32 %v2593, 16
      %v2715 = vrot.slane %v2713, 5
      %v2716 = vsel %vm2606, %v2711, %v2715
      %v2717 = vshrl.u32 %v2593, 16
      %v2719 = vrot.slane %v2717, 4
      %v2720 = vor.u32 %v2719, %v2715
      %v2721 = vrot.slane %v2720, 4
      %v2723 = vshll.u32 %v2594, 16
      %v2725 = vrot.slane %v2723, 5
      %v2726 = vsel %vm2606, %v2721, %v2725
      %v2728 = vshrl.u32 %v2595, 16
      %v2730 = vrot.slane %v2728, 4
      %v2731 = vshll.u32 %v2595, 16
      %v2733 = vrot.slane %v2731, 5
      %v2734 = vor.u32 %v2730, %v2733
      %v2735 = vrot.slane %v2734, 4
      %v2737 = vshll.u32 %v2596, 16
      %v2739 = vrot.slane %v2737, 5
      %v2740 = vsel %vm2606, %v2735, %v2739
      %v2741 = vshrl.u32 %v2596, 16
      %v2743 = vrot.slane %v2741, 4
      %v2744 = vor.u32 %v2743, %v2739
      %v2745 = vrot.slane %v2744, 4
      %v2747 = vshll.u32 %v2597, 16
      %v2749 = vrot.slane %v2747, 5
      %v2750 = vsel %vm2606, %v2745, %v2749
      %v2752 = vshrl.u32 %v2598, 16
      %v2754 = vrot.slane %v2752, 4
      %v2755 = vshll.u32 %v2598, 16
      %v2757 = vrot.slane %v2755, 5
      %v2758 = vor.u32 %v2754, %v2757
      %v2759 = vrot.slane %v2758, 4
      %v2761 = vshll.u32 %v2599, 16
      %v2763 = vrot.slane %v2761, 5
      %v2764 = vsel %vm2606, %v2759, %v2763
      %v2765 = vshrl.u32 %v2599, 16
      %v2767 = vrot.slane %v2765, 4
      %v2768 = vor.u32 %v2767, %v2763
      %v2769 = vrot.slane %v2768, 4
      %v2771 = vshll.u32 %v2600, 16
      %v2773 = vrot.slane %v2771, 5
      %v2774 = vsel %vm2606, %v2769, %v2773
      %v2776 = vshrl.u32 %v2601, 16
      %v2778 = vrot.slane %v2776, 4
      %v2779 = vshll.u32 %v2601, 16
      %v2781 = vrot.slane %v2779, 5
      %v2782 = vor.u32 %v2778, %v2781
      %v2783 = vrot.slane %v2782, 4
      %v2785 = vshll.u32 %v2602, 16
      %v2787 = vrot.slane %v2785, 5
      %v2788 = vsel %vm2606, %v2783, %v2787
      %v2789 = vshrl.u32 %v2602, 16
      %v2791 = vrot.slane %v2789, 4
      %v2792 = vor.u32 %v2791, %v2787
      %v2793 = vrot.slane %v2792, 4
      %v2795 = vshll.u32 %v2603, 16
      %v2797 = vrot.slane %v2795, 5
      %v2798 = vsel %vm2606, %v2793, %v2797
      %s2799 = scalar_lea.vmem %s1, 36
      %v2800 = vld [vmem:[%s2799] sm:$0xf]
      %v2801 = vld [vmem:[%s2579] sm:$0xe]
      %v2802 = vld [vmem:[%s2579 + $0x8] sm:$0x3]
      %v2803 = vld [vmem:[%s2579 + $0xc] sm:$0xe]
      %v2804 = vld [vmem:[%s2579 + $0x14] sm:$0x3]
      %v2805 = vld [vmem:[%s2579 + $0x18] sm:$0xe]
      %v2806 = vld [vmem:[%s2579 + $0x20] sm:$0x3]
      %v2807 = vld [vmem:[%s2579 + $0x24] sm:$0xe]
      %v2808 = vld [vmem:[%s2579 + $0x2c] sm:$0x3]
      %v2809 = vld [vmem:[%s2579 + $0x30] sm:$0xe]
      %v2810 = vld [vmem:[%s2579 + $0x38] sm:$0x3]
      %v2811 = vld [vmem:[%s2579 + $0x3c] sm:$0xe]
      %v2812 = vld [vmem:[%s2579 + $0x44] sm:$0x3]
      %v2813 = vld [vmem:[%s2579 + $0x48] sm:$0xe]
      %v2814 = vld [vmem:[%s2579 + $0x50] sm:$0x3]
      %v2815 = vld [vmem:[%s2579 + $0x54] sm:$0xe]
      %v2816 = vld [vmem:[%s2579 + $0x5c] sm:$0x3]
      %v2818 = vshrl.u32 %v2801, 16
      %v2820 = vrot.slane %v2818, 5
      %v2821 = vshll.u32 %v2801, 16
      %v2823 = vrot.slane %v2821, 6
      %v2824 = vor.u32 %v2820, %v2823
      %v2825 = vrot.slane %v2824, 4
      %v2826 = vrot.slane %v2621, 5
      %v2827 = vrot.slane %v2617, 6
      %v2828 = vor.u32 %v2826, %v2827
      %v2829 = vsel %vm371, %v2825, %v2828
      %v2830 = vrot.slane %v2828, 4
      %v2832 = vshrl.u32 %v2802, 16
      %v2834 = vrot.slane %v2832, 5
      %v2835 = vshll.u32 %v2802, 16
      %v2837 = vrot.slane %v2835, 6
      %v2838 = vor.u32 %v2834, %v2837
      %v2839 = vsel %vm371, %v2830, %v2838
      %v2841 = vshrl.u32 %v2803, 16
      %v2843 = vrot.slane %v2841, 5
      %v2844 = vshll.u32 %v2803, 16
      %v2846 = vrot.slane %v2844, 6
      %v2847 = vor.u32 %v2843, %v2846
      %v2848 = vrot.slane %v2847, 4
      %v2849 = vrot.slane %v2645, 5
      %v2850 = vrot.slane %v2641, 6
      %v2851 = vor.u32 %v2849, %v2850
      %v2852 = vsel %vm371, %v2848, %v2851
      %v2853 = vrot.slane %v2851, 4
      %v2855 = vshrl.u32 %v2804, 16
      %v2857 = vrot.slane %v2855, 5
      %v2858 = vshll.u32 %v2804, 16
      %v2860 = vrot.slane %v2858, 6
      %v2861 = vor.u32 %v2857, %v2860
      %v2862 = vsel %vm371, %v2853, %v2861
      %v2864 = vshrl.u32 %v2805, 16
      %v2866 = vrot.slane %v2864, 5
      %v2867 = vshll.u32 %v2805, 16
      %v2869 = vrot.slane %v2867, 6
      %v2870 = vor.u32 %v2866, %v2869
      %v2871 = vrot.slane %v2870, 4
      %v2872 = vrot.slane %v2669, 5
      %v2873 = vrot.slane %v2665, 6
      %v2874 = vor.u32 %v2872, %v2873
      %v2875 = vsel %vm371, %v2871, %v2874
      %v2876 = vrot.slane %v2874, 4
      %v2878 = vshrl.u32 %v2806, 16
      %v2880 = vrot.slane %v2878, 5
      %v2881 = vshll.u32 %v2806, 16
      %v2883 = vrot.slane %v2881, 6
      %v2884 = vor.u32 %v2880, %v2883
      %v2885 = vsel %vm371, %v2876, %v2884
      %v2887 = vshrl.u32 %v2807, 16
      %v2889 = vrot.slane %v2887, 5
      %v2890 = vshll.u32 %v2807, 16
      %v2892 = vrot.slane %v2890, 6
      %v2893 = vor.u32 %v2889, %v2892
      %v2894 = vrot.slane %v2893, 4
      %v2895 = vrot.slane %v2693, 5
      %v2896 = vrot.slane %v2689, 6
      %v2897 = vor.u32 %v2895, %v2896
      %v2898 = vsel %vm371, %v2894, %v2897
      %v2899 = vrot.slane %v2897, 4
      %v2901 = vshrl.u32 %v2808, 16
      %v2903 = vrot.slane %v2901, 5
      %v2904 = vshll.u32 %v2808, 16
      %v2906 = vrot.slane %v2904, 6
      %v2907 = vor.u32 %v2903, %v2906
      %v2908 = vsel %vm371, %v2899, %v2907
      %v2910 = vshrl.u32 %v2809, 16
      %v2912 = vrot.slane %v2910, 5
      %v2913 = vshll.u32 %v2809, 16
      %v2915 = vrot.slane %v2913, 6
      %v2916 = vor.u32 %v2912, %v2915
      %v2917 = vrot.slane %v2916, 4
      %v2918 = vrot.slane %v2717, 5
      %v2919 = vrot.slane %v2713, 6
      %v2920 = vor.u32 %v2918, %v2919
      %v2921 = vsel %vm371, %v2917, %v2920
      %v2922 = vrot.slane %v2920, 4
      %v2924 = vshrl.u32 %v2810, 16
      %v2926 = vrot.slane %v2924, 5
      %v2927 = vshll.u32 %v2810, 16
      %v2929 = vrot.slane %v2927, 6
      %v2930 = vor.u32 %v2926, %v2929
      %v2931 = vsel %vm371, %v2922, %v2930
      %v2933 = vshrl.u32 %v2811, 16
      %v2935 = vrot.slane %v2933, 5
      %v2936 = vshll.u32 %v2811, 16
      %v2938 = vrot.slane %v2936, 6
      %v2939 = vor.u32 %v2935, %v2938
      %v2940 = vrot.slane %v2939, 4
      %v2941 = vrot.slane %v2741, 5
      %v2942 = vrot.slane %v2737, 6
      %v2943 = vor.u32 %v2941, %v2942
      %v2944 = vsel %vm371, %v2940, %v2943
      %v2945 = vrot.slane %v2943, 4
      %v2947 = vshrl.u32 %v2812, 16
      %v2949 = vrot.slane %v2947, 5
      %v2950 = vshll.u32 %v2812, 16
      %v2952 = vrot.slane %v2950, 6
      %v2953 = vor.u32 %v2949, %v2952
      %v2954 = vsel %vm371, %v2945, %v2953
      %v2956 = vshrl.u32 %v2813, 16
      %v2958 = vrot.slane %v2956, 5
      %v2959 = vshll.u32 %v2813, 16
      %v2961 = vrot.slane %v2959, 6
      %v2962 = vor.u32 %v2958, %v2961
      %v2963 = vrot.slane %v2962, 4
      %v2964 = vrot.slane %v2765, 5
      %v2965 = vrot.slane %v2761, 6
      %v2966 = vor.u32 %v2964, %v2965
      %v2967 = vsel %vm371, %v2963, %v2966
      %v2968 = vrot.slane %v2966, 4
      %v2970 = vshrl.u32 %v2814, 16
      %v2972 = vrot.slane %v2970, 5
      %v2973 = vshll.u32 %v2814, 16
      %v2975 = vrot.slane %v2973, 6
      %v2976 = vor.u32 %v2972, %v2975
      %v2977 = vsel %vm371, %v2968, %v2976
      %v2979 = vshrl.u32 %v2815, 16
      %v2981 = vrot.slane %v2979, 5
      %v2982 = vshll.u32 %v2815, 16
      %v2984 = vrot.slane %v2982, 6
      %v2985 = vor.u32 %v2981, %v2984
      %v2986 = vrot.slane %v2985, 4
      %v2987 = vrot.slane %v2789, 5
      %v2988 = vrot.slane %v2785, 6
      %v2989 = vor.u32 %v2987, %v2988
      %v2990 = vsel %vm371, %v2986, %v2989
      %v2991 = vrot.slane %v2989, 4
      %v2993 = vshrl.u32 %v2816, 16
      %v2995 = vrot.slane %v2993, 5
      %v2996 = vshll.u32 %v2816, 16
      %v2998 = vrot.slane %v2996, 6
      %v2999 = vor.u32 %v2995, %v2998
      %v3000 = vsel %vm371, %v2991, %v2999
      %s3001 = scalar_lea.vmem %s1, 40
      %v3002 = vld [vmem:[%s3001] sm:$0xf]
      %v3003 = vunpack.c.l.b16 %v2829
      %v3004 = vunpack.c.l.b16 %v2839
      %v3005 = vunpack.c.l.b16 %v2852
      %v3006 = vunpack.c.l.b16 %v2862
      %v3007 = vunpack.c.l.b16 %v2875
      %v3008 = vunpack.c.l.b16 %v2885
      %v3009 = vunpack.c.l.b16 %v2898
      %v3010 = vunpack.c.l.b16 %v2908
      %v3011 = vunpack.c.l.b16 %v2921
      %v3012 = vunpack.c.l.b16 %v2931
      %v3013 = vunpack.c.l.b16 %v2944
      %v3014 = vunpack.c.l.b16 %v2954
      %v3015 = vunpack.c.l.b16 %v2967
      %v3016 = vunpack.c.l.b16 %v2977
      %v3017 = vunpack.c.l.b16 %v2990
      %v3018 = vunpack.c.l.b16 %v3000
      %v3019 = vpack.c.b16 %v3004, %v3003
      %v3020 = vpack.c.b16 %v3006, %v3005
      %v3021 = vpack.c.b16 %v3008, %v3007
      %v3022 = vpack.c.b16 %v3010, %v3009
      %v3023 = vpack.c.b16 %v3012, %v3011
      %v3024 = vpack.c.b16 %v3014, %v3013
      %v3025 = vpack.c.b16 %v3016, %v3015
      %v3026 = vpack.c.b16 %v3018, %v3017
      %v3028 = vsel %vm622, %v3019, 0
      %v3031 = vsel %vm622, %v3020, 0
      %v3034 = vsel %vm622, %v3021, 0
      %v3037 = vsel %vm622, %v3022, 0
      %v3040 = vsel %vm622, %v3023, 0
      %v3043 = vsel %vm622, %v3024, 0
      %v3046 = vsel %vm622, %v3025, 0
      %v3049 = vsel %vm622, %v3026, 0
      %v3052 = vsel %vm647, %v3002, 0
      %3054 = vmatpush.bf16.msra.mxu0 0
      %3055 = vmatpush.bf16.msra.mxu0 0
      %3056 = vmatpush.bf16.msra.mxu0 0
      %3057 = vmatpush.bf16.msra.mxu0 0
      %3058 = vmatpush.bf16.msra.mxu0 0
      %3059 = vmatpush.bf16.msra.mxu0 0
      %3060 = vmatpush.bf16.msra.mxu0 0
      %3061 = vmatpush.bf16.msra.mxu0 %v3052
      %3062 = vmatmul.bf16.gmra.mxu0 %v3028
      %v3063 = vpop.f32.mrf.mxu0
      %v3064 = vadd.f32 0.0, %v3063
      %v3065 = vpop.f32.mrf.mxu0
      %v3066 = vadd.f32 0.0, %v3065
      %3067 = vmatmul.bf16.gmra.mxu0 %v3031
      %v3068 = vpop.f32.mrf.mxu0
      %v3069 = vadd.f32 0.0, %v3068
      %v3070 = vpop.f32.mrf.mxu0
      %v3071 = vadd.f32 0.0, %v3070
      %3072 = vmatmul.bf16.gmra.mxu0 %v3034
      %v3073 = vpop.f32.mrf.mxu0
      %v3074 = vadd.f32 0.0, %v3073
      %v3075 = vpop.f32.mrf.mxu0
      %v3076 = vadd.f32 0.0, %v3075
      %3077 = vmatmul.bf16.gmra.mxu0 %v3037
      %v3078 = vpop.f32.mrf.mxu0
      %v3079 = vadd.f32 0.0, %v3078
      %v3080 = vpop.f32.mrf.mxu0
      %v3081 = vadd.f32 0.0, %v3080
      %3082 = vmatmul.bf16.gmra.mxu0 %v3040
      %v3083 = vpop.f32.mrf.mxu0
      %v3084 = vadd.f32 0.0, %v3083
      %v3085 = vpop.f32.mrf.mxu0
      %v3086 = vadd.f32 0.0, %v3085
      %3087 = vmatmul.bf16.gmra.mxu0 %v3043
      %v3088 = vpop.f32.mrf.mxu0
      %v3089 = vadd.f32 0.0, %v3088
      %v3090 = vpop.f32.mrf.mxu0
      %v3091 = vadd.f32 0.0, %v3090
      %3092 = vmatmul.bf16.gmra.mxu0 %v3046
      %v3093 = vpop.f32.mrf.mxu0
      %v3094 = vadd.f32 0.0, %v3093
      %v3095 = vpop.f32.mrf.mxu0
      %v3096 = vadd.f32 0.0, %v3095
      %3097 = vmatmul.bf16.gmra.mxu0 %v3049
      %v3098 = vpop.f32.mrf.mxu0
      %v3099 = vadd.f32 0.0, %v3098
      %v3100 = vpop.f32.mrf.mxu0
      %v3101 = vadd.f32 0.0, %v3100
      %3102 = vdwg.mxu0
      %v3103 = vunpack.c.l.b16 %v2620
      %v3104 = vunpack.c.l.b16 %v2630
      %v3105 = vunpack.c.l.b16 %v2644
      %v3106 = vunpack.c.l.b16 %v2654
      %v3107 = vunpack.c.l.b16 %v2668
      %v3108 = vunpack.c.l.b16 %v2678
      %v3109 = vunpack.c.l.b16 %v2692
      %v3110 = vunpack.c.l.b16 %v2702
      %v3111 = vunpack.c.l.b16 %v2716
      %v3112 = vunpack.c.l.b16 %v2726
      %v3113 = vunpack.c.l.b16 %v2740
      %v3114 = vunpack.c.l.b16 %v2750
      %v3115 = vunpack.c.l.b16 %v2764
      %v3116 = vunpack.c.l.b16 %v2774
      %v3117 = vunpack.c.l.b16 %v2788
      %v3118 = vunpack.c.l.b16 %v2798
      %v3119 = vpack.c.b16 %v3104, %v3103
      %v3120 = vpack.c.b16 %v3106, %v3105
      %v3121 = vpack.c.b16 %v3108, %v3107
      %v3122 = vpack.c.b16 %v3110, %v3109
      %v3123 = vpack.c.b16 %v3112, %v3111
      %v3124 = vpack.c.b16 %v3114, %v3113
      %v3125 = vpack.c.b16 %v3116, %v3115
      %v3126 = vpack.c.b16 %v3118, %v3117
      %v3128 = vsel %vm622, %v3119, 0
      %v3131 = vsel %vm622, %v3120, 0
      %v3134 = vsel %vm622, %v3121, 0
      %v3137 = vsel %vm622, %v3122, 0
      %v3140 = vsel %vm622, %v3123, 0
      %v3143 = vsel %vm622, %v3124, 0
      %v3146 = vsel %vm622, %v3125, 0
      %v3149 = vsel %vm622, %v3126, 0
      %v3152 = vsel %vm647, %v2800, 0
      %3154 = vmatpush.bf16.msra.mxu0 0
      %3155 = vmatpush.bf16.msra.mxu0 0
      %3156 = vmatpush.bf16.msra.mxu0 0
      %3157 = vmatpush.bf16.msra.mxu0 0
      %3158 = vmatpush.bf16.msra.mxu0 0
      %3159 = vmatpush.bf16.msra.mxu0 0
      %3160 = vmatpush.bf16.msra.mxu0 0
      %3161 = vmatpush.bf16.msra.mxu0 %v3152
      %3162 = vmatmul.bf16.gmra.mxu0 %v3128
      %v3163 = vpop.f32.mrf.mxu0
      %v3164 = vadd.f32 %v3064, %v3163
      %v3165 = vpop.f32.mrf.mxu0
      %v3166 = vadd.f32 %v3066, %v3165
      %3167 = vmatmul.bf16.gmra.mxu0 %v3131
      %v3168 = vpop.f32.mrf.mxu0
      %v3169 = vadd.f32 %v3069, %v3168
      %v3170 = vpop.f32.mrf.mxu0
      %v3171 = vadd.f32 %v3071, %v3170
      %3172 = vmatmul.bf16.gmra.mxu0 %v3134
      %v3173 = vpop.f32.mrf.mxu0
      %v3174 = vadd.f32 %v3074, %v3173
      %v3175 = vpop.f32.mrf.mxu0
      %v3176 = vadd.f32 %v3076, %v3175
      %3177 = vmatmul.bf16.gmra.mxu0 %v3137
      %v3178 = vpop.f32.mrf.mxu0
      %v3179 = vadd.f32 %v3079, %v3178
      %v3180 = vpop.f32.mrf.mxu0
      %v3181 = vadd.f32 %v3081, %v3180
      %3182 = vmatmul.bf16.gmra.mxu0 %v3140
      %v3183 = vpop.f32.mrf.mxu0
      %v3184 = vadd.f32 %v3084, %v3183
      %v3185 = vpop.f32.mrf.mxu0
      %v3186 = vadd.f32 %v3086, %v3185
      %3187 = vmatmul.bf16.gmra.mxu0 %v3143
      %v3188 = vpop.f32.mrf.mxu0
      %v3189 = vadd.f32 %v3089, %v3188
      %v3190 = vpop.f32.mrf.mxu0
      %v3191 = vadd.f32 %v3091, %v3190
      %3192 = vmatmul.bf16.gmra.mxu0 %v3146
      %v3193 = vpop.f32.mrf.mxu0
      %v3194 = vadd.f32 %v3094, %v3193
      %v3195 = vpop.f32.mrf.mxu0
      %v3196 = vadd.f32 %v3096, %v3195
      %3197 = vmatmul.bf16.gmra.mxu0 %v3149
      %v3198 = vpop.f32.mrf.mxu0
      %v3199 = vadd.f32 %v3099, %v3198
      %v3200 = vpop.f32.mrf.mxu0
      %v3201 = vadd.f32 %v3101, %v3200
      %3202 = vdwg.mxu0
      %v3203 = vld [vmem:[%s2579] sm:$0xc]
      %v3204 = vld [vmem:[%s2579 + $0x8] sm:$0x7]
      %v3205 = vld [vmem:[%s2579 + $0xc] sm:$0xc]
      %v3206 = vld [vmem:[%s2579 + $0x14] sm:$0x7]
      %v3207 = vld [vmem:[%s2579 + $0x18] sm:$0xc]
      %v3208 = vld [vmem:[%s2579 + $0x20] sm:$0x7]
      %v3209 = vld [vmem:[%s2579 + $0x24] sm:$0xc]
      %v3210 = vld [vmem:[%s2579 + $0x2c] sm:$0x7]
      %v3211 = vld [vmem:[%s2579 + $0x30] sm:$0xc]
      %v3212 = vld [vmem:[%s2579 + $0x38] sm:$0x7]
      %v3213 = vld [vmem:[%s2579 + $0x3c] sm:$0xc]
      %v3214 = vld [vmem:[%s2579 + $0x44] sm:$0x7]
      %v3215 = vld [vmem:[%s2579 + $0x48] sm:$0xc]
      %v3216 = vld [vmem:[%s2579 + $0x50] sm:$0x7]
      %v3217 = vld [vmem:[%s2579 + $0x54] sm:$0xc]
      %v3218 = vld [vmem:[%s2579 + $0x5c] sm:$0x7]
      %vm3219 = vsmask.f32 1280
      %vm3220 = vsmask.f32 5392
      %vm3221 = vmor %vm3219, %vm3220
      %v3223 = vshrl.u32 %v3203, 16
      %v3225 = vrot.slane %v3223, 6
      %v3226 = vshll.u32 %v3203, 16
      %v3228 = vrot.slane %v3226, 7
      %v3229 = vor.u32 %v3225, %v3228
      %v3230 = vrot.slane %v3229, 4
      %v3231 = vrot.slane %v2621, 6
      %v3232 = vrot.slane %v2617, 7
      %v3233 = vor.u32 %v3231, %v3232
      %v3234 = vsel %vm3221, %v3230, %v3233
      %v3235 = vrot.slane %v3233, 4
      %v3237 = vshrl.u32 %v3204, 16
      %v3239 = vrot.slane %v3237, 6
      %v3240 = vshll.u32 %v3204, 16
      %v3242 = vrot.slane %v3240, 7
      %v3243 = vor.u32 %v3239, %v3242
      %v3244 = vsel %vm3221, %v3235, %v3243
      %v3246 = vshrl.u32 %v3205, 16
      %v3248 = vrot.slane %v3246, 6
      %v3249 = vshll.u32 %v3205, 16
      %v3251 = vrot.slane %v3249, 7
      %v3252 = vor.u32 %v3248, %v3251
      %v3253 = vrot.slane %v3252, 4
      %v3254 = vrot.slane %v2645, 6
      %v3255 = vrot.slane %v2641, 7
      %v3256 = vor.u32 %v3254, %v3255
      %v3257 = vsel %vm3221, %v3253, %v3256
      %v3258 = vrot.slane %v3256, 4
      %v3260 = vshrl.u32 %v3206, 16
      %v3262 = vrot.slane %v3260, 6
      %v3263 = vshll.u32 %v3206, 16
      %v3265 = vrot.slane %v3263, 7
      %v3266 = vor.u32 %v3262, %v3265
      %v3267 = vsel %vm3221, %v3258, %v3266
      %v3269 = vshrl.u32 %v3207, 16
      %v3271 = vrot.slane %v3269, 6
      %v3272 = vshll.u32 %v3207, 16
      %v3274 = vrot.slane %v3272, 7
      %v3275 = vor.u32 %v3271, %v3274
      %v3276 = vrot.slane %v3275, 4
      %v3277 = vrot.slane %v2669, 6
      %v3278 = vrot.slane %v2665, 7
      %v3279 = vor.u32 %v3277, %v3278
      %v3280 = vsel %vm3221, %v3276, %v3279
      %v3281 = vrot.slane %v3279, 4
      %v3283 = vshrl.u32 %v3208, 16
      %v3285 = vrot.slane %v3283, 6
      %v3286 = vshll.u32 %v3208, 16
      %v3288 = vrot.slane %v3286, 7
      %v3289 = vor.u32 %v3285, %v3288
      %v3290 = vsel %vm3221, %v3281, %v3289
      %v3292 = vshrl.u32 %v3209, 16
      %v3294 = vrot.slane %v3292, 6
      %v3295 = vshll.u32 %v3209, 16
      %v3297 = vrot.slane %v3295, 7
      %v3298 = vor.u32 %v3294, %v3297
      %v3299 = vrot.slane %v3298, 4
      %v3300 = vrot.slane %v2693, 6
      %v3301 = vrot.slane %v2689, 7
      %v3302 = vor.u32 %v3300, %v3301
      %v3303 = vsel %vm3221, %v3299, %v3302
      %v3304 = vrot.slane %v3302, 4
      %v3306 = vshrl.u32 %v3210, 16
      %v3308 = vrot.slane %v3306, 6
      %v3309 = vshll.u32 %v3210, 16
      %v3311 = vrot.slane %v3309, 7
      %v3312 = vor.u32 %v3308, %v3311
      %v3313 = vsel %vm3221, %v3304, %v3312
      %v3315 = vshrl.u32 %v3211, 16
      %v3317 = vrot.slane %v3315, 6
      %v3318 = vshll.u32 %v3211, 16
      %v3320 = vrot.slane %v3318, 7
      %v3321 = vor.u32 %v3317, %v3320
      %v3322 = vrot.slane %v3321, 4
      %v3323 = vrot.slane %v2717, 6
      %v3324 = vrot.slane %v2713, 7
      %v3325 = vor.u32 %v3323, %v3324
      %v3326 = vsel %vm3221, %v3322, %v3325
      %v3327 = vrot.slane %v3325, 4
      %v3329 = vshrl.u32 %v3212, 16
      %v3331 = vrot.slane %v3329, 6
      %v3332 = vshll.u32 %v3212, 16
      %v3334 = vrot.slane %v3332, 7
      %v3335 = vor.u32 %v3331, %v3334
      %v3336 = vsel %vm3221, %v3327, %v3335
      %v3338 = vshrl.u32 %v3213, 16
      %v3340 = vrot.slane %v3338, 6
      %v3341 = vshll.u32 %v3213, 16
      %v3343 = vrot.slane %v3341, 7
      %v3344 = vor.u32 %v3340, %v3343
      %v3345 = vrot.slane %v3344, 4
      %v3346 = vrot.slane %v2741, 6
      %v3347 = vrot.slane %v2737, 7
      %v3348 = vor.u32 %v3346, %v3347
      %v3349 = vsel %vm3221, %v3345, %v3348
      %v3350 = vrot.slane %v3348, 4
      %v3352 = vshrl.u32 %v3214, 16
      %v3354 = vrot.slane %v3352, 6
      %v3355 = vshll.u32 %v3214, 16
      %v3357 = vrot.slane %v3355, 7
      %v3358 = vor.u32 %v3354, %v3357
      %v3359 = vsel %vm3221, %v3350, %v3358
      %v3361 = vshrl.u32 %v3215, 16
      %v3363 = vrot.slane %v3361, 6
      %v3364 = vshll.u32 %v3215, 16
      %v3366 = vrot.slane %v3364, 7
      %v3367 = vor.u32 %v3363, %v3366
      %v3368 = vrot.slane %v3367, 4
      %v3369 = vrot.slane %v2765, 6
      %v3370 = vrot.slane %v2761, 7
      %v3371 = vor.u32 %v3369, %v3370
      %v3372 = vsel %vm3221, %v3368, %v3371
      %v3373 = vrot.slane %v3371, 4
      %v3375 = vshrl.u32 %v3216, 16
      %v3377 = vrot.slane %v3375, 6
      %v3378 = vshll.u32 %v3216, 16
      %v3380 = vrot.slane %v3378, 7
      %v3381 = vor.u32 %v3377, %v3380
      %v3382 = vsel %vm3221, %v3373, %v3381
      %v3384 = vshrl.u32 %v3217, 16
      %v3386 = vrot.slane %v3384, 6
      %v3387 = vshll.u32 %v3217, 16
      %v3389 = vrot.slane %v3387, 7
      %v3390 = vor.u32 %v3386, %v3389
      %v3391 = vrot.slane %v3390, 4
      %v3392 = vrot.slane %v2789, 6
      %v3393 = vrot.slane %v2785, 7
      %v3394 = vor.u32 %v3392, %v3393
      %v3395 = vsel %vm3221, %v3391, %v3394
      %v3396 = vrot.slane %v3394, 4
      %v3398 = vshrl.u32 %v3218, 16
      %v3400 = vrot.slane %v3398, 6
      %v3401 = vshll.u32 %v3218, 16
      %v3403 = vrot.slane %v3401, 7
      %v3404 = vor.u32 %v3400, %v3403
      %v3405 = vsel %vm3221, %v3396, %v3404
      %s3406 = scalar_lea.vmem %s1, 44
      %v3407 = vld [vmem:[%s3406] sm:$0xf]
      %v3408 = vunpack.c.l.b16 %v3234
      %v3409 = vunpack.c.l.b16 %v3244
      %v3410 = vunpack.c.l.b16 %v3257
      %v3411 = vunpack.c.l.b16 %v3267
      %v3412 = vunpack.c.l.b16 %v3280
      %v3413 = vunpack.c.l.b16 %v3290
      %v3414 = vunpack.c.l.b16 %v3303
      %v3415 = vunpack.c.l.b16 %v3313
      %v3416 = vunpack.c.l.b16 %v3326
      %v3417 = vunpack.c.l.b16 %v3336
      %v3418 = vunpack.c.l.b16 %v3349
      %v3419 = vunpack.c.l.b16 %v3359
      %v3420 = vunpack.c.l.b16 %v3372
      %v3421 = vunpack.c.l.b16 %v3382
      %v3422 = vunpack.c.l.b16 %v3395
      %v3423 = vunpack.c.l.b16 %v3405
      %v3424 = vpack.c.b16 %v3409, %v3408
      %v3425 = vpack.c.b16 %v3411, %v3410
      %v3426 = vpack.c.b16 %v3413, %v3412
      %v3427 = vpack.c.b16 %v3415, %v3414
      %v3428 = vpack.c.b16 %v3417, %v3416
      %v3429 = vpack.c.b16 %v3419, %v3418
      %v3430 = vpack.c.b16 %v3421, %v3420
      %v3431 = vpack.c.b16 %v3423, %v3422
      %v3433 = vsel %vm622, %v3424, 0
      %v3436 = vsel %vm622, %v3425, 0
      %v3439 = vsel %vm622, %v3426, 0
      %v3442 = vsel %vm622, %v3427, 0
      %v3445 = vsel %vm622, %v3428, 0
      %v3448 = vsel %vm622, %v3429, 0
      %v3451 = vsel %vm622, %v3430, 0
      %v3454 = vsel %vm622, %v3431, 0
      %v3457 = vsel %vm647, %v3407, 0
      %3459 = vmatpush.bf16.msra.mxu0 0
      %3460 = vmatpush.bf16.msra.mxu0 0
      %3461 = vmatpush.bf16.msra.mxu0 0
      %3462 = vmatpush.bf16.msra.mxu0 0
      %3463 = vmatpush.bf16.msra.mxu0 0
      %3464 = vmatpush.bf16.msra.mxu0 0
      %3465 = vmatpush.bf16.msra.mxu0 0
      %3466 = vmatpush.bf16.msra.mxu0 %v3457
      %3467 = vmatmul.bf16.gmra.mxu0 %v3433
      %v3468 = vpop.f32.mrf.mxu0
      %v3469 = vadd.f32 0.0, %v3468
      %v3470 = vpop.f32.mrf.mxu0
      %v3471 = vadd.f32 0.0, %v3470
      %3472 = vmatmul.bf16.gmra.mxu0 %v3436
      %v3473 = vpop.f32.mrf.mxu0
      %v3474 = vadd.f32 0.0, %v3473
      %v3475 = vpop.f32.mrf.mxu0
      %v3476 = vadd.f32 0.0, %v3475
      %3477 = vmatmul.bf16.gmra.mxu0 %v3439
      %v3478 = vpop.f32.mrf.mxu0
      %v3479 = vadd.f32 0.0, %v3478
      %v3480 = vpop.f32.mrf.mxu0
      %v3481 = vadd.f32 0.0, %v3480
      %3482 = vmatmul.bf16.gmra.mxu0 %v3442
      %v3483 = vpop.f32.mrf.mxu0
      %v3484 = vadd.f32 0.0, %v3483
      %v3485 = vpop.f32.mrf.mxu0
      %v3486 = vadd.f32 0.0, %v3485
      %3487 = vmatmul.bf16.gmra.mxu0 %v3445
      %v3488 = vpop.f32.mrf.mxu0
      %v3489 = vadd.f32 0.0, %v3488
      %v3490 = vpop.f32.mrf.mxu0
      %v3491 = vadd.f32 0.0, %v3490
      %3492 = vmatmul.bf16.gmra.mxu0 %v3448
      %v3493 = vpop.f32.mrf.mxu0
      %v3494 = vadd.f32 0.0, %v3493
      %v3495 = vpop.f32.mrf.mxu0
      %v3496 = vadd.f32 0.0, %v3495
      %3497 = vmatmul.bf16.gmra.mxu0 %v3451
      %v3498 = vpop.f32.mrf.mxu0
      %v3499 = vadd.f32 0.0, %v3498
      %v3500 = vpop.f32.mrf.mxu0
      %v3501 = vadd.f32 0.0, %v3500
      %3502 = vmatmul.bf16.gmra.mxu0 %v3454
      %v3503 = vpop.f32.mrf.mxu0
      %v3504 = vadd.f32 0.0, %v3503
      %v3505 = vpop.f32.mrf.mxu0
      %v3506 = vadd.f32 0.0, %v3505
      %3507 = vdwg.mxu0
      %v3508 = vadd.f32 %v3164, %v3469
      %v3509 = vadd.f32 %v3166, %v3471
      %v3510 = vadd.f32 %v3169, %v3474
      %v3511 = vadd.f32 %v3171, %v3476
      %v3512 = vadd.f32 %v3174, %v3479
      %v3513 = vadd.f32 %v3176, %v3481
      %v3514 = vadd.f32 %v3179, %v3484
      %v3515 = vadd.f32 %v3181, %v3486
      %v3516 = vadd.f32 %v3184, %v3489
      %v3517 = vadd.f32 %v3186, %v3491
      %v3518 = vadd.f32 %v3189, %v3494
      %v3519 = vadd.f32 %v3191, %v3496
      %v3520 = vadd.f32 %v3194, %v3499
      %v3521 = vadd.f32 %v3196, %v3501
      %v3522 = vadd.f32 %v3199, %v3504
      %v3523 = vadd.f32 %v3201, %v3506
      %v3524 = vld [vmem:[%s1001] sm:$0xf]
      %v3525 = vld [vmem:[%s1001 + $0xc] sm:$0xf]
      %v3526 = vld [vmem:[%s1001 + $0x18] sm:$0xf]
      %v3527 = vld [vmem:[%s1001 + $0x24] sm:$0xf]
      %v3528 = vld [vmem:[%s1001 + $0x30] sm:$0xf]
      %v3529 = vld [vmem:[%s1001 + $0x3c] sm:$0xf]
      %v3530 = vld [vmem:[%s1001 + $0x48] sm:$0xf]
      %v3531 = vld [vmem:[%s1001 + $0x54] sm:$0xf]
      %v3533 = vshrl.u32 %v3524, 16
      %v3535 = vrot.slane %v3533, 4
      %v3536 = vshll.u32 %v3524, 16
      %v3538 = vrot.slane %v3536, 5
      %v3539 = vor.u32 %v3535, %v3538
      %v3540 = vrot.slane %v3539, 4
      %v3541 = vrot.slane %v1245, 5
      %v3542 = vsel %vm2606, %v3540, %v3541
      %v3543 = vrot.slane %v1242, 4
      %v3544 = vor.u32 %v3543, %v3541
      %v3545 = vrot.slane %v3544, 4
      %v3547 = vshll.u32 %v1004, 16
      %v3549 = vrot.slane %v3547, 5
      %v3550 = vsel %vm2606, %v3545, %v3549
      %v3552 = vshrl.u32 %v3525, 16
      %v3554 = vrot.slane %v3552, 4
      %v3555 = vshll.u32 %v3525, 16
      %v3557 = vrot.slane %v3555, 5
      %v3558 = vor.u32 %v3554, %v3557
      %v3559 = vrot.slane %v3558, 4
      %v3560 = vrot.slane %v1273, 5
      %v3561 = vsel %vm2606, %v3559, %v3560
      %v3562 = vrot.slane %v1270, 4
      %v3563 = vor.u32 %v3562, %v3560
      %v3564 = vrot.slane %v3563, 4
      %v3566 = vshll.u32 %v1007, 16
      %v3568 = vrot.slane %v3566, 5
      %v3569 = vsel %vm2606, %v3564, %v3568
      %v3571 = vshrl.u32 %v3526, 16
      %v3573 = vrot.slane %v3571, 4
      %v3574 = vshll.u32 %v3526, 16
      %v3576 = vrot.slane %v3574, 5
      %v3577 = vor.u32 %v3573, %v3576
      %v3578 = vrot.slane %v3577, 4
      %v3579 = vrot.slane %v1301, 5
      %v3580 = vsel %vm2606, %v3578, %v3579
      %v3581 = vrot.slane %v1298, 4
      %v3582 = vor.u32 %v3581, %v3579
      %v3583 = vrot.slane %v3582, 4
      %v3585 = vshll.u32 %v1010, 16
      %v3587 = vrot.slane %v3585, 5
      %v3588 = vsel %vm2606, %v3583, %v3587
      %v3590 = vshrl.u32 %v3527, 16
      %v3592 = vrot.slane %v3590, 4
      %v3593 = vshll.u32 %v3527, 16
      %v3595 = vrot.slane %v3593, 5
      %v3596 = vor.u32 %v3592, %v3595
      %v3597 = vrot.slane %v3596, 4
      %v3598 = vrot.slane %v1329, 5
      %v3599 = vsel %vm2606, %v3597, %v3598
      %v3600 = vrot.slane %v1326, 4
      %v3601 = vor.u32 %v3600, %v3598
      %v3602 = vrot.slane %v3601, 4
      %v3604 = vshll.u32 %v1013, 16
      %v3606 = vrot.slane %v3604, 5
      %v3607 = vsel %vm2606, %v3602, %v3606
      %v3609 = vshrl.u32 %v3528, 16
      %v3611 = vrot.slane %v3609, 4
      %v3612 = vshll.u32 %v3528, 16
      %v3614 = vrot.slane %v3612, 5
      %v3615 = vor.u32 %v3611, %v3614
      %v3616 = vrot.slane %v3615, 4
      %v3617 = vrot.slane %v1357, 5
      %v3618 = vsel %vm2606, %v3616, %v3617
      %v3619 = vrot.slane %v1354, 4
      %v3620 = vor.u32 %v3619, %v3617
      %v3621 = vrot.slane %v3620, 4
      %v3623 = vshll.u32 %v1016, 16
      %v3625 = vrot.slane %v3623, 5
      %v3626 = vsel %vm2606, %v3621, %v3625
      %v3628 = vshrl.u32 %v3529, 16
      %v3630 = vrot.slane %v3628, 4
      %v3631 = vshll.u32 %v3529, 16
      %v3633 = vrot.slane %v3631, 5
      %v3634 = vor.u32 %v3630, %v3633
      %v3635 = vrot.slane %v3634, 4
      %v3636 = vrot.slane %v1385, 5
      %v3637 = vsel %vm2606, %v3635, %v3636
      %v3638 = vrot.slane %v1382, 4
      %v3639 = vor.u32 %v3638, %v3636
      %v3640 = vrot.slane %v3639, 4
      %v3642 = vshll.u32 %v1019, 16
      %v3644 = vrot.slane %v3642, 5
      %v3645 = vsel %vm2606, %v3640, %v3644
      %v3647 = vshrl.u32 %v3530, 16
      %v3649 = vrot.slane %v3647, 4
      %v3650 = vshll.u32 %v3530, 16
      %v3652 = vrot.slane %v3650, 5
      %v3653 = vor.u32 %v3649, %v3652
      %v3654 = vrot.slane %v3653, 4
      %v3655 = vrot.slane %v1413, 5
      %v3656 = vsel %vm2606, %v3654, %v3655
      %v3657 = vrot.slane %v1410, 4
      %v3658 = vor.u32 %v3657, %v3655
      %v3659 = vrot.slane %v3658, 4
      %v3661 = vshll.u32 %v1022, 16
      %v3663 = vrot.slane %v3661, 5
      %v3664 = vsel %vm2606, %v3659, %v3663
      %v3666 = vshrl.u32 %v3531, 16
      %v3668 = vrot.slane %v3666, 4
      %v3669 = vshll.u32 %v3531, 16
      %v3671 = vrot.slane %v3669, 5
      %v3672 = vor.u32 %v3668, %v3671
      %v3673 = vrot.slane %v3672, 4
      %v3674 = vrot.slane %v1441, 5
      %v3675 = vsel %vm2606, %v3673, %v3674
      %v3676 = vrot.slane %v1438, 4
      %v3677 = vor.u32 %v3676, %v3674
      %v3678 = vrot.slane %v3677, 4
      %v3680 = vshll.u32 %v1025, 16
      %v3682 = vrot.slane %v3680, 5
      %v3683 = vsel %vm2606, %v3678, %v3682
      %s3684 = scalar_lea.vmem %s1, 48
      %v3685 = vld [vmem:[%s3684] sm:$0xf]
      %v3686 = vunpack.c.l.b16 %v3542
      %v3687 = vunpack.c.l.b16 %v3550
      %v3688 = vunpack.c.l.b16 %v3561
      %v3689 = vunpack.c.l.b16 %v3569
      %v3690 = vunpack.c.l.b16 %v3580
      %v3691 = vunpack.c.l.b16 %v3588
      %v3692 = vunpack.c.l.b16 %v3599
      %v3693 = vunpack.c.l.b16 %v3607
      %v3694 = vunpack.c.l.b16 %v3618
      %v3695 = vunpack.c.l.b16 %v3626
      %v3696 = vunpack.c.l.b16 %v3637
      %v3697 = vunpack.c.l.b16 %v3645
      %v3698 = vunpack.c.l.b16 %v3656
      %v3699 = vunpack.c.l.b16 %v3664
      %v3700 = vunpack.c.l.b16 %v3675
      %v3701 = vunpack.c.l.b16 %v3683
      %v3702 = vpack.c.b16 %v3687, %v3686
      %v3703 = vpack.c.b16 %v3689, %v3688
      %v3704 = vpack.c.b16 %v3691, %v3690
      %v3705 = vpack.c.b16 %v3693, %v3692
      %v3706 = vpack.c.b16 %v3695, %v3694
      %v3707 = vpack.c.b16 %v3697, %v3696
      %v3708 = vpack.c.b16 %v3699, %v3698
      %v3709 = vpack.c.b16 %v3701, %v3700
      %v3711 = vsel %vm622, %v3702, 0
      %v3714 = vsel %vm622, %v3703, 0
      %v3717 = vsel %vm622, %v3704, 0
      %v3720 = vsel %vm622, %v3705, 0
      %v3723 = vsel %vm622, %v3706, 0
      %v3726 = vsel %vm622, %v3707, 0
      %v3729 = vsel %vm622, %v3708, 0
      %v3732 = vsel %vm622, %v3709, 0
      %v3735 = vsel %vm647, %v3685, 0
      %3737 = vmatpush.bf16.msra.mxu0 0
      %3738 = vmatpush.bf16.msra.mxu0 0
      %3739 = vmatpush.bf16.msra.mxu0 0
      %3740 = vmatpush.bf16.msra.mxu0 0
      %3741 = vmatpush.bf16.msra.mxu0 0
      %3742 = vmatpush.bf16.msra.mxu0 0
      %3743 = vmatpush.bf16.msra.mxu0 0
      %3744 = vmatpush.bf16.msra.mxu0 %v3735
      %3745 = vmatmul.bf16.gmra.mxu0 %v3711
      %v3746 = vpop.f32.mrf.mxu0
      %v3747 = vadd.f32 0.0, %v3746
      %v3748 = vpop.f32.mrf.mxu0
      %v3749 = vadd.f32 0.0, %v3748
      %3750 = vmatmul.bf16.gmra.mxu0 %v3714
      %v3751 = vpop.f32.mrf.mxu0
      %v3752 = vadd.f32 0.0, %v3751
      %v3753 = vpop.f32.mrf.mxu0
      %v3754 = vadd.f32 0.0, %v3753
      %3755 = vmatmul.bf16.gmra.mxu0 %v3717
      %v3756 = vpop.f32.mrf.mxu0
      %v3757 = vadd.f32 0.0, %v3756
      %v3758 = vpop.f32.mrf.mxu0
      %v3759 = vadd.f32 0.0, %v3758
      %3760 = vmatmul.bf16.gmra.mxu0 %v3720
      %v3761 = vpop.f32.mrf.mxu0
      %v3762 = vadd.f32 0.0, %v3761
      %v3763 = vpop.f32.mrf.mxu0
      %v3764 = vadd.f32 0.0, %v3763
      %3765 = vmatmul.bf16.gmra.mxu0 %v3723
      %v3766 = vpop.f32.mrf.mxu0
      %v3767 = vadd.f32 0.0, %v3766
      %v3768 = vpop.f32.mrf.mxu0
      %v3769 = vadd.f32 0.0, %v3768
      %3770 = vmatmul.bf16.gmra.mxu0 %v3726
      %v3771 = vpop.f32.mrf.mxu0
      %v3772 = vadd.f32 0.0, %v3771
      %v3773 = vpop.f32.mrf.mxu0
      %v3774 = vadd.f32 0.0, %v3773
      %3775 = vmatmul.bf16.gmra.mxu0 %v3729
      %v3776 = vpop.f32.mrf.mxu0
      %v3777 = vadd.f32 0.0, %v3776
      %v3778 = vpop.f32.mrf.mxu0
      %v3779 = vadd.f32 0.0, %v3778
      %3780 = vmatmul.bf16.gmra.mxu0 %v3732
      %v3781 = vpop.f32.mrf.mxu0
      %v3782 = vadd.f32 0.0, %v3781
      %v3783 = vpop.f32.mrf.mxu0
      %v3784 = vadd.f32 0.0, %v3783
      %3785 = vdwg.mxu0
      %v3786 = vadd.f32 %v3508, %v3747
      %v3787 = vadd.f32 %v3509, %v3749
      %v3788 = vadd.f32 %v3510, %v3752
      %v3789 = vadd.f32 %v3511, %v3754
      %v3790 = vadd.f32 %v3512, %v3757
      %v3791 = vadd.f32 %v3513, %v3759
      %v3792 = vadd.f32 %v3514, %v3762
      %v3793 = vadd.f32 %v3515, %v3764
      %v3794 = vadd.f32 %v3516, %v3767
      %v3795 = vadd.f32 %v3517, %v3769
      %v3796 = vadd.f32 %v3518, %v3772
      %v3797 = vadd.f32 %v3519, %v3774
      %v3798 = vadd.f32 %v3520, %v3777
      %v3799 = vadd.f32 %v3521, %v3779
      %v3800 = vadd.f32 %v3522, %v3782
      %v3801 = vadd.f32 %v3523, %v3784
      %s3802 = scalar_lea.vmem %s1, 52
      %v3803 = vld [vmem:[%s3802] sm:$0xf]
      %v3805 = vsel %vm647, %v3803, 0
      %3807 = vmatpush.bf16.msra.mxu0 0
      %3808 = vmatpush.bf16.msra.mxu0 0
      %3809 = vmatpush.bf16.msra.mxu0 0
      %3810 = vmatpush.bf16.msra.mxu0 0
      %3811 = vmatpush.bf16.msra.mxu0 0
      %3812 = vmatpush.bf16.msra.mxu0 0
      %3813 = vmatpush.bf16.msra.mxu0 0
      %3814 = vmatpush.bf16.msra.mxu0 %v3805
      %3815 = vmatmul.bf16.gmra.mxu0 %v1483
      %v3816 = vpop.f32.mrf.mxu0
      %v3817 = vadd.f32 0.0, %v3816
      %v3818 = vpop.f32.mrf.mxu0
      %v3819 = vadd.f32 0.0, %v3818
      %3820 = vmatmul.bf16.gmra.mxu0 %v1486
      %v3821 = vpop.f32.mrf.mxu0
      %v3822 = vadd.f32 0.0, %v3821
      %v3823 = vpop.f32.mrf.mxu0
      %v3824 = vadd.f32 0.0, %v3823
      %3825 = vmatmul.bf16.gmra.mxu0 %v1489
      %v3826 = vpop.f32.mrf.mxu0
      %v3827 = vadd.f32 0.0, %v3826
      %v3828 = vpop.f32.mrf.mxu0
      %v3829 = vadd.f32 0.0, %v3828
      %3830 = vmatmul.bf16.gmra.mxu0 %v1492
      %v3831 = vpop.f32.mrf.mxu0
      %v3832 = vadd.f32 0.0, %v3831
      %v3833 = vpop.f32.mrf.mxu0
      %v3834 = vadd.f32 0.0, %v3833
      %3835 = vmatmul.bf16.gmra.mxu0 %v1495
      %v3836 = vpop.f32.mrf.mxu0
      %v3837 = vadd.f32 0.0, %v3836
      %v3838 = vpop.f32.mrf.mxu0
      %v3839 = vadd.f32 0.0, %v3838
      %3840 = vmatmul.bf16.gmra.mxu0 %v1498
      %v3841 = vpop.f32.mrf.mxu0
      %v3842 = vadd.f32 0.0, %v3841
      %v3843 = vpop.f32.mrf.mxu0
      %v3844 = vadd.f32 0.0, %v3843
      %3845 = vmatmul.bf16.gmra.mxu0 %v1501
      %v3846 = vpop.f32.mrf.mxu0
      %v3847 = vadd.f32 0.0, %v3846
      %v3848 = vpop.f32.mrf.mxu0
      %v3849 = vadd.f32 0.0, %v3848
      %3850 = vmatmul.bf16.gmra.mxu0 %v1504
      %v3851 = vpop.f32.mrf.mxu0
      %v3852 = vadd.f32 0.0, %v3851
      %v3853 = vpop.f32.mrf.mxu0
      %v3854 = vadd.f32 0.0, %v3853
      %3855 = vdwg.mxu0
      %v3856 = vadd.f32 %v3786, %v3817
      %v3857 = vadd.f32 %v3787, %v3819
      %v3858 = vadd.f32 %v3788, %v3822
      %v3859 = vadd.f32 %v3789, %v3824
      %v3860 = vadd.f32 %v3790, %v3827
      %v3861 = vadd.f32 %v3791, %v3829
      %v3862 = vadd.f32 %v3792, %v3832
      %v3863 = vadd.f32 %v3793, %v3834
      %v3864 = vadd.f32 %v3794, %v3837
      %v3865 = vadd.f32 %v3795, %v3839
      %v3866 = vadd.f32 %v3796, %v3842
      %v3867 = vadd.f32 %v3797, %v3844
      %v3868 = vadd.f32 %v3798, %v3847
      %v3869 = vadd.f32 %v3799, %v3849
      %v3870 = vadd.f32 %v3800, %v3852
      %v3871 = vadd.f32 %v3801, %v3854
      %v3872 = vld [vmem:[%s1001 + $0x8] sm:$0x7]
      %v3873 = vld [vmem:[%s1001 + $0x14] sm:$0x7]
      %v3874 = vld [vmem:[%s1001 + $0x20] sm:$0x7]
      %v3875 = vld [vmem:[%s1001 + $0x2c] sm:$0x7]
      %v3876 = vld [vmem:[%s1001 + $0x38] sm:$0x7]
      %v3877 = vld [vmem:[%s1001 + $0x44] sm:$0x7]
      %v3878 = vld [vmem:[%s1001 + $0x50] sm:$0x7]
      %v3879 = vld [vmem:[%s1001 + $0x5c] sm:$0x7]
      %v3881 = vshrl.u32 %v1574, 16
      %v3883 = vrot.slane %v3881, 6
      %v3884 = vshll.u32 %v1574, 16
      %v3886 = vrot.slane %v3884, 7
      %v3887 = vor.u32 %v3883, %v3886
      %v3888 = vrot.slane %v3887, 4
      %v3889 = vrot.slane %v1242, 6
      %v3890 = vrot.slane %v1245, 7
      %v3891 = vor.u32 %v3889, %v3890
      %v3892 = vsel %vm3221, %v3888, %v3891
      %v3893 = vrot.slane %v3891, 4
      %v3895 = vshrl.u32 %v3872, 16
      %v3897 = vrot.slane %v3895, 6
      %v3898 = vshll.u32 %v3872, 16
      %v3900 = vrot.slane %v3898, 7
      %v3901 = vor.u32 %v3897, %v3900
      %v3902 = vsel %vm3221, %v3893, %v3901
      %v3904 = vshrl.u32 %v1575, 16
      %v3906 = vrot.slane %v3904, 6
      %v3907 = vshll.u32 %v1575, 16
      %v3909 = vrot.slane %v3907, 7
      %v3910 = vor.u32 %v3906, %v3909
      %v3911 = vrot.slane %v3910, 4
      %v3912 = vrot.slane %v1270, 6
      %v3913 = vrot.slane %v1273, 7
      %v3914 = vor.u32 %v3912, %v3913
      %v3915 = vsel %vm3221, %v3911, %v3914
      %v3916 = vrot.slane %v3914, 4
      %v3918 = vshrl.u32 %v3873, 16
      %v3920 = vrot.slane %v3918, 6
      %v3921 = vshll.u32 %v3873, 16
      %v3923 = vrot.slane %v3921, 7
      %v3924 = vor.u32 %v3920, %v3923
      %v3925 = vsel %vm3221, %v3916, %v3924
      %v3927 = vshrl.u32 %v1576, 16
      %v3929 = vrot.slane %v3927, 6
      %v3930 = vshll.u32 %v1576, 16
      %v3932 = vrot.slane %v3930, 7
      %v3933 = vor.u32 %v3929, %v3932
      %v3934 = vrot.slane %v3933, 4
      %v3935 = vrot.slane %v1298, 6
      %v3936 = vrot.slane %v1301, 7
      %v3937 = vor.u32 %v3935, %v3936
      %v3938 = vsel %vm3221, %v3934, %v3937
      %v3939 = vrot.slane %v3937, 4
      %v3941 = vshrl.u32 %v3874, 16
      %v3943 = vrot.slane %v3941, 6
      %v3944 = vshll.u32 %v3874, 16
      %v3946 = vrot.slane %v3944, 7
      %v3947 = vor.u32 %v3943, %v3946
      %v3948 = vsel %vm3221, %v3939, %v3947
      %v3950 = vshrl.u32 %v1577, 16
      %v3952 = vrot.slane %v3950, 6
      %v3953 = vshll.u32 %v1577, 16
      %v3955 = vrot.slane %v3953, 7
      %v3956 = vor.u32 %v3952, %v3955
      %v3957 = vrot.slane %v3956, 4
      %v3958 = vrot.slane %v1326, 6
      %v3959 = vrot.slane %v1329, 7
      %v3960 = vor.u32 %v3958, %v3959
      %v3961 = vsel %vm3221, %v3957, %v3960
      %v3962 = vrot.slane %v3960, 4
      %v3964 = vshrl.u32 %v3875, 16
      %v3966 = vrot.slane %v3964, 6
      %v3967 = vshll.u32 %v3875, 16
      %v3969 = vrot.slane %v3967, 7
      %v3970 = vor.u32 %v3966, %v3969
      %v3971 = vsel %vm3221, %v3962, %v3970
      %v3973 = vshrl.u32 %v1578, 16
      %v3975 = vrot.slane %v3973, 6
      %v3976 = vshll.u32 %v1578, 16
      %v3978 = vrot.slane %v3976, 7
      %v3979 = vor.u32 %v3975, %v3978
      %v3980 = vrot.slane %v3979, 4
      %v3981 = vrot.slane %v1354, 6
      %v3982 = vrot.slane %v1357, 7
      %v3983 = vor.u32 %v3981, %v3982
      %v3984 = vsel %vm3221, %v3980, %v3983
      %v3985 = vrot.slane %v3983, 4
      %v3987 = vshrl.u32 %v3876, 16
      %v3989 = vrot.slane %v3987, 6
      %v3990 = vshll.u32 %v3876, 16
      %v3992 = vrot.slane %v3990, 7
      %v3993 = vor.u32 %v3989, %v3992
      %v3994 = vsel %vm3221, %v3985, %v3993
      %v3996 = vshrl.u32 %v1579, 16
      %v3998 = vrot.slane %v3996, 6
      %v3999 = vshll.u32 %v1579, 16
      %v4001 = vrot.slane %v3999, 7
      %v4002 = vor.u32 %v3998, %v4001
      %v4003 = vrot.slane %v4002, 4
      %v4004 = vrot.slane %v1382, 6
      %v4005 = vrot.slane %v1385, 7
      %v4006 = vor.u32 %v4004, %v4005
      %v4007 = vsel %vm3221, %v4003, %v4006
      %v4008 = vrot.slane %v4006, 4
      %v4010 = vshrl.u32 %v3877, 16
      %v4012 = vrot.slane %v4010, 6
      %v4013 = vshll.u32 %v3877, 16
      %v4015 = vrot.slane %v4013, 7
      %v4016 = vor.u32 %v4012, %v4015
      %v4017 = vsel %vm3221, %v4008, %v4016
      %v4019 = vshrl.u32 %v1580, 16
      %v4021 = vrot.slane %v4019, 6
      %v4022 = vshll.u32 %v1580, 16
      %v4024 = vrot.slane %v4022, 7
      %v4025 = vor.u32 %v4021, %v4024
      %v4026 = vrot.slane %v4025, 4
      %v4027 = vrot.slane %v1410, 6
      %v4028 = vrot.slane %v1413, 7
      %v4029 = vor.u32 %v4027, %v4028
      %v4030 = vsel %vm3221, %v4026, %v4029
      %v4031 = vrot.slane %v4029, 4
      %v4033 = vshrl.u32 %v3878, 16
      %v4035 = vrot.slane %v4033, 6
      %v4036 = vshll.u32 %v3878, 16
      %v4038 = vrot.slane %v4036, 7
      %v4039 = vor.u32 %v4035, %v4038
      %v4040 = vsel %vm3221, %v4031, %v4039
      %v4042 = vshrl.u32 %v1581, 16
      %v4044 = vrot.slane %v4042, 6
      %v4045 = vshll.u32 %v1581, 16
      %v4047 = vrot.slane %v4045, 7
      %v4048 = vor.u32 %v4044, %v4047
      %v4049 = vrot.slane %v4048, 4
      %v4050 = vrot.slane %v1438, 6
      %v4051 = vrot.slane %v1441, 7
      %v4052 = vor.u32 %v4050, %v4051
      %v4053 = vsel %vm3221, %v4049, %v4052
      %v4054 = vrot.slane %v4052, 4
      %v4056 = vshrl.u32 %v3879, 16
      %v4058 = vrot.slane %v4056, 6
      %v4059 = vshll.u32 %v3879, 16
      %v4061 = vrot.slane %v4059, 7
      %v4062 = vor.u32 %v4058, %v4061
      %v4063 = vsel %vm3221, %v4054, %v4062
      %s4064 = scalar_lea.vmem %s1, 56
      %v4065 = vld [vmem:[%s4064] sm:$0xf]
      %v4066 = vunpack.c.l.b16 %v3892
      %v4067 = vunpack.c.l.b16 %v3902
      %v4068 = vunpack.c.l.b16 %v3915
      %v4069 = vunpack.c.l.b16 %v3925
      %v4070 = vunpack.c.l.b16 %v3938
      %v4071 = vunpack.c.l.b16 %v3948
      %v4072 = vunpack.c.l.b16 %v3961
      %v4073 = vunpack.c.l.b16 %v3971
      %v4074 = vunpack.c.l.b16 %v3984
      %v4075 = vunpack.c.l.b16 %v3994
      %v4076 = vunpack.c.l.b16 %v4007
      %v4077 = vunpack.c.l.b16 %v4017
      %v4078 = vunpack.c.l.b16 %v4030
      %v4079 = vunpack.c.l.b16 %v4040
      %v4080 = vunpack.c.l.b16 %v4053
      %v4081 = vunpack.c.l.b16 %v4063
      %v4082 = vpack.c.b16 %v4067, %v4066
      %v4083 = vpack.c.b16 %v4069, %v4068
      %v4084 = vpack.c.b16 %v4071, %v4070
      %v4085 = vpack.c.b16 %v4073, %v4072
      %v4086 = vpack.c.b16 %v4075, %v4074
      %v4087 = vpack.c.b16 %v4077, %v4076
      %v4088 = vpack.c.b16 %v4079, %v4078
      %v4089 = vpack.c.b16 %v4081, %v4080
      %v4091 = vsel %vm622, %v4082, 0
      %v4094 = vsel %vm622, %v4083, 0
      %v4097 = vsel %vm622, %v4084, 0
      %v4100 = vsel %vm622, %v4085, 0
      %v4103 = vsel %vm622, %v4086, 0
      %v4106 = vsel %vm622, %v4087, 0
      %v4109 = vsel %vm622, %v4088, 0
      %v4112 = vsel %vm622, %v4089, 0
      %v4115 = vsel %vm647, %v4065, 0
      %4117 = vmatpush.bf16.msra.mxu0 0
      %4118 = vmatpush.bf16.msra.mxu0 0
      %4119 = vmatpush.bf16.msra.mxu0 0
      %4120 = vmatpush.bf16.msra.mxu0 0
      %4121 = vmatpush.bf16.msra.mxu0 0
      %4122 = vmatpush.bf16.msra.mxu0 0
      %4123 = vmatpush.bf16.msra.mxu0 0
      %4124 = vmatpush.bf16.msra.mxu0 %v4115
      %4125 = vmatmul.bf16.gmra.mxu0 %v4091
      %v4126 = vpop.f32.mrf.mxu0
      %v4127 = vadd.f32 0.0, %v4126
      %v4128 = vpop.f32.mrf.mxu0
      %v4129 = vadd.f32 0.0, %v4128
      %4130 = vmatmul.bf16.gmra.mxu0 %v4094
      %v4131 = vpop.f32.mrf.mxu0
      %v4132 = vadd.f32 0.0, %v4131
      %v4133 = vpop.f32.mrf.mxu0
      %v4134 = vadd.f32 0.0, %v4133
      %4135 = vmatmul.bf16.gmra.mxu0 %v4097
      %v4136 = vpop.f32.mrf.mxu0
      %v4137 = vadd.f32 0.0, %v4136
      %v4138 = vpop.f32.mrf.mxu0
      %v4139 = vadd.f32 0.0, %v4138
      %4140 = vmatmul.bf16.gmra.mxu0 %v4100
      %v4141 = vpop.f32.mrf.mxu0
      %v4142 = vadd.f32 0.0, %v4141
      %v4143 = vpop.f32.mrf.mxu0
      %v4144 = vadd.f32 0.0, %v4143
      %4145 = vmatmul.bf16.gmra.mxu0 %v4103
      %v4146 = vpop.f32.mrf.mxu0
      %v4147 = vadd.f32 0.0, %v4146
      %v4148 = vpop.f32.mrf.mxu0
      %v4149 = vadd.f32 0.0, %v4148
      %4150 = vmatmul.bf16.gmra.mxu0 %v4106
      %v4151 = vpop.f32.mrf.mxu0
      %v4152 = vadd.f32 0.0, %v4151
      %v4153 = vpop.f32.mrf.mxu0
      %v4154 = vadd.f32 0.0, %v4153
      %4155 = vmatmul.bf16.gmra.mxu0 %v4109
      %v4156 = vpop.f32.mrf.mxu0
      %v4157 = vadd.f32 0.0, %v4156
      %v4158 = vpop.f32.mrf.mxu0
      %v4159 = vadd.f32 0.0, %v4158
      %4160 = vmatmul.bf16.gmra.mxu0 %v4112
      %v4161 = vpop.f32.mrf.mxu0
      %v4162 = vadd.f32 0.0, %v4161
      %v4163 = vpop.f32.mrf.mxu0
      %v4164 = vadd.f32 0.0, %v4163
      %4165 = vdwg.mxu0
      %v4166 = vadd.f32 %v3856, %v4127
      %v4167 = vadd.f32 %v3857, %v4129
      %v4168 = vadd.f32 %v3858, %v4132
      %v4169 = vadd.f32 %v3859, %v4134
      %v4170 = vadd.f32 %v3860, %v4137
      %v4171 = vadd.f32 %v3861, %v4139
      %v4172 = vadd.f32 %v3862, %v4142
      %v4173 = vadd.f32 %v3863, %v4144
      %v4174 = vadd.f32 %v3864, %v4147
      %v4175 = vadd.f32 %v3865, %v4149
      %v4176 = vadd.f32 %v3866, %v4152
      %v4177 = vadd.f32 %v3867, %v4154
      %v4178 = vadd.f32 %v3868, %v4157
      %v4179 = vadd.f32 %v3869, %v4159
      %v4180 = vadd.f32 %v3870, %v4162
      %v4181 = vadd.f32 %v3871, %v4164
      %s4182 = scalar_lea.vmem %s234, 60
      %v4183 = vld [vmem:[%s4182] sm:$0xf]
      %v4184 = vld [vmem:[%s4182 + $0x4] sm:$0xf]
      %v4185 = vld [vmem:[%s4182 + $0x8] sm:$0x1]
      %v4186 = vld [vmem:[%s4182 + $0xc] sm:$0xf]
      %v4187 = vld [vmem:[%s4182 + $0x10] sm:$0xf]
      %v4188 = vld [vmem:[%s4182 + $0x14] sm:$0x1]
      %v4189 = vld [vmem:[%s4182 + $0x18] sm:$0xf]
      %v4190 = vld [vmem:[%s4182 + $0x1c] sm:$0xf]
      %v4191 = vld [vmem:[%s4182 + $0x20] sm:$0x1]
      %v4192 = vld [vmem:[%s4182 + $0x24] sm:$0xf]
      %v4193 = vld [vmem:[%s4182 + $0x28] sm:$0xf]
      %v4194 = vld [vmem:[%s4182 + $0x2c] sm:$0x1]
      %v4195 = vld [vmem:[%s4182 + $0x30] sm:$0xf]
      %v4196 = vld [vmem:[%s4182 + $0x34] sm:$0xf]
      %v4197 = vld [vmem:[%s4182 + $0x38] sm:$0x1]
      %v4198 = vld [vmem:[%s4182 + $0x3c] sm:$0xf]
      %v4199 = vld [vmem:[%s4182 + $0x40] sm:$0xf]
      %v4200 = vld [vmem:[%s4182 + $0x44] sm:$0x1]
      %v4201 = vld [vmem:[%s4182 + $0x48] sm:$0xf]
      %v4202 = vld [vmem:[%s4182 + $0x4c] sm:$0xf]
      %v4203 = vld [vmem:[%s4182 + $0x50] sm:$0x1]
      %v4204 = vld [vmem:[%s4182 + $0x54] sm:$0xf]
      %v4205 = vld [vmem:[%s4182 + $0x58] sm:$0xf]
      %v4206 = vld [vmem:[%s4182 + $0x5c] sm:$0x1]
      %v4208 = vshrl.u32 %v4183, 16
      %v4210 = vrot.slane %v4208, 4
      %v4211 = vshll.u32 %v4183, 16
      %v4213 = vrot.slane %v4211, 5
      %v4214 = vor.u32 %v4210, %v4213
      %v4215 = vrot.slane %v4214, 4
      %v4217 = vshll.u32 %v4184, 16
      %v4219 = vrot.slane %v4217, 5
      %v4220 = vsel %vm2606, %v4215, %v4219
      %v4221 = vshrl.u32 %v4184, 16
      %v4223 = vrot.slane %v4221, 4
      %v4224 = vor.u32 %v4223, %v4219
      %v4225 = vrot.slane %v4224, 4
      %v4227 = vshll.u32 %v4185, 16
      %v4229 = vrot.slane %v4227, 5
      %v4230 = vsel %vm2606, %v4225, %v4229
      %v4232 = vshrl.u32 %v4186, 16
      %v4234 = vrot.slane %v4232, 4
      %v4235 = vshll.u32 %v4186, 16
      %v4237 = vrot.slane %v4235, 5
      %v4238 = vor.u32 %v4234, %v4237
      %v4239 = vrot.slane %v4238, 4
      %v4241 = vshll.u32 %v4187, 16
      %v4243 = vrot.slane %v4241, 5
      %v4244 = vsel %vm2606, %v4239, %v4243
      %v4245 = vshrl.u32 %v4187, 16
      %v4247 = vrot.slane %v4245, 4
      %v4248 = vor.u32 %v4247, %v4243
      %v4249 = vrot.slane %v4248, 4
      %v4251 = vshll.u32 %v4188, 16
      %v4253 = vrot.slane %v4251, 5
      %v4254 = vsel %vm2606, %v4249, %v4253
      %v4256 = vshrl.u32 %v4189, 16
      %v4258 = vrot.slane %v4256, 4
      %v4259 = vshll.u32 %v4189, 16
      %v4261 = vrot.slane %v4259, 5
      %v4262 = vor.u32 %v4258, %v4261
      %v4263 = vrot.slane %v4262, 4
      %v4265 = vshll.u32 %v4190, 16
      %v4267 = vrot.slane %v4265, 5
      %v4268 = vsel %vm2606, %v4263, %v4267
      %v4269 = vshrl.u32 %v4190, 16
      %v4271 = vrot.slane %v4269, 4
      %v4272 = vor.u32 %v4271, %v4267
      %v4273 = vrot.slane %v4272, 4
      %v4275 = vshll.u32 %v4191, 16
      %v4277 = vrot.slane %v4275, 5
      %v4278 = vsel %vm2606, %v4273, %v4277
      %v4280 = vshrl.u32 %v4192, 16
      %v4282 = vrot.slane %v4280, 4
      %v4283 = vshll.u32 %v4192, 16
      %v4285 = vrot.slane %v4283, 5
      %v4286 = vor.u32 %v4282, %v4285
      %v4287 = vrot.slane %v4286, 4
      %v4289 = vshll.u32 %v4193, 16
      %v4291 = vrot.slane %v4289, 5
      %v4292 = vsel %vm2606, %v4287, %v4291
      %v4293 = vshrl.u32 %v4193, 16
      %v4295 = vrot.slane %v4293, 4
      %v4296 = vor.u32 %v4295, %v4291
      %v4297 = vrot.slane %v4296, 4
      %v4299 = vshll.u32 %v4194, 16
      %v4301 = vrot.slane %v4299, 5
      %v4302 = vsel %vm2606, %v4297, %v4301
      %v4304 = vshrl.u32 %v4195, 16
      %v4306 = vrot.slane %v4304, 4
      %v4307 = vshll.u32 %v4195, 16
      %v4309 = vrot.slane %v4307, 5
      %v4310 = vor.u32 %v4306, %v4309
      %v4311 = vrot.slane %v4310, 4
      %v4313 = vshll.u32 %v4196, 16
      %v4315 = vrot.slane %v4313, 5
      %v4316 = vsel %vm2606, %v4311, %v4315
      %v4317 = vshrl.u32 %v4196, 16
      %v4319 = vrot.slane %v4317, 4
      %v4320 = vor.u32 %v4319, %v4315
      %v4321 = vrot.slane %v4320, 4
      %v4323 = vshll.u32 %v4197, 16
      %v4325 = vrot.slane %v4323, 5
      %v4326 = vsel %vm2606, %v4321, %v4325
      %v4328 = vshrl.u32 %v4198, 16
      %v4330 = vrot.slane %v4328, 4
      %v4331 = vshll.u32 %v4198, 16
      %v4333 = vrot.slane %v4331, 5
      %v4334 = vor.u32 %v4330, %v4333
      %v4335 = vrot.slane %v4334, 4
      %v4337 = vshll.u32 %v4199, 16
      %v4339 = vrot.slane %v4337, 5
      %v4340 = vsel %vm2606, %v4335, %v4339
      %v4341 = vshrl.u32 %v4199, 16
      %v4343 = vrot.slane %v4341, 4
      %v4344 = vor.u32 %v4343, %v4339
      %v4345 = vrot.slane %v4344, 4
      %v4347 = vshll.u32 %v4200, 16
      %v4349 = vrot.slane %v4347, 5
      %v4350 = vsel %vm2606, %v4345, %v4349
      %v4352 = vshrl.u32 %v4201, 16
      %v4354 = vrot.slane %v4352, 4
      %v4355 = vshll.u32 %v4201, 16
      %v4357 = vrot.slane %v4355, 5
      %v4358 = vor.u32 %v4354, %v4357
      %v4359 = vrot.slane %v4358, 4
      %v4361 = vshll.u32 %v4202, 16
      %v4363 = vrot.slane %v4361, 5
      %v4364 = vsel %vm2606, %v4359, %v4363
      %v4365 = vshrl.u32 %v4202, 16
      %v4367 = vrot.slane %v4365, 4
      %v4368 = vor.u32 %v4367, %v4363
      %v4369 = vrot.slane %v4368, 4
      %v4371 = vshll.u32 %v4203, 16
      %v4373 = vrot.slane %v4371, 5
      %v4374 = vsel %vm2606, %v4369, %v4373
      %v4376 = vshrl.u32 %v4204, 16
      %v4378 = vrot.slane %v4376, 4
      %v4379 = vshll.u32 %v4204, 16
      %v4381 = vrot.slane %v4379, 5
      %v4382 = vor.u32 %v4378, %v4381
      %v4383 = vrot.slane %v4382, 4
      %v4385 = vshll.u32 %v4205, 16
      %v4387 = vrot.slane %v4385, 5
      %v4388 = vsel %vm2606, %v4383, %v4387
      %v4389 = vshrl.u32 %v4205, 16
      %v4391 = vrot.slane %v4389, 4
      %v4392 = vor.u32 %v4391, %v4387
      %v4393 = vrot.slane %v4392, 4
      %v4395 = vshll.u32 %v4206, 16
      %v4397 = vrot.slane %v4395, 5
      %v4398 = vsel %vm2606, %v4393, %v4397
      %s4399 = scalar_lea.vmem %s1, 60
      %v4400 = vld [vmem:[%s4399] sm:$0xf]
      %v4401 = vunpack.c.l.b16 %v4220
      %v4402 = vunpack.c.l.b16 %v4230
      %v4403 = vunpack.c.l.b16 %v4244
      %v4404 = vunpack.c.l.b16 %v4254
      %v4405 = vunpack.c.l.b16 %v4268
      %v4406 = vunpack.c.l.b16 %v4278
      %v4407 = vunpack.c.l.b16 %v4292
      %v4408 = vunpack.c.l.b16 %v4302
      %v4409 = vunpack.c.l.b16 %v4316
      %v4410 = vunpack.c.l.b16 %v4326
      %v4411 = vunpack.c.l.b16 %v4340
      %v4412 = vunpack.c.l.b16 %v4350
      %v4413 = vunpack.c.l.b16 %v4364
      %v4414 = vunpack.c.l.b16 %v4374
      %v4415 = vunpack.c.l.b16 %v4388
      %v4416 = vunpack.c.l.b16 %v4398
      %v4417 = vpack.c.b16 %v4402, %v4401
      %v4418 = vpack.c.b16 %v4404, %v4403
      %v4419 = vpack.c.b16 %v4406, %v4405
      %v4420 = vpack.c.b16 %v4408, %v4407
      %v4421 = vpack.c.b16 %v4410, %v4409
      %v4422 = vpack.c.b16 %v4412, %v4411
      %v4423 = vpack.c.b16 %v4414, %v4413
      %v4424 = vpack.c.b16 %v4416, %v4415
      %v4426 = vsel %vm622, %v4417, 0
      %v4429 = vsel %vm622, %v4418, 0
      %v4432 = vsel %vm622, %v4419, 0
      %v4435 = vsel %vm622, %v4420, 0
      %v4438 = vsel %vm622, %v4421, 0
      %v4441 = vsel %vm622, %v4422, 0
      %v4444 = vsel %vm622, %v4423, 0
      %v4447 = vsel %vm622, %v4424, 0
      %v4450 = vsel %vm647, %v4400, 0
      %4452 = vmatpush.bf16.msra.mxu0 0
      %4453 = vmatpush.bf16.msra.mxu0 0
      %4454 = vmatpush.bf16.msra.mxu0 0
      %4455 = vmatpush.bf16.msra.mxu0 0
      %4456 = vmatpush.bf16.msra.mxu0 0
      %4457 = vmatpush.bf16.msra.mxu0 0
      %4458 = vmatpush.bf16.msra.mxu0 0
      %4459 = vmatpush.bf16.msra.mxu0 %v4450
      %4460 = vmatmul.bf16.gmra.mxu0 %v4426
      %v4461 = vpop.f32.mrf.mxu0
      %v4462 = vadd.f32 0.0, %v4461
      %v4463 = vpop.f32.mrf.mxu0
      %v4464 = vadd.f32 0.0, %v4463
      %4465 = vmatmul.bf16.gmra.mxu0 %v4429
      %v4466 = vpop.f32.mrf.mxu0
      %v4467 = vadd.f32 0.0, %v4466
      %v4468 = vpop.f32.mrf.mxu0
      %v4469 = vadd.f32 0.0, %v4468
      %4470 = vmatmul.bf16.gmra.mxu0 %v4432
      %v4471 = vpop.f32.mrf.mxu0
      %v4472 = vadd.f32 0.0, %v4471
      %v4473 = vpop.f32.mrf.mxu0
      %v4474 = vadd.f32 0.0, %v4473
      %4475 = vmatmul.bf16.gmra.mxu0 %v4435
      %v4476 = vpop.f32.mrf.mxu0
      %v4477 = vadd.f32 0.0, %v4476
      %v4478 = vpop.f32.mrf.mxu0
      %v4479 = vadd.f32 0.0, %v4478
      %4480 = vmatmul.bf16.gmra.mxu0 %v4438
      %v4481 = vpop.f32.mrf.mxu0
      %v4482 = vadd.f32 0.0, %v4481
      %v4483 = vpop.f32.mrf.mxu0
      %v4484 = vadd.f32 0.0, %v4483
      %4485 = vmatmul.bf16.gmra.mxu0 %v4441
      %v4486 = vpop.f32.mrf.mxu0
      %v4487 = vadd.f32 0.0, %v4486
      %v4488 = vpop.f32.mrf.mxu0
      %v4489 = vadd.f32 0.0, %v4488
      %4490 = vmatmul.bf16.gmra.mxu0 %v4444
      %v4491 = vpop.f32.mrf.mxu0
      %v4492 = vadd.f32 0.0, %v4491
      %v4493 = vpop.f32.mrf.mxu0
      %v4494 = vadd.f32 0.0, %v4493
      %4495 = vmatmul.bf16.gmra.mxu0 %v4447
      %v4496 = vpop.f32.mrf.mxu0
      %v4497 = vadd.f32 0.0, %v4496
      %v4498 = vpop.f32.mrf.mxu0
      %v4499 = vadd.f32 0.0, %v4498
      %4500 = vdwg.mxu0
      %v4501 = vadd.f32 %v4166, %v4462
      %v4502 = vadd.f32 %v4167, %v4464
      %v4503 = vadd.f32 %v4168, %v4467
      %v4504 = vadd.f32 %v4169, %v4469
      %v4505 = vadd.f32 %v4170, %v4472
      %v4506 = vadd.f32 %v4171, %v4474
      %v4507 = vadd.f32 %v4172, %v4477
      %v4508 = vadd.f32 %v4173, %v4479
      %v4509 = vadd.f32 %v4174, %v4482
      %v4510 = vadd.f32 %v4175, %v4484
      %v4511 = vadd.f32 %v4176, %v4487
      %v4512 = vadd.f32 %v4177, %v4489
      %v4513 = vadd.f32 %v4178, %v4492
      %v4514 = vadd.f32 %v4179, %v4494
      %v4515 = vadd.f32 %v4180, %v4497
      %v4516 = vadd.f32 %v4181, %v4499
      %v4517 = vld [vmem:[%s4182] sm:$0xe]
      %v4518 = vld [vmem:[%s4182 + $0x8] sm:$0x3]
      %v4519 = vld [vmem:[%s4182 + $0xc] sm:$0xe]
      %v4520 = vld [vmem:[%s4182 + $0x14] sm:$0x3]
      %v4521 = vld [vmem:[%s4182 + $0x18] sm:$0xe]
      %v4522 = vld [vmem:[%s4182 + $0x20] sm:$0x3]
      %v4523 = vld [vmem:[%s4182 + $0x24] sm:$0xe]
      %v4524 = vld [vmem:[%s4182 + $0x2c] sm:$0x3]
      %v4525 = vld [vmem:[%s4182 + $0x30] sm:$0xe]
      %v4526 = vld [vmem:[%s4182 + $0x38] sm:$0x3]
      %v4527 = vld [vmem:[%s4182 + $0x3c] sm:$0xe]
      %v4528 = vld [vmem:[%s4182 + $0x44] sm:$0x3]
      %v4529 = vld [vmem:[%s4182 + $0x48] sm:$0xe]
      %v4530 = vld [vmem:[%s4182 + $0x50] sm:$0x3]
      %v4531 = vld [vmem:[%s4182 + $0x54] sm:$0xe]
      %v4532 = vld [vmem:[%s4182 + $0x5c] sm:$0x3]
      %v4534 = vshrl.u32 %v4517, 16
      %v4536 = vrot.slane %v4534, 5
      %v4537 = vshll.u32 %v4517, 16
      %v4539 = vrot.slane %v4537, 6
      %v4540 = vor.u32 %v4536, %v4539
      %v4541 = vrot.slane %v4540, 4
      %v4542 = vrot.slane %v4221, 5
      %v4543 = vrot.slane %v4217, 6
      %v4544 = vor.u32 %v4542, %v4543
      %v4545 = vsel %vm371, %v4541, %v4544
      %v4546 = vrot.slane %v4544, 4
      %v4548 = vshrl.u32 %v4518, 16
      %v4550 = vrot.slane %v4548, 5
      %v4551 = vshll.u32 %v4518, 16
      %v4553 = vrot.slane %v4551, 6
      %v4554 = vor.u32 %v4550, %v4553
      %v4555 = vsel %vm371, %v4546, %v4554
      %v4557 = vshrl.u32 %v4519, 16
      %v4559 = vrot.slane %v4557, 5
      %v4560 = vshll.u32 %v4519, 16
      %v4562 = vrot.slane %v4560, 6
      %v4563 = vor.u32 %v4559, %v4562
      %v4564 = vrot.slane %v4563, 4
      %v4565 = vrot.slane %v4245, 5
      %v4566 = vrot.slane %v4241, 6
      %v4567 = vor.u32 %v4565, %v4566
      %v4568 = vsel %vm371, %v4564, %v4567
      %v4569 = vrot.slane %v4567, 4
      %v4571 = vshrl.u32 %v4520, 16
      %v4573 = vrot.slane %v4571, 5
      %v4574 = vshll.u32 %v4520, 16
      %v4576 = vrot.slane %v4574, 6
      %v4577 = vor.u32 %v4573, %v4576
      %v4578 = vsel %vm371, %v4569, %v4577
      %v4580 = vshrl.u32 %v4521, 16
      %v4582 = vrot.slane %v4580, 5
      %v4583 = vshll.u32 %v4521, 16
      %v4585 = vrot.slane %v4583, 6
      %v4586 = vor.u32 %v4582, %v4585
      %v4587 = vrot.slane %v4586, 4
      %v4588 = vrot.slane %v4269, 5
      %v4589 = vrot.slane %v4265, 6
      %v4590 = vor.u32 %v4588, %v4589
      %v4591 = vsel %vm371, %v4587, %v4590
      %v4592 = vrot.slane %v4590, 4
      %v4594 = vshrl.u32 %v4522, 16
      %v4596 = vrot.slane %v4594, 5
      %v4597 = vshll.u32 %v4522, 16
      %v4599 = vrot.slane %v4597, 6
      %v4600 = vor.u32 %v4596, %v4599
      %v4601 = vsel %vm371, %v4592, %v4600
      %v4603 = vshrl.u32 %v4523, 16
      %v4605 = vrot.slane %v4603, 5
      %v4606 = vshll.u32 %v4523, 16
      %v4608 = vrot.slane %v4606, 6
      %v4609 = vor.u32 %v4605, %v4608
      %v4610 = vrot.slane %v4609, 4
      %v4611 = vrot.slane %v4293, 5
      %v4612 = vrot.slane %v4289, 6
      %v4613 = vor.u32 %v4611, %v4612
      %v4614 = vsel %vm371, %v4610, %v4613
      %v4615 = vrot.slane %v4613, 4
      %v4617 = vshrl.u32 %v4524, 16
      %v4619 = vrot.slane %v4617, 5
      %v4620 = vshll.u32 %v4524, 16
      %v4622 = vrot.slane %v4620, 6
      %v4623 = vor.u32 %v4619, %v4622
      %v4624 = vsel %vm371, %v4615, %v4623
      %v4626 = vshrl.u32 %v4525, 16
      %v4628 = vrot.slane %v4626, 5
      %v4629 = vshll.u32 %v4525, 16
      %v4631 = vrot.slane %v4629, 6
      %v4632 = vor.u32 %v4628, %v4631
      %v4633 = vrot.slane %v4632, 4
      %v4634 = vrot.slane %v4317, 5
      %v4635 = vrot.slane %v4313, 6
      %v4636 = vor.u32 %v4634, %v4635
      %v4637 = vsel %vm371, %v4633, %v4636
      %v4638 = vrot.slane %v4636, 4
      %v4640 = vshrl.u32 %v4526, 16
      %v4642 = vrot.slane %v4640, 5
      %v4643 = vshll.u32 %v4526, 16
      %v4645 = vrot.slane %v4643, 6
      %v4646 = vor.u32 %v4642, %v4645
      %v4647 = vsel %vm371, %v4638, %v4646
      %v4649 = vshrl.u32 %v4527, 16
      %v4651 = vrot.slane %v4649, 5
      %v4652 = vshll.u32 %v4527, 16
      %v4654 = vrot.slane %v4652, 6
      %v4655 = vor.u32 %v4651, %v4654
      %v4656 = vrot.slane %v4655, 4
      %v4657 = vrot.slane %v4341, 5
      %v4658 = vrot.slane %v4337, 6
      %v4659 = vor.u32 %v4657, %v4658
      %v4660 = vsel %vm371, %v4656, %v4659
      %v4661 = vrot.slane %v4659, 4
      %v4663 = vshrl.u32 %v4528, 16
      %v4665 = vrot.slane %v4663, 5
      %v4666 = vshll.u32 %v4528, 16
      %v4668 = vrot.slane %v4666, 6
      %v4669 = vor.u32 %v4665, %v4668
      %v4670 = vsel %vm371, %v4661, %v4669
      %v4672 = vshrl.u32 %v4529, 16
      %v4674 = vrot.slane %v4672, 5
      %v4675 = vshll.u32 %v4529, 16
      %v4677 = vrot.slane %v4675, 6
      %v4678 = vor.u32 %v4674, %v4677
      %v4679 = vrot.slane %v4678, 4
      %v4680 = vrot.slane %v4365, 5
      %v4681 = vrot.slane %v4361, 6
      %v4682 = vor.u32 %v4680, %v4681
      %v4683 = vsel %vm371, %v4679, %v4682
      %v4684 = vrot.slane %v4682, 4
      %v4686 = vshrl.u32 %v4530, 16
      %v4688 = vrot.slane %v4686, 5
      %v4689 = vshll.u32 %v4530, 16
      %v4691 = vrot.slane %v4689, 6
      %v4692 = vor.u32 %v4688, %v4691
      %v4693 = vsel %vm371, %v4684, %v4692
      %v4695 = vshrl.u32 %v4531, 16
      %v4697 = vrot.slane %v4695, 5
      %v4698 = vshll.u32 %v4531, 16
      %v4700 = vrot.slane %v4698, 6
      %v4701 = vor.u32 %v4697, %v4700
      %v4702 = vrot.slane %v4701, 4
      %v4703 = vrot.slane %v4389, 5
      %v4704 = vrot.slane %v4385, 6
      %v4705 = vor.u32 %v4703, %v4704
      %v4706 = vsel %vm371, %v4702, %v4705
      %v4707 = vrot.slane %v4705, 4
      %v4709 = vshrl.u32 %v4532, 16
      %v4711 = vrot.slane %v4709, 5
      %v4712 = vshll.u32 %v4532, 16
      %v4714 = vrot.slane %v4712, 6
      %v4715 = vor.u32 %v4711, %v4714
      %v4716 = vsel %vm371, %v4707, %v4715
      %s4717 = scalar_lea.vmem %s1, 64
      %v4718 = vld [vmem:[%s4717] sm:$0xf]
      %v4719 = vunpack.c.l.b16 %v4545
      %v4720 = vunpack.c.l.b16 %v4555
      %v4721 = vunpack.c.l.b16 %v4568
      %v4722 = vunpack.c.l.b16 %v4578
      %v4723 = vunpack.c.l.b16 %v4591
      %v4724 = vunpack.c.l.b16 %v4601
      %v4725 = vunpack.c.l.b16 %v4614
      %v4726 = vunpack.c.l.b16 %v4624
      %v4727 = vunpack.c.l.b16 %v4637
      %v4728 = vunpack.c.l.b16 %v4647
      %v4729 = vunpack.c.l.b16 %v4660
      %v4730 = vunpack.c.l.b16 %v4670
      %v4731 = vunpack.c.l.b16 %v4683
      %v4732 = vunpack.c.l.b16 %v4693
      %v4733 = vunpack.c.l.b16 %v4706
      %v4734 = vunpack.c.l.b16 %v4716
      %v4735 = vpack.c.b16 %v4720, %v4719
      %v4736 = vpack.c.b16 %v4722, %v4721
      %v4737 = vpack.c.b16 %v4724, %v4723
      %v4738 = vpack.c.b16 %v4726, %v4725
      %v4739 = vpack.c.b16 %v4728, %v4727
      %v4740 = vpack.c.b16 %v4730, %v4729
      %v4741 = vpack.c.b16 %v4732, %v4731
      %v4742 = vpack.c.b16 %v4734, %v4733
      %v4744 = vsel %vm622, %v4735, 0
      %v4747 = vsel %vm622, %v4736, 0
      %v4750 = vsel %vm622, %v4737, 0
      %v4753 = vsel %vm622, %v4738, 0
      %v4756 = vsel %vm622, %v4739, 0
      %v4759 = vsel %vm622, %v4740, 0
      %v4762 = vsel %vm622, %v4741, 0
      %v4765 = vsel %vm622, %v4742, 0
      %v4768 = vsel %vm647, %v4718, 0
      %4770 = vmatpush.bf16.msra.mxu0 0
      %4771 = vmatpush.bf16.msra.mxu0 0
      %4772 = vmatpush.bf16.msra.mxu0 0
      %4773 = vmatpush.bf16.msra.mxu0 0
      %4774 = vmatpush.bf16.msra.mxu0 0
      %4775 = vmatpush.bf16.msra.mxu0 0
      %4776 = vmatpush.bf16.msra.mxu0 0
      %4777 = vmatpush.bf16.msra.mxu0 %v4768
      %4778 = vmatmul.bf16.gmra.mxu0 %v4744
      %v4779 = vpop.f32.mrf.mxu0
      %v4780 = vadd.f32 0.0, %v4779
      %v4781 = vpop.f32.mrf.mxu0
      %v4782 = vadd.f32 0.0, %v4781
      %4783 = vmatmul.bf16.gmra.mxu0 %v4747
      %v4784 = vpop.f32.mrf.mxu0
      %v4785 = vadd.f32 0.0, %v4784
      %v4786 = vpop.f32.mrf.mxu0
      %v4787 = vadd.f32 0.0, %v4786
      %4788 = vmatmul.bf16.gmra.mxu0 %v4750
      %v4789 = vpop.f32.mrf.mxu0
      %v4790 = vadd.f32 0.0, %v4789
      %v4791 = vpop.f32.mrf.mxu0
      %v4792 = vadd.f32 0.0, %v4791
      %4793 = vmatmul.bf16.gmra.mxu0 %v4753
      %v4794 = vpop.f32.mrf.mxu0
      %v4795 = vadd.f32 0.0, %v4794
      %v4796 = vpop.f32.mrf.mxu0
      %v4797 = vadd.f32 0.0, %v4796
      %4798 = vmatmul.bf16.gmra.mxu0 %v4756
      %v4799 = vpop.f32.mrf.mxu0
      %v4800 = vadd.f32 0.0, %v4799
      %v4801 = vpop.f32.mrf.mxu0
      %v4802 = vadd.f32 0.0, %v4801
      %4803 = vmatmul.bf16.gmra.mxu0 %v4759
      %v4804 = vpop.f32.mrf.mxu0
      %v4805 = vadd.f32 0.0, %v4804
      %v4806 = vpop.f32.mrf.mxu0
      %v4807 = vadd.f32 0.0, %v4806
      %4808 = vmatmul.bf16.gmra.mxu0 %v4762
      %v4809 = vpop.f32.mrf.mxu0
      %v4810 = vadd.f32 0.0, %v4809
      %v4811 = vpop.f32.mrf.mxu0
      %v4812 = vadd.f32 0.0, %v4811
      %4813 = vmatmul.bf16.gmra.mxu0 %v4765
      %v4814 = vpop.f32.mrf.mxu0
      %v4815 = vadd.f32 0.0, %v4814
      %v4816 = vpop.f32.mrf.mxu0
      %v4817 = vadd.f32 0.0, %v4816
      %4818 = vdwg.mxu0
      %v4819 = vadd.f32 %v4501, %v4780
      %v4820 = vadd.f32 %v4502, %v4782
      %v4821 = vadd.f32 %v4503, %v4785
      %v4822 = vadd.f32 %v4504, %v4787
      %v4823 = vadd.f32 %v4505, %v4790
      %v4824 = vadd.f32 %v4506, %v4792
      %v4825 = vadd.f32 %v4507, %v4795
      %v4826 = vadd.f32 %v4508, %v4797
      %v4827 = vadd.f32 %v4509, %v4800
      %v4828 = vadd.f32 %v4510, %v4802
      %v4829 = vadd.f32 %v4511, %v4805
      %v4830 = vadd.f32 %v4512, %v4807
      %v4831 = vadd.f32 %v4513, %v4810
      %v4832 = vadd.f32 %v4514, %v4812
      %v4833 = vadd.f32 %v4515, %v4815
      %v4834 = vadd.f32 %v4516, %v4817
      %v4835 = vld [vmem:[%s4182] sm:$0xc]
      %v4836 = vld [vmem:[%s4182 + $0x8] sm:$0x7]
      %v4837 = vld [vmem:[%s4182 + $0xc] sm:$0xc]
      %v4838 = vld [vmem:[%s4182 + $0x14] sm:$0x7]
      %v4839 = vld [vmem:[%s4182 + $0x18] sm:$0xc]
      %v4840 = vld [vmem:[%s4182 + $0x20] sm:$0x7]
      %v4841 = vld [vmem:[%s4182 + $0x24] sm:$0xc]
      %v4842 = vld [vmem:[%s4182 + $0x2c] sm:$0x7]
      %v4843 = vld [vmem:[%s4182 + $0x30] sm:$0xc]
      %v4844 = vld [vmem:[%s4182 + $0x38] sm:$0x7]
      %v4845 = vld [vmem:[%s4182 + $0x3c] sm:$0xc]
      %v4846 = vld [vmem:[%s4182 + $0x44] sm:$0x7]
      %v4847 = vld [vmem:[%s4182 + $0x48] sm:$0xc]
      %v4848 = vld [vmem:[%s4182 + $0x50] sm:$0x7]
      %v4849 = vld [vmem:[%s4182 + $0x54] sm:$0xc]
      %v4850 = vld [vmem:[%s4182 + $0x5c] sm:$0x7]
      %v4852 = vshrl.u32 %v4835, 16
      %v4854 = vrot.slane %v4852, 6
      %v4855 = vshll.u32 %v4835, 16
      %v4857 = vrot.slane %v4855, 7
      %v4858 = vor.u32 %v4854, %v4857
      %v4859 = vrot.slane %v4858, 4
      %v4860 = vrot.slane %v4221, 6
      %v4861 = vrot.slane %v4217, 7
      %v4862 = vor.u32 %v4860, %v4861
      %v4863 = vsel %vm3221, %v4859, %v4862
      %v4864 = vrot.slane %v4862, 4
      %v4866 = vshrl.u32 %v4836, 16
      %v4868 = vrot.slane %v4866, 6
      %v4869 = vshll.u32 %v4836, 16
      %v4871 = vrot.slane %v4869, 7
      %v4872 = vor.u32 %v4868, %v4871
      %v4873 = vsel %vm3221, %v4864, %v4872
      %v4875 = vshrl.u32 %v4837, 16
      %v4877 = vrot.slane %v4875, 6
      %v4878 = vshll.u32 %v4837, 16
      %v4880 = vrot.slane %v4878, 7
      %v4881 = vor.u32 %v4877, %v4880
      %v4882 = vrot.slane %v4881, 4
      %v4883 = vrot.slane %v4245, 6
      %v4884 = vrot.slane %v4241, 7
      %v4885 = vor.u32 %v4883, %v4884
      %v4886 = vsel %vm3221, %v4882, %v4885
      %v4887 = vrot.slane %v4885, 4
      %v4889 = vshrl.u32 %v4838, 16
      %v4891 = vrot.slane %v4889, 6
      %v4892 = vshll.u32 %v4838, 16
      %v4894 = vrot.slane %v4892, 7
      %v4895 = vor.u32 %v4891, %v4894
      %v4896 = vsel %vm3221, %v4887, %v4895
      %v4898 = vshrl.u32 %v4839, 16
      %v4900 = vrot.slane %v4898, 6
      %v4901 = vshll.u32 %v4839, 16
      %v4903 = vrot.slane %v4901, 7
      %v4904 = vor.u32 %v4900, %v4903
      %v4905 = vrot.slane %v4904, 4
      %v4906 = vrot.slane %v4269, 6
      %v4907 = vrot.slane %v4265, 7
      %v4908 = vor.u32 %v4906, %v4907
      %v4909 = vsel %vm3221, %v4905, %v4908
      %v4910 = vrot.slane %v4908, 4
      %v4912 = vshrl.u32 %v4840, 16
      %v4914 = vrot.slane %v4912, 6
      %v4915 = vshll.u32 %v4840, 16
      %v4917 = vrot.slane %v4915, 7
      %v4918 = vor.u32 %v4914, %v4917
      %v4919 = vsel %vm3221, %v4910, %v4918
      %v4921 = vshrl.u32 %v4841, 16
      %v4923 = vrot.slane %v4921, 6
      %v4924 = vshll.u32 %v4841, 16
      %v4926 = vrot.slane %v4924, 7
      %v4927 = vor.u32 %v4923, %v4926
      %v4928 = vrot.slane %v4927, 4
      %v4929 = vrot.slane %v4293, 6
      %v4930 = vrot.slane %v4289, 7
      %v4931 = vor.u32 %v4929, %v4930
      %v4932 = vsel %vm3221, %v4928, %v4931
      %v4933 = vrot.slane %v4931, 4
      %v4935 = vshrl.u32 %v4842, 16
      %v4937 = vrot.slane %v4935, 6
      %v4938 = vshll.u32 %v4842, 16
      %v4940 = vrot.slane %v4938, 7
      %v4941 = vor.u32 %v4937, %v4940
      %v4942 = vsel %vm3221, %v4933, %v4941
      %v4944 = vshrl.u32 %v4843, 16
      %v4946 = vrot.slane %v4944, 6
      %v4947 = vshll.u32 %v4843, 16
      %v4949 = vrot.slane %v4947, 7
      %v4950 = vor.u32 %v4946, %v4949
      %v4951 = vrot.slane %v4950, 4
      %v4952 = vrot.slane %v4317, 6
      %v4953 = vrot.slane %v4313, 7
      %v4954 = vor.u32 %v4952, %v4953
      %v4955 = vsel %vm3221, %v4951, %v4954
      %v4956 = vrot.slane %v4954, 4
      %v4958 = vshrl.u32 %v4844, 16
      %v4960 = vrot.slane %v4958, 6
      %v4961 = vshll.u32 %v4844, 16
      %v4963 = vrot.slane %v4961, 7
      %v4964 = vor.u32 %v4960, %v4963
      %v4965 = vsel %vm3221, %v4956, %v4964
      %v4967 = vshrl.u32 %v4845, 16
      %v4969 = vrot.slane %v4967, 6
      %v4970 = vshll.u32 %v4845, 16
      %v4972 = vrot.slane %v4970, 7
      %v4973 = vor.u32 %v4969, %v4972
      %v4974 = vrot.slane %v4973, 4
      %v4975 = vrot.slane %v4341, 6
      %v4976 = vrot.slane %v4337, 7
      %v4977 = vor.u32 %v4975, %v4976
      %v4978 = vsel %vm3221, %v4974, %v4977
      %v4979 = vrot.slane %v4977, 4
      %v4981 = vshrl.u32 %v4846, 16
      %v4983 = vrot.slane %v4981, 6
      %v4984 = vshll.u32 %v4846, 16
      %v4986 = vrot.slane %v4984, 7
      %v4987 = vor.u32 %v4983, %v4986
      %v4988 = vsel %vm3221, %v4979, %v4987
      %v4990 = vshrl.u32 %v4847, 16
      %v4992 = vrot.slane %v4990, 6
      %v4993 = vshll.u32 %v4847, 16
      %v4995 = vrot.slane %v4993, 7
      %v4996 = vor.u32 %v4992, %v4995
      %v4997 = vrot.slane %v4996, 4
      %v4998 = vrot.slane %v4365, 6
      %v4999 = vrot.slane %v4361, 7
      %v5000 = vor.u32 %v4998, %v4999
      %v5001 = vsel %vm3221, %v4997, %v5000
      %v5002 = vrot.slane %v5000, 4
      %v5004 = vshrl.u32 %v4848, 16
      %v5006 = vrot.slane %v5004, 6
      %v5007 = vshll.u32 %v4848, 16
      %v5009 = vrot.slane %v5007, 7
      %v5010 = vor.u32 %v5006, %v5009
      %v5011 = vsel %vm3221, %v5002, %v5010
      %v5013 = vshrl.u32 %v4849, 16
      %v5015 = vrot.slane %v5013, 6
      %v5016 = vshll.u32 %v4849, 16
      %v5018 = vrot.slane %v5016, 7
      %v5019 = vor.u32 %v5015, %v5018
      %v5020 = vrot.slane %v5019, 4
      %v5021 = vrot.slane %v4389, 6
      %v5022 = vrot.slane %v4385, 7
      %v5023 = vor.u32 %v5021, %v5022
      %v5024 = vsel %vm3221, %v5020, %v5023
      %v5025 = vrot.slane %v5023, 4
      %v5027 = vshrl.u32 %v4850, 16
      %v5029 = vrot.slane %v5027, 6
      %v5030 = vshll.u32 %v4850, 16
      %v5032 = vrot.slane %v5030, 7
      %v5033 = vor.u32 %v5029, %v5032
      %v5034 = vsel %vm3221, %v5025, %v5033
      %s5035 = scalar_lea.vmem %s1, 68
      %v5036 = vld [vmem:[%s5035] sm:$0xf]
      %v5037 = vunpack.c.l.b16 %v4863
      %v5038 = vunpack.c.l.b16 %v4873
      %v5039 = vunpack.c.l.b16 %v4886
      %v5040 = vunpack.c.l.b16 %v4896
      %v5041 = vunpack.c.l.b16 %v4909
      %v5042 = vunpack.c.l.b16 %v4919
      %v5043 = vunpack.c.l.b16 %v4932
      %v5044 = vunpack.c.l.b16 %v4942
      %v5045 = vunpack.c.l.b16 %v4955
      %v5046 = vunpack.c.l.b16 %v4965
      %v5047 = vunpack.c.l.b16 %v4978
      %v5048 = vunpack.c.l.b16 %v4988
      %v5049 = vunpack.c.l.b16 %v5001
      %v5050 = vunpack.c.l.b16 %v5011
      %v5051 = vunpack.c.l.b16 %v5024
      %v5052 = vunpack.c.l.b16 %v5034
      %v5053 = vpack.c.b16 %v5038, %v5037
      %v5054 = vpack.c.b16 %v5040, %v5039
      %v5055 = vpack.c.b16 %v5042, %v5041
      %v5056 = vpack.c.b16 %v5044, %v5043
      %v5057 = vpack.c.b16 %v5046, %v5045
      %v5058 = vpack.c.b16 %v5048, %v5047
      %v5059 = vpack.c.b16 %v5050, %v5049
      %v5060 = vpack.c.b16 %v5052, %v5051
      %v5062 = vsel %vm622, %v5053, 0
      %v5065 = vsel %vm622, %v5054, 0
      %v5068 = vsel %vm622, %v5055, 0
      %v5071 = vsel %vm622, %v5056, 0
      %v5074 = vsel %vm622, %v5057, 0
      %v5077 = vsel %vm622, %v5058, 0
      %v5080 = vsel %vm622, %v5059, 0
      %v5083 = vsel %vm622, %v5060, 0
      %v5086 = vsel %vm647, %v5036, 0
      %5088 = vmatpush.bf16.msra.mxu0 0
      %5089 = vmatpush.bf16.msra.mxu0 0
      %5090 = vmatpush.bf16.msra.mxu0 0
      %5091 = vmatpush.bf16.msra.mxu0 0
      %5092 = vmatpush.bf16.msra.mxu0 0
      %5093 = vmatpush.bf16.msra.mxu0 0
      %5094 = vmatpush.bf16.msra.mxu0 0
      %5095 = vmatpush.bf16.msra.mxu0 %v5086
      %5096 = vmatmul.bf16.gmra.mxu0 %v5062
      %v5097 = vpop.f32.mrf.mxu0
      %v5098 = vadd.f32 0.0, %v5097
      %v5099 = vpop.f32.mrf.mxu0
      %v5100 = vadd.f32 0.0, %v5099
      %5101 = vmatmul.bf16.gmra.mxu0 %v5065
      %v5102 = vpop.f32.mrf.mxu0
      %v5103 = vadd.f32 0.0, %v5102
      %v5104 = vpop.f32.mrf.mxu0
      %v5105 = vadd.f32 0.0, %v5104
      %5106 = vmatmul.bf16.gmra.mxu0 %v5068
      %v5107 = vpop.f32.mrf.mxu0
      %v5108 = vadd.f32 0.0, %v5107
      %v5109 = vpop.f32.mrf.mxu0
      %v5110 = vadd.f32 0.0, %v5109
      %5111 = vmatmul.bf16.gmra.mxu0 %v5071
      %v5112 = vpop.f32.mrf.mxu0
      %v5113 = vadd.f32 0.0, %v5112
      %v5114 = vpop.f32.mrf.mxu0
      %v5115 = vadd.f32 0.0, %v5114
      %5116 = vmatmul.bf16.gmra.mxu0 %v5074
      %v5117 = vpop.f32.mrf.mxu0
      %v5118 = vadd.f32 0.0, %v5117
      %v5119 = vpop.f32.mrf.mxu0
      %v5120 = vadd.f32 0.0, %v5119
      %5121 = vmatmul.bf16.gmra.mxu0 %v5077
      %v5122 = vpop.f32.mrf.mxu0
      %v5123 = vadd.f32 0.0, %v5122
      %v5124 = vpop.f32.mrf.mxu0
      %v5125 = vadd.f32 0.0, %v5124
      %5126 = vmatmul.bf16.gmra.mxu0 %v5080
      %v5127 = vpop.f32.mrf.mxu0
      %v5128 = vadd.f32 0.0, %v5127
      %v5129 = vpop.f32.mrf.mxu0
      %v5130 = vadd.f32 0.0, %v5129
      %5131 = vmatmul.bf16.gmra.mxu0 %v5083
      %v5132 = vpop.f32.mrf.mxu0
      %v5133 = vadd.f32 0.0, %v5132
      %v5134 = vpop.f32.mrf.mxu0
      %v5135 = vadd.f32 0.0, %v5134
      %5136 = vdwg.mxu0
      %v5137 = vadd.f32 %v4819, %v5098
      %v5138 = vadd.f32 %v4820, %v5100
      %v5139 = vadd.f32 %v4821, %v5103
      %v5140 = vadd.f32 %v4822, %v5105
      %v5141 = vadd.f32 %v4823, %v5108
      %v5142 = vadd.f32 %v4824, %v5110
      %v5143 = vadd.f32 %v4825, %v5113
      %v5144 = vadd.f32 %v4826, %v5115
      %v5145 = vadd.f32 %v4827, %v5118
      %v5146 = vadd.f32 %v4828, %v5120
      %v5147 = vadd.f32 %v4829, %v5123
      %v5148 = vadd.f32 %v4830, %v5125
      %v5149 = vadd.f32 %v4831, %v5128
      %v5150 = vadd.f32 %v4832, %v5130
      %v5151 = vadd.f32 %v4833, %v5133
      %v5152 = vadd.f32 %v4834, %v5135
      %s5153 = scalar_lea.vmem %s2, 1
      %v5154 = vld [vmem:[%s5153] sm:$0x1]
      %v5156 = vperm.slane %v5154, 0
      %v5158 = vadd.f32 %v5137, %v5156
      %v5159 = vadd.f32 %v5138, %v5156
      %v5160 = vadd.f32 %v5139, %v5156
      %v5161 = vadd.f32 %v5140, %v5156
      %v5162 = vadd.f32 %v5141, %v5156
      %v5163 = vadd.f32 %v5142, %v5156
      %v5164 = vadd.f32 %v5143, %v5156
      %v5165 = vadd.f32 %v5144, %v5156
      %v5166 = vadd.f32 %v5145, %v5156
      %v5167 = vadd.f32 %v5146, %v5156
      %v5168 = vadd.f32 %v5147, %v5156
      %v5169 = vadd.f32 %v5148, %v5156
      %v5170 = vadd.f32 %v5149, %v5156
      %v5171 = vadd.f32 %v5150, %v5156
      %v5172 = vadd.f32 %v5151, %v5156
      %v5173 = vadd.f32 %v5152, %v5156
      %v5174 = vmax.f32 %v5158, 0.0
      %v5175 = vmax.f32 %v5159, 0.0
      %v5176 = vmax.f32 %v5160, 0.0
      %v5177 = vmax.f32 %v5161, 0.0
      %v5178 = vmax.f32 %v5162, 0.0
      %v5179 = vmax.f32 %v5163, 0.0
      %v5180 = vmax.f32 %v5164, 0.0
      %v5181 = vmax.f32 %v5165, 0.0
      %v5182 = vmax.f32 %v5166, 0.0
      %v5183 = vmax.f32 %v5167, 0.0
      %v5184 = vmax.f32 %v5168, 0.0
      %v5185 = vmax.f32 %v5169, 0.0
      %v5186 = vmax.f32 %v5170, 0.0
      %v5187 = vmax.f32 %v5171, 0.0
      %v5188 = vmax.f32 %v5172, 0.0
      %v5189 = vmax.f32 %v5173, 0.0
      %v5190 = vld [vmem:[%s234] sm:$0xf]
      %v5191 = vld [vmem:[%s234 + $0x4] sm:$0xf]
      %v5192 = vld [vmem:[%s234 + $0xc] sm:$0xf]
      %v5193 = vld [vmem:[%s234 + $0x10] sm:$0xf]
      %v5194 = vld [vmem:[%s234 + $0x18] sm:$0xf]
      %v5195 = vld [vmem:[%s234 + $0x1c] sm:$0xf]
      %v5196 = vld [vmem:[%s234 + $0x24] sm:$0xf]
      %v5197 = vld [vmem:[%s234 + $0x28] sm:$0xf]
      %v5198 = vld [vmem:[%s234 + $0x30] sm:$0xf]
      %v5199 = vld [vmem:[%s234 + $0x34] sm:$0xf]
      %v5200 = vld [vmem:[%s234 + $0x3c] sm:$0xf]
      %v5201 = vld [vmem:[%s234 + $0x40] sm:$0xf]
      %v5202 = vld [vmem:[%s234 + $0x48] sm:$0xf]
      %v5203 = vld [vmem:[%s234 + $0x4c] sm:$0xf]
      %v5204 = vld [vmem:[%s234 + $0x54] sm:$0xf]
      %v5205 = vld [vmem:[%s234 + $0x58] sm:$0xf]
      %s5206 = scalar_lea.vmem %s1, 72
      %v5207 = vld [vmem:[%s5206] sm:$0xf]
      %v5208 = vld [vmem:[%s234] sm:$0xe]
      %v5209 = vld [vmem:[%s234 + $0x8] sm:$0x3]
      %v5210 = vld [vmem:[%s234 + $0xc] sm:$0xe]
      %v5211 = vld [vmem:[%s234 + $0x14] sm:$0x3]
      %v5212 = vld [vmem:[%s234 + $0x18] sm:$0xe]
      %v5213 = vld [vmem:[%s234 + $0x20] sm:$0x3]
      %v5214 = vld [vmem:[%s234 + $0x24] sm:$0xe]
      %v5215 = vld [vmem:[%s234 + $0x2c] sm:$0x3]
      %v5216 = vld [vmem:[%s234 + $0x30] sm:$0xe]
      %v5217 = vld [vmem:[%s234 + $0x38] sm:$0x3]
      %v5218 = vld [vmem:[%s234 + $0x3c] sm:$0xe]
      %v5219 = vld [vmem:[%s234 + $0x44] sm:$0x3]
      %v5220 = vld [vmem:[%s234 + $0x48] sm:$0xe]
      %v5221 = vld [vmem:[%s234 + $0x50] sm:$0x3]
      %v5222 = vld [vmem:[%s234 + $0x54] sm:$0xe]
      %v5223 = vld [vmem:[%s234 + $0x5c] sm:$0x3]
      %v5225 = vshrl.u32 %v5208, 16
      %v5227 = vrot.slane %v5225, 5
      %v5228 = vshll.u32 %v5208, 16
      %v5230 = vrot.slane %v5228, 6
      %v5231 = vor.u32 %v5227, %v5230
      %v5232 = vrot.slane %v5231, 4
      %v5234 = vshrl.u32 %v5191, 16
      %v5236 = vrot.slane %v5234, 5
      %v5237 = vshll.u32 %v5191, 16
      %v5239 = vrot.slane %v5237, 6
      %v5240 = vor.u32 %v5236, %v5239
      %v5241 = vsel %vm371, %v5232, %v5240
      %v5242 = vrot.slane %v5240, 4
      %v5244 = vshrl.u32 %v5209, 16
      %v5246 = vrot.slane %v5244, 5
      %v5247 = vshll.u32 %v5209, 16
      %v5249 = vrot.slane %v5247, 6
      %v5250 = vor.u32 %v5246, %v5249
      %v5251 = vsel %vm371, %v5242, %v5250
      %v5253 = vshrl.u32 %v5210, 16
      %v5255 = vrot.slane %v5253, 5
      %v5256 = vshll.u32 %v5210, 16
      %v5258 = vrot.slane %v5256, 6
      %v5259 = vor.u32 %v5255, %v5258
      %v5260 = vrot.slane %v5259, 4
      %v5262 = vshrl.u32 %v5193, 16
      %v5264 = vrot.slane %v5262, 5
      %v5265 = vshll.u32 %v5193, 16
      %v5267 = vrot.slane %v5265, 6
      %v5268 = vor.u32 %v5264, %v5267
      %v5269 = vsel %vm371, %v5260, %v5268
      %v5270 = vrot.slane %v5268, 4
      %v5272 = vshrl.u32 %v5211, 16
      %v5274 = vrot.slane %v5272, 5
      %v5275 = vshll.u32 %v5211, 16
      %v5277 = vrot.slane %v5275, 6
      %v5278 = vor.u32 %v5274, %v5277
      %v5279 = vsel %vm371, %v5270, %v5278
      %v5281 = vshrl.u32 %v5212, 16
      %v5283 = vrot.slane %v5281, 5
      %v5284 = vshll.u32 %v5212, 16
      %v5286 = vrot.slane %v5284, 6
      %v5287 = vor.u32 %v5283, %v5286
      %v5288 = vrot.slane %v5287, 4
      %v5290 = vshrl.u32 %v5195, 16
      %v5292 = vrot.slane %v5290, 5
      %v5293 = vshll.u32 %v5195, 16
      %v5295 = vrot.slane %v5293, 6
      %v5296 = vor.u32 %v5292, %v5295
      %v5297 = vsel %vm371, %v5288, %v5296
      %v5298 = vrot.slane %v5296, 4
      %v5300 = vshrl.u32 %v5213, 16
      %v5302 = vrot.slane %v5300, 5
      %v5303 = vshll.u32 %v5213, 16
      %v5305 = vrot.slane %v5303, 6
      %v5306 = vor.u32 %v5302, %v5305
      %v5307 = vsel %vm371, %v5298, %v5306
      %v5309 = vshrl.u32 %v5214, 16
      %v5311 = vrot.slane %v5309, 5
      %v5312 = vshll.u32 %v5214, 16
      %v5314 = vrot.slane %v5312, 6
      %v5315 = vor.u32 %v5311, %v5314
      %v5316 = vrot.slane %v5315, 4
      %v5318 = vshrl.u32 %v5197, 16
      %v5320 = vrot.slane %v5318, 5
      %v5321 = vshll.u32 %v5197, 16
      %v5323 = vrot.slane %v5321, 6
      %v5324 = vor.u32 %v5320, %v5323
      %v5325 = vsel %vm371, %v5316, %v5324
      %v5326 = vrot.slane %v5324, 4
      %v5328 = vshrl.u32 %v5215, 16
      %v5330 = vrot.slane %v5328, 5
      %v5331 = vshll.u32 %v5215, 16
      %v5333 = vrot.slane %v5331, 6
      %v5334 = vor.u32 %v5330, %v5333
      %v5335 = vsel %vm371, %v5326, %v5334
      %v5337 = vshrl.u32 %v5216, 16
      %v5339 = vrot.slane %v5337, 5
      %v5340 = vshll.u32 %v5216, 16
      %v5342 = vrot.slane %v5340, 6
      %v5343 = vor.u32 %v5339, %v5342
      %v5344 = vrot.slane %v5343, 4
      %v5346 = vshrl.u32 %v5199, 16
      %v5348 = vrot.slane %v5346, 5
      %v5349 = vshll.u32 %v5199, 16
      %v5351 = vrot.slane %v5349, 6
      %v5352 = vor.u32 %v5348, %v5351
      %v5353 = vsel %vm371, %v5344, %v5352
      %v5354 = vrot.slane %v5352, 4
      %v5356 = vshrl.u32 %v5217, 16
      %v5358 = vrot.slane %v5356, 5
      %v5359 = vshll.u32 %v5217, 16
      %v5361 = vrot.slane %v5359, 6
      %v5362 = vor.u32 %v5358, %v5361
      %v5363 = vsel %vm371, %v5354, %v5362
      %v5365 = vshrl.u32 %v5218, 16
      %v5367 = vrot.slane %v5365, 5
      %v5368 = vshll.u32 %v5218, 16
      %v5370 = vrot.slane %v5368, 6
      %v5371 = vor.u32 %v5367, %v5370
      %v5372 = vrot.slane %v5371, 4
      %v5374 = vshrl.u32 %v5201, 16
      %v5376 = vrot.slane %v5374, 5
      %v5377 = vshll.u32 %v5201, 16
      %v5379 = vrot.slane %v5377, 6
      %v5380 = vor.u32 %v5376, %v5379
      %v5381 = vsel %vm371, %v5372, %v5380
      %v5382 = vrot.slane %v5380, 4
      %v5384 = vshrl.u32 %v5219, 16
      %v5386 = vrot.slane %v5384, 5
      %v5387 = vshll.u32 %v5219, 16
      %v5389 = vrot.slane %v5387, 6
      %v5390 = vor.u32 %v5386, %v5389
      %v5391 = vsel %vm371, %v5382, %v5390
      %v5393 = vshrl.u32 %v5220, 16
      %v5395 = vrot.slane %v5393, 5
      %v5396 = vshll.u32 %v5220, 16
      %v5398 = vrot.slane %v5396, 6
      %v5399 = vor.u32 %v5395, %v5398
      %v5400 = vrot.slane %v5399, 4
      %v5402 = vshrl.u32 %v5203, 16
      %v5404 = vrot.slane %v5402, 5
      %v5405 = vshll.u32 %v5203, 16
      %v5407 = vrot.slane %v5405, 6
      %v5408 = vor.u32 %v5404, %v5407
      %v5409 = vsel %vm371, %v5400, %v5408
      %v5410 = vrot.slane %v5408, 4
      %v5412 = vshrl.u32 %v5221, 16
      %v5414 = vrot.slane %v5412, 5
      %v5415 = vshll.u32 %v5221, 16
      %v5417 = vrot.slane %v5415, 6
      %v5418 = vor.u32 %v5414, %v5417
      %v5419 = vsel %vm371, %v5410, %v5418
      %v5421 = vshrl.u32 %v5222, 16
      %v5423 = vrot.slane %v5421, 5
      %v5424 = vshll.u32 %v5222, 16
      %v5426 = vrot.slane %v5424, 6
      %v5427 = vor.u32 %v5423, %v5426
      %v5428 = vrot.slane %v5427, 4
      %v5430 = vshrl.u32 %v5205, 16
      %v5432 = vrot.slane %v5430, 5
      %v5433 = vshll.u32 %v5205, 16
      %v5435 = vrot.slane %v5433, 6
      %v5436 = vor.u32 %v5432, %v5435
      %v5437 = vsel %vm371, %v5428, %v5436
      %v5438 = vrot.slane %v5436, 4
      %v5440 = vshrl.u32 %v5223, 16
      %v5442 = vrot.slane %v5440, 5
      %v5443 = vshll.u32 %v5223, 16
      %v5445 = vrot.slane %v5443, 6
      %v5446 = vor.u32 %v5442, %v5445
      %v5447 = vsel %vm371, %v5438, %v5446
      %s5448 = scalar_lea.vmem %s1, 76
      %v5449 = vld [vmem:[%s5448] sm:$0xf]
      %v5450 = vunpack.c.l.b16 %v5241
      %v5451 = vunpack.c.l.b16 %v5251
      %v5452 = vunpack.c.l.b16 %v5269
      %v5453 = vunpack.c.l.b16 %v5279
      %v5454 = vunpack.c.l.b16 %v5297
      %v5455 = vunpack.c.l.b16 %v5307
      %v5456 = vunpack.c.l.b16 %v5325
      %v5457 = vunpack.c.l.b16 %v5335
      %v5458 = vunpack.c.l.b16 %v5353
      %v5459 = vunpack.c.l.b16 %v5363
      %v5460 = vunpack.c.l.b16 %v5381
      %v5461 = vunpack.c.l.b16 %v5391
      %v5462 = vunpack.c.l.b16 %v5409
      %v5463 = vunpack.c.l.b16 %v5419
      %v5464 = vunpack.c.l.b16 %v5437
      %v5465 = vunpack.c.l.b16 %v5447
      %v5466 = vpack.c.b16 %v5451, %v5450
      %v5467 = vpack.c.b16 %v5453, %v5452
      %v5468 = vpack.c.b16 %v5455, %v5454
      %v5469 = vpack.c.b16 %v5457, %v5456
      %v5470 = vpack.c.b16 %v5459, %v5458
      %v5471 = vpack.c.b16 %v5461, %v5460
      %v5472 = vpack.c.b16 %v5463, %v5462
      %v5473 = vpack.c.b16 %v5465, %v5464
      %v5475 = vsel %vm622, %v5466, 0
      %v5478 = vsel %vm622, %v5467, 0
      %v5481 = vsel %vm622, %v5468, 0
      %v5484 = vsel %vm622, %v5469, 0
      %v5487 = vsel %vm622, %v5470, 0
      %v5490 = vsel %vm622, %v5471, 0
      %v5493 = vsel %vm622, %v5472, 0
      %v5496 = vsel %vm622, %v5473, 0
      %v5499 = vsel %vm647, %v5449, 0
      %5501 = vmatpush.bf16.msra.mxu0 0
      %5502 = vmatpush.bf16.msra.mxu0 0
      %5503 = vmatpush.bf16.msra.mxu0 0
      %5504 = vmatpush.bf16.msra.mxu0 0
      %5505 = vmatpush.bf16.msra.mxu0 0
      %5506 = vmatpush.bf16.msra.mxu0 0
      %5507 = vmatpush.bf16.msra.mxu0 0
      %5508 = vmatpush.bf16.msra.mxu0 %v5499
      %5509 = vmatmul.bf16.gmra.mxu0 %v5475
      %v5510 = vpop.f32.mrf.mxu0
      %v5511 = vadd.f32 0.0, %v5510
      %v5512 = vpop.f32.mrf.mxu0
      %v5513 = vadd.f32 0.0, %v5512
      %5514 = vmatmul.bf16.gmra.mxu0 %v5478
      %v5515 = vpop.f32.mrf.mxu0
      %v5516 = vadd.f32 0.0, %v5515
      %v5517 = vpop.f32.mrf.mxu0
      %v5518 = vadd.f32 0.0, %v5517
      %5519 = vmatmul.bf16.gmra.mxu0 %v5481
      %v5520 = vpop.f32.mrf.mxu0
      %v5521 = vadd.f32 0.0, %v5520
      %v5522 = vpop.f32.mrf.mxu0
      %v5523 = vadd.f32 0.0, %v5522
      %5524 = vmatmul.bf16.gmra.mxu0 %v5484
      %v5525 = vpop.f32.mrf.mxu0
      %v5526 = vadd.f32 0.0, %v5525
      %v5527 = vpop.f32.mrf.mxu0
      %v5528 = vadd.f32 0.0, %v5527
      %5529 = vmatmul.bf16.gmra.mxu0 %v5487
      %v5530 = vpop.f32.mrf.mxu0
      %v5531 = vadd.f32 0.0, %v5530
      %v5532 = vpop.f32.mrf.mxu0
      %v5533 = vadd.f32 0.0, %v5532
      %5534 = vmatmul.bf16.gmra.mxu0 %v5490
      %v5535 = vpop.f32.mrf.mxu0
      %v5536 = vadd.f32 0.0, %v5535
      %v5537 = vpop.f32.mrf.mxu0
      %v5538 = vadd.f32 0.0, %v5537
      %5539 = vmatmul.bf16.gmra.mxu0 %v5493
      %v5540 = vpop.f32.mrf.mxu0
      %v5541 = vadd.f32 0.0, %v5540
      %v5542 = vpop.f32.mrf.mxu0
      %v5543 = vadd.f32 0.0, %v5542
      %5544 = vmatmul.bf16.gmra.mxu0 %v5496
      %v5545 = vpop.f32.mrf.mxu0
      %v5546 = vadd.f32 0.0, %v5545
      %v5547 = vpop.f32.mrf.mxu0
      %v5548 = vadd.f32 0.0, %v5547
      %5549 = vdwg.mxu0
      %v5566 = vunpack.c.l.b16 %v5190
      %v5567 = vunpack.c.l.b16 %v5191
      %v5568 = vunpack.c.l.b16 %v5192
      %v5569 = vunpack.c.l.b16 %v5193
      %v5570 = vunpack.c.l.b16 %v5194
      %v5571 = vunpack.c.l.b16 %v5195
      %v5572 = vunpack.c.l.b16 %v5196
      %v5573 = vunpack.c.l.b16 %v5197
      %v5574 = vunpack.c.l.b16 %v5198
      %v5575 = vunpack.c.l.b16 %v5199
      %v5576 = vunpack.c.l.b16 %v5200
      %v5577 = vunpack.c.l.b16 %v5201
      %v5578 = vunpack.c.l.b16 %v5202
      %v5579 = vunpack.c.l.b16 %v5203
      %v5580 = vunpack.c.l.b16 %v5204
      %v5581 = vunpack.c.l.b16 %v5205
      %v5582 = vpack.c.b16 %v5567, %v5566
      %v5583 = vpack.c.b16 %v5569, %v5568
      %v5584 = vpack.c.b16 %v5571, %v5570
      %v5585 = vpack.c.b16 %v5573, %v5572
      %v5586 = vpack.c.b16 %v5575, %v5574
      %v5587 = vpack.c.b16 %v5577, %v5576
      %v5588 = vpack.c.b16 %v5579, %v5578
      %v5589 = vpack.c.b16 %v5581, %v5580
      %v5591 = vsel %vm622, %v5582, 0
      %v5594 = vsel %vm622, %v5583, 0
      %v5597 = vsel %vm622, %v5584, 0
      %v5600 = vsel %vm622, %v5585, 0
      %v5603 = vsel %vm622, %v5586, 0
      %v5606 = vsel %vm622, %v5587, 0
      %v5609 = vsel %vm622, %v5588, 0
      %v5612 = vsel %vm622, %v5589, 0
      %v5615 = vsel %vm647, %v5207, 0
      %5617 = vmatpush.bf16.msra.mxu0 0
      %5618 = vmatpush.bf16.msra.mxu0 0
      %5619 = vmatpush.bf16.msra.mxu0 0
      %5620 = vmatpush.bf16.msra.mxu0 0
      %5621 = vmatpush.bf16.msra.mxu0 0
      %5622 = vmatpush.bf16.msra.mxu0 0
      %5623 = vmatpush.bf16.msra.mxu0 0
      %5624 = vmatpush.bf16.msra.mxu0 %v5615
      %5625 = vmatmul.bf16.gmra.mxu0 %v5591
      %v5626 = vpop.f32.mrf.mxu0
      %v5627 = vadd.f32 %v5511, %v5626
      %v5628 = vpop.f32.mrf.mxu0
      %v5629 = vadd.f32 %v5513, %v5628
      %5630 = vmatmul.bf16.gmra.mxu0 %v5594
      %v5631 = vpop.f32.mrf.mxu0
      %v5632 = vadd.f32 %v5516, %v5631
      %v5633 = vpop.f32.mrf.mxu0
      %v5634 = vadd.f32 %v5518, %v5633
      %5635 = vmatmul.bf16.gmra.mxu0 %v5597
      %v5636 = vpop.f32.mrf.mxu0
      %v5637 = vadd.f32 %v5521, %v5636
      %v5638 = vpop.f32.mrf.mxu0
      %v5639 = vadd.f32 %v5523, %v5638
      %5640 = vmatmul.bf16.gmra.mxu0 %v5600
      %v5641 = vpop.f32.mrf.mxu0
      %v5642 = vadd.f32 %v5526, %v5641
      %v5643 = vpop.f32.mrf.mxu0
      %v5644 = vadd.f32 %v5528, %v5643
      %5645 = vmatmul.bf16.gmra.mxu0 %v5603
      %v5646 = vpop.f32.mrf.mxu0
      %v5647 = vadd.f32 %v5531, %v5646
      %v5648 = vpop.f32.mrf.mxu0
      %v5649 = vadd.f32 %v5533, %v5648
      %5650 = vmatmul.bf16.gmra.mxu0 %v5606
      %v5651 = vpop.f32.mrf.mxu0
      %v5652 = vadd.f32 %v5536, %v5651
      %v5653 = vpop.f32.mrf.mxu0
      %v5654 = vadd.f32 %v5538, %v5653
      %5655 = vmatmul.bf16.gmra.mxu0 %v5609
      %v5656 = vpop.f32.mrf.mxu0
      %v5657 = vadd.f32 %v5541, %v5656
      %v5658 = vpop.f32.mrf.mxu0
      %v5659 = vadd.f32 %v5543, %v5658
      %5660 = vmatmul.bf16.gmra.mxu0 %v5612
      %v5661 = vpop.f32.mrf.mxu0
      %v5662 = vadd.f32 %v5546, %v5661
      %v5663 = vpop.f32.mrf.mxu0
      %v5664 = vadd.f32 %v5548, %v5663
      %5665 = vdwg.mxu0
      %v5666 = vld [vmem:[%s234] sm:$0x8]
      %v5667 = vld [vmem:[%s234 + $0x8] sm:$0x7]
      %v5668 = vld [vmem:[%s234 + $0xc] sm:$0x8]
      %v5669 = vld [vmem:[%s234 + $0x14] sm:$0x7]
      %v5670 = vld [vmem:[%s234 + $0x18] sm:$0x8]
      %v5671 = vld [vmem:[%s234 + $0x20] sm:$0x7]
      %v5672 = vld [vmem:[%s234 + $0x24] sm:$0x8]
      %v5673 = vld [vmem:[%s234 + $0x2c] sm:$0x7]
      %v5674 = vld [vmem:[%s234 + $0x30] sm:$0x8]
      %v5675 = vld [vmem:[%s234 + $0x38] sm:$0x7]
      %v5676 = vld [vmem:[%s234 + $0x3c] sm:$0x8]
      %v5677 = vld [vmem:[%s234 + $0x44] sm:$0x7]
      %v5678 = vld [vmem:[%s234 + $0x48] sm:$0x8]
      %v5679 = vld [vmem:[%s234 + $0x50] sm:$0x7]
      %v5680 = vld [vmem:[%s234 + $0x54] sm:$0x8]
      %v5681 = vld [vmem:[%s234 + $0x5c] sm:$0x7]
      %vm5698 = vcmask 1040384
      %vm5699 = vcmask 1044484
      %vm5700 = vmor %vm5698, %vm5699
      %v5701 = vrot.slane %v5666, 7
      %v5702 = vrot.slane %v5701, 4
      %v5703 = vrot.slane %v5191, 7
      %v5704 = vsel %vm5700, %v5702, %v5703
      %v5705 = vrot.slane %v5703, 4
      %v5706 = vrot.slane %v5667, 7
      %v5707 = vsel %vm5700, %v5705, %v5706
      %v5708 = vrot.slane %v5668, 7
      %v5709 = vrot.slane %v5708, 4
      %v5710 = vrot.slane %v5193, 7
      %v5711 = vsel %vm5700, %v5709, %v5710
      %v5712 = vrot.slane %v5710, 4
      %v5713 = vrot.slane %v5669, 7
      %v5714 = vsel %vm5700, %v5712, %v5713
      %v5715 = vrot.slane %v5670, 7
      %v5716 = vrot.slane %v5715, 4
      %v5717 = vrot.slane %v5195, 7
      %v5718 = vsel %vm5700, %v5716, %v5717
      %v5719 = vrot.slane %v5717, 4
      %v5720 = vrot.slane %v5671, 7
      %v5721 = vsel %vm5700, %v5719, %v5720
      %v5722 = vrot.slane %v5672, 7
      %v5723 = vrot.slane %v5722, 4
      %v5724 = vrot.slane %v5197, 7
      %v5725 = vsel %vm5700, %v5723, %v5724
      %v5726 = vrot.slane %v5724, 4
      %v5727 = vrot.slane %v5673, 7
      %v5728 = vsel %vm5700, %v5726, %v5727
      %v5729 = vrot.slane %v5674, 7
      %v5730 = vrot.slane %v5729, 4
      %v5731 = vrot.slane %v5199, 7
      %v5732 = vsel %vm5700, %v5730, %v5731
      %v5733 = vrot.slane %v5731, 4
      %v5734 = vrot.slane %v5675, 7
      %v5735 = vsel %vm5700, %v5733, %v5734
      %v5736 = vrot.slane %v5676, 7
      %v5737 = vrot.slane %v5736, 4
      %v5738 = vrot.slane %v5201, 7
      %v5739 = vsel %vm5700, %v5737, %v5738
      %v5740 = vrot.slane %v5738, 4
      %v5741 = vrot.slane %v5677, 7
      %v5742 = vsel %vm5700, %v5740, %v5741
      %v5743 = vrot.slane %v5678, 7
      %v5744 = vrot.slane %v5743, 4
      %v5745 = vrot.slane %v5203, 7
      %v5746 = vsel %vm5700, %v5744, %v5745
      %v5747 = vrot.slane %v5745, 4
      %v5748 = vrot.slane %v5679, 7
      %v5749 = vsel %vm5700, %v5747, %v5748
      %v5750 = vrot.slane %v5680, 7
      %v5751 = vrot.slane %v5750, 4
      %v5752 = vrot.slane %v5205, 7
      %v5753 = vsel %vm5700, %v5751, %v5752
      %v5754 = vrot.slane %v5752, 4
      %v5755 = vrot.slane %v5681, 7
      %v5756 = vsel %vm5700, %v5754, %v5755
      %s5757 = scalar_lea.vmem %s1, 80
      %v5758 = vld [vmem:[%s5757] sm:$0xf]
      %v5759 = vunpack.c.l.b16 %v5704
      %v5760 = vunpack.c.l.b16 %v5707
      %v5761 = vunpack.c.l.b16 %v5711
      %v5762 = vunpack.c.l.b16 %v5714
      %v5763 = vunpack.c.l.b16 %v5718
      %v5764 = vunpack.c.l.b16 %v5721
      %v5765 = vunpack.c.l.b16 %v5725
      %v5766 = vunpack.c.l.b16 %v5728
      %v5767 = vunpack.c.l.b16 %v5732
      %v5768 = vunpack.c.l.b16 %v5735
      %v5769 = vunpack.c.l.b16 %v5739
      %v5770 = vunpack.c.l.b16 %v5742
      %v5771 = vunpack.c.l.b16 %v5746
      %v5772 = vunpack.c.l.b16 %v5749
      %v5773 = vunpack.c.l.b16 %v5753
      %v5774 = vunpack.c.l.b16 %v5756
      %v5775 = vpack.c.b16 %v5760, %v5759
      %v5776 = vpack.c.b16 %v5762, %v5761
      %v5777 = vpack.c.b16 %v5764, %v5763
      %v5778 = vpack.c.b16 %v5766, %v5765
      %v5779 = vpack.c.b16 %v5768, %v5767
      %v5780 = vpack.c.b16 %v5770, %v5769
      %v5781 = vpack.c.b16 %v5772, %v5771
      %v5782 = vpack.c.b16 %v5774, %v5773
      %v5784 = vsel %vm622, %v5775, 0
      %v5787 = vsel %vm622, %v5776, 0
      %v5790 = vsel %vm622, %v5777, 0
      %v5793 = vsel %vm622, %v5778, 0
      %v5796 = vsel %vm622, %v5779, 0
      %v5799 = vsel %vm622, %v5780, 0
      %v5802 = vsel %vm622, %v5781, 0
      %v5805 = vsel %vm622, %v5782, 0
      %v5808 = vsel %vm647, %v5758, 0
      %5810 = vmatpush.bf16.msra.mxu0 0
      %5811 = vmatpush.bf16.msra.mxu0 0
      %5812 = vmatpush.bf16.msra.mxu0 0
      %5813 = vmatpush.bf16.msra.mxu0 0
      %5814 = vmatpush.bf16.msra.mxu0 0
      %5815 = vmatpush.bf16.msra.mxu0 0
      %5816 = vmatpush.bf16.msra.mxu0 0
      %5817 = vmatpush.bf16.msra.mxu0 %v5808
      %5818 = vmatmul.bf16.gmra.mxu0 %v5784
      %v5819 = vpop.f32.mrf.mxu0
      %v5820 = vadd.f32 0.0, %v5819
      %v5821 = vpop.f32.mrf.mxu0
      %v5822 = vadd.f32 0.0, %v5821
      %5823 = vmatmul.bf16.gmra.mxu0 %v5787
      %v5824 = vpop.f32.mrf.mxu0
      %v5825 = vadd.f32 0.0, %v5824
      %v5826 = vpop.f32.mrf.mxu0
      %v5827 = vadd.f32 0.0, %v5826
      %5828 = vmatmul.bf16.gmra.mxu0 %v5790
      %v5829 = vpop.f32.mrf.mxu0
      %v5830 = vadd.f32 0.0, %v5829
      %v5831 = vpop.f32.mrf.mxu0
      %v5832 = vadd.f32 0.0, %v5831
      %5833 = vmatmul.bf16.gmra.mxu0 %v5793
      %v5834 = vpop.f32.mrf.mxu0
      %v5835 = vadd.f32 0.0, %v5834
      %v5836 = vpop.f32.mrf.mxu0
      %v5837 = vadd.f32 0.0, %v5836
      %5838 = vmatmul.bf16.gmra.mxu0 %v5796
      %v5839 = vpop.f32.mrf.mxu0
      %v5840 = vadd.f32 0.0, %v5839
      %v5841 = vpop.f32.mrf.mxu0
      %v5842 = vadd.f32 0.0, %v5841
      %5843 = vmatmul.bf16.gmra.mxu0 %v5799
      %v5844 = vpop.f32.mrf.mxu0
      %v5845 = vadd.f32 0.0, %v5844
      %v5846 = vpop.f32.mrf.mxu0
      %v5847 = vadd.f32 0.0, %v5846
      %5848 = vmatmul.bf16.gmra.mxu0 %v5802
      %v5849 = vpop.f32.mrf.mxu0
      %v5850 = vadd.f32 0.0, %v5849
      %v5851 = vpop.f32.mrf.mxu0
      %v5852 = vadd.f32 0.0, %v5851
      %5853 = vmatmul.bf16.gmra.mxu0 %v5805
      %v5854 = vpop.f32.mrf.mxu0
      %v5855 = vadd.f32 0.0, %v5854
      %v5856 = vpop.f32.mrf.mxu0
      %v5857 = vadd.f32 0.0, %v5856
      %5858 = vdwg.mxu0
      %v5859 = vadd.f32 %v5627, %v5820
      %v5860 = vadd.f32 %v5629, %v5822
      %v5861 = vadd.f32 %v5632, %v5825
      %v5862 = vadd.f32 %v5634, %v5827
      %v5863 = vadd.f32 %v5637, %v5830
      %v5864 = vadd.f32 %v5639, %v5832
      %v5865 = vadd.f32 %v5642, %v5835
      %v5866 = vadd.f32 %v5644, %v5837
      %v5867 = vadd.f32 %v5647, %v5840
      %v5868 = vadd.f32 %v5649, %v5842
      %v5869 = vadd.f32 %v5652, %v5845
      %v5870 = vadd.f32 %v5654, %v5847
      %v5871 = vadd.f32 %v5657, %v5850
      %v5872 = vadd.f32 %v5659, %v5852
      %v5873 = vadd.f32 %v5662, %v5855
      %v5874 = vadd.f32 %v5664, %v5857
      %v5875 = vld [vmem:[%s1001] sm:$0xf]
      %v5876 = vld [vmem:[%s1001 + $0x4] sm:$0xf]
      %v5877 = vld [vmem:[%s1001 + $0xc] sm:$0xf]
      %v5878 = vld [vmem:[%s1001 + $0x10] sm:$0xf]
      %v5879 = vld [vmem:[%s1001 + $0x18] sm:$0xf]
      %v5880 = vld [vmem:[%s1001 + $0x1c] sm:$0xf]
      %v5881 = vld [vmem:[%s1001 + $0x24] sm:$0xf]
      %v5882 = vld [vmem:[%s1001 + $0x28] sm:$0xf]
      %v5883 = vld [vmem:[%s1001 + $0x30] sm:$0xf]
      %v5884 = vld [vmem:[%s1001 + $0x34] sm:$0xf]
      %v5885 = vld [vmem:[%s1001 + $0x3c] sm:$0xf]
      %v5886 = vld [vmem:[%s1001 + $0x40] sm:$0xf]
      %v5887 = vld [vmem:[%s1001 + $0x48] sm:$0xf]
      %v5888 = vld [vmem:[%s1001 + $0x4c] sm:$0xf]
      %v5889 = vld [vmem:[%s1001 + $0x54] sm:$0xf]
      %v5890 = vld [vmem:[%s1001 + $0x58] sm:$0xf]
      %s5891 = scalar_lea.vmem %s1, 84
      %v5892 = vld [vmem:[%s5891] sm:$0xf]
      %v5909 = vunpack.c.l.b16 %v5875
      %v5910 = vunpack.c.l.b16 %v5876
      %v5911 = vunpack.c.l.b16 %v5877
      %v5912 = vunpack.c.l.b16 %v5878
      %v5913 = vunpack.c.l.b16 %v5879
      %v5914 = vunpack.c.l.b16 %v5880
      %v5915 = vunpack.c.l.b16 %v5881
      %v5916 = vunpack.c.l.b16 %v5882
      %v5917 = vunpack.c.l.b16 %v5883
      %v5918 = vunpack.c.l.b16 %v5884
      %v5919 = vunpack.c.l.b16 %v5885
      %v5920 = vunpack.c.l.b16 %v5886
      %v5921 = vunpack.c.l.b16 %v5887
      %v5922 = vunpack.c.l.b16 %v5888
      %v5923 = vunpack.c.l.b16 %v5889
      %v5924 = vunpack.c.l.b16 %v5890
      %v5925 = vpack.c.b16 %v5910, %v5909
      %v5926 = vpack.c.b16 %v5912, %v5911
      %v5927 = vpack.c.b16 %v5914, %v5913
      %v5928 = vpack.c.b16 %v5916, %v5915
      %v5929 = vpack.c.b16 %v5918, %v5917
      %v5930 = vpack.c.b16 %v5920, %v5919
      %v5931 = vpack.c.b16 %v5922, %v5921
      %v5932 = vpack.c.b16 %v5924, %v5923
      %v5934 = vsel %vm622, %v5925, 0
      %v5937 = vsel %vm622, %v5926, 0
      %v5940 = vsel %vm622, %v5927, 0
      %v5943 = vsel %vm622, %v5928, 0
      %v5946 = vsel %vm622, %v5929, 0
      %v5949 = vsel %vm622, %v5930, 0
      %v5952 = vsel %vm622, %v5931, 0
      %v5955 = vsel %vm622, %v5932, 0
      %v5958 = vsel %vm647, %v5892, 0
      %5960 = vmatpush.bf16.msra.mxu0 0
      %5961 = vmatpush.bf16.msra.mxu0 0
      %5962 = vmatpush.bf16.msra.mxu0 0
      %5963 = vmatpush.bf16.msra.mxu0 0
      %5964 = vmatpush.bf16.msra.mxu0 0
      %5965 = vmatpush.bf16.msra.mxu0 0
      %5966 = vmatpush.bf16.msra.mxu0 0
      %5967 = vmatpush.bf16.msra.mxu0 %v5958
      %5968 = vmatmul.bf16.gmra.mxu0 %v5934
      %v5969 = vpop.f32.mrf.mxu0
      %v5970 = vadd.f32 0.0, %v5969
      %v5971 = vpop.f32.mrf.mxu0
      %v5972 = vadd.f32 0.0, %v5971
      %5973 = vmatmul.bf16.gmra.mxu0 %v5937
      %v5974 = vpop.f32.mrf.mxu0
      %v5975 = vadd.f32 0.0, %v5974
      %v5976 = vpop.f32.mrf.mxu0
      %v5977 = vadd.f32 0.0, %v5976
      %5978 = vmatmul.bf16.gmra.mxu0 %v5940
      %v5979 = vpop.f32.mrf.mxu0
      %v5980 = vadd.f32 0.0, %v5979
      %v5981 = vpop.f32.mrf.mxu0
      %v5982 = vadd.f32 0.0, %v5981
      %5983 = vmatmul.bf16.gmra.mxu0 %v5943
      %v5984 = vpop.f32.mrf.mxu0
      %v5985 = vadd.f32 0.0, %v5984
      %v5986 = vpop.f32.mrf.mxu0
      %v5987 = vadd.f32 0.0, %v5986
      %5988 = vmatmul.bf16.gmra.mxu0 %v5946
      %v5989 = vpop.f32.mrf.mxu0
      %v5990 = vadd.f32 0.0, %v5989
      %v5991 = vpop.f32.mrf.mxu0
      %v5992 = vadd.f32 0.0, %v5991
      %5993 = vmatmul.bf16.gmra.mxu0 %v5949
      %v5994 = vpop.f32.mrf.mxu0
      %v5995 = vadd.f32 0.0, %v5994
      %v5996 = vpop.f32.mrf.mxu0
      %v5997 = vadd.f32 0.0, %v5996
      %5998 = vmatmul.bf16.gmra.mxu0 %v5952
      %v5999 = vpop.f32.mrf.mxu0
      %v6000 = vadd.f32 0.0, %v5999
      %v6001 = vpop.f32.mrf.mxu0
      %v6002 = vadd.f32 0.0, %v6001
      %6003 = vmatmul.bf16.gmra.mxu0 %v5955
      %v6004 = vpop.f32.mrf.mxu0
      %v6005 = vadd.f32 0.0, %v6004
      %v6006 = vpop.f32.mrf.mxu0
      %v6007 = vadd.f32 0.0, %v6006
      %6008 = vdwg.mxu0
      %v6009 = vadd.f32 %v5859, %v5970
      %v6010 = vadd.f32 %v5860, %v5972
      %v6011 = vadd.f32 %v5861, %v5975
      %v6012 = vadd.f32 %v5862, %v5977
      %v6013 = vadd.f32 %v5863, %v5980
      %v6014 = vadd.f32 %v5864, %v5982
      %v6015 = vadd.f32 %v5865, %v5985
      %v6016 = vadd.f32 %v5866, %v5987
      %v6017 = vadd.f32 %v5867, %v5990
      %v6018 = vadd.f32 %v5868, %v5992
      %v6019 = vadd.f32 %v5869, %v5995
      %v6020 = vadd.f32 %v5870, %v5997
      %v6021 = vadd.f32 %v5871, %v6000
      %v6022 = vadd.f32 %v5872, %v6002
      %v6023 = vadd.f32 %v5873, %v6005
      %v6024 = vadd.f32 %v5874, %v6007
      %s6025 = scalar_lea.vmem %s1, 88
      %v6026 = vld [vmem:[%s6025] sm:$0xf]
      %v6028 = vsel %vm647, %v6026, 0
      %6030 = vmatpush.bf16.msra.mxu0 0
      %6031 = vmatpush.bf16.msra.mxu0 0
      %6032 = vmatpush.bf16.msra.mxu0 0
      %6033 = vmatpush.bf16.msra.mxu0 0
      %6034 = vmatpush.bf16.msra.mxu0 0
      %6035 = vmatpush.bf16.msra.mxu0 0
      %6036 = vmatpush.bf16.msra.mxu0 0
      %6037 = vmatpush.bf16.msra.mxu0 %v6028
      %6038 = vmatmul.bf16.gmra.mxu0 %v1483
      %v6039 = vpop.f32.mrf.mxu0
      %v6040 = vadd.f32 0.0, %v6039
      %v6041 = vpop.f32.mrf.mxu0
      %v6042 = vadd.f32 0.0, %v6041
      %6043 = vmatmul.bf16.gmra.mxu0 %v1486
      %v6044 = vpop.f32.mrf.mxu0
      %v6045 = vadd.f32 0.0, %v6044
      %v6046 = vpop.f32.mrf.mxu0
      %v6047 = vadd.f32 0.0, %v6046
      %6048 = vmatmul.bf16.gmra.mxu0 %v1489
      %v6049 = vpop.f32.mrf.mxu0
      %v6050 = vadd.f32 0.0, %v6049
      %v6051 = vpop.f32.mrf.mxu0
      %v6052 = vadd.f32 0.0, %v6051
      %6053 = vmatmul.bf16.gmra.mxu0 %v1492
      %v6054 = vpop.f32.mrf.mxu0
      %v6055 = vadd.f32 0.0, %v6054
      %v6056 = vpop.f32.mrf.mxu0
      %v6057 = vadd.f32 0.0, %v6056
      %6058 = vmatmul.bf16.gmra.mxu0 %v1495
      %v6059 = vpop.f32.mrf.mxu0
      %v6060 = vadd.f32 0.0, %v6059
      %v6061 = vpop.f32.mrf.mxu0
      %v6062 = vadd.f32 0.0, %v6061
      %6063 = vmatmul.bf16.gmra.mxu0 %v1498
      %v6064 = vpop.f32.mrf.mxu0
      %v6065 = vadd.f32 0.0, %v6064
      %v6066 = vpop.f32.mrf.mxu0
      %v6067 = vadd.f32 0.0, %v6066
      %6068 = vmatmul.bf16.gmra.mxu0 %v1501
      %v6069 = vpop.f32.mrf.mxu0
      %v6070 = vadd.f32 0.0, %v6069
      %v6071 = vpop.f32.mrf.mxu0
      %v6072 = vadd.f32 0.0, %v6071
      %6073 = vmatmul.bf16.gmra.mxu0 %v1504
      %v6074 = vpop.f32.mrf.mxu0
      %v6075 = vadd.f32 0.0, %v6074
      %v6076 = vpop.f32.mrf.mxu0
      %v6077 = vadd.f32 0.0, %v6076
      %6078 = vdwg.mxu0
      %v6079 = vadd.f32 %v6009, %v6040
      %v6080 = vadd.f32 %v6010, %v6042
      %v6081 = vadd.f32 %v6011, %v6045
      %v6082 = vadd.f32 %v6012, %v6047
      %v6083 = vadd.f32 %v6013, %v6050
      %v6084 = vadd.f32 %v6014, %v6052
      %v6085 = vadd.f32 %v6015, %v6055
      %v6086 = vadd.f32 %v6016, %v6057
      %v6087 = vadd.f32 %v6017, %v6060
      %v6088 = vadd.f32 %v6018, %v6062
      %v6089 = vadd.f32 %v6019, %v6065
      %v6090 = vadd.f32 %v6020, %v6067
      %v6091 = vadd.f32 %v6021, %v6070
      %v6092 = vadd.f32 %v6022, %v6072
      %v6093 = vadd.f32 %v6023, %v6075
      %v6094 = vadd.f32 %v6024, %v6077
      %v6095 = vld [vmem:[%s1001] sm:$0x8]
      %v6096 = vld [vmem:[%s1001 + $0xc] sm:$0x8]
      %v6097 = vld [vmem:[%s1001 + $0x18] sm:$0x8]
      %v6098 = vld [vmem:[%s1001 + $0x24] sm:$0x8]
      %v6099 = vld [vmem:[%s1001 + $0x30] sm:$0x8]
      %v6100 = vld [vmem:[%s1001 + $0x3c] sm:$0x8]
      %v6101 = vld [vmem:[%s1001 + $0x48] sm:$0x8]
      %v6102 = vld [vmem:[%s1001 + $0x54] sm:$0x8]
      %v6119 = vrot.slane %v6095, 7
      %v6120 = vrot.slane %v6119, 4
      %v6121 = vrot.slane %v1003, 7
      %v6122 = vsel %vm5700, %v6120, %v6121
      %v6123 = vrot.slane %v6121, 4
      %v6124 = vrot.slane %v3872, 7
      %v6125 = vsel %vm5700, %v6123, %v6124
      %v6126 = vrot.slane %v6096, 7
      %v6127 = vrot.slane %v6126, 4
      %v6128 = vrot.slane %v1006, 7
      %v6129 = vsel %vm5700, %v6127, %v6128
      %v6130 = vrot.slane %v6128, 4
      %v6131 = vrot.slane %v3873, 7
      %v6132 = vsel %vm5700, %v6130, %v6131
      %v6133 = vrot.slane %v6097, 7
      %v6134 = vrot.slane %v6133, 4
      %v6135 = vrot.slane %v1009, 7
      %v6136 = vsel %vm5700, %v6134, %v6135
      %v6137 = vrot.slane %v6135, 4
      %v6138 = vrot.slane %v3874, 7
      %v6139 = vsel %vm5700, %v6137, %v6138
      %v6140 = vrot.slane %v6098, 7
      %v6141 = vrot.slane %v6140, 4
      %v6142 = vrot.slane %v1012, 7
      %v6143 = vsel %vm5700, %v6141, %v6142
      %v6144 = vrot.slane %v6142, 4
      %v6145 = vrot.slane %v3875, 7
      %v6146 = vsel %vm5700, %v6144, %v6145
      %v6147 = vrot.slane %v6099, 7
      %v6148 = vrot.slane %v6147, 4
      %v6149 = vrot.slane %v1015, 7
      %v6150 = vsel %vm5700, %v6148, %v6149
      %v6151 = vrot.slane %v6149, 4
      %v6152 = vrot.slane %v3876, 7
      %v6153 = vsel %vm5700, %v6151, %v6152
      %v6154 = vrot.slane %v6100, 7
      %v6155 = vrot.slane %v6154, 4
      %v6156 = vrot.slane %v1018, 7
      %v6157 = vsel %vm5700, %v6155, %v6156
      %v6158 = vrot.slane %v6156, 4
      %v6159 = vrot.slane %v3877, 7
      %v6160 = vsel %vm5700, %v6158, %v6159
      %v6161 = vrot.slane %v6101, 7
      %v6162 = vrot.slane %v6161, 4
      %v6163 = vrot.slane %v1021, 7
      %v6164 = vsel %vm5700, %v6162, %v6163
      %v6165 = vrot.slane %v6163, 4
      %v6166 = vrot.slane %v3878, 7
      %v6167 = vsel %vm5700, %v6165, %v6166
      %v6168 = vrot.slane %v6102, 7
      %v6169 = vrot.slane %v6168, 4
      %v6170 = vrot.slane %v1024, 7
      %v6171 = vsel %vm5700, %v6169, %v6170
      %v6172 = vrot.slane %v6170, 4
      %v6173 = vrot.slane %v3879, 7
      %v6174 = vsel %vm5700, %v6172, %v6173
      %s6175 = scalar_lea.vmem %s1, 92
      %v6176 = vld [vmem:[%s6175] sm:$0xf]
      %v6177 = vunpack.c.l.b16 %v6122
      %v6178 = vunpack.c.l.b16 %v6125
      %v6179 = vunpack.c.l.b16 %v6129
      %v6180 = vunpack.c.l.b16 %v6132
      %v6181 = vunpack.c.l.b16 %v6136
      %v6182 = vunpack.c.l.b16 %v6139
      %v6183 = vunpack.c.l.b16 %v6143
      %v6184 = vunpack.c.l.b16 %v6146
      %v6185 = vunpack.c.l.b16 %v6150
      %v6186 = vunpack.c.l.b16 %v6153
      %v6187 = vunpack.c.l.b16 %v6157
      %v6188 = vunpack.c.l.b16 %v6160
      %v6189 = vunpack.c.l.b16 %v6164
      %v6190 = vunpack.c.l.b16 %v6167
      %v6191 = vunpack.c.l.b16 %v6171
      %v6192 = vunpack.c.l.b16 %v6174
      %v6193 = vpack.c.b16 %v6178, %v6177
      %v6194 = vpack.c.b16 %v6180, %v6179
      %v6195 = vpack.c.b16 %v6182, %v6181
      %v6196 = vpack.c.b16 %v6184, %v6183
      %v6197 = vpack.c.b16 %v6186, %v6185
      %v6198 = vpack.c.b16 %v6188, %v6187
      %v6199 = vpack.c.b16 %v6190, %v6189
      %v6200 = vpack.c.b16 %v6192, %v6191
      %v6202 = vsel %vm622, %v6193, 0
      %v6205 = vsel %vm622, %v6194, 0
      %v6208 = vsel %vm622, %v6195, 0
      %v6211 = vsel %vm622, %v6196, 0
      %v6214 = vsel %vm622, %v6197, 0
      %v6217 = vsel %vm622, %v6198, 0
      %v6220 = vsel %vm622, %v6199, 0
      %v6223 = vsel %vm622, %v6200, 0
      %v6226 = vsel %vm647, %v6176, 0
      %6228 = vmatpush.bf16.msra.mxu0 0
      %6229 = vmatpush.bf16.msra.mxu0 0
      %6230 = vmatpush.bf16.msra.mxu0 0
      %6231 = vmatpush.bf16.msra.mxu0 0
      %6232 = vmatpush.bf16.msra.mxu0 0
      %6233 = vmatpush.bf16.msra.mxu0 0
      %6234 = vmatpush.bf16.msra.mxu0 0
      %6235 = vmatpush.bf16.msra.mxu0 %v6226
      %6236 = vmatmul.bf16.gmra.mxu0 %v6202
      %v6237 = vpop.f32.mrf.mxu0
      %v6238 = vadd.f32 0.0, %v6237
      %v6239 = vpop.f32.mrf.mxu0
      %v6240 = vadd.f32 0.0, %v6239
      %6241 = vmatmul.bf16.gmra.mxu0 %v6205
      %v6242 = vpop.f32.mrf.mxu0
      %v6243 = vadd.f32 0.0, %v6242
      %v6244 = vpop.f32.mrf.mxu0
      %v6245 = vadd.f32 0.0, %v6244
      %6246 = vmatmul.bf16.gmra.mxu0 %v6208
      %v6247 = vpop.f32.mrf.mxu0
      %v6248 = vadd.f32 0.0, %v6247
      %v6249 = vpop.f32.mrf.mxu0
      %v6250 = vadd.f32 0.0, %v6249
      %6251 = vmatmul.bf16.gmra.mxu0 %v6211
      %v6252 = vpop.f32.mrf.mxu0
      %v6253 = vadd.f32 0.0, %v6252
      %v6254 = vpop.f32.mrf.mxu0
      %v6255 = vadd.f32 0.0, %v6254
      %6256 = vmatmul.bf16.gmra.mxu0 %v6214
      %v6257 = vpop.f32.mrf.mxu0
      %v6258 = vadd.f32 0.0, %v6257
      %v6259 = vpop.f32.mrf.mxu0
      %v6260 = vadd.f32 0.0, %v6259
      %6261 = vmatmul.bf16.gmra.mxu0 %v6217
      %v6262 = vpop.f32.mrf.mxu0
      %v6263 = vadd.f32 0.0, %v6262
      %v6264 = vpop.f32.mrf.mxu0
      %v6265 = vadd.f32 0.0, %v6264
      %6266 = vmatmul.bf16.gmra.mxu0 %v6220
      %v6267 = vpop.f32.mrf.mxu0
      %v6268 = vadd.f32 0.0, %v6267
      %v6269 = vpop.f32.mrf.mxu0
      %v6270 = vadd.f32 0.0, %v6269
      %6271 = vmatmul.bf16.gmra.mxu0 %v6223
      %v6272 = vpop.f32.mrf.mxu0
      %v6273 = vadd.f32 0.0, %v6272
      %v6274 = vpop.f32.mrf.mxu0
      %v6275 = vadd.f32 0.0, %v6274
      %6276 = vdwg.mxu0
      %v6277 = vadd.f32 %v6079, %v6238
      %v6278 = vadd.f32 %v6080, %v6240
      %v6279 = vadd.f32 %v6081, %v6243
      %v6280 = vadd.f32 %v6082, %v6245
      %v6281 = vadd.f32 %v6083, %v6248
      %v6282 = vadd.f32 %v6084, %v6250
      %v6283 = vadd.f32 %v6085, %v6253
      %v6284 = vadd.f32 %v6086, %v6255
      %v6285 = vadd.f32 %v6087, %v6258
      %v6286 = vadd.f32 %v6088, %v6260
      %v6287 = vadd.f32 %v6089, %v6263
      %v6288 = vadd.f32 %v6090, %v6265
      %v6289 = vadd.f32 %v6091, %v6268
      %v6290 = vadd.f32 %v6092, %v6270
      %v6291 = vadd.f32 %v6093, %v6273
      %v6292 = vadd.f32 %v6094, %v6275
      %s6293 = scalar_lea.vmem %s234, 72
      %v6294 = vld [vmem:[%s6293] sm:$0xf]
      %v6295 = vld [vmem:[%s6293 + $0x4] sm:$0xf]
      %v6296 = vld [vmem:[%s6293 + $0xc] sm:$0xf]
      %v6297 = vld [vmem:[%s6293 + $0x10] sm:$0xf]
      %v6298 = vld [vmem:[%s6293 + $0x18] sm:$0xf]
      %v6299 = vld [vmem:[%s6293 + $0x1c] sm:$0xf]
      %v6300 = vld [vmem:[%s6293 + $0x24] sm:$0xf]
      %v6301 = vld [vmem:[%s6293 + $0x28] sm:$0xf]
      %v6302 = vld [vmem:[%s6293 + $0x30] sm:$0xf]
      %v6303 = vld [vmem:[%s6293 + $0x34] sm:$0xf]
      %v6304 = vld [vmem:[%s6293 + $0x3c] sm:$0xf]
      %v6305 = vld [vmem:[%s6293 + $0x40] sm:$0xf]
      %v6306 = vld [vmem:[%s6293 + $0x48] sm:$0xf]
      %v6307 = vld [vmem:[%s6293 + $0x4c] sm:$0xf]
      %v6308 = vld [vmem:[%s6293 + $0x54] sm:$0xf]
      %v6309 = vld [vmem:[%s6293 + $0x58] sm:$0xf]
      %s6310 = scalar_lea.vmem %s1, 96
      %v6311 = vld [vmem:[%s6310] sm:$0xf]
      %v6328 = vunpack.c.l.b16 %v6294
      %v6329 = vunpack.c.l.b16 %v6295
      %v6330 = vunpack.c.l.b16 %v6296
      %v6331 = vunpack.c.l.b16 %v6297
      %v6332 = vunpack.c.l.b16 %v6298
      %v6333 = vunpack.c.l.b16 %v6299
      %v6334 = vunpack.c.l.b16 %v6300
      %v6335 = vunpack.c.l.b16 %v6301
      %v6336 = vunpack.c.l.b16 %v6302
      %v6337 = vunpack.c.l.b16 %v6303
      %v6338 = vunpack.c.l.b16 %v6304
      %v6339 = vunpack.c.l.b16 %v6305
      %v6340 = vunpack.c.l.b16 %v6306
      %v6341 = vunpack.c.l.b16 %v6307
      %v6342 = vunpack.c.l.b16 %v6308
      %v6343 = vunpack.c.l.b16 %v6309
      %v6344 = vpack.c.b16 %v6329, %v6328
      %v6345 = vpack.c.b16 %v6331, %v6330
      %v6346 = vpack.c.b16 %v6333, %v6332
      %v6347 = vpack.c.b16 %v6335, %v6334
      %v6348 = vpack.c.b16 %v6337, %v6336
      %v6349 = vpack.c.b16 %v6339, %v6338
      %v6350 = vpack.c.b16 %v6341, %v6340
      %v6351 = vpack.c.b16 %v6343, %v6342
      %v6353 = vsel %vm622, %v6344, 0
      %v6356 = vsel %vm622, %v6345, 0
      %v6359 = vsel %vm622, %v6346, 0
      %v6362 = vsel %vm622, %v6347, 0
      %v6365 = vsel %vm622, %v6348, 0
      %v6368 = vsel %vm622, %v6349, 0
      %v6371 = vsel %vm622, %v6350, 0
      %v6374 = vsel %vm622, %v6351, 0
      %v6377 = vsel %vm647, %v6311, 0
      %6379 = vmatpush.bf16.msra.mxu0 0
      %6380 = vmatpush.bf16.msra.mxu0 0
      %6381 = vmatpush.bf16.msra.mxu0 0
      %6382 = vmatpush.bf16.msra.mxu0 0
      %6383 = vmatpush.bf16.msra.mxu0 0
      %6384 = vmatpush.bf16.msra.mxu0 0
      %6385 = vmatpush.bf16.msra.mxu0 0
      %6386 = vmatpush.bf16.msra.mxu0 %v6377
      %6387 = vmatmul.bf16.gmra.mxu0 %v6353
      %v6388 = vpop.f32.mrf.mxu0
      %v6389 = vadd.f32 0.0, %v6388
      %v6390 = vpop.f32.mrf.mxu0
      %v6391 = vadd.f32 0.0, %v6390
      %6392 = vmatmul.bf16.gmra.mxu0 %v6356
      %v6393 = vpop.f32.mrf.mxu0
      %v6394 = vadd.f32 0.0, %v6393
      %v6395 = vpop.f32.mrf.mxu0
      %v6396 = vadd.f32 0.0, %v6395
      %6397 = vmatmul.bf16.gmra.mxu0 %v6359
      %v6398 = vpop.f32.mrf.mxu0
      %v6399 = vadd.f32 0.0, %v6398
      %v6400 = vpop.f32.mrf.mxu0
      %v6401 = vadd.f32 0.0, %v6400
      %6402 = vmatmul.bf16.gmra.mxu0 %v6362
      %v6403 = vpop.f32.mrf.mxu0
      %v6404 = vadd.f32 0.0, %v6403
      %v6405 = vpop.f32.mrf.mxu0
      %v6406 = vadd.f32 0.0, %v6405
      %6407 = vmatmul.bf16.gmra.mxu0 %v6365
      %v6408 = vpop.f32.mrf.mxu0
      %v6409 = vadd.f32 0.0, %v6408
      %v6410 = vpop.f32.mrf.mxu0
      %v6411 = vadd.f32 0.0, %v6410
      %6412 = vmatmul.bf16.gmra.mxu0 %v6368
      %v6413 = vpop.f32.mrf.mxu0
      %v6414 = vadd.f32 0.0, %v6413
      %v6415 = vpop.f32.mrf.mxu0
      %v6416 = vadd.f32 0.0, %v6415
      %6417 = vmatmul.bf16.gmra.mxu0 %v6371
      %v6418 = vpop.f32.mrf.mxu0
      %v6419 = vadd.f32 0.0, %v6418
      %v6420 = vpop.f32.mrf.mxu0
      %v6421 = vadd.f32 0.0, %v6420
      %6422 = vmatmul.bf16.gmra.mxu0 %v6374
      %v6423 = vpop.f32.mrf.mxu0
      %v6424 = vadd.f32 0.0, %v6423
      %v6425 = vpop.f32.mrf.mxu0
      %v6426 = vadd.f32 0.0, %v6425
      %6427 = vdwg.mxu0
      %v6428 = vadd.f32 %v6277, %v6389
      %v6429 = vadd.f32 %v6278, %v6391
      %v6430 = vadd.f32 %v6279, %v6394
      %v6431 = vadd.f32 %v6280, %v6396
      %v6432 = vadd.f32 %v6281, %v6399
      %v6433 = vadd.f32 %v6282, %v6401
      %v6434 = vadd.f32 %v6283, %v6404
      %v6435 = vadd.f32 %v6284, %v6406
      %v6436 = vadd.f32 %v6285, %v6409
      %v6437 = vadd.f32 %v6286, %v6411
      %v6438 = vadd.f32 %v6287, %v6414
      %v6439 = vadd.f32 %v6288, %v6416
      %v6440 = vadd.f32 %v6289, %v6419
      %v6441 = vadd.f32 %v6290, %v6421
      %v6442 = vadd.f32 %v6291, %v6424
      %v6443 = vadd.f32 %v6292, %v6426
      %v6444 = vld [vmem:[%s6293] sm:$0xe]
      %v6445 = vld [vmem:[%s6293 + $0x4] sm:$0xf]
      %v6446 = vld [vmem:[%s6293 + $0x8] sm:$0x3]
      %v6447 = vld [vmem:[%s6293 + $0xc] sm:$0xe]
      %v6448 = vld [vmem:[%s6293 + $0x10] sm:$0xf]
      %v6449 = vld [vmem:[%s6293 + $0x14] sm:$0x3]
      %v6450 = vld [vmem:[%s6293 + $0x18] sm:$0xe]
      %v6451 = vld [vmem:[%s6293 + $0x1c] sm:$0xf]
      %v6452 = vld [vmem:[%s6293 + $0x20] sm:$0x3]
      %v6453 = vld [vmem:[%s6293 + $0x24] sm:$0xe]
      %v6454 = vld [vmem:[%s6293 + $0x28] sm:$0xf]
      %v6455 = vld [vmem:[%s6293 + $0x2c] sm:$0x3]
      %v6456 = vld [vmem:[%s6293 + $0x30] sm:$0xe]
      %v6457 = vld [vmem:[%s6293 + $0x34] sm:$0xf]
      %v6458 = vld [vmem:[%s6293 + $0x38] sm:$0x3]
      %v6459 = vld [vmem:[%s6293 + $0x3c] sm:$0xe]
      %v6460 = vld [vmem:[%s6293 + $0x40] sm:$0xf]
      %v6461 = vld [vmem:[%s6293 + $0x44] sm:$0x3]
      %v6462 = vld [vmem:[%s6293 + $0x48] sm:$0xe]
      %v6463 = vld [vmem:[%s6293 + $0x4c] sm:$0xf]
      %v6464 = vld [vmem:[%s6293 + $0x50] sm:$0x3]
      %v6465 = vld [vmem:[%s6293 + $0x54] sm:$0xe]
      %v6466 = vld [vmem:[%s6293 + $0x58] sm:$0xf]
      %v6467 = vld [vmem:[%s6293 + $0x5c] sm:$0x3]
      %v6469 = vshrl.u32 %v6444, 16
      %v6471 = vrot.slane %v6469, 5
      %v6472 = vshll.u32 %v6444, 16
      %v6474 = vrot.slane %v6472, 6
      %v6475 = vor.u32 %v6471, %v6474
      %v6476 = vrot.slane %v6475, 4
      %v6478 = vshrl.u32 %v6445, 16
      %v6480 = vrot.slane %v6478, 5
      %v6481 = vshll.u32 %v6445, 16
      %v6483 = vrot.slane %v6481, 6
      %v6484 = vor.u32 %v6480, %v6483
      %v6485 = vsel %vm371, %v6476, %v6484
      %v6486 = vrot.slane %v6484, 4
      %v6488 = vshrl.u32 %v6446, 16
      %v6490 = vrot.slane %v6488, 5
      %v6491 = vshll.u32 %v6446, 16
      %v6493 = vrot.slane %v6491, 6
      %v6494 = vor.u32 %v6490, %v6493
      %v6495 = vsel %vm371, %v6486, %v6494
      %v6497 = vshrl.u32 %v6447, 16
      %v6499 = vrot.slane %v6497, 5
      %v6500 = vshll.u32 %v6447, 16
      %v6502 = vrot.slane %v6500, 6
      %v6503 = vor.u32 %v6499, %v6502
      %v6504 = vrot.slane %v6503, 4
      %v6506 = vshrl.u32 %v6448, 16
      %v6508 = vrot.slane %v6506, 5
      %v6509 = vshll.u32 %v6448, 16
      %v6511 = vrot.slane %v6509, 6
      %v6512 = vor.u32 %v6508, %v6511
      %v6513 = vsel %vm371, %v6504, %v6512
      %v6514 = vrot.slane %v6512, 4
      %v6516 = vshrl.u32 %v6449, 16
      %v6518 = vrot.slane %v6516, 5
      %v6519 = vshll.u32 %v6449, 16
      %v6521 = vrot.slane %v6519, 6
      %v6522 = vor.u32 %v6518, %v6521
      %v6523 = vsel %vm371, %v6514, %v6522
      %v6525 = vshrl.u32 %v6450, 16
      %v6527 = vrot.slane %v6525, 5
      %v6528 = vshll.u32 %v6450, 16
      %v6530 = vrot.slane %v6528, 6
      %v6531 = vor.u32 %v6527, %v6530
      %v6532 = vrot.slane %v6531, 4
      %v6534 = vshrl.u32 %v6451, 16
      %v6536 = vrot.slane %v6534, 5
      %v6537 = vshll.u32 %v6451, 16
      %v6539 = vrot.slane %v6537, 6
      %v6540 = vor.u32 %v6536, %v6539
      %v6541 = vsel %vm371, %v6532, %v6540
      %v6542 = vrot.slane %v6540, 4
      %v6544 = vshrl.u32 %v6452, 16
      %v6546 = vrot.slane %v6544, 5
      %v6547 = vshll.u32 %v6452, 16
      %v6549 = vrot.slane %v6547, 6
      %v6550 = vor.u32 %v6546, %v6549
      %v6551 = vsel %vm371, %v6542, %v6550
      %v6553 = vshrl.u32 %v6453, 16
      %v6555 = vrot.slane %v6553, 5
      %v6556 = vshll.u32 %v6453, 16
      %v6558 = vrot.slane %v6556, 6
      %v6559 = vor.u32 %v6555, %v6558
      %v6560 = vrot.slane %v6559, 4
      %v6562 = vshrl.u32 %v6454, 16
      %v6564 = vrot.slane %v6562, 5
      %v6565 = vshll.u32 %v6454, 16
      %v6567 = vrot.slane %v6565, 6
      %v6568 = vor.u32 %v6564, %v6567
      %v6569 = vsel %vm371, %v6560, %v6568
      %v6570 = vrot.slane %v6568, 4
      %v6572 = vshrl.u32 %v6455, 16
      %v6574 = vrot.slane %v6572, 5
      %v6575 = vshll.u32 %v6455, 16
      %v6577 = vrot.slane %v6575, 6
      %v6578 = vor.u32 %v6574, %v6577
      %v6579 = vsel %vm371, %v6570, %v6578
      %v6581 = vshrl.u32 %v6456, 16
      %v6583 = vrot.slane %v6581, 5
      %v6584 = vshll.u32 %v6456, 16
      %v6586 = vrot.slane %v6584, 6
      %v6587 = vor.u32 %v6583, %v6586
      %v6588 = vrot.slane %v6587, 4
      %v6590 = vshrl.u32 %v6457, 16
      %v6592 = vrot.slane %v6590, 5
      %v6593 = vshll.u32 %v6457, 16
      %v6595 = vrot.slane %v6593, 6
      %v6596 = vor.u32 %v6592, %v6595
      %v6597 = vsel %vm371, %v6588, %v6596
      %v6598 = vrot.slane %v6596, 4
      %v6600 = vshrl.u32 %v6458, 16
      %v6602 = vrot.slane %v6600, 5
      %v6603 = vshll.u32 %v6458, 16
      %v6605 = vrot.slane %v6603, 6
      %v6606 = vor.u32 %v6602, %v6605
      %v6607 = vsel %vm371, %v6598, %v6606
      %v6609 = vshrl.u32 %v6459, 16
      %v6611 = vrot.slane %v6609, 5
      %v6612 = vshll.u32 %v6459, 16
      %v6614 = vrot.slane %v6612, 6
      %v6615 = vor.u32 %v6611, %v6614
      %v6616 = vrot.slane %v6615, 4
      %v6618 = vshrl.u32 %v6460, 16
      %v6620 = vrot.slane %v6618, 5
      %v6621 = vshll.u32 %v6460, 16
      %v6623 = vrot.slane %v6621, 6
      %v6624 = vor.u32 %v6620, %v6623
      %v6625 = vsel %vm371, %v6616, %v6624
      %v6626 = vrot.slane %v6624, 4
      %v6628 = vshrl.u32 %v6461, 16
      %v6630 = vrot.slane %v6628, 5
      %v6631 = vshll.u32 %v6461, 16
      %v6633 = vrot.slane %v6631, 6
      %v6634 = vor.u32 %v6630, %v6633
      %v6635 = vsel %vm371, %v6626, %v6634
      %v6637 = vshrl.u32 %v6462, 16
      %v6639 = vrot.slane %v6637, 5
      %v6640 = vshll.u32 %v6462, 16
      %v6642 = vrot.slane %v6640, 6
      %v6643 = vor.u32 %v6639, %v6642
      %v6644 = vrot.slane %v6643, 4
      %v6646 = vshrl.u32 %v6463, 16
      %v6648 = vrot.slane %v6646, 5
      %v6649 = vshll.u32 %v6463, 16
      %v6651 = vrot.slane %v6649, 6
      %v6652 = vor.u32 %v6648, %v6651
      %v6653 = vsel %vm371, %v6644, %v6652
      %v6654 = vrot.slane %v6652, 4
      %v6656 = vshrl.u32 %v6464, 16
      %v6658 = vrot.slane %v6656, 5
      %v6659 = vshll.u32 %v6464, 16
      %v6661 = vrot.slane %v6659, 6
      %v6662 = vor.u32 %v6658, %v6661
      %v6663 = vsel %vm371, %v6654, %v6662
      %v6665 = vshrl.u32 %v6465, 16
      %v6667 = vrot.slane %v6665, 5
      %v6668 = vshll.u32 %v6465, 16
      %v6670 = vrot.slane %v6668, 6
      %v6671 = vor.u32 %v6667, %v6670
      %v6672 = vrot.slane %v6671, 4
      %v6674 = vshrl.u32 %v6466, 16
      %v6676 = vrot.slane %v6674, 5
      %v6677 = vshll.u32 %v6466, 16
      %v6679 = vrot.slane %v6677, 6
      %v6680 = vor.u32 %v6676, %v6679
      %v6681 = vsel %vm371, %v6672, %v6680
      %v6682 = vrot.slane %v6680, 4
      %v6684 = vshrl.u32 %v6467, 16
      %v6686 = vrot.slane %v6684, 5
      %v6687 = vshll.u32 %v6467, 16
      %v6689 = vrot.slane %v6687, 6
      %v6690 = vor.u32 %v6686, %v6689
      %v6691 = vsel %vm371, %v6682, %v6690
      %s6692 = scalar_lea.vmem %s1, 100
      %v6693 = vld [vmem:[%s6692] sm:$0xf]
      %v6694 = vunpack.c.l.b16 %v6485
      %v6695 = vunpack.c.l.b16 %v6495
      %v6696 = vunpack.c.l.b16 %v6513
      %v6697 = vunpack.c.l.b16 %v6523
      %v6698 = vunpack.c.l.b16 %v6541
      %v6699 = vunpack.c.l.b16 %v6551
      %v6700 = vunpack.c.l.b16 %v6569
      %v6701 = vunpack.c.l.b16 %v6579
      %v6702 = vunpack.c.l.b16 %v6597
      %v6703 = vunpack.c.l.b16 %v6607
      %v6704 = vunpack.c.l.b16 %v6625
      %v6705 = vunpack.c.l.b16 %v6635
      %v6706 = vunpack.c.l.b16 %v6653
      %v6707 = vunpack.c.l.b16 %v6663
      %v6708 = vunpack.c.l.b16 %v6681
      %v6709 = vunpack.c.l.b16 %v6691
      %v6710 = vpack.c.b16 %v6695, %v6694
      %v6711 = vpack.c.b16 %v6697, %v6696
      %v6712 = vpack.c.b16 %v6699, %v6698
      %v6713 = vpack.c.b16 %v6701, %v6700
      %v6714 = vpack.c.b16 %v6703, %v6702
      %v6715 = vpack.c.b16 %v6705, %v6704
      %v6716 = vpack.c.b16 %v6707, %v6706
      %v6717 = vpack.c.b16 %v6709, %v6708
      %v6719 = vsel %vm622, %v6710, 0
      %v6722 = vsel %vm622, %v6711, 0
      %v6725 = vsel %vm622, %v6712, 0
      %v6728 = vsel %vm622, %v6713, 0
      %v6731 = vsel %vm622, %v6714, 0
      %v6734 = vsel %vm622, %v6715, 0
      %v6737 = vsel %vm622, %v6716, 0
      %v6740 = vsel %vm622, %v6717, 0
      %v6743 = vsel %vm647, %v6693, 0
      %6745 = vmatpush.bf16.msra.mxu0 0
      %6746 = vmatpush.bf16.msra.mxu0 0
      %6747 = vmatpush.bf16.msra.mxu0 0
      %6748 = vmatpush.bf16.msra.mxu0 0
      %6749 = vmatpush.bf16.msra.mxu0 0
      %6750 = vmatpush.bf16.msra.mxu0 0
      %6751 = vmatpush.bf16.msra.mxu0 0
      %6752 = vmatpush.bf16.msra.mxu0 %v6743
      %6753 = vmatmul.bf16.gmra.mxu0 %v6719
      %v6754 = vpop.f32.mrf.mxu0
      %v6755 = vadd.f32 0.0, %v6754
      %v6756 = vpop.f32.mrf.mxu0
      %v6757 = vadd.f32 0.0, %v6756
      %6758 = vmatmul.bf16.gmra.mxu0 %v6722
      %v6759 = vpop.f32.mrf.mxu0
      %v6760 = vadd.f32 0.0, %v6759
      %v6761 = vpop.f32.mrf.mxu0
      %v6762 = vadd.f32 0.0, %v6761
      %6763 = vmatmul.bf16.gmra.mxu0 %v6725
      %v6764 = vpop.f32.mrf.mxu0
      %v6765 = vadd.f32 0.0, %v6764
      %v6766 = vpop.f32.mrf.mxu0
      %v6767 = vadd.f32 0.0, %v6766
      %6768 = vmatmul.bf16.gmra.mxu0 %v6728
      %v6769 = vpop.f32.mrf.mxu0
      %v6770 = vadd.f32 0.0, %v6769
      %v6771 = vpop.f32.mrf.mxu0
      %v6772 = vadd.f32 0.0, %v6771
      %6773 = vmatmul.bf16.gmra.mxu0 %v6731
      %v6774 = vpop.f32.mrf.mxu0
      %v6775 = vadd.f32 0.0, %v6774
      %v6776 = vpop.f32.mrf.mxu0
      %v6777 = vadd.f32 0.0, %v6776
      %6778 = vmatmul.bf16.gmra.mxu0 %v6734
      %v6779 = vpop.f32.mrf.mxu0
      %v6780 = vadd.f32 0.0, %v6779
      %v6781 = vpop.f32.mrf.mxu0
      %v6782 = vadd.f32 0.0, %v6781
      %6783 = vmatmul.bf16.gmra.mxu0 %v6737
      %v6784 = vpop.f32.mrf.mxu0
      %v6785 = vadd.f32 0.0, %v6784
      %v6786 = vpop.f32.mrf.mxu0
      %v6787 = vadd.f32 0.0, %v6786
      %6788 = vmatmul.bf16.gmra.mxu0 %v6740
      %v6789 = vpop.f32.mrf.mxu0
      %v6790 = vadd.f32 0.0, %v6789
      %v6791 = vpop.f32.mrf.mxu0
      %v6792 = vadd.f32 0.0, %v6791
      %6793 = vdwg.mxu0
      %v6794 = vadd.f32 %v6428, %v6755
      %v6795 = vadd.f32 %v6429, %v6757
      %v6796 = vadd.f32 %v6430, %v6760
      %v6797 = vadd.f32 %v6431, %v6762
      %v6798 = vadd.f32 %v6432, %v6765
      %v6799 = vadd.f32 %v6433, %v6767
      %v6800 = vadd.f32 %v6434, %v6770
      %v6801 = vadd.f32 %v6435, %v6772
      %v6802 = vadd.f32 %v6436, %v6775
      %v6803 = vadd.f32 %v6437, %v6777
      %v6804 = vadd.f32 %v6438, %v6780
      %v6805 = vadd.f32 %v6439, %v6782
      %v6806 = vadd.f32 %v6440, %v6785
      %v6807 = vadd.f32 %v6441, %v6787
      %v6808 = vadd.f32 %v6442, %v6790
      %v6809 = vadd.f32 %v6443, %v6792
      %v6810 = vld [vmem:[%s6293] sm:$0x8]
      %v6811 = vld [vmem:[%s6293 + $0x8] sm:$0x7]
      %v6812 = vld [vmem:[%s6293 + $0xc] sm:$0x8]
      %v6813 = vld [vmem:[%s6293 + $0x14] sm:$0x7]
      %v6814 = vld [vmem:[%s6293 + $0x18] sm:$0x8]
      %v6815 = vld [vmem:[%s6293 + $0x20] sm:$0x7]
      %v6816 = vld [vmem:[%s6293 + $0x24] sm:$0x8]
      %v6817 = vld [vmem:[%s6293 + $0x2c] sm:$0x7]
      %v6818 = vld [vmem:[%s6293 + $0x30] sm:$0x8]
      %v6819 = vld [vmem:[%s6293 + $0x38] sm:$0x7]
      %v6820 = vld [vmem:[%s6293 + $0x3c] sm:$0x8]
      %v6821 = vld [vmem:[%s6293 + $0x44] sm:$0x7]
      %v6822 = vld [vmem:[%s6293 + $0x48] sm:$0x8]
      %v6823 = vld [vmem:[%s6293 + $0x50] sm:$0x7]
      %v6824 = vld [vmem:[%s6293 + $0x54] sm:$0x8]
      %v6825 = vld [vmem:[%s6293 + $0x5c] sm:$0x7]
      %v6850 = vrot.slane %v6810, 7
      %v6851 = vrot.slane %v6850, 4
      %v6852 = vrot.slane %v6445, 7
      %v6853 = vsel %vm5700, %v6851, %v6852
      %v6854 = vrot.slane %v6852, 4
      %v6855 = vrot.slane %v6811, 7
      %v6856 = vsel %vm5700, %v6854, %v6855
      %v6857 = vrot.slane %v6812, 7
      %v6858 = vrot.slane %v6857, 4
      %v6859 = vrot.slane %v6448, 7
      %v6860 = vsel %vm5700, %v6858, %v6859
      %v6861 = vrot.slane %v6859, 4
      %v6862 = vrot.slane %v6813, 7
      %v6863 = vsel %vm5700, %v6861, %v6862
      %v6864 = vrot.slane %v6814, 7
      %v6865 = vrot.slane %v6864, 4
      %v6866 = vrot.slane %v6451, 7
      %v6867 = vsel %vm5700, %v6865, %v6866
      %v6868 = vrot.slane %v6866, 4
      %v6869 = vrot.slane %v6815, 7
      %v6870 = vsel %vm5700, %v6868, %v6869
      %v6871 = vrot.slane %v6816, 7
      %v6872 = vrot.slane %v6871, 4
      %v6873 = vrot.slane %v6454, 7
      %v6874 = vsel %vm5700, %v6872, %v6873
      %v6875 = vrot.slane %v6873, 4
      %v6876 = vrot.slane %v6817, 7
      %v6877 = vsel %vm5700, %v6875, %v6876
      %v6878 = vrot.slane %v6818, 7
      %v6879 = vrot.slane %v6878, 4
      %v6880 = vrot.slane %v6457, 7
      %v6881 = vsel %vm5700, %v6879, %v6880
      %v6882 = vrot.slane %v6880, 4
      %v6883 = vrot.slane %v6819, 7
      %v6884 = vsel %vm5700, %v6882, %v6883
      %v6885 = vrot.slane %v6820, 7
      %v6886 = vrot.slane %v6885, 4
      %v6887 = vrot.slane %v6460, 7
      %v6888 = vsel %vm5700, %v6886, %v6887
      %v6889 = vrot.slane %v6887, 4
      %v6890 = vrot.slane %v6821, 7
      %v6891 = vsel %vm5700, %v6889, %v6890
      %v6892 = vrot.slane %v6822, 7
      %v6893 = vrot.slane %v6892, 4
      %v6894 = vrot.slane %v6463, 7
      %v6895 = vsel %vm5700, %v6893, %v6894
      %v6896 = vrot.slane %v6894, 4
      %v6897 = vrot.slane %v6823, 7
      %v6898 = vsel %vm5700, %v6896, %v6897
      %v6899 = vrot.slane %v6824, 7
      %v6900 = vrot.slane %v6899, 4
      %v6901 = vrot.slane %v6466, 7
      %v6902 = vsel %vm5700, %v6900, %v6901
      %v6903 = vrot.slane %v6901, 4
      %v6904 = vrot.slane %v6825, 7
      %v6905 = vsel %vm5700, %v6903, %v6904
      %s6906 = scalar_lea.vmem %s1, 104
      %v6907 = vld [vmem:[%s6906] sm:$0xf]
      %v6908 = vunpack.c.l.b16 %v6853
      %v6909 = vunpack.c.l.b16 %v6856
      %v6910 = vunpack.c.l.b16 %v6860
      %v6911 = vunpack.c.l.b16 %v6863
      %v6912 = vunpack.c.l.b16 %v6867
      %v6913 = vunpack.c.l.b16 %v6870
      %v6914 = vunpack.c.l.b16 %v6874
      %v6915 = vunpack.c.l.b16 %v6877
      %v6916 = vunpack.c.l.b16 %v6881
      %v6917 = vunpack.c.l.b16 %v6884
      %v6918 = vunpack.c.l.b16 %v6888
      %v6919 = vunpack.c.l.b16 %v6891
      %v6920 = vunpack.c.l.b16 %v6895
      %v6921 = vunpack.c.l.b16 %v6898
      %v6922 = vunpack.c.l.b16 %v6902
      %v6923 = vunpack.c.l.b16 %v6905
      %v6924 = vpack.c.b16 %v6909, %v6908
      %v6925 = vpack.c.b16 %v6911, %v6910
      %v6926 = vpack.c.b16 %v6913, %v6912
      %v6927 = vpack.c.b16 %v6915, %v6914
      %v6928 = vpack.c.b16 %v6917, %v6916
      %v6929 = vpack.c.b16 %v6919, %v6918
      %v6930 = vpack.c.b16 %v6921, %v6920
      %v6931 = vpack.c.b16 %v6923, %v6922
      %v6933 = vsel %vm622, %v6924, 0
      %v6936 = vsel %vm622, %v6925, 0
      %v6939 = vsel %vm622, %v6926, 0
      %v6942 = vsel %vm622, %v6927, 0
      %v6945 = vsel %vm622, %v6928, 0
      %v6948 = vsel %vm622, %v6929, 0
      %v6951 = vsel %vm622, %v6930, 0
      %v6954 = vsel %vm622, %v6931, 0
      %v6957 = vsel %vm647, %v6907, 0
      %6959 = vmatpush.bf16.msra.mxu0 0
      %6960 = vmatpush.bf16.msra.mxu0 0
      %6961 = vmatpush.bf16.msra.mxu0 0
      %6962 = vmatpush.bf16.msra.mxu0 0
      %6963 = vmatpush.bf16.msra.mxu0 0
      %6964 = vmatpush.bf16.msra.mxu0 0
      %6965 = vmatpush.bf16.msra.mxu0 0
      %6966 = vmatpush.bf16.msra.mxu0 %v6957
      %6967 = vmatmul.bf16.gmra.mxu0 %v6933
      %v6968 = vpop.f32.mrf.mxu0
      %v6969 = vadd.f32 0.0, %v6968
      %v6970 = vpop.f32.mrf.mxu0
      %v6971 = vadd.f32 0.0, %v6970
      %6972 = vmatmul.bf16.gmra.mxu0 %v6936
      %v6973 = vpop.f32.mrf.mxu0
      %v6974 = vadd.f32 0.0, %v6973
      %v6975 = vpop.f32.mrf.mxu0
      %v6976 = vadd.f32 0.0, %v6975
      %6977 = vmatmul.bf16.gmra.mxu0 %v6939
      %v6978 = vpop.f32.mrf.mxu0
      %v6979 = vadd.f32 0.0, %v6978
      %v6980 = vpop.f32.mrf.mxu0
      %v6981 = vadd.f32 0.0, %v6980
      %6982 = vmatmul.bf16.gmra.mxu0 %v6942
      %v6983 = vpop.f32.mrf.mxu0
      %v6984 = vadd.f32 0.0, %v6983
      %v6985 = vpop.f32.mrf.mxu0
      %v6986 = vadd.f32 0.0, %v6985
      %6987 = vmatmul.bf16.gmra.mxu0 %v6945
      %v6988 = vpop.f32.mrf.mxu0
      %v6989 = vadd.f32 0.0, %v6988
      %v6990 = vpop.f32.mrf.mxu0
      %v6991 = vadd.f32 0.0, %v6990
      %6992 = vmatmul.bf16.gmra.mxu0 %v6948
      %v6993 = vpop.f32.mrf.mxu0
      %v6994 = vadd.f32 0.0, %v6993
      %v6995 = vpop.f32.mrf.mxu0
      %v6996 = vadd.f32 0.0, %v6995
      %6997 = vmatmul.bf16.gmra.mxu0 %v6951
      %v6998 = vpop.f32.mrf.mxu0
      %v6999 = vadd.f32 0.0, %v6998
      %v7000 = vpop.f32.mrf.mxu0
      %v7001 = vadd.f32 0.0, %v7000
      %7002 = vmatmul.bf16.gmra.mxu0 %v6954
      %v7003 = vpop.f32.mrf.mxu0
      %v7004 = vadd.f32 0.0, %v7003
      %v7005 = vpop.f32.mrf.mxu0
      %v7006 = vadd.f32 0.0, %v7005
      %7007 = vdwg.mxu0
      %v7008 = vadd.f32 %v6794, %v6969
      %v7009 = vadd.f32 %v6795, %v6971
      %v7010 = vadd.f32 %v6796, %v6974
      %v7011 = vadd.f32 %v6797, %v6976
      %v7012 = vadd.f32 %v6798, %v6979
      %v7013 = vadd.f32 %v6799, %v6981
      %v7014 = vadd.f32 %v6800, %v6984
      %v7015 = vadd.f32 %v6801, %v6986
      %v7016 = vadd.f32 %v6802, %v6989
      %v7017 = vadd.f32 %v6803, %v6991
      %v7018 = vadd.f32 %v6804, %v6994
      %v7019 = vadd.f32 %v6805, %v6996
      %v7020 = vadd.f32 %v6806, %v6999
      %v7021 = vadd.f32 %v6807, %v7001
      %v7022 = vadd.f32 %v6808, %v7004
      %v7023 = vadd.f32 %v6809, %v7006
      %s7024 = scalar_lea.vmem %s2, 2
      %v7025 = vld [vmem:[%s7024] sm:$0x1]
      %v7027 = vperm.slane %v7025, 0
      %v7029 = vadd.f32 %v7008, %v7027
      %v7030 = vadd.f32 %v7009, %v7027
      %v7031 = vadd.f32 %v7010, %v7027
      %v7032 = vadd.f32 %v7011, %v7027
      %v7033 = vadd.f32 %v7012, %v7027
      %v7034 = vadd.f32 %v7013, %v7027
      %v7035 = vadd.f32 %v7014, %v7027
      %v7036 = vadd.f32 %v7015, %v7027
      %v7037 = vadd.f32 %v7016, %v7027
      %v7038 = vadd.f32 %v7017, %v7027
      %v7039 = vadd.f32 %v7018, %v7027
      %v7040 = vadd.f32 %v7019, %v7027
      %v7041 = vadd.f32 %v7020, %v7027
      %v7042 = vadd.f32 %v7021, %v7027
      %v7043 = vadd.f32 %v7022, %v7027
      %v7044 = vadd.f32 %v7023, %v7027
      %v7045 = vmax.f32 %v7029, 0.0
      %v7046 = vmax.f32 %v7030, 0.0
      %v7047 = vmax.f32 %v7031, 0.0
      %v7048 = vmax.f32 %v7032, 0.0
      %v7049 = vmax.f32 %v7033, 0.0
      %v7050 = vmax.f32 %v7034, 0.0
      %v7051 = vmax.f32 %v7035, 0.0
      %v7052 = vmax.f32 %v7036, 0.0
      %v7053 = vmax.f32 %v7037, 0.0
      %v7054 = vmax.f32 %v7038, 0.0
      %v7055 = vmax.f32 %v7039, 0.0
      %v7056 = vmax.f32 %v7040, 0.0
      %v7057 = vmax.f32 %v7041, 0.0
      %v7058 = vmax.f32 %v7042, 0.0
      %v7059 = vmax.f32 %v7043, 0.0
      %v7060 = vmax.f32 %v7044, 0.0
      %v7061 = vld [vmem:[%s239] sm:$0x1]
      %v7063 = vperm.slane %v7061, 0
      %7080 = vrot.lane.b32.xlu0 %v5174, 2
      %v7081 = vpop.permute.xlu0 %7080
      %7082 = vrot.lane.b32.xlu0 %v5175, 2
      %v7083 = vpop.permute.xlu0 %7082
      %7084 = vrot.lane.b32.xlu0 %v5176, 2
      %v7085 = vpop.permute.xlu0 %7084
      %7086 = vrot.lane.b32.xlu0 %v5177, 2
      %v7087 = vpop.permute.xlu0 %7086
      %7088 = vrot.lane.b32.xlu0 %v5178, 2
      %v7089 = vpop.permute.xlu0 %7088
      %7090 = vrot.lane.b32.xlu0 %v5179, 2
      %v7091 = vpop.permute.xlu0 %7090
      %7092 = vrot.lane.b32.xlu0 %v5180, 2
      %v7093 = vpop.permute.xlu0 %7092
      %7094 = vrot.lane.b32.xlu0 %v5181, 2
      %v7095 = vpop.permute.xlu0 %7094
      %7096 = vrot.lane.b32.xlu0 %v5182, 2
      %v7097 = vpop.permute.xlu0 %7096
      %7098 = vrot.lane.b32.xlu0 %v5183, 2
      %v7099 = vpop.permute.xlu0 %7098
      %7100 = vrot.lane.b32.xlu0 %v5184, 2
      %v7101 = vpop.permute.xlu0 %7100
      %7102 = vrot.lane.b32.xlu0 %v5185, 2
      %v7103 = vpop.permute.xlu0 %7102
      %7104 = vrot.lane.b32.xlu0 %v5186, 2
      %v7105 = vpop.permute.xlu0 %7104
      %7106 = vrot.lane.b32.xlu0 %v5187, 2
      %v7107 = vpop.permute.xlu0 %7106
      %7108 = vrot.lane.b32.xlu0 %v5188, 2
      %v7109 = vpop.permute.xlu0 %7108
      %7110 = vrot.lane.b32.xlu0 %v5189, 2
      %v7111 = vpop.permute.xlu0 %7110
      %7144 = vrot.lane.b32.xlu0 %v7045, 4
      %v7145 = vpop.permute.xlu0 %7144
      %7146 = vrot.lane.b32.xlu0 %v7046, 4
      %v7147 = vpop.permute.xlu0 %7146
      %7148 = vrot.lane.b32.xlu0 %v7047, 4
      %v7149 = vpop.permute.xlu0 %7148
      %7150 = vrot.lane.b32.xlu0 %v7048, 4
      %v7151 = vpop.permute.xlu0 %7150
      %7152 = vrot.lane.b32.xlu0 %v7049, 4
      %v7153 = vpop.permute.xlu0 %7152
      %7154 = vrot.lane.b32.xlu0 %v7050, 4
      %v7155 = vpop.permute.xlu0 %7154
      %7156 = vrot.lane.b32.xlu0 %v7051, 4
      %v7157 = vpop.permute.xlu0 %7156
      %7158 = vrot.lane.b32.xlu0 %v7052, 4
      %v7159 = vpop.permute.xlu0 %7158
      %7160 = vrot.lane.b32.xlu0 %v7053, 4
      %v7161 = vpop.permute.xlu0 %7160
      %7162 = vrot.lane.b32.xlu0 %v7054, 4
      %v7163 = vpop.permute.xlu0 %7162
      %7164 = vrot.lane.b32.xlu0 %v7055, 4
      %v7165 = vpop.permute.xlu0 %7164
      %7166 = vrot.lane.b32.xlu0 %v7056, 4
      %v7167 = vpop.permute.xlu0 %7166
      %7168 = vrot.lane.b32.xlu0 %v7057, 4
      %v7169 = vpop.permute.xlu0 %7168
      %7170 = vrot.lane.b32.xlu0 %v7058, 4
      %v7171 = vpop.permute.xlu0 %7170
      %7172 = vrot.lane.b32.xlu0 %v7059, 4
      %v7173 = vpop.permute.xlu0 %7172
      %7174 = vrot.lane.b32.xlu0 %v7060, 4
      %v7175 = vpop.permute.xlu0 %7174
      %7192 = vrot.lane.b32.xlu0 %v7063, 6
      %v7193 = vpop.permute.xlu0 %7192
      %vm7195 = vcmask 15360
      %v7196 = vsel %vm7195, %v2563, %v7081
      %v7197 = vsel %vm7195, %v2564, %v7083
      %v7198 = vsel %vm7195, %v2565, %v7085
      %v7199 = vsel %vm7195, %v2566, %v7087
      %v7200 = vsel %vm7195, %v2567, %v7089
      %v7201 = vsel %vm7195, %v2568, %v7091
      %v7202 = vsel %vm7195, %v2569, %v7093
      %v7203 = vsel %vm7195, %v2570, %v7095
      %v7204 = vsel %vm7195, %v2571, %v7097
      %v7205 = vsel %vm7195, %v2572, %v7099
      %v7206 = vsel %vm7195, %v2573, %v7101
      %v7207 = vsel %vm7195, %v2574, %v7103
      %v7208 = vsel %vm7195, %v2575, %v7105
      %v7209 = vsel %vm7195, %v2576, %v7107
      %v7210 = vsel %vm7195, %v2577, %v7109
      %v7211 = vsel %vm7195, %v2578, %v7111
      %vm7212 = vcmask 31744
      %v7213 = vsel %vm7212, %v7196, %v7145
      %v7214 = vsel %vm7212, %v7197, %v7147
      %v7215 = vsel %vm7212, %v7198, %v7149
      %v7216 = vsel %vm7212, %v7199, %v7151
      %v7217 = vsel %vm7212, %v7200, %v7153
      %v7218 = vsel %vm7212, %v7201, %v7155
      %v7219 = vsel %vm7212, %v7202, %v7157
      %v7220 = vsel %vm7212, %v7203, %v7159
      %v7221 = vsel %vm7212, %v7204, %v7161
      %v7222 = vsel %vm7212, %v7205, %v7163
      %v7223 = vsel %vm7212, %v7206, %v7165
      %v7224 = vsel %vm7212, %v7207, %v7167
      %v7225 = vsel %vm7212, %v7208, %v7169
      %v7226 = vsel %vm7212, %v7209, %v7171
      %v7227 = vsel %vm7212, %v7210, %v7173
      %v7228 = vsel %vm7212, %v7211, %v7175
      %vm7229 = vcmask 48128
      %v7230 = vsel %vm7229, %v7213, %v7193
      %v7231 = vsel %vm7229, %v7214, %v7193
      %v7232 = vsel %vm7229, %v7215, %v7193
      %v7233 = vsel %vm7229, %v7216, %v7193
      %v7234 = vsel %vm7229, %v7217, %v7193
      %v7235 = vsel %vm7229, %v7218, %v7193
      %v7236 = vsel %vm7229, %v7219, %v7193
      %v7237 = vsel %vm7229, %v7220, %v7193
      %v7238 = vsel %vm7229, %v7221, %v7193
      %v7239 = vsel %vm7229, %v7222, %v7193
      %v7240 = vsel %vm7229, %v7223, %v7193
      %v7241 = vsel %vm7229, %v7224, %v7193
      %v7242 = vsel %vm7229, %v7225, %v7193
      %v7243 = vsel %vm7229, %v7226, %v7193
      %v7244 = vsel %vm7229, %v7227, %v7193
      %v7245 = vsel %vm7229, %v7228, %v7193
      %7246 = vst.msk [vmem:[%s249] sm:$0xff] %vm622, %v7230
      %7247 = vst.msk [vmem:[%s249 + $0x8] sm:$0xff] %vm622, %v7231
      %7248 = vst.msk [vmem:[%s249 + $0x10] sm:$0xff] %vm622, %v7232
      %7249 = vst.msk [vmem:[%s249 + $0x18] sm:$0xff] %vm622, %v7233
      %7250 = vst.msk [vmem:[%s249 + $0x20] sm:$0xff] %vm622, %v7234
      %7251 = vst.msk [vmem:[%s249 + $0x28] sm:$0xff] %vm622, %v7235
      %7252 = vst.msk [vmem:[%s249 + $0x30] sm:$0xff] %vm622, %v7236
      %7253 = vst.msk [vmem:[%s249 + $0x38] sm:$0xff] %vm622, %v7237
      %7254 = vst.msk [vmem:[%s249 + $0x40] sm:$0xff] %vm622, %v7238
      %7255 = vst.msk [vmem:[%s249 + $0x48] sm:$0xff] %vm622, %v7239
      %7256 = vst.msk [vmem:[%s249 + $0x50] sm:$0xff] %vm622, %v7240
      %7257 = vst.msk [vmem:[%s249 + $0x58] sm:$0xff] %vm622, %v7241
      %7258 = vst.msk [vmem:[%s249 + $0x60] sm:$0xff] %vm622, %v7242
      %7259 = vst.msk [vmem:[%s249 + $0x68] sm:$0xff] %vm622, %v7243
      %7260 = vst.msk [vmem:[%s249 + $0x70] sm:$0xff] %vm622, %v7244
      %7261 = vst.msk [vmem:[%s249 + $0x78] sm:$0xff] %vm622, %v7245
      %s7262 = smul.u32 8, %s20
      %p7263 = scmp.lt.s32.totalorder %s19, 1
      %s7264 = scalar_select %p7263, %s19, 1
      %p7265 = scmp.lt.s32.totalorder %s7262, 15
      %s7266 = scalar_select %p7265, %s7262, 15
      %s7267 = smul.addr %s7266, 2
      %s7268 = smul.addr %s7264, 32
      %s7269 = sadd.s32 %s7267, %s7268
      %s7270 = smul.addr %s7269, 8
      %s7271 = scalar_lea.vmem %s4, %s7270
      // Predicated region
      $region37: #{_lambda_.3} parent=35 // pred_check
        %p7272 = pneg %p145
      $region38: #{_lambda_.3} parent=35 // pred_check_branch
        %7274 = sbr.rel (%p7272) target = $region40
      $region39: #{_lambda_.3} parent=35 // pred_region
        %s7275 = smul.u32 8, %s20
      $region40: #{_lambda_.3} parent=35 // pred_fallthru
        _
    $region36: #{_lambda_.3} parent=5 // pred_fallthru
      _
    %p7276 = scmp.le.s32.totalorder 2, %s10
    // Predicated region
    $region41: #{_lambda_.3} parent=5 // pred_check
      %p7277 = pneg %p7276
    $region42: #{_lambda_.3} parent=5 // pred_check_branch
      %7279 = sbr.rel (%p7277) target = $region44
    $region43: #{_lambda_.3} parent=5 // pred_region
      %s7280 = ssub.s32 %s10, 2
      // Predicated region
      $region45: #{_lambda_.3} parent=43 // pred_check
        %p7281 = pneg %p151
      $region46: #{_lambda_.3} parent=43 // pred_check_branch
        %7283 = sbr.rel (%p7281) target = $region48
      $region47: #{_lambda_.3} parent=43 // pred_region
        %s7284 = smul.u32 8, %s22
        %p7285 = scmp.lt.s32.totalorder %s21, 1
        %s7286 = scalar_select %p7285, %s21, 1
        %p7287 = scmp.lt.s32.totalorder %s7284, 15
        %s7288 = scalar_select %p7287, %s7284, 15
        %s7289 = smul.addr %s7288, 2
        %s7290 = smul.addr %s7286, 32
        %s7291 = sadd.s32 %s7289, %s7290
        %s7292 = smul.addr %s7291, 8
        %s7293 = scalar_lea.vmem %s4, %s7292
      $region48: #{_lambda_.3} parent=43 // pred_fallthru
        _
    $region44: #{_lambda_.3} parent=5 // pred_fallthru
      _
  $region6: #{_lambda_.3} parent=0 // loop_footer
    %s14 = sadd.s32 1, %s10
  $region7: #{_lambda_.3} parent=0 // loop_footer_branch
    %9 = sbr.rel target = $region3
  $region8: #{_lambda_.3} parent=0 // loop_exit
    _

</llo_original>
